<compile_context>
chip_gen: v7x
topology: tpu7x:2x2x1
jax: 0.10.0
libtpu: 0.0.40
codegen_flags: <defaults>
</compile_context>

<pallas_src>
import numpy as np
import jax
import jax.numpy as jnp
from jax.experimental import pallas as pl
from jax.experimental.pallas import tpu as pltpu


# ------------------------------ parameters ----------------------------------

def init_params(key):
    """Deterministic synthetic parameters (PyTorch-default-like uniform)."""
    ks = jax.random.split(key, 10)

    def u(k, shape, fan_in):
        bound = 1.0 / jnp.sqrt(jnp.float32(fan_in))
        return jax.random.uniform(k, shape, jnp.float32, -bound, bound)

    return {
        "w1": u(ks[0], (5, 5, 3, 32), 5 * 5 * 3),   "b1": u(ks[1], (32,), 5 * 5 * 3),
        "w2": u(ks[2], (5, 5, 32, 32), 5 * 5 * 32), "b2": u(ks[3], (32,), 5 * 5 * 32),
        "w3": u(ks[4], (5, 5, 32, 64), 5 * 5 * 32), "b3": u(ks[5], (64,), 5 * 5 * 32),
        "w4": u(ks[6], (64 * 4 * 4, 64), 64 * 4 * 4), "b4": u(ks[7], (64,), 64 * 4 * 4),
        "w5": u(ks[8], (64, 10), 64),               "b5": u(ks[9], (10,), 64),
    }


def prepare_kernel_params(params):
    """Rearrange the semantic parameters into the kernel-friendly layout."""
    bf16 = jnp.bfloat16

    # conv1 weight as a dense (K, 32) patch-matmul operand; row = dy*15+dx*3+c
    # (matches the wrapper-built patches), K zero-padded 75 -> 128.
    w1 = params["w1"].reshape(75, 32)
    w1 = jnp.pad(w1, ((0, 128 - 75), (0, 0))).astype(bf16)

    def conv_w(w):   # (5, 5, cin, cout) -> (5, 5*cin, cout), row = dx*cin + c
        _, _, cin, cout = w.shape
        return w.reshape(5, 5 * cin, cout).astype(bf16)

    # Fold Linear(64,10) into Linear(1024,64) (exact, no nonlinearity between).
    # W4 rows reordered to the kernel's (hw, c) flatten order (hw = h*4 + w).
    w4r = params["w4"].reshape(64, 16, 64).transpose(1, 0, 2).reshape(1024, 64)
    w45 = (w4r @ params["w5"]).astype(bf16)                         # (1024, 10)
    b45 = (params["b4"] @ params["w5"] + params["b5"]).reshape(1, -1)

    return {
        "W1": w1,                    "B1": params["b1"].reshape(1, -1),
        "W2": conv_w(params["w2"]),  "B2": params["b2"].reshape(1, -1),
        "W3": conv_w(params["w3"]),  "B3": params["b3"].reshape(1, -1),
        "W45": w45,                  "B45": b45,
    }


# ------------------------------ fused kernel --------------------------------

def _rxq_kernel(x_ref, w1_ref, b1_ref, w2_ref, b2_ref, w3_ref, b3_ref,
                w45_ref, b45_ref, o_ref,
                acc_ref, xf2_ref, xf3_ref, xw_ref, fc_ref):
    f32, bf16 = jnp.float32, jnp.bfloat16

    # Zero-padded flat activation maps for layers 2/3 (borders = conv padding).
    xf2_ref[...] = jnp.zeros_like(xf2_ref)
    xf3_ref[...] = jnp.zeros_like(xf3_ref)

    def pooled_row(cw, cout, wo, i):
        """2x2 max-pool of output row i from the conv output held in acc_ref.

        The conv output lives in a flattened row space with row-length `cw`;
        the four pool candidates of pooled pixel (i, j) sit at flat rows
        {2i*cw+2j, 2i*cw+2j+1, (2i+1)*cw+2j, (2i+1)*cw+2j+1}, so each
        candidate set is one stride-2 sublane read (no gather matmuls)."""
        b0, b1 = 2 * i * cw, (2 * i + 1) * cw
        return jnp.maximum(
            jnp.maximum(acc_ref[pl.ds(b0,     wo, stride=2), 0:cout],
                        acc_ref[pl.ds(b0 + 1, wo, stride=2), 0:cout]),
            jnp.maximum(acc_ref[pl.ds(b1,     wo, stride=2), 0:cout],
                        acc_ref[pl.ds(b1 + 1, wo, stride=2), 0:cout]))

    def conv_wide(xf_ref, w_ref, b_ref, h, w, cin, cout):
        """5x5 'SAME' conv on a flattened zero-padded (h+4)x(w+4) bf16 map.

        xw[q, dx*cin+c] = xf[q+dx, c] (kx-widened, plain bf16 copies), then
        5 MXU matmuls (one per ky row shift, K = 5*cin) accumulated in f32.
        Result (+bias) is stored in the 'wide' h x (w+4) row space; columns
        ox >= w are garbage but never read by the strided pooling."""
        wp = w + 4
        lw = (h + 4) * wp
        L = h * wp
        kw = 5 * cin
        for dx in range(5):
            xw_ref[0:lw, dx * cin:(dx + 1) * cin] = xf_ref[dx:dx + lw, 0:cin]
        acc = jnp.dot(xw_ref[0:L, 0:kw], w_ref[0], preferred_element_type=f32)
        for dy in range(1, 5):
            # TODO(synk): on v7x verify this lowers to MRB-accumulating vmatmul.
            acc = acc + jnp.dot(xw_ref[dy * wp:dy * wp + L, 0:kw], w_ref[dy],
                                preferred_element_type=f32)
        acc_ref[0:L, 0:cout] = acc + b_ref[...]

    # ---- layer 1: Conv2d(3,32,5,1,2) as one K=128 patch matmul -------------
    for m0 in range(0, 1024, 256):          # chunked to keep live vregs small
        blk = jnp.dot(x_ref[0, m0:m0 + 256, :], w1_ref[...],
                      preferred_element_type=f32)
        acc_ref[m0:m0 + 256, 0:32] = blk + b1_ref[...]
    # MaxPool2d(2): 32x32 -> 16x16, scattered into the padded 20x20 flat map.
    for i in range(16):
        xf2_ref[(i + 2) * 20 + 2:(i + 2) * 20 + 18, 0:32] = \
            pooled_row(32, 32, 16, i).astype(bf16)

    # ---- layer 2: Conv2d(32,32,5,1,2) + MaxPool2d(2) ------------------------
    conv_wide(xf2_ref, w2_ref, b2_ref, 16, 16, 32, 32)
    for i in range(8):
        xf3_ref[(i + 2) * 12 + 2:(i + 2) * 12 + 10, 0:32] = \
            pooled_row(20, 32, 8, i).astype(bf16)

    # ---- layer 3: Conv2d(32,64,5,1,2) + MaxPool2d(2) + Flatten --------------
    conv_wide(xf3_ref, w3_ref, b3_ref, 8, 8, 32, 64)
    for i in range(4):
        r = pooled_row(12, 64, 4, i)
        for j in range(4):            # NCHW flatten order is baked into W45
            off = (i * 4 + j) * 64
            fc_ref[0:1, off:off + 64] = r[j:j + 1, :].astype(bf16)

    # ---- FC tail: Linear(1024,64)+Linear(64,10) pre-folded into one matmul --
    out = jnp.dot(fc_ref[...], w45_ref[...], preferred_element_type=f32)
    o_ref[0] = out + b45_ref[...]


def _invariant_spec(arr):
    nd = arr.ndim
    return pl.BlockSpec(arr.shape, lambda b, _nd=nd: (0,) * _nd)


@jax.jit
def rxq_forward(kparams, x_nchw):
    B = x_nchw.shape[0]
    # Layer-1 im2col hoisted to XLA: (B, 1024, 75) patches, K padded to 128.
    x = jnp.transpose(x_nchw, (0, 2, 3, 1)).astype(jnp.float32)       # NHWC
    xp = jnp.pad(x, ((0, 0), (2, 2), (2, 2), (0, 0)))                 # (B,36,36,3)
    taps = [xp[:, dy:dy + 32, dx:dx + 32, :]
            for dy in range(5) for dx in range(5)]
    patches = jnp.concatenate(taps, axis=-1).reshape(B, 1024, 75)
    patches = jnp.pad(patches, ((0, 0), (0, 0), (0, 53))).astype(jnp.bfloat16)

    operands = (patches,
                kparams["W1"], kparams["B1"],
                kparams["W2"], kparams["B2"],
                kparams["W3"], kparams["B3"],
                kparams["W45"], kparams["B45"])

    in_specs = [pl.BlockSpec((1, 1024, 128), lambda b: (b, 0, 0))] + \
               [_invariant_spec(a) for a in operands[1:]]

    out = pl.pallas_call(
        _rxq_kernel,
        out_shape=jax.ShapeDtypeStruct((B, 1, 10), jnp.float32),
        grid=(B,),
        in_specs=in_specs,
        out_specs=pl.BlockSpec((1, 1, 10), lambda b: (b, 0, 0)),
        scratch_shapes=[
            pltpu.VMEM((1024, 64), jnp.float32),    # conv output (all layers)
            pltpu.VMEM((408, 32), jnp.bfloat16),    # padded 20x20 map (L2 in)
            pltpu.VMEM((152, 32), jnp.bfloat16),    # padded 12x12 map (L3 in)
            pltpu.VMEM((400, 160), jnp.bfloat16),   # kx-widened im2col (L2/L3)
            pltpu.VMEM((1, 1024), jnp.bfloat16),    # flattened FC input row
        ],
        compiler_params=pltpu.CompilerParams(
            dimension_semantics=("parallel",)),
    )(*operands)
    return out[:, 0, :]


# --------------------------- pure-JAX reference -----------------------------

def rxq_reference(params, x_nchw):
    x = jnp.transpose(x_nchw, (0, 2, 3, 1)).astype(jnp.float32)

    def conv(x, w, b):
        y = jax.lax.conv_general_dilated(
            x, w, (1, 1), "SAME", dimension_numbers=("NHWC", "HWIO", "NHWC"))
        return y + b

    def pool(x):
        return jax.lax.reduce_window(x, -jnp.inf, jax.lax.max,
                                     (1, 2, 2, 1), (1, 2, 2, 1), "VALID")

    x = pool(conv(x, params["w1"], params["b1"]))
    x = pool(conv(x, params["w2"], params["b2"]))
    x = pool(conv(x, params["w3"], params["b3"]))
    B = x.shape[0]
    x = jnp.transpose(x, (0, 3, 1, 2)).reshape(B, -1)   # PyTorch NCHW flatten
    x = x @ params["w4"] + params["b4"]
    x = x @ params["w5"] + params["b5"]
    return x


# ---------------------------------- main -------------------------------------

if __name__ == "__main__":
    key = jax.random.PRNGKey(0)
    kp_key, kx_key = jax.random.split(key)
    params = init_params(kp_key)
    kparams = prepare_kernel_params(params)

    # Linear(64*4*4) forces a 32x32 spatial input (32 -> 16 -> 8 -> 4).
    x = jax.random.normal(kx_key, (2, 3, 32, 32), jnp.float32)   # NCHW

    out = jax.block_until_ready(rxq_forward(kparams, x))
    assert out.shape == (2, 10) and out.dtype == jnp.float32

    ref = jax.block_until_ready(rxq_reference(params, x))
    np.testing.assert_allclose(np.asarray(out), np.asarray(ref),
                               rtol=5e-2, atol=5e-2)
    print("KERNEL_OK")
</pallas_src>

<mosaic_0001>
module attributes {stable_mosaic.version = 11 : i64} {
  func.func @_rxq_kernel(%arg0: i32, %arg1: memref<1x1024x128xbf16, #tpu.memory_space<vmem>>, %arg2: memref<128x32xbf16, #tpu.memory_space<vmem>>, %arg3: memref<1x32xf32, #tpu.memory_space<vmem>>, %arg4: memref<5x160x32xbf16, #tpu.memory_space<vmem>>, %arg5: memref<1x32xf32, #tpu.memory_space<vmem>>, %arg6: memref<5x160x64xbf16, #tpu.memory_space<vmem>>, %arg7: memref<1x64xf32, #tpu.memory_space<vmem>>, %arg8: memref<1024x10xbf16, #tpu.memory_space<vmem>>, %arg9: memref<1x10xf32, #tpu.memory_space<vmem>>, %arg10: memref<1x1x10xf32, #tpu.memory_space<vmem>>, %arg11: memref<1024x64xf32, #tpu.memory_space<vmem>>, %arg12: memref<408x32xbf16, #tpu.memory_space<vmem>>, %arg13: memref<152x32xbf16, #tpu.memory_space<vmem>>, %arg14: memref<400x160xbf16, #tpu.memory_space<vmem>>, %arg15: memref<1x1024xbf16, #tpu.memory_space<vmem>>) attributes {dimension_semantics = [#tpu.dimension_semantics<parallel>], iteration_bounds = array<i64: 2>, scalar_prefetch = 0 : i64, scratch_operands = 5 : i64, tpu.core_type = #tpu.core_type<tc>, window_params = [{transform_indices = @transform_0, window_bounds = array<i64: 1, 1024, 128>}, {pipeline_mode = #tpu.pipeline_mode<synchronous>, transform_indices = @transform_1, window_bounds = array<i64: 128, 32>}, {pipeline_mode = #tpu.pipeline_mode<synchronous>, transform_indices = @transform_2, window_bounds = array<i64: 1, 32>}, {pipeline_mode = #tpu.pipeline_mode<synchronous>, transform_indices = @transform_3, window_bounds = array<i64: 5, 160, 32>}, {pipeline_mode = #tpu.pipeline_mode<synchronous>, transform_indices = @transform_4, window_bounds = array<i64: 1, 32>}, {pipeline_mode = #tpu.pipeline_mode<synchronous>, transform_indices = @transform_5, window_bounds = array<i64: 5, 160, 64>}, {pipeline_mode = #tpu.pipeline_mode<synchronous>, transform_indices = @transform_6, window_bounds = array<i64: 1, 64>}, {pipeline_mode = #tpu.pipeline_mode<synchronous>, transform_indices = @transform_7, window_bounds = array<i64: 1024, 10>}, {pipeline_mode = #tpu.pipeline_mode<synchronous>, transform_indices = @transform_8, window_bounds = array<i64: 1, 10>}, {transform_indices = @transform_9, window_bounds = array<i64: 1, 1, 10>}]} {
    %cst = arith.constant 0.000000e+00 : bf16
    %0 = vector.broadcast %cst : bf16 to vector<408x32xbf16>
    %c0 = arith.constant 0 : index
    %c0_0 = arith.constant 0 : index
    %1 = vector.load %arg12[%c0, %c0_0] : memref<408x32xbf16, #tpu.memory_space<vmem>>, vector<408x32xbf16>
    tpu.vector_store %arg12[%c0, %c0_0], %0 {strides = array<i32>} : memref<408x32xbf16, #tpu.memory_space<vmem>>, vector<408x32xbf16>,
    %cst_1 = arith.constant 0.000000e+00 : bf16
    %2 = vector.broadcast %cst_1 : bf16 to vector<152x32xbf16>
    %c0_2 = arith.constant 0 : index
    %c0_3 = arith.constant 0 : index
    %3 = vector.load %arg13[%c0_2, %c0_3] : memref<152x32xbf16, #tpu.memory_space<vmem>>, vector<152x32xbf16>
    tpu.vector_store %arg13[%c0_2, %c0_3], %2 {strides = array<i32>} : memref<152x32xbf16, #tpu.memory_space<vmem>>, vector<152x32xbf16>,
    %c0_4 = arith.constant 0 : index
    %c0_5 = arith.constant 0 : index
    %c0_6 = arith.constant 0 : index
    %4 = vector.load %arg1[%c0_4, %c0_5, %c0_6] : memref<1x1024x128xbf16, #tpu.memory_space<vmem>>, vector<1x256x128xbf16>
    %5 = vector.shape_cast %4 : vector<1x256x128xbf16> to vector<256x128xbf16>
    %c0_7 = arith.constant 0 : index
    %c0_8 = arith.constant 0 : index
    %6 = vector.load %arg2[%c0_7, %c0_8] : memref<128x32xbf16, #tpu.memory_space<vmem>>, vector<128x32xbf16>
    %cst_9 = arith.constant dense<0.000000e+00> : vector<256x32xf32>
    %7 = tpu.matmul %5, %6, %cst_9 {dimension_numbers = #tpu.dot_dimension_numbers<[1], [0], [0], [1], [0, 0, 1, 1], [], []>} : vector<256x128xbf16>, vector<128x32xbf16>, vector<256x32xf32> -> vector<256x32xf32>
    %c0_10 = arith.constant 0 : index
    %c0_11 = arith.constant 0 : index
    %8 = vector.load %arg3[%c0_10, %c0_11] : memref<1x32xf32, #tpu.memory_space<vmem>>, vector<1x32xf32>
    %9 = vector.broadcast %8 : vector<1x32xf32> to vector<256x32xf32>
    %10 = arith.addf %7, %9 : vector<256x32xf32>
    %c0_12 = arith.constant 0 : index
    %c0_13 = arith.constant 0 : index
    %11 = vector.load %arg11[%c0_12, %c0_13] : memref<1024x64xf32, #tpu.memory_space<vmem>>, vector<256x32xf32>
    tpu.vector_store %arg11[%c0_12, %c0_13], %10 {strides = array<i32>} : memref<1024x64xf32, #tpu.memory_space<vmem>>, vector<256x32xf32>,
    %c0_14 = arith.constant 0 : index
    %c256 = arith.constant 256 : index
    %c0_15 = arith.constant 0 : index
    %12 = vector.load %arg1[%c0_14, %c256, %c0_15] : memref<1x1024x128xbf16, #tpu.memory_space<vmem>>, vector<1x256x128xbf16>
    %13 = vector.shape_cast %12 : vector<1x256x128xbf16> to vector<256x128xbf16>
    %c0_16 = arith.constant 0 : index
    %c0_17 = arith.constant 0 : index
    %14 = vector.load %arg2[%c0_16, %c0_17] : memref<128x32xbf16, #tpu.memory_space<vmem>>, vector<128x32xbf16>
    %cst_18 = arith.constant dense<0.000000e+00> : vector<256x32xf32>
    %15 = tpu.matmul %13, %14, %cst_18 {dimension_numbers = #tpu.dot_dimension_numbers<[1], [0], [0], [1], [0, 0, 1, 1], [], []>} : vector<256x128xbf16>, vector<128x32xbf16>, vector<256x32xf32> -> vector<256x32xf32>
    %c0_19 = arith.constant 0 : index
    %c0_20 = arith.constant 0 : index
    %16 = vector.load %arg3[%c0_19, %c0_20] : memref<1x32xf32, #tpu.memory_space<vmem>>, vector<1x32xf32>
    %17 = vector.broadcast %16 : vector<1x32xf32> to vector<256x32xf32>
    %18 = arith.addf %15, %17 : vector<256x32xf32>
    %c256_21 = arith.constant 256 : index
    %c0_22 = arith.constant 0 : index
    %19 = vector.load %arg11[%c256_21, %c0_22] : memref<1024x64xf32, #tpu.memory_space<vmem>>, vector<256x32xf32>
    tpu.vector_store %arg11[%c256_21, %c0_22], %18 {strides = array<i32>} : memref<1024x64xf32, #tpu.memory_space<vmem>>, vector<256x32xf32>,
    %c0_23 = arith.constant 0 : index
    %c512 = arith.constant 512 : index
    %c0_24 = arith.constant 0 : index
    %20 = vector.load %arg1[%c0_23, %c512, %c0_24] : memref<1x1024x128xbf16, #tpu.memory_space<vmem>>, vector<1x256x128xbf16>
    %21 = vector.shape_cast %20 : vector<1x256x128xbf16> to vector<256x128xbf16>
    %c0_25 = arith.constant 0 : index
    %c0_26 = arith.constant 0 : index
    %22 = vector.load %arg2[%c0_25, %c0_26] : memref<128x32xbf16, #tpu.memory_space<vmem>>, vector<128x32xbf16>
    %cst_27 = arith.constant dense<0.000000e+00> : vector<256x32xf32>
    %23 = tpu.matmul %21, %22, %cst_27 {dimension_numbers = #tpu.dot_dimension_numbers<[1], [0], [0], [1], [0, 0, 1, 1], [], []>} : vector<256x128xbf16>, vector<128x32xbf16>, vector<256x32xf32> -> vector<256x32xf32>
    %c0_28 = arith.constant 0 : index
    %c0_29 = arith.constant 0 : index
    %24 = vector.load %arg3[%c0_28, %c0_29] : memref<1x32xf32, #tpu.memory_space<vmem>>, vector<1x32xf32>
    %25 = vector.broadcast %24 : vector<1x32xf32> to vector<256x32xf32>
    %26 = arith.addf %23, %25 : vector<256x32xf32>
    %c512_30 = arith.constant 512 : index
    %c0_31 = arith.constant 0 : index
    %27 = vector.load %arg11[%c512_30, %c0_31] : memref<1024x64xf32, #tpu.memory_space<vmem>>, vector<256x32xf32>
    tpu.vector_store %arg11[%c512_30, %c0_31], %26 {strides = array<i32>} : memref<1024x64xf32, #tpu.memory_space<vmem>>, vector<256x32xf32>,
    %c0_32 = arith.constant 0 : index
    %c768 = arith.constant 768 : index
    %c0_33 = arith.constant 0 : index
    %28 = vector.load %arg1[%c0_32, %c768, %c0_33] : memref<1x1024x128xbf16, #tpu.memory_space<vmem>>, vector<1x256x128xbf16>
    %29 = vector.shape_cast %28 : vector<1x256x128xbf16> to vector<256x128xbf16>
    %c0_34 = arith.constant 0 : index
    %c0_35 = arith.constant 0 : index
    %30 = vector.load %arg2[%c0_34, %c0_35] : memref<128x32xbf16, #tpu.memory_space<vmem>>, vector<128x32xbf16>
    %cst_36 = arith.constant dense<0.000000e+00> : vector<256x32xf32>
    %31 = tpu.matmul %29, %30, %cst_36 {dimension_numbers = #tpu.dot_dimension_numbers<[1], [0], [0], [1], [0, 0, 1, 1], [], []>} : vector<256x128xbf16>, vector<128x32xbf16>, vector<256x32xf32> -> vector<256x32xf32>
    %c0_37 = arith.constant 0 : index
    %c0_38 = arith.constant 0 : index
    %32 = vector.load %arg3[%c0_37, %c0_38] : memref<1x32xf32, #tpu.memory_space<vmem>>, vector<1x32xf32>
    %33 = vector.broadcast %32 : vector<1x32xf32> to vector<256x32xf32>
    %34 = arith.addf %31, %33 : vector<256x32xf32>
    %c768_39 = arith.constant 768 : index
    %c0_40 = arith.constant 0 : index
    %35 = vector.load %arg11[%c768_39, %c0_40] : memref<1024x64xf32, #tpu.memory_space<vmem>>, vector<256x32xf32>
    tpu.vector_store %arg11[%c768_39, %c0_40], %34 {strides = array<i32>} : memref<1024x64xf32, #tpu.memory_space<vmem>>, vector<256x32xf32>,
    %c0_41 = arith.constant 0 : index
    %c0_42 = arith.constant 0 : index
    %36 = tpu.strided_load %arg11[%c0_41, %c0_42] {strides = array<i32: 2, 1>} : memref<1024x64xf32, #tpu.memory_space<vmem>>, vector<16x32xf32>
    %c1 = arith.constant 1 : index
    %c0_43 = arith.constant 0 : index
    %37 = tpu.strided_load %arg11[%c1, %c0_43] {strides = array<i32: 2, 1>} : memref<1024x64xf32, #tpu.memory_space<vmem>>, vector<16x32xf32>
    %38 = arith.maximumf %36, %37 : vector<16x32xf32>
    %c32 = arith.constant 32 : index
    %c0_44 = arith.constant 0 : index
    %39 = tpu.strided_load %arg11[%c32, %c0_44] {strides = array<i32: 2, 1>} : memref<1024x64xf32, #tpu.memory_space<vmem>>, vector<16x32xf32>
    %c33 = arith.constant 33 : index
    %c0_45 = arith.constant 0 : index
    %40 = tpu.strided_load %arg11[%c33, %c0_45] {strides = array<i32: 2, 1>} : memref<1024x64xf32, #tpu.memory_space<vmem>>, vector<16x32xf32>
    %41 = arith.maximumf %39, %40 : vector<16x32xf32>
    %42 = arith.maximumf %38, %41 : vector<16x32xf32>
    %43 = arith.truncf %42 : vector<16x32xf32> to vector<16x32xbf16>
    %c42 = arith.constant 42 : index
    %c0_46 = arith.constant 0 : index
    %44 = vector.load %arg12[%c42, %c0_46] : memref<408x32xbf16, #tpu.memory_space<vmem>>, vector<16x32xbf16>
    tpu.vector_store %arg12[%c42, %c0_46], %43 {strides = array<i32>} : memref<408x32xbf16, #tpu.memory_space<vmem>>, vector<16x32xbf16>,
    %c64 = arith.constant 64 : index
    %c0_47 = arith.constant 0 : index
    %45 = tpu.strided_load %arg11[%c64, %c0_47] {strides = array<i32: 2, 1>} : memref<1024x64xf32, #tpu.memory_space<vmem>>, vector<16x32xf32>
    %c65 = arith.constant 65 : index
    %c0_48 = arith.constant 0 : index
    %46 = tpu.strided_load %arg11[%c65, %c0_48] {strides = array<i32: 2, 1>} : memref<1024x64xf32, #tpu.memory_space<vmem>>, vector<16x32xf32>
    %47 = arith.maximumf %45, %46 : vector<16x32xf32>
    %c96 = arith.constant 96 : index
    %c0_49 = arith.constant 0 : index
    %48 = tpu.strided_load %arg11[%c96, %c0_49] {strides = array<i32: 2, 1>} : memref<1024x64xf32, #tpu.memory_space<vmem>>, vector<16x32xf32>
    %c97 = arith.constant 97 : index
    %c0_50 = arith.constant 0 : index
    %49 = tpu.strided_load %arg11[%c97, %c0_50] {strides = array<i32: 2, 1>} : memref<1024x64xf32, #tpu.memory_space<vmem>>, vector<16x32xf32>
    %50 = arith.maximumf %48, %49 : vector<16x32xf32>
    %51 = arith.maximumf %47, %50 : vector<16x32xf32>
    %52 = arith.truncf %51 : vector<16x32xf32> to vector<16x32xbf16>
    %c62 = arith.constant 62 : index
    %c0_51 = arith.constant 0 : index
    %53 = vector.load %arg12[%c62, %c0_51] : memref<408x32xbf16, #tpu.memory_space<vmem>>, vector<16x32xbf16>
    tpu.vector_store %arg12[%c62, %c0_51], %52 {strides = array<i32>} : memref<408x32xbf16, #tpu.memory_space<vmem>>, vector<16x32xbf16>,
    %c128 = arith.constant 128 : index
    %c0_52 = arith.constant 0 : index
    %54 = tpu.strided_load %arg11[%c128, %c0_52] {strides = array<i32: 2, 1>} : memref<1024x64xf32, #tpu.memory_space<vmem>>, vector<16x32xf32>
    %c129 = arith.constant 129 : index
    %c0_53 = arith.constant 0 : index
    %55 = tpu.strided_load %arg11[%c129, %c0_53] {strides = array<i32: 2, 1>} : memref<1024x64xf32, #tpu.memory_space<vmem>>, vector<16x32xf32>
    %56 = arith.maximumf %54, %55 : vector<16x32xf32>
    %c160 = arith.constant 160 : index
    %c0_54 = arith.constant 0 : index
    %57 = tpu.strided_load %arg11[%c160, %c0_54] {strides = array<i32: 2, 1>} : memref<1024x64xf32, #tpu.memory_space<vmem>>, vector<16x32xf32>
    %c161 = arith.constant 161 : index
    %c0_55 = arith.constant 0 : index
    %58 = tpu.strided_load %arg11[%c161, %c0_55] {strides = array<i32: 2, 1>} : memref<1024x64xf32, #tpu.memory_space<vmem>>, vector<16x32xf32>
    %59 = arith.maximumf %57, %58 : vector<16x32xf32>
    %60 = arith.maximumf %56, %59 : vector<16x32xf32>
    %61 = arith.truncf %60 : vector<16x32xf32> to vector<16x32xbf16>
    %c82 = arith.constant 82 : index
    %c0_56 = arith.constant 0 : index
    %62 = vector.load %arg12[%c82, %c0_56] : memref<408x32xbf16, #tpu.memory_space<vmem>>, vector<16x32xbf16>
    tpu.vector_store %arg12[%c82, %c0_56], %61 {strides = array<i32>} : memref<408x32xbf16, #tpu.memory_space<vmem>>, vector<16x32xbf16>,
    %c192 = arith.constant 192 : index
    %c0_57 = arith.constant 0 : index
    %63 = tpu.strided_load %arg11[%c192, %c0_57] {strides = array<i32: 2, 1>} : memref<1024x64xf32, #tpu.memory_space<vmem>>, vector<16x32xf32>
    %c193 = arith.constant 193 : index
    %c0_58 = arith.constant 0 : index
    %64 = tpu.strided_load %arg11[%c193, %c0_58] {strides = array<i32: 2, 1>} : memref<1024x64xf32, #tpu.memory_space<vmem>>, vector<16x32xf32>
    %65 = arith.maximumf %63, %64 : vector<16x32xf32>
    %c224 = arith.constant 224 : index
    %c0_59 = arith.constant 0 : index
    %66 = tpu.strided_load %arg11[%c224, %c0_59] {strides = array<i32: 2, 1>} : memref<1024x64xf32, #tpu.memory_space<vmem>>, vector<16x32xf32>
    %c225 = arith.constant 225 : index
    %c0_60 = arith.constant 0 : index
    %67 = tpu.strided_load %arg11[%c225, %c0_60] {strides = array<i32: 2, 1>} : memref<1024x64xf32, #tpu.memory_space<vmem>>, vector<16x32xf32>
    %68 = arith.maximumf %66, %67 : vector<16x32xf32>
    %69 = arith.maximumf %65, %68 : vector<16x32xf32>
    %70 = arith.truncf %69 : vector<16x32xf32> to vector<16x32xbf16>
    %c102 = arith.constant 102 : index
    %c0_61 = arith.constant 0 : index
    %71 = vector.load %arg12[%c102, %c0_61] : memref<408x32xbf16, #tpu.memory_space<vmem>>, vector<16x32xbf16>
    tpu.vector_store %arg12[%c102, %c0_61], %70 {strides = array<i32>} : memref<408x32xbf16, #tpu.memory_space<vmem>>, vector<16x32xbf16>,
    %c256_62 = arith.constant 256 : index
    %c0_63 = arith.constant 0 : index
    %72 = tpu.strided_load %arg11[%c256_62, %c0_63] {strides = array<i32: 2, 1>} : memref<1024x64xf32, #tpu.memory_space<vmem>>, vector<16x32xf32>
    %c257 = arith.constant 257 : index
    %c0_64 = arith.constant 0 : index
    %73 = tpu.strided_load %arg11[%c257, %c0_64] {strides = array<i32: 2, 1>} : memref<1024x64xf32, #tpu.memory_space<vmem>>, vector<16x32xf32>
    %74 = arith.maximumf %72, %73 : vector<16x32xf32>
    %c288 = arith.constant 288 : index
    %c0_65 = arith.constant 0 : index
    %75 = tpu.strided_load %arg11[%c288, %c0_65] {strides = array<i32: 2, 1>} : memref<1024x64xf32, #tpu.memory_space<vmem>>, vector<16x32xf32>
    %c289 = arith.constant 289 : index
    %c0_66 = arith.constant 0 : index
    %76 = tpu.strided_load %arg11[%c289, %c0_66] {strides = array<i32: 2, 1>} : memref<1024x64xf32, #tpu.memory_space<vmem>>, vector<16x32xf32>
    %77 = arith.maximumf %75, %76 : vector<16x32xf32>
    %78 = arith.maximumf %74, %77 : vector<16x32xf32>
    %79 = arith.truncf %78 : vector<16x32xf32> to vector<16x32xbf16>
    %c122 = arith.constant 122 : index
    %c0_67 = arith.constant 0 : index
    %80 = vector.load %arg12[%c122, %c0_67] : memref<408x32xbf16, #tpu.memory_space<vmem>>, vector<16x32xbf16>
    tpu.vector_store %arg12[%c122, %c0_67], %79 {strides = array<i32>} : memref<408x32xbf16, #tpu.memory_space<vmem>>, vector<16x32xbf16>,
    %c320 = arith.constant 320 : index
    %c0_68 = arith.constant 0 : index
    %81 = tpu.strided_load %arg11[%c320, %c0_68] {strides = array<i32: 2, 1>} : memref<1024x64xf32, #tpu.memory_space<vmem>>, vector<16x32xf32>
    %c321 = arith.constant 321 : index
    %c0_69 = arith.constant 0 : index
    %82 = tpu.strided_load %arg11[%c321, %c0_69] {strides = array<i32: 2, 1>} : memref<1024x64xf32, #tpu.memory_space<vmem>>, vector<16x32xf32>
    %83 = arith.maximumf %81, %82 : vector<16x32xf32>
    %c352 = arith.constant 352 : index
    %c0_70 = arith.constant 0 : index
    %84 = tpu.strided_load %arg11[%c352, %c0_70] {strides = array<i32: 2, 1>} : memref<1024x64xf32, #tpu.memory_space<vmem>>, vector<16x32xf32>
    %c353 = arith.constant 353 : index
    %c0_71 = arith.constant 0 : index
    %85 = tpu.strided_load %arg11[%c353, %c0_71] {strides = array<i32: 2, 1>} : memref<1024x64xf32, #tpu.memory_space<vmem>>, vector<16x32xf32>
    %86 = arith.maximumf %84, %85 : vector<16x32xf32>
    %87 = arith.maximumf %83, %86 : vector<16x32xf32>
    %88 = arith.truncf %87 : vector<16x32xf32> to vector<16x32xbf16>
    %c142 = arith.constant 142 : index
    %c0_72 = arith.constant 0 : index
    %89 = vector.load %arg12[%c142, %c0_72] : memref<408x32xbf16, #tpu.memory_space<vmem>>, vector<16x32xbf16>
    tpu.vector_store %arg12[%c142, %c0_72], %88 {strides = array<i32>} : memref<408x32xbf16, #tpu.memory_space<vmem>>, vector<16x32xbf16>,
    %c384 = arith.constant 384 : index
    %c0_73 = arith.constant 0 : index
    %90 = tpu.strided_load %arg11[%c384, %c0_73] {strides = array<i32: 2, 1>} : memref<1024x64xf32, #tpu.memory_space<vmem>>, vector<16x32xf32>
    %c385 = arith.constant 385 : index
    %c0_74 = arith.constant 0 : index
    %91 = tpu.strided_load %arg11[%c385, %c0_74] {strides = array<i32: 2, 1>} : memref<1024x64xf32, #tpu.memory_space<vmem>>, vector<16x32xf32>
    %92 = arith.maximumf %90, %91 : vector<16x32xf32>
    %c416 = arith.constant 416 : index
    %c0_75 = arith.constant 0 : index
    %93 = tpu.strided_load %arg11[%c416, %c0_75] {strides = array<i32: 2, 1>} : memref<1024x64xf32, #tpu.memory_space<vmem>>, vector<16x32xf32>
    %c417 = arith.constant 417 : index
    %c0_76 = arith.constant 0 : index
    %94 = tpu.strided_load %arg11[%c417, %c0_76] {strides = array<i32: 2, 1>} : memref<1024x64xf32, #tpu.memory_space<vmem>>, vector<16x32xf32>
    %95 = arith.maximumf %93, %94 : vector<16x32xf32>
    %96 = arith.maximumf %92, %95 : vector<16x32xf32>
    %97 = arith.truncf %96 : vector<16x32xf32> to vector<16x32xbf16>
    %c162 = arith.constant 162 : index
    %c0_77 = arith.constant 0 : index
    %98 = vector.load %arg12[%c162, %c0_77] : memref<408x32xbf16, #tpu.memory_space<vmem>>, vector<16x32xbf16>
    tpu.vector_store %arg12[%c162, %c0_77], %97 {strides = array<i32>} : memref<408x32xbf16, #tpu.memory_space<vmem>>, vector<16x32xbf16>,
    %c448 = arith.constant 448 : index
    %c0_78 = arith.constant 0 : index
    %99 = tpu.strided_load %arg11[%c448, %c0_78] {strides = array<i32: 2, 1>} : memref<1024x64xf32, #tpu.memory_space<vmem>>, vector<16x32xf32>
    %c449 = arith.constant 449 : index
    %c0_79 = arith.constant 0 : index
    %100 = tpu.strided_load %arg11[%c449, %c0_79] {strides = array<i32: 2, 1>} : memref<1024x64xf32, #tpu.memory_space<vmem>>, vector<16x32xf32>
    %101 = arith.maximumf %99, %100 : vector<16x32xf32>
    %c480 = arith.constant 480 : index
    %c0_80 = arith.constant 0 : index
    %102 = tpu.strided_load %arg11[%c480, %c0_80] {strides = array<i32: 2, 1>} : memref<1024x64xf32, #tpu.memory_space<vmem>>, vector<16x32xf32>
    %c481 = arith.constant 481 : index
    %c0_81 = arith.constant 0 : index
    %103 = tpu.strided_load %arg11[%c481, %c0_81] {strides = array<i32: 2, 1>} : memref<1024x64xf32, #tpu.memory_space<vmem>>, vector<16x32xf32>
    %104 = arith.maximumf %102, %103 : vector<16x32xf32>
    %105 = arith.maximumf %101, %104 : vector<16x32xf32>
    %106 = arith.truncf %105 : vector<16x32xf32> to vector<16x32xbf16>
    %c182 = arith.constant 182 : index
    %c0_82 = arith.constant 0 : index
    %107 = vector.load %arg12[%c182, %c0_82] : memref<408x32xbf16, #tpu.memory_space<vmem>>, vector<16x32xbf16>
    tpu.vector_store %arg12[%c182, %c0_82], %106 {strides = array<i32>} : memref<408x32xbf16, #tpu.memory_space<vmem>>, vector<16x32xbf16>,
    %c512_83 = arith.constant 512 : index
    %c0_84 = arith.constant 0 : index
    %108 = tpu.strided_load %arg11[%c512_83, %c0_84] {strides = array<i32: 2, 1>} : memref<1024x64xf32, #tpu.memory_space<vmem>>, vector<16x32xf32>
    %c513 = arith.constant 513 : index
    %c0_85 = arith.constant 0 : index
    %109 = tpu.strided_load %arg11[%c513, %c0_85] {strides = array<i32: 2, 1>} : memref<1024x64xf32, #tpu.memory_space<vmem>>, vector<16x32xf32>
    %110 = arith.maximumf %108, %109 : vector<16x32xf32>
    %c544 = arith.constant 544 : index
    %c0_86 = arith.constant 0 : index
    %111 = tpu.strided_load %arg11[%c544, %c0_86] {strides = array<i32: 2, 1>} : memref<1024x64xf32, #tpu.memory_space<vmem>>, vector<16x32xf32>
    %c545 = arith.constant 545 : index
    %c0_87 = arith.constant 0 : index
    %112 = tpu.strided_load %arg11[%c545, %c0_87] {strides = array<i32: 2, 1>} : memref<1024x64xf32, #tpu.memory_space<vmem>>, vector<16x32xf32>
    %113 = arith.maximumf %111, %112 : vector<16x32xf32>
    %114 = arith.maximumf %110, %113 : vector<16x32xf32>
    %115 = arith.truncf %114 : vector<16x32xf32> to vector<16x32xbf16>
    %c202 = arith.constant 202 : index
    %c0_88 = arith.constant 0 : index
    %116 = vector.load %arg12[%c202, %c0_88] : memref<408x32xbf16, #tpu.memory_space<vmem>>, vector<16x32xbf16>
    tpu.vector_store %arg12[%c202, %c0_88], %115 {strides = array<i32>} : memref<408x32xbf16, #tpu.memory_space<vmem>>, vector<16x32xbf16>,
    %c576 = arith.constant 576 : index
    %c0_89 = arith.constant 0 : index
    %117 = tpu.strided_load %arg11[%c576, %c0_89] {strides = array<i32: 2, 1>} : memref<1024x64xf32, #tpu.memory_space<vmem>>, vector<16x32xf32>
    %c577 = arith.constant 577 : index
    %c0_90 = arith.constant 0 : index
    %118 = tpu.strided_load %arg11[%c577, %c0_90] {strides = array<i32: 2, 1>} : memref<1024x64xf32, #tpu.memory_space<vmem>>, vector<16x32xf32>
    %119 = arith.maximumf %117, %118 : vector<16x32xf32>
    %c608 = arith.constant 608 : index
    %c0_91 = arith.constant 0 : index
    %120 = tpu.strided_load %arg11[%c608, %c0_91] {strides = array<i32: 2, 1>} : memref<1024x64xf32, #tpu.memory_space<vmem>>, vector<16x32xf32>
    %c609 = arith.constant 609 : index
    %c0_92 = arith.constant 0 : index
    %121 = tpu.strided_load %arg11[%c609, %c0_92] {strides = array<i32: 2, 1>} : memref<1024x64xf32, #tpu.memory_space<vmem>>, vector<16x32xf32>
    %122 = arith.maximumf %120, %121 : vector<16x32xf32>
    %123 = arith.maximumf %119, %122 : vector<16x32xf32>
    %124 = arith.truncf %123 : vector<16x32xf32> to vector<16x32xbf16>
    %c222 = arith.constant 222 : index
    %c0_93 = arith.constant 0 : index
    %125 = vector.load %arg12[%c222, %c0_93] : memref<408x32xbf16, #tpu.memory_space<vmem>>, vector<16x32xbf16>
    tpu.vector_store %arg12[%c222, %c0_93], %124 {strides = array<i32>} : memref<408x32xbf16, #tpu.memory_space<vmem>>, vector<16x32xbf16>,
    %c640 = arith.constant 640 : index
    %c0_94 = arith.constant 0 : index
    %126 = tpu.strided_load %arg11[%c640, %c0_94] {strides = array<i32: 2, 1>} : memref<1024x64xf32, #tpu.memory_space<vmem>>, vector<16x32xf32>
    %c641 = arith.constant 641 : index
    %c0_95 = arith.constant 0 : index
    %127 = tpu.strided_load %arg11[%c641, %c0_95] {strides = array<i32: 2, 1>} : memref<1024x64xf32, #tpu.memory_space<vmem>>, vector<16x32xf32>
    %128 = arith.maximumf %126, %127 : vector<16x32xf32>
    %c672 = arith.constant 672 : index
    %c0_96 = arith.constant 0 : index
    %129 = tpu.strided_load %arg11[%c672, %c0_96] {strides = array<i32: 2, 1>} : memref<1024x64xf32, #tpu.memory_space<vmem>>, vector<16x32xf32>
    %c673 = arith.constant 673 : index
    %c0_97 = arith.constant 0 : index
    %130 = tpu.strided_load %arg11[%c673, %c0_97] {strides = array<i32: 2, 1>} : memref<1024x64xf32, #tpu.memory_space<vmem>>, vector<16x32xf32>
    %131 = arith.maximumf %129, %130 : vector<16x32xf32>
    %132 = arith.maximumf %128, %131 : vector<16x32xf32>
    %133 = arith.truncf %132 : vector<16x32xf32> to vector<16x32xbf16>
    %c242 = arith.constant 242 : index
    %c0_98 = arith.constant 0 : index
    %134 = vector.load %arg12[%c242, %c0_98] : memref<408x32xbf16, #tpu.memory_space<vmem>>, vector<16x32xbf16>
    tpu.vector_store %arg12[%c242, %c0_98], %133 {strides = array<i32>} : memref<408x32xbf16, #tpu.memory_space<vmem>>, vector<16x32xbf16>,
    %c704 = arith.constant 704 : index
    %c0_99 = arith.constant 0 : index
    %135 = tpu.strided_load %arg11[%c704, %c0_99] {strides = array<i32: 2, 1>} : memref<1024x64xf32, #tpu.memory_space<vmem>>, vector<16x32xf32>
    %c705 = arith.constant 705 : index
    %c0_100 = arith.constant 0 : index
    %136 = tpu.strided_load %arg11[%c705, %c0_100] {strides = array<i32: 2, 1>} : memref<1024x64xf32, #tpu.memory_space<vmem>>, vector<16x32xf32>
    %137 = arith.maximumf %135, %136 : vector<16x32xf32>
    %c736 = arith.constant 736 : index
    %c0_101 = arith.constant 0 : index
    %138 = tpu.strided_load %arg11[%c736, %c0_101] {strides = array<i32: 2, 1>} : memref<1024x64xf32, #tpu.memory_space<vmem>>, vector<16x32xf32>
    %c737 = arith.constant 737 : index
    %c0_102 = arith.constant 0 : index
    %139 = tpu.strided_load %arg11[%c737, %c0_102] {strides = array<i32: 2, 1>} : memref<1024x64xf32, #tpu.memory_space<vmem>>, vector<16x32xf32>
    %140 = arith.maximumf %138, %139 : vector<16x32xf32>
    %141 = arith.maximumf %137, %140 : vector<16x32xf32>
    %142 = arith.truncf %141 : vector<16x32xf32> to vector<16x32xbf16>
    %c262 = arith.constant 262 : index
    %c0_103 = arith.constant 0 : index
    %143 = vector.load %arg12[%c262, %c0_103] : memref<408x32xbf16, #tpu.memory_space<vmem>>, vector<16x32xbf16>
    tpu.vector_store %arg12[%c262, %c0_103], %142 {strides = array<i32>} : memref<408x32xbf16, #tpu.memory_space<vmem>>, vector<16x32xbf16>,
    %c768_104 = arith.constant 768 : index
    %c0_105 = arith.constant 0 : index
    %144 = tpu.strided_load %arg11[%c768_104, %c0_105] {strides = array<i32: 2, 1>} : memref<1024x64xf32, #tpu.memory_space<vmem>>, vector<16x32xf32>
    %c769 = arith.constant 769 : index
    %c0_106 = arith.constant 0 : index
    %145 = tpu.strided_load %arg11[%c769, %c0_106] {strides = array<i32: 2, 1>} : memref<1024x64xf32, #tpu.memory_space<vmem>>, vector<16x32xf32>
    %146 = arith.maximumf %144, %145 : vector<16x32xf32>
    %c800 = arith.constant 800 : index
    %c0_107 = arith.constant 0 : index
    %147 = tpu.strided_load %arg11[%c800, %c0_107] {strides = array<i32: 2, 1>} : memref<1024x64xf32, #tpu.memory_space<vmem>>, vector<16x32xf32>
    %c801 = arith.constant 801 : index
    %c0_108 = arith.constant 0 : index
    %148 = tpu.strided_load %arg11[%c801, %c0_108] {strides = array<i32: 2, 1>} : memref<1024x64xf32, #tpu.memory_space<vmem>>, vector<16x32xf32>
    %149 = arith.maximumf %147, %148 : vector<16x32xf32>
    %150 = arith.maximumf %146, %149 : vector<16x32xf32>
    %151 = arith.truncf %150 : vector<16x32xf32> to vector<16x32xbf16>
    %c282 = arith.constant 282 : index
    %c0_109 = arith.constant 0 : index
    %152 = vector.load %arg12[%c282, %c0_109] : memref<408x32xbf16, #tpu.memory_space<vmem>>, vector<16x32xbf16>
    tpu.vector_store %arg12[%c282, %c0_109], %151 {strides = array<i32>} : memref<408x32xbf16, #tpu.memory_space<vmem>>, vector<16x32xbf16>,
    %c832 = arith.constant 832 : index
    %c0_110 = arith.constant 0 : index
    %153 = tpu.strided_load %arg11[%c832, %c0_110] {strides = array<i32: 2, 1>} : memref<1024x64xf32, #tpu.memory_space<vmem>>, vector<16x32xf32>
    %c833 = arith.constant 833 : index
    %c0_111 = arith.constant 0 : index
    %154 = tpu.strided_load %arg11[%c833, %c0_111] {strides = array<i32: 2, 1>} : memref<1024x64xf32, #tpu.memory_space<vmem>>, vector<16x32xf32>
    %155 = arith.maximumf %153, %154 : vector<16x32xf32>
    %c864 = arith.constant 864 : index
    %c0_112 = arith.constant 0 : index
    %156 = tpu.strided_load %arg11[%c864, %c0_112] {strides = array<i32: 2, 1>} : memref<1024x64xf32, #tpu.memory_space<vmem>>, vector<16x32xf32>
    %c865 = arith.constant 865 : index
    %c0_113 = arith.constant 0 : index
    %157 = tpu.strided_load %arg11[%c865, %c0_113] {strides = array<i32: 2, 1>} : memref<1024x64xf32, #tpu.memory_space<vmem>>, vector<16x32xf32>
    %158 = arith.maximumf %156, %157 : vector<16x32xf32>
    %159 = arith.maximumf %155, %158 : vector<16x32xf32>
    %160 = arith.truncf %159 : vector<16x32xf32> to vector<16x32xbf16>
    %c302 = arith.constant 302 : index
    %c0_114 = arith.constant 0 : index
    %161 = vector.load %arg12[%c302, %c0_114] : memref<408x32xbf16, #tpu.memory_space<vmem>>, vector<16x32xbf16>
    tpu.vector_store %arg12[%c302, %c0_114], %160 {strides = array<i32>} : memref<408x32xbf16, #tpu.memory_space<vmem>>, vector<16x32xbf16>,
    %c896 = arith.constant 896 : index
    %c0_115 = arith.constant 0 : index
    %162 = tpu.strided_load %arg11[%c896, %c0_115] {strides = array<i32: 2, 1>} : memref<1024x64xf32, #tpu.memory_space<vmem>>, vector<16x32xf32>
    %c897 = arith.constant 897 : index
    %c0_116 = arith.constant 0 : index
    %163 = tpu.strided_load %arg11[%c897, %c0_116] {strides = array<i32: 2, 1>} : memref<1024x64xf32, #tpu.memory_space<vmem>>, vector<16x32xf32>
    %164 = arith.maximumf %162, %163 : vector<16x32xf32>
    %c928 = arith.constant 928 : index
    %c0_117 = arith.constant 0 : index
    %165 = tpu.strided_load %arg11[%c928, %c0_117] {strides = array<i32: 2, 1>} : memref<1024x64xf32, #tpu.memory_space<vmem>>, vector<16x32xf32>
    %c929 = arith.constant 929 : index
    %c0_118 = arith.constant 0 : index
    %166 = tpu.strided_load %arg11[%c929, %c0_118] {strides = array<i32: 2, 1>} : memref<1024x64xf32, #tpu.memory_space<vmem>>, vector<16x32xf32>
    %167 = arith.maximumf %165, %166 : vector<16x32xf32>
    %168 = arith.maximumf %164, %167 : vector<16x32xf32>
    %169 = arith.truncf %168 : vector<16x32xf32> to vector<16x32xbf16>
    %c322 = arith.constant 322 : index
    %c0_119 = arith.constant 0 : index
    %170 = vector.load %arg12[%c322, %c0_119] : memref<408x32xbf16, #tpu.memory_space<vmem>>, vector<16x32xbf16>
    tpu.vector_store %arg12[%c322, %c0_119], %169 {strides = array<i32>} : memref<408x32xbf16, #tpu.memory_space<vmem>>, vector<16x32xbf16>,
    %c960 = arith.constant 960 : index
    %c0_120 = arith.constant 0 : index
    %171 = tpu.strided_load %arg11[%c960, %c0_120] {strides = array<i32: 2, 1>} : memref<1024x64xf32, #tpu.memory_space<vmem>>, vector<16x32xf32>
    %c961 = arith.constant 961 : index
    %c0_121 = arith.constant 0 : index
    %172 = tpu.strided_load %arg11[%c961, %c0_121] {strides = array<i32: 2, 1>} : memref<1024x64xf32, #tpu.memory_space<vmem>>, vector<16x32xf32>
    %173 = arith.maximumf %171, %172 : vector<16x32xf32>
    %c992 = arith.constant 992 : index
    %c0_122 = arith.constant 0 : index
    %174 = tpu.strided_load %arg11[%c992, %c0_122] {strides = array<i32: 2, 1>} : memref<1024x64xf32, #tpu.memory_space<vmem>>, vector<16x32xf32>
    %c993 = arith.constant 993 : index
    %c0_123 = arith.constant 0 : index
    %175 = tpu.strided_load %arg11[%c993, %c0_123] {strides = array<i32: 2, 1>} : memref<1024x64xf32, #tpu.memory_space<vmem>>, vector<16x32xf32>
    %176 = arith.maximumf %174, %175 : vector<16x32xf32>
    %177 = arith.maximumf %173, %176 : vector<16x32xf32>
    %178 = arith.truncf %177 : vector<16x32xf32> to vector<16x32xbf16>
    %c342 = arith.constant 342 : index
    %c0_124 = arith.constant 0 : index
    %179 = vector.load %arg12[%c342, %c0_124] : memref<408x32xbf16, #tpu.memory_space<vmem>>, vector<16x32xbf16>
    tpu.vector_store %arg12[%c342, %c0_124], %178 {strides = array<i32>} : memref<408x32xbf16, #tpu.memory_space<vmem>>, vector<16x32xbf16>,
    %c0_125 = arith.constant 0 : index
    %c0_126 = arith.constant 0 : index
    %180 = vector.load %arg12[%c0_125, %c0_126] : memref<408x32xbf16, #tpu.memory_space<vmem>>, vector<400x32xbf16>
    %c0_127 = arith.constant 0 : index
    %c0_128 = arith.constant 0 : index
    %181 = vector.load %arg14[%c0_127, %c0_128] : memref<400x160xbf16, #tpu.memory_space<vmem>>, vector<400x32xbf16>
    tpu.vector_store %arg14[%c0_127, %c0_128], %180 {strides = array<i32>} : memref<400x160xbf16, #tpu.memory_space<vmem>>, vector<400x32xbf16>,
    %c1_129 = arith.constant 1 : index
    %c0_130 = arith.constant 0 : index
    %182 = vector.load %arg12[%c1_129, %c0_130] : memref<408x32xbf16, #tpu.memory_space<vmem>>, vector<400x32xbf16>
    %c0_131 = arith.constant 0 : index
    %c32_132 = arith.constant 32 : index
    %183 = vector.load %arg14[%c0_131, %c32_132] : memref<400x160xbf16, #tpu.memory_space<vmem>>, vector<400x32xbf16>
    tpu.vector_store %arg14[%c0_131, %c32_132], %182 {strides = array<i32>} : memref<400x160xbf16, #tpu.memory_space<vmem>>, vector<400x32xbf16>,
    %c2 = arith.constant 2 : index
    %c0_133 = arith.constant 0 : index
    %184 = vector.load %arg12[%c2, %c0_133] : memref<408x32xbf16, #tpu.memory_space<vmem>>, vector<400x32xbf16>
    %c0_134 = arith.constant 0 : index
    %c64_135 = arith.constant 64 : index
    %185 = vector.load %arg14[%c0_134, %c64_135] : memref<400x160xbf16, #tpu.memory_space<vmem>>, vector<400x32xbf16>
    tpu.vector_store %arg14[%c0_134, %c64_135], %184 {strides = array<i32>} : memref<400x160xbf16, #tpu.memory_space<vmem>>, vector<400x32xbf16>,
    %c3 = arith.constant 3 : index
    %c0_136 = arith.constant 0 : index
    %186 = vector.load %arg12[%c3, %c0_136] : memref<408x32xbf16, #tpu.memory_space<vmem>>, vector<400x32xbf16>
    %c0_137 = arith.constant 0 : index
    %c96_138 = arith.constant 96 : index
    %187 = vector.load %arg14[%c0_137, %c96_138] : memref<400x160xbf16, #tpu.memory_space<vmem>>, vector<400x32xbf16>
    tpu.vector_store %arg14[%c0_137, %c96_138], %186 {strides = array<i32>} : memref<400x160xbf16, #tpu.memory_space<vmem>>, vector<400x32xbf16>,
    %c4 = arith.constant 4 : index
    %c0_139 = arith.constant 0 : index
    %188 = vector.load %arg12[%c4, %c0_139] : memref<408x32xbf16, #tpu.memory_space<vmem>>, vector<400x32xbf16>
    %c0_140 = arith.constant 0 : index
    %c128_141 = arith.constant 128 : index
    %189 = vector.load %arg14[%c0_140, %c128_141] : memref<400x160xbf16, #tpu.memory_space<vmem>>, vector<400x32xbf16>
    tpu.vector_store %arg14[%c0_140, %c128_141], %188 {strides = array<i32>} : memref<400x160xbf16, #tpu.memory_space<vmem>>, vector<400x32xbf16>,
    %c0_142 = arith.constant 0 : index
    %c0_143 = arith.constant 0 : index
    %190 = vector.load %arg14[%c0_142, %c0_143] : memref<400x160xbf16, #tpu.memory_space<vmem>>, vector<320x160xbf16>
    %c0_144 = arith.constant 0 : index
    %c0_145 = arith.constant 0 : index
    %c0_146 = arith.constant 0 : index
    %191 = vector.load %arg4[%c0_144, %c0_145, %c0_146] : memref<5x160x32xbf16, #tpu.memory_space<vmem>>, vector<1x160x32xbf16>
    %192 = vector.shape_cast %191 : vector<1x160x32xbf16> to vector<160x32xbf16>
    %cst_147 = arith.constant dense<0.000000e+00> : vector<320x32xf32>
    %193 = tpu.matmul %190, %192, %cst_147 {dimension_numbers = #tpu.dot_dimension_numbers<[1], [0], [0], [1], [0, 0, 1, 1], [], []>} : vector<320x160xbf16>, vector<160x32xbf16>, vector<320x32xf32> -> vector<320x32xf32>
    %c20 = arith.constant 20 : index
    %c0_148 = arith.constant 0 : index
    %194 = vector.load %arg14[%c20, %c0_148] : memref<400x160xbf16, #tpu.memory_space<vmem>>, vector<320x160xbf16>
    %c1_149 = arith.constant 1 : index
    %c0_150 = arith.constant 0 : index
    %c0_151 = arith.constant 0 : index
    %195 = vector.load %arg4[%c1_149, %c0_150, %c0_151] : memref<5x160x32xbf16, #tpu.memory_space<vmem>>, vector<1x160x32xbf16>
    %196 = vector.shape_cast %195 : vector<1x160x32xbf16> to vector<160x32xbf16>
    %cst_152 = arith.constant dense<0.000000e+00> : vector<320x32xf32>
    %197 = tpu.matmul %194, %196, %cst_152 {dimension_numbers = #tpu.dot_dimension_numbers<[1], [0], [0], [1], [0, 0, 1, 1], [], []>} : vector<320x160xbf16>, vector<160x32xbf16>, vector<320x32xf32> -> vector<320x32xf32>
    %198 = arith.addf %193, %197 : vector<320x32xf32>
    %c40 = arith.constant 40 : index
    %c0_153 = arith.constant 0 : index
    %199 = vector.load %arg14[%c40, %c0_153] : memref<400x160xbf16, #tpu.memory_space<vmem>>, vector<320x160xbf16>
    %c2_154 = arith.constant 2 : index
    %c0_155 = arith.constant 0 : index
    %c0_156 = arith.constant 0 : index
    %200 = vector.load %arg4[%c2_154, %c0_155, %c0_156] : memref<5x160x32xbf16, #tpu.memory_space<vmem>>, vector<1x160x32xbf16>
    %201 = vector.shape_cast %200 : vector<1x160x32xbf16> to vector<160x32xbf16>
    %cst_157 = arith.constant dense<0.000000e+00> : vector<320x32xf32>
    %202 = tpu.matmul %199, %201, %cst_157 {dimension_numbers = #tpu.dot_dimension_numbers<[1], [0], [0], [1], [0, 0, 1, 1], [], []>} : vector<320x160xbf16>, vector<160x32xbf16>, vector<320x32xf32> -> vector<320x32xf32>
    %203 = arith.addf %198, %202 : vector<320x32xf32>
    %c60 = arith.constant 60 : index
    %c0_158 = arith.constant 0 : index
    %204 = vector.load %arg14[%c60, %c0_158] : memref<400x160xbf16, #tpu.memory_space<vmem>>, vector<320x160xbf16>
    %c3_159 = arith.constant 3 : index
    %c0_160 = arith.constant 0 : index
    %c0_161 = arith.constant 0 : index
    %205 = vector.load %arg4[%c3_159, %c0_160, %c0_161] : memref<5x160x32xbf16, #tpu.memory_space<vmem>>, vector<1x160x32xbf16>
    %206 = vector.shape_cast %205 : vector<1x160x32xbf16> to vector<160x32xbf16>
    %cst_162 = arith.constant dense<0.000000e+00> : vector<320x32xf32>
    %207 = tpu.matmul %204, %206, %cst_162 {dimension_numbers = #tpu.dot_dimension_numbers<[1], [0], [0], [1], [0, 0, 1, 1], [], []>} : vector<320x160xbf16>, vector<160x32xbf16>, vector<320x32xf32> -> vector<320x32xf32>
    %208 = arith.addf %203, %207 : vector<320x32xf32>
    %c80 = arith.constant 80 : index
    %c0_163 = arith.constant 0 : index
    %209 = vector.load %arg14[%c80, %c0_163] : memref<400x160xbf16, #tpu.memory_space<vmem>>, vector<320x160xbf16>
    %c4_164 = arith.constant 4 : index
    %c0_165 = arith.constant 0 : index
    %c0_166 = arith.constant 0 : index
    %210 = vector.load %arg4[%c4_164, %c0_165, %c0_166] : memref<5x160x32xbf16, #tpu.memory_space<vmem>>, vector<1x160x32xbf16>
    %211 = vector.shape_cast %210 : vector<1x160x32xbf16> to vector<160x32xbf16>
    %cst_167 = arith.constant dense<0.000000e+00> : vector<320x32xf32>
    %212 = tpu.matmul %209, %211, %cst_167 {dimension_numbers = #tpu.dot_dimension_numbers<[1], [0], [0], [1], [0, 0, 1, 1], [], []>} : vector<320x160xbf16>, vector<160x32xbf16>, vector<320x32xf32> -> vector<320x32xf32>
    %213 = arith.addf %208, %212 : vector<320x32xf32>
    %c0_168 = arith.constant 0 : index
    %c0_169 = arith.constant 0 : index
    %214 = vector.load %arg5[%c0_168, %c0_169] : memref<1x32xf32, #tpu.memory_space<vmem>>, vector<1x32xf32>
    %215 = vector.broadcast %214 : vector<1x32xf32> to vector<320x32xf32>
    %216 = arith.addf %213, %215 : vector<320x32xf32>
    %c0_170 = arith.constant 0 : index
    %c0_171 = arith.constant 0 : index
    %217 = vector.load %arg11[%c0_170, %c0_171] : memref<1024x64xf32, #tpu.memory_space<vmem>>, vector<320x32xf32>
    tpu.vector_store %arg11[%c0_170, %c0_171], %216 {strides = array<i32>} : memref<1024x64xf32, #tpu.memory_space<vmem>>, vector<320x32xf32>,
    %c0_172 = arith.constant 0 : index
    %c0_173 = arith.constant 0 : index
    %218 = tpu.strided_load %arg11[%c0_172, %c0_173] {strides = array<i32: 2, 1>} : memref<1024x64xf32, #tpu.memory_space<vmem>>, vector<8x32xf32>
    %c1_174 = arith.constant 1 : index
    %c0_175 = arith.constant 0 : index
    %219 = tpu.strided_load %arg11[%c1_174, %c0_175] {strides = array<i32: 2, 1>} : memref<1024x64xf32, #tpu.memory_space<vmem>>, vector<8x32xf32>
    %220 = arith.maximumf %218, %219 : vector<8x32xf32>
    %c20_176 = arith.constant 20 : index
    %c0_177 = arith.constant 0 : index
    %221 = tpu.strided_load %arg11[%c20_176, %c0_177] {strides = array<i32: 2, 1>} : memref<1024x64xf32, #tpu.memory_space<vmem>>, vector<8x32xf32>
    %c21 = arith.constant 21 : index
    %c0_178 = arith.constant 0 : index
    %222 = tpu.strided_load %arg11[%c21, %c0_178] {strides = array<i32: 2, 1>} : memref<1024x64xf32, #tpu.memory_space<vmem>>, vector<8x32xf32>
    %223 = arith.maximumf %221, %222 : vector<8x32xf32>
    %224 = arith.maximumf %220, %223 : vector<8x32xf32>
    %225 = arith.truncf %224 : vector<8x32xf32> to vector<8x32xbf16>
    %c26 = arith.constant 26 : index
    %c0_179 = arith.constant 0 : index
    %226 = vector.load %arg13[%c26, %c0_179] : memref<152x32xbf16, #tpu.memory_space<vmem>>, vector<8x32xbf16>
    tpu.vector_store %arg13[%c26, %c0_179], %225 {strides = array<i32>} : memref<152x32xbf16, #tpu.memory_space<vmem>>, vector<8x32xbf16>,
    %c40_180 = arith.constant 40 : index
    %c0_181 = arith.constant 0 : index
    %227 = tpu.strided_load %arg11[%c40_180, %c0_181] {strides = array<i32: 2, 1>} : memref<1024x64xf32, #tpu.memory_space<vmem>>, vector<8x32xf32>
    %c41 = arith.constant 41 : index
    %c0_182 = arith.constant 0 : index
    %228 = tpu.strided_load %arg11[%c41, %c0_182] {strides = array<i32: 2, 1>} : memref<1024x64xf32, #tpu.memory_space<vmem>>, vector<8x32xf32>
    %229 = arith.maximumf %227, %228 : vector<8x32xf32>
    %c60_183 = arith.constant 60 : index
    %c0_184 = arith.constant 0 : index
    %230 = tpu.strided_load %arg11[%c60_183, %c0_184] {strides = array<i32: 2, 1>} : memref<1024x64xf32, #tpu.memory_space<vmem>>, vector<8x32xf32>
    %c61 = arith.constant 61 : index
    %c0_185 = arith.constant 0 : index
    %231 = tpu.strided_load %arg11[%c61, %c0_185] {strides = array<i32: 2, 1>} : memref<1024x64xf32, #tpu.memory_space<vmem>>, vector<8x32xf32>
    %232 = arith.maximumf %230, %231 : vector<8x32xf32>
    %233 = arith.maximumf %229, %232 : vector<8x32xf32>
    %234 = arith.truncf %233 : vector<8x32xf32> to vector<8x32xbf16>
    %c38 = arith.constant 38 : index
    %c0_186 = arith.constant 0 : index
    %235 = vector.load %arg13[%c38, %c0_186] : memref<152x32xbf16, #tpu.memory_space<vmem>>, vector<8x32xbf16>
    tpu.vector_store %arg13[%c38, %c0_186], %234 {strides = array<i32>} : memref<152x32xbf16, #tpu.memory_space<vmem>>, vector<8x32xbf16>,
    %c80_187 = arith.constant 80 : index
    %c0_188 = arith.constant 0 : index
    %236 = tpu.strided_load %arg11[%c80_187, %c0_188] {strides = array<i32: 2, 1>} : memref<1024x64xf32, #tpu.memory_space<vmem>>, vector<8x32xf32>
    %c81 = arith.constant 81 : index
    %c0_189 = arith.constant 0 : index
    %237 = tpu.strided_load %arg11[%c81, %c0_189] {strides = array<i32: 2, 1>} : memref<1024x64xf32, #tpu.memory_space<vmem>>, vector<8x32xf32>
    %238 = arith.maximumf %236, %237 : vector<8x32xf32>
    %c100 = arith.constant 100 : index
    %c0_190 = arith.constant 0 : index
    %239 = tpu.strided_load %arg11[%c100, %c0_190] {strides = array<i32: 2, 1>} : memref<1024x64xf32, #tpu.memory_space<vmem>>, vector<8x32xf32>
    %c101 = arith.constant 101 : index
    %c0_191 = arith.constant 0 : index
    %240 = tpu.strided_load %arg11[%c101, %c0_191] {strides = array<i32: 2, 1>} : memref<1024x64xf32, #tpu.memory_space<vmem>>, vector<8x32xf32>
    %241 = arith.maximumf %239, %240 : vector<8x32xf32>
    %242 = arith.maximumf %238, %241 : vector<8x32xf32>
    %243 = arith.truncf %242 : vector<8x32xf32> to vector<8x32xbf16>
    %c50 = arith.constant 50 : index
    %c0_192 = arith.constant 0 : index
    %244 = vector.load %arg13[%c50, %c0_192] : memref<152x32xbf16, #tpu.memory_space<vmem>>, vector<8x32xbf16>
    tpu.vector_store %arg13[%c50, %c0_192], %243 {strides = array<i32>} : memref<152x32xbf16, #tpu.memory_space<vmem>>, vector<8x32xbf16>,
    %c120 = arith.constant 120 : index
    %c0_193 = arith.constant 0 : index
    %245 = tpu.strided_load %arg11[%c120, %c0_193] {strides = array<i32: 2, 1>} : memref<1024x64xf32, #tpu.memory_space<vmem>>, vector<8x32xf32>
    %c121 = arith.constant 121 : index
    %c0_194 = arith.constant 0 : index
    %246 = tpu.strided_load %arg11[%c121, %c0_194] {strides = array<i32: 2, 1>} : memref<1024x64xf32, #tpu.memory_space<vmem>>, vector<8x32xf32>
    %247 = arith.maximumf %245, %246 : vector<8x32xf32>
    %c140 = arith.constant 140 : index
    %c0_195 = arith.constant 0 : index
    %248 = tpu.strided_load %arg11[%c140, %c0_195] {strides = array<i32: 2, 1>} : memref<1024x64xf32, #tpu.memory_space<vmem>>, vector<8x32xf32>
    %c141 = arith.constant 141 : index
    %c0_196 = arith.constant 0 : index
    %249 = tpu.strided_load %arg11[%c141, %c0_196] {strides = array<i32: 2, 1>} : memref<1024x64xf32, #tpu.memory_space<vmem>>, vector<8x32xf32>
    %250 = arith.maximumf %248, %249 : vector<8x32xf32>
    %251 = arith.maximumf %247, %250 : vector<8x32xf32>
    %252 = arith.truncf %251 : vector<8x32xf32> to vector<8x32xbf16>
    %c62_197 = arith.constant 62 : index
    %c0_198 = arith.constant 0 : index
    %253 = vector.load %arg13[%c62_197, %c0_198] : memref<152x32xbf16, #tpu.memory_space<vmem>>, vector<8x32xbf16>
    tpu.vector_store %arg13[%c62_197, %c0_198], %252 {strides = array<i32>} : memref<152x32xbf16, #tpu.memory_space<vmem>>, vector<8x32xbf16>,
    %c160_199 = arith.constant 160 : index
    %c0_200 = arith.constant 0 : index
    %254 = tpu.strided_load %arg11[%c160_199, %c0_200] {strides = array<i32: 2, 1>} : memref<1024x64xf32, #tpu.memory_space<vmem>>, vector<8x32xf32>
    %c161_201 = arith.constant 161 : index
    %c0_202 = arith.constant 0 : index
    %255 = tpu.strided_load %arg11[%c161_201, %c0_202] {strides = array<i32: 2, 1>} : memref<1024x64xf32, #tpu.memory_space<vmem>>, vector<8x32xf32>
    %256 = arith.maximumf %254, %255 : vector<8x32xf32>
    %c180 = arith.constant 180 : index
    %c0_203 = arith.constant 0 : index
    %257 = tpu.strided_load %arg11[%c180, %c0_203] {strides = array<i32: 2, 1>} : memref<1024x64xf32, #tpu.memory_space<vmem>>, vector<8x32xf32>
    %c181 = arith.constant 181 : index
    %c0_204 = arith.constant 0 : index
    %258 = tpu.strided_load %arg11[%c181, %c0_204] {strides = array<i32: 2, 1>} : memref<1024x64xf32, #tpu.memory_space<vmem>>, vector<8x32xf32>
    %259 = arith.maximumf %257, %258 : vector<8x32xf32>
    %260 = arith.maximumf %256, %259 : vector<8x32xf32>
    %261 = arith.truncf %260 : vector<8x32xf32> to vector<8x32xbf16>
    %c74 = arith.constant 74 : index
    %c0_205 = arith.constant 0 : index
    %262 = vector.load %arg13[%c74, %c0_205] : memref<152x32xbf16, #tpu.memory_space<vmem>>, vector<8x32xbf16>
    tpu.vector_store %arg13[%c74, %c0_205], %261 {strides = array<i32>} : memref<152x32xbf16, #tpu.memory_space<vmem>>, vector<8x32xbf16>,
    %c200 = arith.constant 200 : index
    %c0_206 = arith.constant 0 : index
    %263 = tpu.strided_load %arg11[%c200, %c0_206] {strides = array<i32: 2, 1>} : memref<1024x64xf32, #tpu.memory_space<vmem>>, vector<8x32xf32>
    %c201 = arith.constant 201 : index
    %c0_207 = arith.constant 0 : index
    %264 = tpu.strided_load %arg11[%c201, %c0_207] {strides = array<i32: 2, 1>} : memref<1024x64xf32, #tpu.memory_space<vmem>>, vector<8x32xf32>
    %265 = arith.maximumf %263, %264 : vector<8x32xf32>
    %c220 = arith.constant 220 : index
    %c0_208 = arith.constant 0 : index
    %266 = tpu.strided_load %arg11[%c220, %c0_208] {strides = array<i32: 2, 1>} : memref<1024x64xf32, #tpu.memory_space<vmem>>, vector<8x32xf32>
    %c221 = arith.constant 221 : index
    %c0_209 = arith.constant 0 : index
    %267 = tpu.strided_load %arg11[%c221, %c0_209] {strides = array<i32: 2, 1>} : memref<1024x64xf32, #tpu.memory_space<vmem>>, vector<8x32xf32>
    %268 = arith.maximumf %266, %267 : vector<8x32xf32>
    %269 = arith.maximumf %265, %268 : vector<8x32xf32>
    %270 = arith.truncf %269 : vector<8x32xf32> to vector<8x32xbf16>
    %c86 = arith.constant 86 : index
    %c0_210 = arith.constant 0 : index
    %271 = vector.load %arg13[%c86, %c0_210] : memref<152x32xbf16, #tpu.memory_space<vmem>>, vector<8x32xbf16>
    tpu.vector_store %arg13[%c86, %c0_210], %270 {strides = array<i32>} : memref<152x32xbf16, #tpu.memory_space<vmem>>, vector<8x32xbf16>,
    %c240 = arith.constant 240 : index
    %c0_211 = arith.constant 0 : index
    %272 = tpu.strided_load %arg11[%c240, %c0_211] {strides = array<i32: 2, 1>} : memref<1024x64xf32, #tpu.memory_space<vmem>>, vector<8x32xf32>
    %c241 = arith.constant 241 : index
    %c0_212 = arith.constant 0 : index
    %273 = tpu.strided_load %arg11[%c241, %c0_212] {strides = array<i32: 2, 1>} : memref<1024x64xf32, #tpu.memory_space<vmem>>, vector<8x32xf32>
    %274 = arith.maximumf %272, %273 : vector<8x32xf32>
    %c260 = arith.constant 260 : index
    %c0_213 = arith.constant 0 : index
    %275 = tpu.strided_load %arg11[%c260, %c0_213] {strides = array<i32: 2, 1>} : memref<1024x64xf32, #tpu.memory_space<vmem>>, vector<8x32xf32>
    %c261 = arith.constant 261 : index
    %c0_214 = arith.constant 0 : index
    %276 = tpu.strided_load %arg11[%c261, %c0_214] {strides = array<i32: 2, 1>} : memref<1024x64xf32, #tpu.memory_space<vmem>>, vector<8x32xf32>
    %277 = arith.maximumf %275, %276 : vector<8x32xf32>
    %278 = arith.maximumf %274, %277 : vector<8x32xf32>
    %279 = arith.truncf %278 : vector<8x32xf32> to vector<8x32xbf16>
    %c98 = arith.constant 98 : index
    %c0_215 = arith.constant 0 : index
    %280 = vector.load %arg13[%c98, %c0_215] : memref<152x32xbf16, #tpu.memory_space<vmem>>, vector<8x32xbf16>
    tpu.vector_store %arg13[%c98, %c0_215], %279 {strides = array<i32>} : memref<152x32xbf16, #tpu.memory_space<vmem>>, vector<8x32xbf16>,
    %c280 = arith.constant 280 : index
    %c0_216 = arith.constant 0 : index
    %281 = tpu.strided_load %arg11[%c280, %c0_216] {strides = array<i32: 2, 1>} : memref<1024x64xf32, #tpu.memory_space<vmem>>, vector<8x32xf32>
    %c281 = arith.constant 281 : index
    %c0_217 = arith.constant 0 : index
    %282 = tpu.strided_load %arg11[%c281, %c0_217] {strides = array<i32: 2, 1>} : memref<1024x64xf32, #tpu.memory_space<vmem>>, vector<8x32xf32>
    %283 = arith.maximumf %281, %282 : vector<8x32xf32>
    %c300 = arith.constant 300 : index
    %c0_218 = arith.constant 0 : index
    %284 = tpu.strided_load %arg11[%c300, %c0_218] {strides = array<i32: 2, 1>} : memref<1024x64xf32, #tpu.memory_space<vmem>>, vector<8x32xf32>
    %c301 = arith.constant 301 : index
    %c0_219 = arith.constant 0 : index
    %285 = tpu.strided_load %arg11[%c301, %c0_219] {strides = array<i32: 2, 1>} : memref<1024x64xf32, #tpu.memory_space<vmem>>, vector<8x32xf32>
    %286 = arith.maximumf %284, %285 : vector<8x32xf32>
    %287 = arith.maximumf %283, %286 : vector<8x32xf32>
    %288 = arith.truncf %287 : vector<8x32xf32> to vector<8x32xbf16>
    %c110 = arith.constant 110 : index
    %c0_220 = arith.constant 0 : index
    %289 = vector.load %arg13[%c110, %c0_220] : memref<152x32xbf16, #tpu.memory_space<vmem>>, vector<8x32xbf16>
    tpu.vector_store %arg13[%c110, %c0_220], %288 {strides = array<i32>} : memref<152x32xbf16, #tpu.memory_space<vmem>>, vector<8x32xbf16>,
    %c0_221 = arith.constant 0 : index
    %c0_222 = arith.constant 0 : index
    %290 = vector.load %arg13[%c0_221, %c0_222] : memref<152x32xbf16, #tpu.memory_space<vmem>>, vector<144x32xbf16>
    %c0_223 = arith.constant 0 : index
    %c0_224 = arith.constant 0 : index
    %291 = vector.load %arg14[%c0_223, %c0_224] : memref<400x160xbf16, #tpu.memory_space<vmem>>, vector<144x32xbf16>
    tpu.vector_store %arg14[%c0_223, %c0_224], %290 {strides = array<i32>} : memref<400x160xbf16, #tpu.memory_space<vmem>>, vector<144x32xbf16>,
    %c1_225 = arith.constant 1 : index
    %c0_226 = arith.constant 0 : index
    %292 = vector.load %arg13[%c1_225, %c0_226] : memref<152x32xbf16, #tpu.memory_space<vmem>>, vector<144x32xbf16>
    %c0_227 = arith.constant 0 : index
    %c32_228 = arith.constant 32 : index
    %293 = vector.load %arg14[%c0_227, %c32_228] : memref<400x160xbf16, #tpu.memory_space<vmem>>, vector<144x32xbf16>
    tpu.vector_store %arg14[%c0_227, %c32_228], %292 {strides = array<i32>} : memref<400x160xbf16, #tpu.memory_space<vmem>>, vector<144x32xbf16>,
    %c2_229 = arith.constant 2 : index
    %c0_230 = arith.constant 0 : index
    %294 = vector.load %arg13[%c2_229, %c0_230] : memref<152x32xbf16, #tpu.memory_space<vmem>>, vector<144x32xbf16>
    %c0_231 = arith.constant 0 : index
    %c64_232 = arith.constant 64 : index
    %295 = vector.load %arg14[%c0_231, %c64_232] : memref<400x160xbf16, #tpu.memory_space<vmem>>, vector<144x32xbf16>
    tpu.vector_store %arg14[%c0_231, %c64_232], %294 {strides = array<i32>} : memref<400x160xbf16, #tpu.memory_space<vmem>>, vector<144x32xbf16>,
    %c3_233 = arith.constant 3 : index
    %c0_234 = arith.constant 0 : index
    %296 = vector.load %arg13[%c3_233, %c0_234] : memref<152x32xbf16, #tpu.memory_space<vmem>>, vector<144x32xbf16>
    %c0_235 = arith.constant 0 : index
    %c96_236 = arith.constant 96 : index
    %297 = vector.load %arg14[%c0_235, %c96_236] : memref<400x160xbf16, #tpu.memory_space<vmem>>, vector<144x32xbf16>
    tpu.vector_store %arg14[%c0_235, %c96_236], %296 {strides = array<i32>} : memref<400x160xbf16, #tpu.memory_space<vmem>>, vector<144x32xbf16>,
    %c4_237 = arith.constant 4 : index
    %c0_238 = arith.constant 0 : index
    %298 = vector.load %arg13[%c4_237, %c0_238] : memref<152x32xbf16, #tpu.memory_space<vmem>>, vector<144x32xbf16>
    %c0_239 = arith.constant 0 : index
    %c128_240 = arith.constant 128 : index
    %299 = vector.load %arg14[%c0_239, %c128_240] : memref<400x160xbf16, #tpu.memory_space<vmem>>, vector<144x32xbf16>
    tpu.vector_store %arg14[%c0_239, %c128_240], %298 {strides = array<i32>} : memref<400x160xbf16, #tpu.memory_space<vmem>>, vector<144x32xbf16>,
    %c0_241 = arith.constant 0 : index
    %c0_242 = arith.constant 0 : index
    %300 = vector.load %arg14[%c0_241, %c0_242] : memref<400x160xbf16, #tpu.memory_space<vmem>>, vector<96x160xbf16>
    %c0_243 = arith.constant 0 : index
    %c0_244 = arith.constant 0 : index
    %c0_245 = arith.constant 0 : index
    %301 = vector.load %arg6[%c0_243, %c0_244, %c0_245] : memref<5x160x64xbf16, #tpu.memory_space<vmem>>, vector<1x160x64xbf16>
    %302 = vector.shape_cast %301 : vector<1x160x64xbf16> to vector<160x64xbf16>
    %cst_246 = arith.constant dense<0.000000e+00> : vector<96x64xf32>
    %303 = tpu.matmul %300, %302, %cst_246 {dimension_numbers = #tpu.dot_dimension_numbers<[1], [0], [0], [1], [0, 0, 1, 1], [], []>} : vector<96x160xbf16>, vector<160x64xbf16>, vector<96x64xf32> -> vector<96x64xf32>
    %c12 = arith.constant 12 : index
    %c0_247 = arith.constant 0 : index
    %304 = vector.load %arg14[%c12, %c0_247] : memref<400x160xbf16, #tpu.memory_space<vmem>>, vector<96x160xbf16>
    %c1_248 = arith.constant 1 : index
    %c0_249 = arith.constant 0 : index
    %c0_250 = arith.constant 0 : index
    %305 = vector.load %arg6[%c1_248, %c0_249, %c0_250] : memref<5x160x64xbf16, #tpu.memory_space<vmem>>, vector<1x160x64xbf16>
    %306 = vector.shape_cast %305 : vector<1x160x64xbf16> to vector<160x64xbf16>
    %cst_251 = arith.constant dense<0.000000e+00> : vector<96x64xf32>
    %307 = tpu.matmul %304, %306, %cst_251 {dimension_numbers = #tpu.dot_dimension_numbers<[1], [0], [0], [1], [0, 0, 1, 1], [], []>} : vector<96x160xbf16>, vector<160x64xbf16>, vector<96x64xf32> -> vector<96x64xf32>
    %308 = arith.addf %303, %307 : vector<96x64xf32>
    %c24 = arith.constant 24 : index
    %c0_252 = arith.constant 0 : index
    %309 = vector.load %arg14[%c24, %c0_252] : memref<400x160xbf16, #tpu.memory_space<vmem>>, vector<96x160xbf16>
    %c2_253 = arith.constant 2 : index
    %c0_254 = arith.constant 0 : index
    %c0_255 = arith.constant 0 : index
    %310 = vector.load %arg6[%c2_253, %c0_254, %c0_255] : memref<5x160x64xbf16, #tpu.memory_space<vmem>>, vector<1x160x64xbf16>
    %311 = vector.shape_cast %310 : vector<1x160x64xbf16> to vector<160x64xbf16>
    %cst_256 = arith.constant dense<0.000000e+00> : vector<96x64xf32>
    %312 = tpu.matmul %309, %311, %cst_256 {dimension_numbers = #tpu.dot_dimension_numbers<[1], [0], [0], [1], [0, 0, 1, 1], [], []>} : vector<96x160xbf16>, vector<160x64xbf16>, vector<96x64xf32> -> vector<96x64xf32>
    %313 = arith.addf %308, %312 : vector<96x64xf32>
    %c36 = arith.constant 36 : index
    %c0_257 = arith.constant 0 : index
    %314 = vector.load %arg14[%c36, %c0_257] : memref<400x160xbf16, #tpu.memory_space<vmem>>, vector<96x160xbf16>
    %c3_258 = arith.constant 3 : index
    %c0_259 = arith.constant 0 : index
    %c0_260 = arith.constant 0 : index
    %315 = vector.load %arg6[%c3_258, %c0_259, %c0_260] : memref<5x160x64xbf16, #tpu.memory_space<vmem>>, vector<1x160x64xbf16>
    %316 = vector.shape_cast %315 : vector<1x160x64xbf16> to vector<160x64xbf16>
    %cst_261 = arith.constant dense<0.000000e+00> : vector<96x64xf32>
    %317 = tpu.matmul %314, %316, %cst_261 {dimension_numbers = #tpu.dot_dimension_numbers<[1], [0], [0], [1], [0, 0, 1, 1], [], []>} : vector<96x160xbf16>, vector<160x64xbf16>, vector<96x64xf32> -> vector<96x64xf32>
    %318 = arith.addf %313, %317 : vector<96x64xf32>
    %c48 = arith.constant 48 : index
    %c0_262 = arith.constant 0 : index
    %319 = vector.load %arg14[%c48, %c0_262] : memref<400x160xbf16, #tpu.memory_space<vmem>>, vector<96x160xbf16>
    %c4_263 = arith.constant 4 : index
    %c0_264 = arith.constant 0 : index
    %c0_265 = arith.constant 0 : index
    %320 = vector.load %arg6[%c4_263, %c0_264, %c0_265] : memref<5x160x64xbf16, #tpu.memory_space<vmem>>, vector<1x160x64xbf16>
    %321 = vector.shape_cast %320 : vector<1x160x64xbf16> to vector<160x64xbf16>
    %cst_266 = arith.constant dense<0.000000e+00> : vector<96x64xf32>
    %322 = tpu.matmul %319, %321, %cst_266 {dimension_numbers = #tpu.dot_dimension_numbers<[1], [0], [0], [1], [0, 0, 1, 1], [], []>} : vector<96x160xbf16>, vector<160x64xbf16>, vector<96x64xf32> -> vector<96x64xf32>
    %323 = arith.addf %318, %322 : vector<96x64xf32>
    %c0_267 = arith.constant 0 : index
    %c0_268 = arith.constant 0 : index
    %324 = vector.load %arg7[%c0_267, %c0_268] : memref<1x64xf32, #tpu.memory_space<vmem>>, vector<1x64xf32>
    %325 = vector.broadcast %324 : vector<1x64xf32> to vector<96x64xf32>
    %326 = arith.addf %323, %325 : vector<96x64xf32>
    %c0_269 = arith.constant 0 : index
    %c0_270 = arith.constant 0 : index
    %327 = vector.load %arg11[%c0_269, %c0_270] : memref<1024x64xf32, #tpu.memory_space<vmem>>, vector<96x64xf32>
    tpu.vector_store %arg11[%c0_269, %c0_270], %326 {strides = array<i32>} : memref<1024x64xf32, #tpu.memory_space<vmem>>, vector<96x64xf32>,
    %c0_271 = arith.constant 0 : index
    %c0_272 = arith.constant 0 : index
    %328 = tpu.strided_load %arg11[%c0_271, %c0_272] {strides = array<i32: 2, 1>} : memref<1024x64xf32, #tpu.memory_space<vmem>>, vector<4x64xf32>
    %c1_273 = arith.constant 1 : index
    %c0_274 = arith.constant 0 : index
    %329 = tpu.strided_load %arg11[%c1_273, %c0_274] {strides = array<i32: 2, 1>} : memref<1024x64xf32, #tpu.memory_space<vmem>>, vector<4x64xf32>
    %330 = arith.maximumf %328, %329 : vector<4x64xf32>
    %c12_275 = arith.constant 12 : index
    %c0_276 = arith.constant 0 : index
    %331 = tpu.strided_load %arg11[%c12_275, %c0_276] {strides = array<i32: 2, 1>} : memref<1024x64xf32, #tpu.memory_space<vmem>>, vector<4x64xf32>
    %c13 = arith.constant 13 : index
    %c0_277 = arith.constant 0 : index
    %332 = tpu.strided_load %arg11[%c13, %c0_277] {strides = array<i32: 2, 1>} : memref<1024x64xf32, #tpu.memory_space<vmem>>, vector<4x64xf32>
    %333 = arith.maximumf %331, %332 : vector<4x64xf32>
    %334 = arith.maximumf %330, %333 : vector<4x64xf32>
    %335 = vector.extract_strided_slice %334 {offsets = [0, 0], sizes = [1, 64], strides = [1, 1]} : vector<4x64xf32> to vector<1x64xf32>
    %336 = arith.truncf %335 : vector<1x64xf32> to vector<1x64xbf16>
    %c0_278 = arith.constant 0 : index
    %c0_279 = arith.constant 0 : index
    %337 = vector.load %arg15[%c0_278, %c0_279] : memref<1x1024xbf16, #tpu.memory_space<vmem>>, vector<1x64xbf16>
    tpu.vector_store %arg15[%c0_278, %c0_279], %336 {strides = array<i32>} : memref<1x1024xbf16, #tpu.memory_space<vmem>>, vector<1x64xbf16>,
    %338 = vector.extract_strided_slice %334 {offsets = [1, 0], sizes = [1, 64], strides = [1, 1]} : vector<4x64xf32> to vector<1x64xf32>
    %339 = arith.truncf %338 : vector<1x64xf32> to vector<1x64xbf16>
    %c0_280 = arith.constant 0 : index
    %c64_281 = arith.constant 64 : index
    %340 = vector.load %arg15[%c0_280, %c64_281] : memref<1x1024xbf16, #tpu.memory_space<vmem>>, vector<1x64xbf16>
    tpu.vector_store %arg15[%c0_280, %c64_281], %339 {strides = array<i32>} : memref<1x1024xbf16, #tpu.memory_space<vmem>>, vector<1x64xbf16>,
    %341 = vector.extract_strided_slice %334 {offsets = [2, 0], sizes = [1, 64], strides = [1, 1]} : vector<4x64xf32> to vector<1x64xf32>
    %342 = arith.truncf %341 : vector<1x64xf32> to vector<1x64xbf16>
    %c0_282 = arith.constant 0 : index
    %c128_283 = arith.constant 128 : index
    %343 = vector.load %arg15[%c0_282, %c128_283] : memref<1x1024xbf16, #tpu.memory_space<vmem>>, vector<1x64xbf16>
    tpu.vector_store %arg15[%c0_282, %c128_283], %342 {strides = array<i32>} : memref<1x1024xbf16, #tpu.memory_space<vmem>>, vector<1x64xbf16>,
    %344 = vector.extract_strided_slice %334 {offsets = [3, 0], sizes = [1, 64], strides = [1, 1]} : vector<4x64xf32> to vector<1x64xf32>
    %345 = arith.truncf %344 : vector<1x64xf32> to vector<1x64xbf16>
    %c0_284 = arith.constant 0 : index
    %c192_285 = arith.constant 192 : index
    %346 = vector.load %arg15[%c0_284, %c192_285] : memref<1x1024xbf16, #tpu.memory_space<vmem>>, vector<1x64xbf16>
    tpu.vector_store %arg15[%c0_284, %c192_285], %345 {strides = array<i32>} : memref<1x1024xbf16, #tpu.memory_space<vmem>>, vector<1x64xbf16>,
    %c24_286 = arith.constant 24 : index
    %c0_287 = arith.constant 0 : index
    %347 = tpu.strided_load %arg11[%c24_286, %c0_287] {strides = array<i32: 2, 1>} : memref<1024x64xf32, #tpu.memory_space<vmem>>, vector<4x64xf32>
    %c25 = arith.constant 25 : index
    %c0_288 = arith.constant 0 : index
    %348 = tpu.strided_load %arg11[%c25, %c0_288] {strides = array<i32: 2, 1>} : memref<1024x64xf32, #tpu.memory_space<vmem>>, vector<4x64xf32>
    %349 = arith.maximumf %347, %348 : vector<4x64xf32>
    %c36_289 = arith.constant 36 : index
    %c0_290 = arith.constant 0 : index
    %350 = tpu.strided_load %arg11[%c36_289, %c0_290] {strides = array<i32: 2, 1>} : memref<1024x64xf32, #tpu.memory_space<vmem>>, vector<4x64xf32>
    %c37 = arith.constant 37 : index
    %c0_291 = arith.constant 0 : index
    %351 = tpu.strided_load %arg11[%c37, %c0_291] {strides = array<i32: 2, 1>} : memref<1024x64xf32, #tpu.memory_space<vmem>>, vector<4x64xf32>
    %352 = arith.maximumf %350, %351 : vector<4x64xf32>
    %353 = arith.maximumf %349, %352 : vector<4x64xf32>
    %354 = vector.extract_strided_slice %353 {offsets = [0, 0], sizes = [1, 64], strides = [1, 1]} : vector<4x64xf32> to vector<1x64xf32>
    %355 = arith.truncf %354 : vector<1x64xf32> to vector<1x64xbf16>
    %c0_292 = arith.constant 0 : index
    %c256_293 = arith.constant 256 : index
    %356 = vector.load %arg15[%c0_292, %c256_293] : memref<1x1024xbf16, #tpu.memory_space<vmem>>, vector<1x64xbf16>
    tpu.vector_store %arg15[%c0_292, %c256_293], %355 {strides = array<i32>} : memref<1x1024xbf16, #tpu.memory_space<vmem>>, vector<1x64xbf16>,
    %357 = vector.extract_strided_slice %353 {offsets = [1, 0], sizes = [1, 64], strides = [1, 1]} : vector<4x64xf32> to vector<1x64xf32>
    %358 = arith.truncf %357 : vector<1x64xf32> to vector<1x64xbf16>
    %c0_294 = arith.constant 0 : index
    %c320_295 = arith.constant 320 : index
    %359 = vector.load %arg15[%c0_294, %c320_295] : memref<1x1024xbf16, #tpu.memory_space<vmem>>, vector<1x64xbf16>
    tpu.vector_store %arg15[%c0_294, %c320_295], %358 {strides = array<i32>} : memref<1x1024xbf16, #tpu.memory_space<vmem>>, vector<1x64xbf16>,
    %360 = vector.extract_strided_slice %353 {offsets = [2, 0], sizes = [1, 64], strides = [1, 1]} : vector<4x64xf32> to vector<1x64xf32>
    %361 = arith.truncf %360 : vector<1x64xf32> to vector<1x64xbf16>
    %c0_296 = arith.constant 0 : index
    %c384_297 = arith.constant 384 : index
    %362 = vector.load %arg15[%c0_296, %c384_297] : memref<1x1024xbf16, #tpu.memory_space<vmem>>, vector<1x64xbf16>
    tpu.vector_store %arg15[%c0_296, %c384_297], %361 {strides = array<i32>} : memref<1x1024xbf16, #tpu.memory_space<vmem>>, vector<1x64xbf16>,
    %363 = vector.extract_strided_slice %353 {offsets = [3, 0], sizes = [1, 64], strides = [1, 1]} : vector<4x64xf32> to vector<1x64xf32>
    %364 = arith.truncf %363 : vector<1x64xf32> to vector<1x64xbf16>
    %c0_298 = arith.constant 0 : index
    %c448_299 = arith.constant 448 : index
    %365 = vector.load %arg15[%c0_298, %c448_299] : memref<1x1024xbf16, #tpu.memory_space<vmem>>, vector<1x64xbf16>
    tpu.vector_store %arg15[%c0_298, %c448_299], %364 {strides = array<i32>} : memref<1x1024xbf16, #tpu.memory_space<vmem>>, vector<1x64xbf16>,
    %c48_300 = arith.constant 48 : index
    %c0_301 = arith.constant 0 : index
    %366 = tpu.strided_load %arg11[%c48_300, %c0_301] {strides = array<i32: 2, 1>} : memref<1024x64xf32, #tpu.memory_space<vmem>>, vector<4x64xf32>
    %c49 = arith.constant 49 : index
    %c0_302 = arith.constant 0 : index
    %367 = tpu.strided_load %arg11[%c49, %c0_302] {strides = array<i32: 2, 1>} : memref<1024x64xf32, #tpu.memory_space<vmem>>, vector<4x64xf32>
    %368 = arith.maximumf %366, %367 : vector<4x64xf32>
    %c60_303 = arith.constant 60 : index
    %c0_304 = arith.constant 0 : index
    %369 = tpu.strided_load %arg11[%c60_303, %c0_304] {strides = array<i32: 2, 1>} : memref<1024x64xf32, #tpu.memory_space<vmem>>, vector<4x64xf32>
    %c61_305 = arith.constant 61 : index
    %c0_306 = arith.constant 0 : index
    %370 = tpu.strided_load %arg11[%c61_305, %c0_306] {strides = array<i32: 2, 1>} : memref<1024x64xf32, #tpu.memory_space<vmem>>, vector<4x64xf32>
    %371 = arith.maximumf %369, %370 : vector<4x64xf32>
    %372 = arith.maximumf %368, %371 : vector<4x64xf32>
    %373 = vector.extract_strided_slice %372 {offsets = [0, 0], sizes = [1, 64], strides = [1, 1]} : vector<4x64xf32> to vector<1x64xf32>
    %374 = arith.truncf %373 : vector<1x64xf32> to vector<1x64xbf16>
    %c0_307 = arith.constant 0 : index
    %c512_308 = arith.constant 512 : index
    %375 = vector.load %arg15[%c0_307, %c512_308] : memref<1x1024xbf16, #tpu.memory_space<vmem>>, vector<1x64xbf16>
    tpu.vector_store %arg15[%c0_307, %c512_308], %374 {strides = array<i32>} : memref<1x1024xbf16, #tpu.memory_space<vmem>>, vector<1x64xbf16>,
    %376 = vector.extract_strided_slice %372 {offsets = [1, 0], sizes = [1, 64], strides = [1, 1]} : vector<4x64xf32> to vector<1x64xf32>
    %377 = arith.truncf %376 : vector<1x64xf32> to vector<1x64xbf16>
    %c0_309 = arith.constant 0 : index
    %c576_310 = arith.constant 576 : index
    %378 = vector.load %arg15[%c0_309, %c576_310] : memref<1x1024xbf16, #tpu.memory_space<vmem>>, vector<1x64xbf16>
    tpu.vector_store %arg15[%c0_309, %c576_310], %377 {strides = array<i32>} : memref<1x1024xbf16, #tpu.memory_space<vmem>>, vector<1x64xbf16>,
    %379 = vector.extract_strided_slice %372 {offsets = [2, 0], sizes = [1, 64], strides = [1, 1]} : vector<4x64xf32> to vector<1x64xf32>
    %380 = arith.truncf %379 : vector<1x64xf32> to vector<1x64xbf16>
    %c0_311 = arith.constant 0 : index
    %c640_312 = arith.constant 640 : index
    %381 = vector.load %arg15[%c0_311, %c640_312] : memref<1x1024xbf16, #tpu.memory_space<vmem>>, vector<1x64xbf16>
    tpu.vector_store %arg15[%c0_311, %c640_312], %380 {strides = array<i32>} : memref<1x1024xbf16, #tpu.memory_space<vmem>>, vector<1x64xbf16>,
    %382 = vector.extract_strided_slice %372 {offsets = [3, 0], sizes = [1, 64], strides = [1, 1]} : vector<4x64xf32> to vector<1x64xf32>
    %383 = arith.truncf %382 : vector<1x64xf32> to vector<1x64xbf16>
    %c0_313 = arith.constant 0 : index
    %c704_314 = arith.constant 704 : index
    %384 = vector.load %arg15[%c0_313, %c704_314] : memref<1x1024xbf16, #tpu.memory_space<vmem>>, vector<1x64xbf16>
    tpu.vector_store %arg15[%c0_313, %c704_314], %383 {strides = array<i32>} : memref<1x1024xbf16, #tpu.memory_space<vmem>>, vector<1x64xbf16>,
    %c72 = arith.constant 72 : index
    %c0_315 = arith.constant 0 : index
    %385 = tpu.strided_load %arg11[%c72, %c0_315] {strides = array<i32: 2, 1>} : memref<1024x64xf32, #tpu.memory_space<vmem>>, vector<4x64xf32>
    %c73 = arith.constant 73 : index
    %c0_316 = arith.constant 0 : index
    %386 = tpu.strided_load %arg11[%c73, %c0_316] {strides = array<i32: 2, 1>} : memref<1024x64xf32, #tpu.memory_space<vmem>>, vector<4x64xf32>
    %387 = arith.maximumf %385, %386 : vector<4x64xf32>
    %c84 = arith.constant 84 : index
    %c0_317 = arith.constant 0 : index
    %388 = tpu.strided_load %arg11[%c84, %c0_317] {strides = array<i32: 2, 1>} : memref<1024x64xf32, #tpu.memory_space<vmem>>, vector<4x64xf32>
    %c85 = arith.constant 85 : index
    %c0_318 = arith.constant 0 : index
    %389 = tpu.strided_load %arg11[%c85, %c0_318] {strides = array<i32: 2, 1>} : memref<1024x64xf32, #tpu.memory_space<vmem>>, vector<4x64xf32>
    %390 = arith.maximumf %388, %389 : vector<4x64xf32>
    %391 = arith.maximumf %387, %390 : vector<4x64xf32>
    %392 = vector.extract_strided_slice %391 {offsets = [0, 0], sizes = [1, 64], strides = [1, 1]} : vector<4x64xf32> to vector<1x64xf32>
    %393 = arith.truncf %392 : vector<1x64xf32> to vector<1x64xbf16>
    %c0_319 = arith.constant 0 : index
    %c768_320 = arith.constant 768 : index
    %394 = vector.load %arg15[%c0_319, %c768_320] : memref<1x1024xbf16, #tpu.memory_space<vmem>>, vector<1x64xbf16>
    tpu.vector_store %arg15[%c0_319, %c768_320], %393 {strides = array<i32>} : memref<1x1024xbf16, #tpu.memory_space<vmem>>, vector<1x64xbf16>,
    %395 = vector.extract_strided_slice %391 {offsets = [1, 0], sizes = [1, 64], strides = [1, 1]} : vector<4x64xf32> to vector<1x64xf32>
    %396 = arith.truncf %395 : vector<1x64xf32> to vector<1x64xbf16>
    %c0_321 = arith.constant 0 : index
    %c832_322 = arith.constant 832 : index
    %397 = vector.load %arg15[%c0_321, %c832_322] : memref<1x1024xbf16, #tpu.memory_space<vmem>>, vector<1x64xbf16>
    tpu.vector_store %arg15[%c0_321, %c832_322], %396 {strides = array<i32>} : memref<1x1024xbf16, #tpu.memory_space<vmem>>, vector<1x64xbf16>,
    %398 = vector.extract_strided_slice %391 {offsets = [2, 0], sizes = [1, 64], strides = [1, 1]} : vector<4x64xf32> to vector<1x64xf32>
    %399 = arith.truncf %398 : vector<1x64xf32> to vector<1x64xbf16>
    %c0_323 = arith.constant 0 : index
    %c896_324 = arith.constant 896 : index
    %400 = vector.load %arg15[%c0_323, %c896_324] : memref<1x1024xbf16, #tpu.memory_space<vmem>>, vector<1x64xbf16>
    tpu.vector_store %arg15[%c0_323, %c896_324], %399 {strides = array<i32>} : memref<1x1024xbf16, #tpu.memory_space<vmem>>, vector<1x64xbf16>,
    %401 = vector.extract_strided_slice %391 {offsets = [3, 0], sizes = [1, 64], strides = [1, 1]} : vector<4x64xf32> to vector<1x64xf32>
    %402 = arith.truncf %401 : vector<1x64xf32> to vector<1x64xbf16>
    %c0_325 = arith.constant 0 : index
    %c960_326 = arith.constant 960 : index
    %403 = vector.load %arg15[%c0_325, %c960_326] : memref<1x1024xbf16, #tpu.memory_space<vmem>>, vector<1x64xbf16>
    tpu.vector_store %arg15[%c0_325, %c960_326], %402 {strides = array<i32>} : memref<1x1024xbf16, #tpu.memory_space<vmem>>, vector<1x64xbf16>,
    %c0_327 = arith.constant 0 : index
    %c0_328 = arith.constant 0 : index
    %404 = vector.load %arg15[%c0_327, %c0_328] : memref<1x1024xbf16, #tpu.memory_space<vmem>>, vector<1x1024xbf16>
    %c0_329 = arith.constant 0 : index
    %c0_330 = arith.constant 0 : index
    %405 = vector.load %arg8[%c0_329, %c0_330] : memref<1024x10xbf16, #tpu.memory_space<vmem>>, vector<1024x10xbf16>
    %cst_331 = arith.constant dense<0.000000e+00> : vector<1x10xf32>
    %406 = tpu.matmul %404, %405, %cst_331 {dimension_numbers = #tpu.dot_dimension_numbers<[1], [0], [0], [1], [0, 0, 1, 1], [], []>} : vector<1x1024xbf16>, vector<1024x10xbf16>, vector<1x10xf32> -> vector<1x10xf32>
    %c0_332 = arith.constant 0 : index
    %c0_333 = arith.constant 0 : index
    %407 = vector.load %arg9[%c0_332, %c0_333] : memref<1x10xf32, #tpu.memory_space<vmem>>, vector<1x10xf32>
    %408 = arith.addf %406, %407 : vector<1x10xf32>
    %c0_334 = arith.constant 0 : index
    %c0_335 = arith.constant 0 : index
    %c0_336 = arith.constant 0 : index
    %409 = vector.load %arg10[%c0_334, %c0_335, %c0_336] : memref<1x1x10xf32, #tpu.memory_space<vmem>>, vector<1x1x10xf32>
    %410 = vector.shape_cast %409 : vector<1x1x10xf32> to vector<1x10xf32>
    %411 = vector.shape_cast %408 : vector<1x10xf32> to vector<1x1x10xf32>
    tpu.vector_store %arg10[%c0_334, %c0_335, %c0_336], %411 {strides = array<i32>} : memref<1x1x10xf32, #tpu.memory_space<vmem>>, vector<1x1x10xf32>,
    return
  }
  func.func @transform_0(%arg0: i32) -> (i32, i32, i32) {
    %c0_i32 = arith.constant 0 : i32
    %c0_i32_0 = arith.constant 0 : i32
    %c0_i32_1 = arith.constant 0 : i32
    return %arg0, %c0_i32, %c0_i32_0 : i32, i32, i32
  }
  func.func @transform_1(%arg0: i32) -> (i32, i32) {
    %c0_i32 = arith.constant 0 : i32
    %c0_i32_0 = arith.constant 0 : i32
    %c0_i32_1 = arith.constant 0 : i32
    return %c0_i32, %c0_i32_0 : i32, i32
  }
  func.func @transform_2(%arg0: i32) -> (i32, i32) {
    %c0_i32 = arith.constant 0 : i32
    %c0_i32_0 = arith.constant 0 : i32
    %c0_i32_1 = arith.constant 0 : i32
    return %c0_i32, %c0_i32_0 : i32, i32
  }
  func.func @transform_3(%arg0: i32) -> (i32, i32, i32) {
    %c0_i32 = arith.constant 0 : i32
    %c0_i32_0 = arith.constant 0 : i32
    %c0_i32_1 = arith.constant 0 : i32
    %c0_i32_2 = arith.constant 0 : i32
    return %c0_i32, %c0_i32_0, %c0_i32_1 : i32, i32, i32
  }
  func.func @transform_4(%arg0: i32) -> (i32, i32) {
    %c0_i32 = arith.constant 0 : i32
    %c0_i32_0 = arith.constant 0 : i32
    %c0_i32_1 = arith.constant 0 : i32
    return %c0_i32, %c0_i32_0 : i32, i32
  }
  func.func @transform_5(%arg0: i32) -> (i32, i32, i32) {
    %c0_i32 = arith.constant 0 : i32
    %c0_i32_0 = arith.constant 0 : i32
    %c0_i32_1 = arith.constant 0 : i32
    %c0_i32_2 = arith.constant 0 : i32
    return %c0_i32, %c0_i32_0, %c0_i32_1 : i32, i32, i32
  }
  func.func @transform_6(%arg0: i32) -> (i32, i32) {
    %c0_i32 = arith.constant 0 : i32
    %c0_i32_0 = arith.constant 0 : i32
    %c0_i32_1 = arith.constant 0 : i32
    return %c0_i32, %c0_i32_0 : i32, i32
  }
  func.func @transform_7(%arg0: i32) -> (i32, i32) {
    %c0_i32 = arith.constant 0 : i32
    %c0_i32_0 = arith.constant 0 : i32
    %c0_i32_1 = arith.constant 0 : i32
    return %c0_i32, %c0_i32_0 : i32, i32
  }
  func.func @transform_8(%arg0: i32) -> (i32, i32) {
    %c0_i32 = arith.constant 0 : i32
    %c0_i32_0 = arith.constant 0 : i32
    %c0_i32_1 = arith.constant 0 : i32
    return %c0_i32, %c0_i32_0 : i32, i32
  }
  func.func @transform_9(%arg0: i32) -> (i32, i32, i32) {
    %c0_i32 = arith.constant 0 : i32
    %c0_i32_0 = arith.constant 0 : i32
    %c0_i32_1 = arith.constant 0 : i32
    return %arg0, %c0_i32, %c0_i32_0 : i32, i32, i32
  }
}

</mosaic_0001>

<llo_original>
// kernel: rxq_forward.1
$region0: #{rxq_forward.1}
  #allocation0 [shape = 'u32[]', space=smem, size = 0x4, offset = 0x4, fixed_abs, tag = 'smem constant byte address 0x4 - core index']
  #allocation1 [shape = 'u32[144,128]{1,0:T(1,128)}', space=vmem, size = 0x12000, scoped, tag = 'internal scratch']
  #allocation2 [shape = 'f32[1024,64]{1,0:T(8,128)}', space=vmem, size = 0x80000, scoped, tag = 'scratch operand']
  #allocation3 [shape = 'bf16[408,32]{1,0:T(8,128)(2,1)}', space=vmem, size = 0x19800, scoped, tag = 'scratch operand']
  #allocation4 [shape = 'bf16[152,32]{1,0:T(8,128)(2,1)}', space=vmem, size = 0x9800, scoped, tag = 'scratch operand']
  #allocation5 [shape = 'bf16[400,160]{1,0:T(16,128)(2,1)}', space=vmem, size = 0x32000, scoped, tag = 'scratch operand']
  #allocation6 [shape = 'bf16[1,1024]{1,0:T(2,128)(2,1)}', space=vmem, size = 0x1000, scoped, tag = 'scratch operand']
  %s0 = inlined_call_operand.vmem [shape: bf16[2,1024,128], index: 0, kind: input, shape index: {}]
  %s1 = inlined_call_operand.vmem [shape: bf16[128,32], index: 1, kind: input, shape index: {}]
  %s2 = inlined_call_operand.vmem [shape: f32[1,32], index: 2, kind: input, shape index: {}]
  %s3 = inlined_call_operand.vmem [shape: bf16[5,160,32], index: 3, kind: input, shape index: {}]
  %s4 = inlined_call_operand.vmem [shape: f32[1,32], index: 4, kind: input, shape index: {}]
  %s5 = inlined_call_operand.vmem [shape: bf16[5,160,64], index: 5, kind: input, shape index: {}]
  %s6 = inlined_call_operand.vmem [shape: f32[1,64], index: 6, kind: input, shape index: {}]
  %s7 = inlined_call_operand.vmem [shape: bf16[1024,10], index: 7, kind: input, shape index: {}]
  %s8 = inlined_call_operand.vmem [shape: f32[1,10], index: 8, kind: input, shape index: {}]
  %s9 = inlined_call_operand.hbm [shape: f32[2,1,10], index: 9, kind: output, shape index: {}]
  %s10 = sld [smem:[#allocation0]]
  $region69: #{rxq_forward.1} parent=0
    _
  %s12 = ssub.s32 1, %s10
  %s13 = scalar_select 0, %s12, %s10
  $region1: #{rxq_forward.1} parent=0
    #allocation7 [shape = 'u8[1024]{0}', space=vmem, size = 0x400, scoped, tag = 'output window, operand 0']
    #allocation8 [shape = 's32[2]{0}', space=sflag, size = 0x8, scoped, tag = 'scoped memory for rxq_forward.1']
    %14 = vsyncpa [#allocation8], 0
    %s15 = scalar_lea.sflag [#allocation8], 1
    %16 = vsyncpa %s15, 0
    loop: start=0, step=1, limit=4
    $region2: #{rxq_forward.1} parent=1 // loop_pre_header
      _
    $region3: #{rxq_forward.1} parent=1 // loop_header
      %s18 = sphi 0, %s22
      %p19 = scmp.ge.s32.totalorder %s18, 4
      %s28 = sphi 0, %s30
      %s31 = sphi 0, %s28
      %s32 = sphi 0, %s31
      %s48 = sphi 0, %s32
      %s52 = sphi 0, %s52
      %s54 = sphi 0, %s52
      %s55 = sphi 0, %s54
      %s69 = sphi 0, %s55
      %s73 = sphi 0, %s73
      %s75 = sphi 0, %s73
      %s76 = sphi 0, %s75
      %s90 = sphi 0, %s76
      %s94 = sphi 0, %s94
      %s96 = sphi 0, %s94
      %s97 = sphi 0, %s96
      %s111 = sphi 0, %s97
      %s115 = sphi 0, %s115
      %s117 = sphi 0, %s115
      %s118 = sphi 0, %s117
      %s132 = sphi 0, %s118
      %s136 = sphi 0, %s136
      %s138 = sphi 0, %s136
      %s139 = sphi 0, %s138
      %s153 = sphi 0, %s139
      %s157 = sphi 0, %s157
      %s159 = sphi 0, %s157
      %s160 = sphi 0, %s159
      %s174 = sphi 0, %s160
      %s178 = sphi 0, %s178
      %s180 = sphi 0, %s178
      %s181 = sphi 0, %s180
      %s195 = sphi 0, %s181
      %s199 = sphi 0, %s199
      %s201 = sphi 0, %s199
      %s202 = sphi 0, %s201
      %s216 = sphi 0, %s202
      %s222 = sphi 0, %s224
      %s225 = sphi 0, %s222
      %s226 = sphi 0, %s225
      %s242 = sphi 0, %s226
    $region4: #{rxq_forward.1} parent=1 // loop_header_branch
      %21 = sbr.rel (%p19) target = $region8
    $region5: #{rxq_forward.1} parent=1 // loop_body
      %s23 = ssub.s32 %s18, 1
      %s24 = ssub.s32 %s18, 2
      %s25 = sadd.s32 %s18, 1
      %s26 = ssub.s32 %s18, %s25
      %p27 = scmp.eq.s32.totalorder %s26, 0
      %s29 = sadd.s32 %s28, 1
      %s30 = scalar_select %p27, %s28, %s29
      %p33 = pneg %p27
      %p34 = scmp.eq.s32.totalorder %s18, 1
      %p35 = por %p33, %p34
      %p36 = scmp.ne.s32.totalorder %s28, %s31
      %p37 = scmp.eq.s32.totalorder %s18, 0
      %p38 = por %p36, %p37
      %p39 = scmp.ne.s32.totalorder %s28, %s31
      %p40 = scmp.eq.s32.totalorder %s23, 1
      %p41 = por %p39, %p40
      %p42 = scmp.ne.s32.totalorder %s31, %s32
      %p43 = scmp.eq.s32.totalorder %s23, 0
      %p44 = por %p42, %p43
      %p45 = scmp.ne.s32.totalorder %s31, %s32
      %p46 = scmp.eq.s32.totalorder %s24, 1
      %p47 = por %p45, %p46
      %p49 = scmp.ne.s32.totalorder %s32, %s48
      %p50 = scmp.eq.s32.totalorder %s24, 0
      %p51 = por %p49, %p50
      %s53 = sadd.s32 %s52, 1
      %p56 = scmp.eq.s32.totalorder %s18, 1
      %p57 = scmp.ne.s32.totalorder %s52, %s54
      %p58 = scmp.eq.s32.totalorder %s18, 0
      %p59 = por %p57, %p58
      %p60 = scmp.ne.s32.totalorder %s52, %s54
      %p61 = scmp.eq.s32.totalorder %s23, 1
      %p62 = por %p60, %p61
      %p63 = scmp.ne.s32.totalorder %s54, %s55
      %p64 = scmp.eq.s32.totalorder %s23, 0
      %p65 = por %p63, %p64
      %p66 = scmp.ne.s32.totalorder %s54, %s55
      %p67 = scmp.eq.s32.totalorder %s24, 1
      %p68 = por %p66, %p67
      %p70 = scmp.ne.s32.totalorder %s55, %s69
      %p71 = scmp.eq.s32.totalorder %s24, 0
      %p72 = por %p70, %p71
      %s74 = sadd.s32 %s73, 1
      %p77 = scmp.eq.s32.totalorder %s18, 1
      %p78 = scmp.ne.s32.totalorder %s73, %s75
      %p79 = scmp.eq.s32.totalorder %s18, 0
      %p80 = por %p78, %p79
      %p81 = scmp.ne.s32.totalorder %s73, %s75
      %p82 = scmp.eq.s32.totalorder %s23, 1
      %p83 = por %p81, %p82
      %p84 = scmp.ne.s32.totalorder %s75, %s76
      %p85 = scmp.eq.s32.totalorder %s23, 0
      %p86 = por %p84, %p85
      %p87 = scmp.ne.s32.totalorder %s75, %s76
      %p88 = scmp.eq.s32.totalorder %s24, 1
      %p89 = por %p87, %p88
      %p91 = scmp.ne.s32.totalorder %s76, %s90
      %p92 = scmp.eq.s32.totalorder %s24, 0
      %p93 = por %p91, %p92
      %s95 = sadd.s32 %s94, 1
      %p98 = scmp.eq.s32.totalorder %s18, 1
      %p99 = scmp.ne.s32.totalorder %s94, %s96
      %p100 = scmp.eq.s32.totalorder %s18, 0
      %p101 = por %p99, %p100
      %p102 = scmp.ne.s32.totalorder %s94, %s96
      %p103 = scmp.eq.s32.totalorder %s23, 1
      %p104 = por %p102, %p103
      %p105 = scmp.ne.s32.totalorder %s96, %s97
      %p106 = scmp.eq.s32.totalorder %s23, 0
      %p107 = por %p105, %p106
      %p108 = scmp.ne.s32.totalorder %s96, %s97
      %p109 = scmp.eq.s32.totalorder %s24, 1
      %p110 = por %p108, %p109
      %p112 = scmp.ne.s32.totalorder %s97, %s111
      %p113 = scmp.eq.s32.totalorder %s24, 0
      %p114 = por %p112, %p113
      %s116 = sadd.s32 %s115, 1
      %p119 = scmp.eq.s32.totalorder %s18, 1
      %p120 = scmp.ne.s32.totalorder %s115, %s117
      %p121 = scmp.eq.s32.totalorder %s18, 0
      %p122 = por %p120, %p121
      %p123 = scmp.ne.s32.totalorder %s115, %s117
      %p124 = scmp.eq.s32.totalorder %s23, 1
      %p125 = por %p123, %p124
      %p126 = scmp.ne.s32.totalorder %s117, %s118
      %p127 = scmp.eq.s32.totalorder %s23, 0
      %p128 = por %p126, %p127
      %p129 = scmp.ne.s32.totalorder %s117, %s118
      %p130 = scmp.eq.s32.totalorder %s24, 1
      %p131 = por %p129, %p130
      %p133 = scmp.ne.s32.totalorder %s118, %s132
      %p134 = scmp.eq.s32.totalorder %s24, 0
      %p135 = por %p133, %p134
      %s137 = sadd.s32 %s136, 1
      %p140 = scmp.eq.s32.totalorder %s18, 1
      %p141 = scmp.ne.s32.totalorder %s136, %s138
      %p142 = scmp.eq.s32.totalorder %s18, 0
      %p143 = por %p141, %p142
      %p144 = scmp.ne.s32.totalorder %s136, %s138
      %p145 = scmp.eq.s32.totalorder %s23, 1
      %p146 = por %p144, %p145
      %p147 = scmp.ne.s32.totalorder %s138, %s139
      %p148 = scmp.eq.s32.totalorder %s23, 0
      %p149 = por %p147, %p148
      %p150 = scmp.ne.s32.totalorder %s138, %s139
      %p151 = scmp.eq.s32.totalorder %s24, 1
      %p152 = por %p150, %p151
      %p154 = scmp.ne.s32.totalorder %s139, %s153
      %p155 = scmp.eq.s32.totalorder %s24, 0
      %p156 = por %p154, %p155
      %s158 = sadd.s32 %s157, 1
      %p161 = scmp.eq.s32.totalorder %s18, 1
      %p162 = scmp.ne.s32.totalorder %s157, %s159
      %p163 = scmp.eq.s32.totalorder %s18, 0
      %p164 = por %p162, %p163
      %p165 = scmp.ne.s32.totalorder %s157, %s159
      %p166 = scmp.eq.s32.totalorder %s23, 1
      %p167 = por %p165, %p166
      %p168 = scmp.ne.s32.totalorder %s159, %s160
      %p169 = scmp.eq.s32.totalorder %s23, 0
      %p170 = por %p168, %p169
      %p171 = scmp.ne.s32.totalorder %s159, %s160
      %p172 = scmp.eq.s32.totalorder %s24, 1
      %p173 = por %p171, %p172
      %p175 = scmp.ne.s32.totalorder %s160, %s174
      %p176 = scmp.eq.s32.totalorder %s24, 0
      %p177 = por %p175, %p176
      %s179 = sadd.s32 %s178, 1
      %p182 = scmp.eq.s32.totalorder %s18, 1
      %p183 = scmp.ne.s32.totalorder %s178, %s180
      %p184 = scmp.eq.s32.totalorder %s18, 0
      %p185 = por %p183, %p184
      %p186 = scmp.ne.s32.totalorder %s178, %s180
      %p187 = scmp.eq.s32.totalorder %s23, 1
      %p188 = por %p186, %p187
      %p189 = scmp.ne.s32.totalorder %s180, %s181
      %p190 = scmp.eq.s32.totalorder %s23, 0
      %p191 = por %p189, %p190
      %p192 = scmp.ne.s32.totalorder %s180, %s181
      %p193 = scmp.eq.s32.totalorder %s24, 1
      %p194 = por %p192, %p193
      %p196 = scmp.ne.s32.totalorder %s181, %s195
      %p197 = scmp.eq.s32.totalorder %s24, 0
      %p198 = por %p196, %p197
      %s200 = sadd.s32 %s199, 1
      %p203 = scmp.eq.s32.totalorder %s18, 1
      %p204 = scmp.ne.s32.totalorder %s199, %s201
      %p205 = scmp.eq.s32.totalorder %s18, 0
      %p206 = por %p204, %p205
      %p207 = scmp.ne.s32.totalorder %s199, %s201
      %p208 = scmp.eq.s32.totalorder %s23, 1
      %p209 = por %p207, %p208
      %p210 = scmp.ne.s32.totalorder %s201, %s202
      %p211 = scmp.eq.s32.totalorder %s23, 0
      %p212 = por %p210, %p211
      %p213 = scmp.ne.s32.totalorder %s201, %s202
      %p214 = scmp.eq.s32.totalorder %s24, 1
      %p215 = por %p213, %p214
      %p217 = scmp.ne.s32.totalorder %s202, %s216
      %p218 = scmp.eq.s32.totalorder %s24, 0
      %p219 = por %p217, %p218
      %s220 = ssub.s32 %s18, %s25
      %p221 = scmp.eq.s32.totalorder %s220, 0
      %s223 = sadd.s32 %s222, 1
      %s224 = scalar_select %p221, %s222, %s223
      %p227 = pneg %p221
      %p228 = scmp.eq.s32.totalorder %s18, 1
      %p229 = por %p227, %p228
      %p230 = scmp.ne.s32.totalorder %s222, %s225
      %p231 = scmp.eq.s32.totalorder %s18, 0
      %p232 = por %p230, %p231
      %p233 = scmp.ne.s32.totalorder %s222, %s225
      %p234 = scmp.eq.s32.totalorder %s23, 1
      %p235 = por %p233, %p234
      %p236 = scmp.ne.s32.totalorder %s225, %s226
      %p237 = scmp.eq.s32.totalorder %s23, 0
      %p238 = por %p236, %p237
      %p239 = scmp.ne.s32.totalorder %s225, %s226
      %p240 = scmp.eq.s32.totalorder %s24, 1
      %p241 = por %p239, %p240
      %p243 = scmp.ne.s32.totalorder %s226, %s242
      %p244 = scmp.eq.s32.totalorder %s24, 0
      %p245 = por %p243, %p244
      %p246 = scmp.le.s32.totalorder 1, %s18
      %p247 = scmp.lt.s32.totalorder %s18, 3
      %p248 = pnand %p246, %p247
      %p249 = pneg %p248
      // Predicated region
      $region9: #{rxq_forward.1} parent=5 // pred_check
        _
      $region10: #{rxq_forward.1} parent=5 // pred_check_branch
        %251 = sbr.rel (%p248) target = $region12
      $region11: #{rxq_forward.1} parent=5 // pred_region
        %s252 = ssub.s32 %s18, 1
        // Predicated region
        $region13: #{rxq_forward.1} parent=11 // pred_check
          %p253 = pneg %p65
        $region14: #{rxq_forward.1} parent=11 // pred_check_branch
          %255 = sbr.rel (%p253) target = $region16
        $region15: #{rxq_forward.1} parent=11 // pred_region
          _
        $region16: #{rxq_forward.1} parent=11 // pred_fallthru
          _
        // Predicated region
        $region17: #{rxq_forward.1} parent=11 // pred_check
          %p256 = pneg %p86
        $region18: #{rxq_forward.1} parent=11 // pred_check_branch
          %258 = sbr.rel (%p256) target = $region20
        $region19: #{rxq_forward.1} parent=11 // pred_region
          _
        $region20: #{rxq_forward.1} parent=11 // pred_fallthru
          _
        // Predicated region
        $region21: #{rxq_forward.1} parent=11 // pred_check
          %p259 = pneg %p107
        $region22: #{rxq_forward.1} parent=11 // pred_check_branch
          %261 = sbr.rel (%p259) target = $region24
        $region23: #{rxq_forward.1} parent=11 // pred_region
          _
        $region24: #{rxq_forward.1} parent=11 // pred_fallthru
          _
        // Predicated region
        $region25: #{rxq_forward.1} parent=11 // pred_check
          %p262 = pneg %p128
        $region26: #{rxq_forward.1} parent=11 // pred_check_branch
          %264 = sbr.rel (%p262) target = $region28
        $region27: #{rxq_forward.1} parent=11 // pred_region
          _
        $region28: #{rxq_forward.1} parent=11 // pred_fallthru
          _
        // Predicated region
        $region29: #{rxq_forward.1} parent=11 // pred_check
          %p265 = pneg %p149
        $region30: #{rxq_forward.1} parent=11 // pred_check_branch
          %267 = sbr.rel (%p265) target = $region32
        $region31: #{rxq_forward.1} parent=11 // pred_region
          _
        $region32: #{rxq_forward.1} parent=11 // pred_fallthru
          _
        // Predicated region
        $region33: #{rxq_forward.1} parent=11 // pred_check
          %p268 = pneg %p170
        $region34: #{rxq_forward.1} parent=11 // pred_check_branch
          %270 = sbr.rel (%p268) target = $region36
        $region35: #{rxq_forward.1} parent=11 // pred_region
          _
        $region36: #{rxq_forward.1} parent=11 // pred_fallthru
          _
        // Predicated region
        $region37: #{rxq_forward.1} parent=11 // pred_check
          %p271 = pneg %p191
        $region38: #{rxq_forward.1} parent=11 // pred_check_branch
          %273 = sbr.rel (%p271) target = $region40
        $region39: #{rxq_forward.1} parent=11 // pred_region
          _
        $region40: #{rxq_forward.1} parent=11 // pred_fallthru
          _
        // Predicated region
        $region41: #{rxq_forward.1} parent=11 // pred_check
          %p274 = pneg %p212
        $region42: #{rxq_forward.1} parent=11 // pred_check_branch
          %276 = sbr.rel (%p274) target = $region44
        $region43: #{rxq_forward.1} parent=11 // pred_region
          _
        $region44: #{rxq_forward.1} parent=11 // pred_fallthru
          _
      $region12: #{rxq_forward.1} parent=5 // pred_fallthru
        _
      %p277 = scmp.lt.s32.totalorder %s18, 2
      // Predicated region
      $region45: #{rxq_forward.1} parent=5 // pred_check
        %p278 = pneg %p277
      $region46: #{rxq_forward.1} parent=5 // pred_check_branch
        %280 = sbr.rel (%p278) target = $region48
      $region47: #{rxq_forward.1} parent=5 // pred_region
        // Predicated region
        $region49: #{rxq_forward.1} parent=47 // pred_check
          %p281 = pneg %p38
        $region50: #{rxq_forward.1} parent=47 // pred_check_branch
          %283 = sbr.rel (%p281) target = $region52
        $region51: #{rxq_forward.1} parent=47 // pred_region
          %p284 = scmp.lt.s32.totalorder %s18, 1
          %s285 = scalar_select %p284, %s18, 1
          %s286 = smul.addr %s285, 128
          %s287 = smul.addr %s286, 4
          %s288 = scalar_lea.vmem %s0, %s287
        $region52: #{rxq_forward.1} parent=47 // pred_fallthru
          _
      $region48: #{rxq_forward.1} parent=5 // pred_fallthru
        _
      %p289 = scmp.le.s32.totalorder 1, %s18
      %p290 = scmp.lt.s32.totalorder %s18, 3
      %p291 = pnand %p289, %p290
      %p292 = pneg %p291
      // Predicated region
      $region53: #{rxq_forward.1} parent=5 // pred_check
        _
      $region54: #{rxq_forward.1} parent=5 // pred_check_branch
        %294 = sbr.rel (%p291) target = $region56
      $region55: #{rxq_forward.1} parent=5 // pred_region
        %s295 = ssub.s32 %s18, 1
        %p296 = scmp.lt.s32.totalorder %s23, 1
        %s297 = scalar_select %p296, %s23, 1
        %s298 = smul.addr %s297, 128
        %s299 = smul.addr %s298, 4
        %s300 = scalar_lea.vmem %s0, %s299
        %p301 = pneg %p44
        %p302 = pneg %p41
        %p303 = pneg %p65
        %p304 = pneg %p62
        %p305 = pneg %p86
        %p306 = pneg %p83
        %p307 = pneg %p107
        %p308 = pneg %p104
        %p309 = pneg %p128
        %p310 = pneg %p125
        %p311 = pneg %p149
        %p312 = pneg %p146
        %p313 = pneg %p170
        %p314 = pneg %p167
        %p315 = pneg %p191
        %p316 = pneg %p188
        %p317 = pneg %p212
        %p318 = pneg %p209
        %p319 = pneg %p238
        %p320 = pneg %p235
        %s321 = sand.u32 %s225, 1
        %s322 = scalar_lea.sflag [#allocation8], %s321
        %s323 = sand.u32 %s225, 1
        %s324 = scalar_lea.vmem [#allocation7], %s323
        %p325 = scmp.lt.s32.totalorder %s23, 1
        %s326 = scalar_select %p325, %s23, 1
        %s327 = smul.addr %s326, 128
        %s328 = smul.addr %s327, 4
        %s329 = scalar_lea.vmem %s0, %s328
        %vm331 = vcmask 257024
        %332 = vst.msk [vmem:[#allocation3] sm:$0xf] %vm331, 0
        %333 = vst.msk [vmem:[#allocation3 + $0x4] sm:$0xf] %vm331, 0
        %334 = vst.msk [vmem:[#allocation3 + $0x8] sm:$0xf] %vm331, 0
        %335 = vst.msk [vmem:[#allocation3 + $0xc] sm:$0xf] %vm331, 0
        %336 = vst.msk [vmem:[#allocation3 + $0x10] sm:$0xf] %vm331, 0
        %337 = vst.msk [vmem:[#allocation3 + $0x14] sm:$0xf] %vm331, 0
        %338 = vst.msk [vmem:[#allocation3 + $0x18] sm:$0xf] %vm331, 0
        %339 = vst.msk [vmem:[#allocation3 + $0x1c] sm:$0xf] %vm331, 0
        %340 = vst.msk [vmem:[#allocation3 + $0x20] sm:$0xf] %vm331, 0
        %341 = vst.msk [vmem:[#allocation3 + $0x24] sm:$0xf] %vm331, 0
        %342 = vst.msk [vmem:[#allocation3 + $0x28] sm:$0xf] %vm331, 0
        %343 = vst.msk [vmem:[#allocation3 + $0x2c] sm:$0xf] %vm331, 0
        %344 = vst.msk [vmem:[#allocation3 + $0x30] sm:$0xf] %vm331, 0
        %345 = vst.msk [vmem:[#allocation3 + $0x34] sm:$0xf] %vm331, 0
        %346 = vst.msk [vmem:[#allocation3 + $0x38] sm:$0xf] %vm331, 0
        %347 = vst.msk [vmem:[#allocation3 + $0x3c] sm:$0xf] %vm331, 0
        %348 = vst.msk [vmem:[#allocation3 + $0x40] sm:$0xf] %vm331, 0
        %349 = vst.msk [vmem:[#allocation3 + $0x44] sm:$0xf] %vm331, 0
        %350 = vst.msk [vmem:[#allocation3 + $0x48] sm:$0xf] %vm331, 0
        %351 = vst.msk [vmem:[#allocation3 + $0x4c] sm:$0xf] %vm331, 0
        %352 = vst.msk [vmem:[#allocation3 + $0x50] sm:$0xf] %vm331, 0
        %353 = vst.msk [vmem:[#allocation3 + $0x54] sm:$0xf] %vm331, 0
        %354 = vst.msk [vmem:[#allocation3 + $0x58] sm:$0xf] %vm331, 0
        %355 = vst.msk [vmem:[#allocation3 + $0x5c] sm:$0xf] %vm331, 0
        %356 = vst.msk [vmem:[#allocation3 + $0x60] sm:$0xf] %vm331, 0
        %357 = vst.msk [vmem:[#allocation3 + $0x64] sm:$0xf] %vm331, 0
        %358 = vst.msk [vmem:[#allocation3 + $0x68] sm:$0xf] %vm331, 0
        %359 = vst.msk [vmem:[#allocation3 + $0x6c] sm:$0xf] %vm331, 0
        %360 = vst.msk [vmem:[#allocation3 + $0x70] sm:$0xf] %vm331, 0
        %361 = vst.msk [vmem:[#allocation3 + $0x74] sm:$0xf] %vm331, 0
        %362 = vst.msk [vmem:[#allocation3 + $0x78] sm:$0xf] %vm331, 0
        %363 = vst.msk [vmem:[#allocation3 + $0x7c] sm:$0xf] %vm331, 0
        %364 = vst.msk [vmem:[#allocation3 + $0x80] sm:$0xf] %vm331, 0
        %365 = vst.msk [vmem:[#allocation3 + $0x84] sm:$0xf] %vm331, 0
        %366 = vst.msk [vmem:[#allocation3 + $0x88] sm:$0xf] %vm331, 0
        %367 = vst.msk [vmem:[#allocation3 + $0x8c] sm:$0xf] %vm331, 0
        %368 = vst.msk [vmem:[#allocation3 + $0x90] sm:$0xf] %vm331, 0
        %369 = vst.msk [vmem:[#allocation3 + $0x94] sm:$0xf] %vm331, 0
        %370 = vst.msk [vmem:[#allocation3 + $0x98] sm:$0xf] %vm331, 0
        %371 = vst.msk [vmem:[#allocation3 + $0x9c] sm:$0xf] %vm331, 0
        %372 = vst.msk [vmem:[#allocation3 + $0xa0] sm:$0xf] %vm331, 0
        %373 = vst.msk [vmem:[#allocation3 + $0xa4] sm:$0xf] %vm331, 0
        %374 = vst.msk [vmem:[#allocation3 + $0xa8] sm:$0xf] %vm331, 0
        %375 = vst.msk [vmem:[#allocation3 + $0xac] sm:$0xf] %vm331, 0
        %376 = vst.msk [vmem:[#allocation3 + $0xb0] sm:$0xf] %vm331, 0
        %377 = vst.msk [vmem:[#allocation3 + $0xb4] sm:$0xf] %vm331, 0
        %378 = vst.msk [vmem:[#allocation3 + $0xb8] sm:$0xf] %vm331, 0
        %379 = vst.msk [vmem:[#allocation3 + $0xbc] sm:$0xf] %vm331, 0
        %380 = vst.msk [vmem:[#allocation3 + $0xc0] sm:$0xf] %vm331, 0
        %381 = vst.msk [vmem:[#allocation3 + $0xc4] sm:$0xf] %vm331, 0
        %382 = vst.msk [vmem:[#allocation3 + $0xc8] sm:$0xf] %vm331, 0
        %383 = vst.msk [vmem:[#allocation4] sm:$0xf] %vm331, 0
        %384 = vst.msk [vmem:[#allocation4 + $0x4] sm:$0xf] %vm331, 0
        %385 = vst.msk [vmem:[#allocation4 + $0x8] sm:$0xf] %vm331, 0
        %386 = vst.msk [vmem:[#allocation4 + $0xc] sm:$0xf] %vm331, 0
        %387 = vst.msk [vmem:[#allocation4 + $0x10] sm:$0xf] %vm331, 0
        %388 = vst.msk [vmem:[#allocation4 + $0x14] sm:$0xf] %vm331, 0
        %389 = vst.msk [vmem:[#allocation4 + $0x18] sm:$0xf] %vm331, 0
        %390 = vst.msk [vmem:[#allocation4 + $0x1c] sm:$0xf] %vm331, 0
        %391 = vst.msk [vmem:[#allocation4 + $0x20] sm:$0xf] %vm331, 0
        %392 = vst.msk [vmem:[#allocation4 + $0x24] sm:$0xf] %vm331, 0
        %393 = vst.msk [vmem:[#allocation4 + $0x28] sm:$0xf] %vm331, 0
        %394 = vst.msk [vmem:[#allocation4 + $0x2c] sm:$0xf] %vm331, 0
        %395 = vst.msk [vmem:[#allocation4 + $0x30] sm:$0xf] %vm331, 0
        %396 = vst.msk [vmem:[#allocation4 + $0x34] sm:$0xf] %vm331, 0
        %397 = vst.msk [vmem:[#allocation4 + $0x38] sm:$0xf] %vm331, 0
        %398 = vst.msk [vmem:[#allocation4 + $0x3c] sm:$0xf] %vm331, 0
        %399 = vst.msk [vmem:[#allocation4 + $0x40] sm:$0xf] %vm331, 0
        %400 = vst.msk [vmem:[#allocation4 + $0x44] sm:$0xf] %vm331, 0
        %401 = vst.msk [vmem:[#allocation4 + $0x48] sm:$0xf] %vm331, 0
        %v402 = vld [vmem:[%s329] sm:$0xf]
        %v403 = vld [vmem:[%s329 + $0x4] sm:$0xf]
        %v404 = vld [vmem:[%s329 + $0x8] sm:$0xf]
        %v405 = vld [vmem:[%s329 + $0xc] sm:$0xf]
        %v406 = vld [vmem:[%s329 + $0x10] sm:$0xf]
        %v407 = vld [vmem:[%s329 + $0x14] sm:$0xf]
        %v408 = vld [vmem:[%s329 + $0x18] sm:$0xf]
        %v409 = vld [vmem:[%s329 + $0x1c] sm:$0xf]
        %v410 = vld [vmem:[%s329 + $0x20] sm:$0xf]
        %v411 = vld [vmem:[%s329 + $0x24] sm:$0xf]
        %v412 = vld [vmem:[%s329 + $0x28] sm:$0xf]
        %v413 = vld [vmem:[%s329 + $0x2c] sm:$0xf]
        %v414 = vld [vmem:[%s329 + $0x30] sm:$0xf]
        %v415 = vld [vmem:[%s329 + $0x34] sm:$0xf]
        %v416 = vld [vmem:[%s329 + $0x38] sm:$0xf]
        %v417 = vld [vmem:[%s329 + $0x3c] sm:$0xf]
        %v418 = vld [vmem:[%s329 + $0x40] sm:$0xf]
        %v419 = vld [vmem:[%s329 + $0x44] sm:$0xf]
        %v420 = vld [vmem:[%s329 + $0x48] sm:$0xf]
        %v421 = vld [vmem:[%s329 + $0x4c] sm:$0xf]
        %v422 = vld [vmem:[%s329 + $0x50] sm:$0xf]
        %v423 = vld [vmem:[%s329 + $0x54] sm:$0xf]
        %v424 = vld [vmem:[%s329 + $0x58] sm:$0xf]
        %v425 = vld [vmem:[%s329 + $0x5c] sm:$0xf]
        %v426 = vld [vmem:[%s329 + $0x60] sm:$0xf]
        %v427 = vld [vmem:[%s329 + $0x64] sm:$0xf]
        %v428 = vld [vmem:[%s329 + $0x68] sm:$0xf]
        %v429 = vld [vmem:[%s329 + $0x6c] sm:$0xf]
        %v430 = vld [vmem:[%s329 + $0x70] sm:$0xf]
        %v431 = vld [vmem:[%s329 + $0x74] sm:$0xf]
        %v432 = vld [vmem:[%s329 + $0x78] sm:$0xf]
        %v433 = vld [vmem:[%s329 + $0x7c] sm:$0xf]
        %v434 = vld [vmem:[%s1] sm:$0xf]
        %v435 = vld [vmem:[%s1 + $0x4] sm:$0xf]
        %v436 = vld [vmem:[%s1 + $0x8] sm:$0xf]
        %v437 = vld [vmem:[%s1 + $0xc] sm:$0xf]
        %v438 = vld [vmem:[%s1 + $0x10] sm:$0xf]
        %v439 = vld [vmem:[%s1 + $0x14] sm:$0xf]
        %v440 = vld [vmem:[%s1 + $0x18] sm:$0xf]
        %v441 = vld [vmem:[%s1 + $0x1c] sm:$0xf]
        %v442 = vld [vmem:[%s1 + $0x20] sm:$0xf]
        %v443 = vld [vmem:[%s1 + $0x24] sm:$0xf]
        %v444 = vld [vmem:[%s1 + $0x28] sm:$0xf]
        %v445 = vld [vmem:[%s1 + $0x2c] sm:$0xf]
        %v446 = vld [vmem:[%s1 + $0x30] sm:$0xf]
        %v447 = vld [vmem:[%s1 + $0x34] sm:$0xf]
        %v448 = vld [vmem:[%s1 + $0x38] sm:$0xf]
        %v449 = vld [vmem:[%s1 + $0x3c] sm:$0xf]
        %v450 = vld [vmem:[%s2] sm:$0x1]
        %v452 = vlaneseq
        %v453 = vshrl.u32 %v452, 7
        %v454 = vsub.s32 0, %v453
        %v455 = vrot.slane %v450, %v454
        %v489 = vunpack.c.l.b16 %v402
        %v490 = vunpack.c.l.b16 %v403
        %v491 = vunpack.c.l.b16 %v404
        %v492 = vunpack.c.l.b16 %v405
        %v493 = vunpack.c.l.b16 %v406
        %v494 = vunpack.c.l.b16 %v407
        %v495 = vunpack.c.l.b16 %v408
        %v496 = vunpack.c.l.b16 %v409
        %v497 = vunpack.c.l.b16 %v410
        %v498 = vunpack.c.l.b16 %v411
        %v499 = vunpack.c.l.b16 %v412
        %v500 = vunpack.c.l.b16 %v413
        %v501 = vunpack.c.l.b16 %v414
        %v502 = vunpack.c.l.b16 %v415
        %v503 = vunpack.c.l.b16 %v416
        %v504 = vunpack.c.l.b16 %v417
        %v505 = vunpack.c.l.b16 %v418
        %v506 = vunpack.c.l.b16 %v419
        %v507 = vunpack.c.l.b16 %v420
        %v508 = vunpack.c.l.b16 %v421
        %v509 = vunpack.c.l.b16 %v422
        %v510 = vunpack.c.l.b16 %v423
        %v511 = vunpack.c.l.b16 %v424
        %v512 = vunpack.c.l.b16 %v425
        %v513 = vunpack.c.l.b16 %v426
        %v514 = vunpack.c.l.b16 %v427
        %v515 = vunpack.c.l.b16 %v428
        %v516 = vunpack.c.l.b16 %v429
        %v517 = vunpack.c.l.b16 %v430
        %v518 = vunpack.c.l.b16 %v431
        %v519 = vunpack.c.l.b16 %v432
        %v520 = vunpack.c.l.b16 %v433
        %v521 = vpack.c.b16 %v490, %v489
        %v522 = vpack.c.b16 %v492, %v491
        %v523 = vpack.c.b16 %v494, %v493
        %v524 = vpack.c.b16 %v496, %v495
        %v525 = vpack.c.b16 %v498, %v497
        %v526 = vpack.c.b16 %v500, %v499
        %v527 = vpack.c.b16 %v502, %v501
        %v528 = vpack.c.b16 %v504, %v503
        %v529 = vpack.c.b16 %v506, %v505
        %v530 = vpack.c.b16 %v508, %v507
        %v531 = vpack.c.b16 %v510, %v509
        %v532 = vpack.c.b16 %v512, %v511
        %v533 = vpack.c.b16 %v514, %v513
        %v534 = vpack.c.b16 %v516, %v515
        %v535 = vpack.c.b16 %v518, %v517
        %v536 = vpack.c.b16 %v520, %v519
        %v569 = vunpack.c.l.b16 %v434
        %v570 = vunpack.c.l.b16 %v435
        %v571 = vunpack.c.l.b16 %v436
        %v572 = vunpack.c.l.b16 %v437
        %v573 = vunpack.c.l.b16 %v438
        %v574 = vunpack.c.l.b16 %v439
        %v575 = vunpack.c.l.b16 %v440
        %v576 = vunpack.c.l.b16 %v441
        %v577 = vunpack.c.l.b16 %v442
        %v578 = vunpack.c.l.b16 %v443
        %v579 = vunpack.c.l.b16 %v444
        %v580 = vunpack.c.l.b16 %v445
        %v581 = vunpack.c.l.b16 %v446
        %v582 = vunpack.c.l.b16 %v447
        %v583 = vunpack.c.l.b16 %v448
        %v584 = vunpack.c.l.b16 %v449
        %v585 = vpack.c.b16 %v570, %v569
        %v586 = vpack.c.b16 %v572, %v571
        %v587 = vpack.c.b16 %v574, %v573
        %v588 = vpack.c.b16 %v576, %v575
        %v589 = vpack.c.b16 %v578, %v577
        %v590 = vpack.c.b16 %v580, %v579
        %v591 = vpack.c.b16 %v582, %v581
        %v592 = vpack.c.b16 %v584, %v583
        %601 = vmatprep.subr.bf16.mxu0 0
        %602 = vmatpush1.bf16.msra.mxu0 %v585
        %603 = vmatprep.subr.bf16.mxu0 0
        %604 = vmatpush1.bf16.msra.mxu0 %v586
        %605 = vmatprep.subr.bf16.mxu0 0
        %606 = vmatpush1.bf16.msra.mxu0 %v587
        %607 = vmatprep.subr.bf16.mxu0 0
        %608 = vmatpush1.bf16.msra.mxu0 %v588
        %609 = vmatprep.subr.bf16.mxu0 0
        %610 = vmatpush1.bf16.msra.mxu0 %v589
        %611 = vmatprep.subr.bf16.mxu0 0
        %612 = vmatpush1.bf16.msra.mxu0 %v590
        %613 = vmatprep.subr.bf16.mxu0 0
        %614 = vmatpush1.bf16.msra.mxu0 %v591
        %615 = vmatprep.subr.bf16.mxu0 0
        %616 = vmatpush1.bf16.msra.mxu0 %v592
        %617 = vmatprep.subr.bf16.mxu0 0
        %618 = vmatpush1.bf16.msra.mxu0 0
        %619 = vmatprep.subr.bf16.mxu0 0
        %620 = vmatpush1.bf16.msra.mxu0 0
        %621 = vmatprep.subr.bf16.mxu0 0
        %622 = vmatpush1.bf16.msra.mxu0 0
        %623 = vmatprep.subr.bf16.mxu0 0
        %624 = vmatpush1.bf16.msra.mxu0 0
        %625 = vmatprep.subr.bf16.mxu0 0
        %626 = vmatpush1.bf16.msra.mxu0 0
        %627 = vmatprep.subr.bf16.mxu0 0
        %628 = vmatpush1.bf16.msra.mxu0 0
        %629 = vmatprep.subr.bf16.mxu0 0
        %630 = vmatpush1.bf16.msra.mxu0 0
        %631 = vmatprep.subr.bf16.mxu0 0
        %632 = vmatpush1.bf16.msra.mxu0 0
        %633 = vmatprep.mubr.bf16.mxu0 0
        %634 = vmatmul.mubr.bf16.gmra.mrb[0].mxu0 %v521
        %v635 = vpop.f32.mrb[0].mxu0
        %v636 = vadd.f32 %v455, %v635
        %v637 = vpop.f32.mrb[0].mxu0
        %v638 = vpop.f32.mrb[0].mxu0
        %v639 = vadd.f32 %v455, %v638
        %v640 = vpop.f32.mrb[0].mxu0
        %641 = vmatprep.mubr.bf16.mxu0 0
        %642 = vmatmul.mubr.bf16.gmra.mrb[0].mxu0 %v522
        %v643 = vpop.f32.mrb[0].mxu0
        %v644 = vadd.f32 %v455, %v643
        %v645 = vpop.f32.mrb[0].mxu0
        %v646 = vpop.f32.mrb[0].mxu0
        %v647 = vadd.f32 %v455, %v646
        %v648 = vpop.f32.mrb[0].mxu0
        %649 = vmatprep.mubr.bf16.mxu0 0
        %650 = vmatmul.mubr.bf16.gmra.mrb[0].mxu0 %v523
        %v651 = vpop.f32.mrb[0].mxu0
        %v652 = vadd.f32 %v455, %v651
        %v653 = vpop.f32.mrb[0].mxu0
        %v654 = vpop.f32.mrb[0].mxu0
        %v655 = vadd.f32 %v455, %v654
        %v656 = vpop.f32.mrb[0].mxu0
        %657 = vmatprep.mubr.bf16.mxu0 0
        %658 = vmatmul.mubr.bf16.gmra.mrb[0].mxu0 %v524
        %v659 = vpop.f32.mrb[0].mxu0
        %v660 = vadd.f32 %v455, %v659
        %v661 = vpop.f32.mrb[0].mxu0
        %v662 = vpop.f32.mrb[0].mxu0
        %v663 = vadd.f32 %v455, %v662
        %v664 = vpop.f32.mrb[0].mxu0
        %665 = vmatprep.mubr.bf16.mxu0 0
        %666 = vmatmul.mubr.bf16.gmra.mrb[0].mxu0 %v525
        %v667 = vpop.f32.mrb[0].mxu0
        %v668 = vadd.f32 %v455, %v667
        %v669 = vpop.f32.mrb[0].mxu0
        %v670 = vpop.f32.mrb[0].mxu0
        %v671 = vadd.f32 %v455, %v670
        %v672 = vpop.f32.mrb[0].mxu0
        %673 = vmatprep.mubr.bf16.mxu0 0
        %674 = vmatmul.mubr.bf16.gmra.mrb[0].mxu0 %v526
        %v675 = vpop.f32.mrb[0].mxu0
        %v676 = vadd.f32 %v455, %v675
        %v677 = vpop.f32.mrb[0].mxu0
        %v678 = vpop.f32.mrb[0].mxu0
        %v679 = vadd.f32 %v455, %v678
        %v680 = vpop.f32.mrb[0].mxu0
        %681 = vmatprep.mubr.bf16.mxu0 0
        %682 = vmatmul.mubr.bf16.gmra.mrb[0].mxu0 %v527
        %v683 = vpop.f32.mrb[0].mxu0
        %v684 = vadd.f32 %v455, %v683
        %v685 = vpop.f32.mrb[0].mxu0
        %v686 = vpop.f32.mrb[0].mxu0
        %v687 = vadd.f32 %v455, %v686
        %v688 = vpop.f32.mrb[0].mxu0
        %689 = vmatprep.mubr.bf16.mxu0 0
        %690 = vmatmul.mubr.bf16.gmra.mrb[0].mxu0 %v528
        %v691 = vpop.f32.mrb[0].mxu0
        %v692 = vadd.f32 %v455, %v691
        %v693 = vpop.f32.mrb[0].mxu0
        %v694 = vpop.f32.mrb[0].mxu0
        %v695 = vadd.f32 %v455, %v694
        %v696 = vpop.f32.mrb[0].mxu0
        %697 = vmatprep.mubr.bf16.mxu0 0
        %698 = vmatmul.mubr.bf16.gmra.mrb[0].mxu0 %v529
        %v699 = vpop.f32.mrb[0].mxu0
        %v700 = vadd.f32 %v455, %v699
        %v701 = vpop.f32.mrb[0].mxu0
        %v702 = vpop.f32.mrb[0].mxu0
        %v703 = vadd.f32 %v455, %v702
        %v704 = vpop.f32.mrb[0].mxu0
        %705 = vmatprep.mubr.bf16.mxu0 0
        %706 = vmatmul.mubr.bf16.gmra.mrb[0].mxu0 %v530
        %v707 = vpop.f32.mrb[0].mxu0
        %v708 = vadd.f32 %v455, %v707
        %v709 = vpop.f32.mrb[0].mxu0
        %v710 = vpop.f32.mrb[0].mxu0
        %v711 = vadd.f32 %v455, %v710
        %v712 = vpop.f32.mrb[0].mxu0
        %713 = vmatprep.mubr.bf16.mxu0 0
        %714 = vmatmul.mubr.bf16.gmra.mrb[0].mxu0 %v531
        %v715 = vpop.f32.mrb[0].mxu0
        %v716 = vadd.f32 %v455, %v715
        %v717 = vpop.f32.mrb[0].mxu0
        %v718 = vpop.f32.mrb[0].mxu0
        %v719 = vadd.f32 %v455, %v718
        %v720 = vpop.f32.mrb[0].mxu0
        %721 = vmatprep.mubr.bf16.mxu0 0
        %722 = vmatmul.mubr.bf16.gmra.mrb[0].mxu0 %v532
        %v723 = vpop.f32.mrb[0].mxu0
        %v724 = vadd.f32 %v455, %v723
        %v725 = vpop.f32.mrb[0].mxu0
        %v726 = vpop.f32.mrb[0].mxu0
        %v727 = vadd.f32 %v455, %v726
        %v728 = vpop.f32.mrb[0].mxu0
        %729 = vmatprep.mubr.bf16.mxu0 0
        %730 = vmatmul.mubr.bf16.gmra.mrb[0].mxu0 %v533
        %v731 = vpop.f32.mrb[0].mxu0
        %v732 = vadd.f32 %v455, %v731
        %v733 = vpop.f32.mrb[0].mxu0
        %v734 = vpop.f32.mrb[0].mxu0
        %v735 = vadd.f32 %v455, %v734
        %v736 = vpop.f32.mrb[0].mxu0
        %737 = vmatprep.mubr.bf16.mxu0 0
        %738 = vmatmul.mubr.bf16.gmra.mrb[0].mxu0 %v534
        %v739 = vpop.f32.mrb[0].mxu0
        %v740 = vadd.f32 %v455, %v739
        %v741 = vpop.f32.mrb[0].mxu0
        %v742 = vpop.f32.mrb[0].mxu0
        %v743 = vadd.f32 %v455, %v742
        %v744 = vpop.f32.mrb[0].mxu0
        %745 = vmatprep.mubr.bf16.mxu0 0
        %746 = vmatmul.mubr.bf16.gmra.mrb[0].mxu0 %v535
        %v747 = vpop.f32.mrb[0].mxu0
        %v748 = vadd.f32 %v455, %v747
        %v749 = vpop.f32.mrb[0].mxu0
        %v750 = vpop.f32.mrb[0].mxu0
        %v751 = vadd.f32 %v455, %v750
        %v752 = vpop.f32.mrb[0].mxu0
        %753 = vmatprep.mubr.bf16.mxu0 0
        %754 = vmatmul.mubr.bf16.gmra.mrb[0].mxu0 %v536
        %v755 = vpop.f32.mrb[0].mxu0
        %v756 = vadd.f32 %v455, %v755
        %v757 = vpop.f32.mrb[0].mxu0
        %v758 = vpop.f32.mrb[0].mxu0
        %v759 = vadd.f32 %v455, %v758
        %v760 = vpop.f32.mrb[0].mxu0
        %761 = vdwg.mxu0
        %vm762 = vcmask 261120
        %763 = vst.msk [vmem:[#allocation2] sm:$0xff] %vm762, %v636
        %764 = vst.msk [vmem:[#allocation2 + $0x8] sm:$0xff] %vm762, %v639
        %765 = vst.msk [vmem:[#allocation2 + $0x10] sm:$0xff] %vm762, %v644
        %766 = vst.msk [vmem:[#allocation2 + $0x18] sm:$0xff] %vm762, %v647
        %767 = vst.msk [vmem:[#allocation2 + $0x20] sm:$0xff] %vm762, %v652
        %768 = vst.msk [vmem:[#allocation2 + $0x28] sm:$0xff] %vm762, %v655
        %769 = vst.msk [vmem:[#allocation2 + $0x30] sm:$0xff] %vm762, %v660
        %770 = vst.msk [vmem:[#allocation2 + $0x38] sm:$0xff] %vm762, %v663
        %771 = vst.msk [vmem:[#allocation2 + $0x40] sm:$0xff] %vm762, %v668
        %772 = vst.msk [vmem:[#allocation2 + $0x48] sm:$0xff] %vm762, %v671
        %773 = vst.msk [vmem:[#allocation2 + $0x50] sm:$0xff] %vm762, %v676
        %774 = vst.msk [vmem:[#allocation2 + $0x58] sm:$0xff] %vm762, %v679
        %775 = vst.msk [vmem:[#allocation2 + $0x60] sm:$0xff] %vm762, %v684
        %776 = vst.msk [vmem:[#allocation2 + $0x68] sm:$0xff] %vm762, %v687
        %777 = vst.msk [vmem:[#allocation2 + $0x70] sm:$0xff] %vm762, %v692
        %778 = vst.msk [vmem:[#allocation2 + $0x78] sm:$0xff] %vm762, %v695
        %779 = vst.msk [vmem:[#allocation2 + $0x80] sm:$0xff] %vm762, %v700
        %780 = vst.msk [vmem:[#allocation2 + $0x88] sm:$0xff] %vm762, %v703
        %781 = vst.msk [vmem:[#allocation2 + $0x90] sm:$0xff] %vm762, %v708
        %782 = vst.msk [vmem:[#allocation2 + $0x98] sm:$0xff] %vm762, %v711
        %783 = vst.msk [vmem:[#allocation2 + $0xa0] sm:$0xff] %vm762, %v716
        %784 = vst.msk [vmem:[#allocation2 + $0xa8] sm:$0xff] %vm762, %v719
        %785 = vst.msk [vmem:[#allocation2 + $0xb0] sm:$0xff] %vm762, %v724
        %786 = vst.msk [vmem:[#allocation2 + $0xb8] sm:$0xff] %vm762, %v727
        %787 = vst.msk [vmem:[#allocation2 + $0xc0] sm:$0xff] %vm762, %v732
        %788 = vst.msk [vmem:[#allocation2 + $0xc8] sm:$0xff] %vm762, %v735
        %789 = vst.msk [vmem:[#allocation2 + $0xd0] sm:$0xff] %vm762, %v740
        %790 = vst.msk [vmem:[#allocation2 + $0xd8] sm:$0xff] %vm762, %v743
        %791 = vst.msk [vmem:[#allocation2 + $0xe0] sm:$0xff] %vm762, %v748
        %792 = vst.msk [vmem:[#allocation2 + $0xe8] sm:$0xff] %vm762, %v751
        %793 = vst.msk [vmem:[#allocation2 + $0xf0] sm:$0xff] %vm762, %v756
        %794 = vst.msk [vmem:[#allocation2 + $0xf8] sm:$0xff] %vm762, %v759
        %v795 = vld [vmem:[%s329 + $0x80] sm:$0xf]
        %v796 = vld [vmem:[%s329 + $0x84] sm:$0xf]
        %v797 = vld [vmem:[%s329 + $0x88] sm:$0xf]
        %v798 = vld [vmem:[%s329 + $0x8c] sm:$0xf]
        %v799 = vld [vmem:[%s329 + $0x90] sm:$0xf]
        %v800 = vld [vmem:[%s329 + $0x94] sm:$0xf]
        %v801 = vld [vmem:[%s329 + $0x98] sm:$0xf]
        %v802 = vld [vmem:[%s329 + $0x9c] sm:$0xf]
        %v803 = vld [vmem:[%s329 + $0xa0] sm:$0xf]
        %v804 = vld [vmem:[%s329 + $0xa4] sm:$0xf]
        %v805 = vld [vmem:[%s329 + $0xa8] sm:$0xf]
        %v806 = vld [vmem:[%s329 + $0xac] sm:$0xf]
        %v807 = vld [vmem:[%s329 + $0xb0] sm:$0xf]
        %v808 = vld [vmem:[%s329 + $0xb4] sm:$0xf]
        %v809 = vld [vmem:[%s329 + $0xb8] sm:$0xf]
        %v810 = vld [vmem:[%s329 + $0xbc] sm:$0xf]
        %v811 = vld [vmem:[%s329 + $0xc0] sm:$0xf]
        %v812 = vld [vmem:[%s329 + $0xc4] sm:$0xf]
        %v813 = vld [vmem:[%s329 + $0xc8] sm:$0xf]
        %v814 = vld [vmem:[%s329 + $0xcc] sm:$0xf]
        %v815 = vld [vmem:[%s329 + $0xd0] sm:$0xf]
        %v816 = vld [vmem:[%s329 + $0xd4] sm:$0xf]
        %v817 = vld [vmem:[%s329 + $0xd8] sm:$0xf]
        %v818 = vld [vmem:[%s329 + $0xdc] sm:$0xf]
        %v819 = vld [vmem:[%s329 + $0xe0] sm:$0xf]
        %v820 = vld [vmem:[%s329 + $0xe4] sm:$0xf]
        %v821 = vld [vmem:[%s329 + $0xe8] sm:$0xf]
        %v822 = vld [vmem:[%s329 + $0xec] sm:$0xf]
        %v823 = vld [vmem:[%s329 + $0xf0] sm:$0xf]
        %v824 = vld [vmem:[%s329 + $0xf4] sm:$0xf]
        %v825 = vld [vmem:[%s329 + $0xf8] sm:$0xf]
        %v826 = vld [vmem:[%s329 + $0xfc] sm:$0xf]
        %v827 = vld [vmem:[%s1] sm:$0xf]
        %v828 = vld [vmem:[%s1 + $0x4] sm:$0xf]
        %v829 = vld [vmem:[%s1 + $0x8] sm:$0xf]
        %v830 = vld [vmem:[%s1 + $0xc] sm:$0xf]
        %v831 = vld [vmem:[%s1 + $0x10] sm:$0xf]
        %v832 = vld [vmem:[%s1 + $0x14] sm:$0xf]
        %v833 = vld [vmem:[%s1 + $0x18] sm:$0xf]
        %v834 = vld [vmem:[%s1 + $0x1c] sm:$0xf]
        %v835 = vld [vmem:[%s1 + $0x20] sm:$0xf]
        %v836 = vld [vmem:[%s1 + $0x24] sm:$0xf]
        %v837 = vld [vmem:[%s1 + $0x28] sm:$0xf]
        %v838 = vld [vmem:[%s1 + $0x2c] sm:$0xf]
        %v839 = vld [vmem:[%s1 + $0x30] sm:$0xf]
        %v840 = vld [vmem:[%s1 + $0x34] sm:$0xf]
        %v841 = vld [vmem:[%s1 + $0x38] sm:$0xf]
        %v842 = vld [vmem:[%s1 + $0x3c] sm:$0xf]
        %v843 = vld [vmem:[%s2] sm:$0x1]
        %v845 = vlaneseq
        %v846 = vshrl.u32 %v845, 7
        %v847 = vsub.s32 0, %v846
        %v848 = vrot.slane %v843, %v847
        %v882 = vunpack.c.l.b16 %v795
        %v883 = vunpack.c.l.b16 %v796
        %v884 = vunpack.c.l.b16 %v797
        %v885 = vunpack.c.l.b16 %v798
        %v886 = vunpack.c.l.b16 %v799
        %v887 = vunpack.c.l.b16 %v800
        %v888 = vunpack.c.l.b16 %v801
        %v889 = vunpack.c.l.b16 %v802
        %v890 = vunpack.c.l.b16 %v803
        %v891 = vunpack.c.l.b16 %v804
        %v892 = vunpack.c.l.b16 %v805
        %v893 = vunpack.c.l.b16 %v806
        %v894 = vunpack.c.l.b16 %v807
        %v895 = vunpack.c.l.b16 %v808
        %v896 = vunpack.c.l.b16 %v809
        %v897 = vunpack.c.l.b16 %v810
        %v898 = vunpack.c.l.b16 %v811
        %v899 = vunpack.c.l.b16 %v812
        %v900 = vunpack.c.l.b16 %v813
        %v901 = vunpack.c.l.b16 %v814
        %v902 = vunpack.c.l.b16 %v815
        %v903 = vunpack.c.l.b16 %v816
        %v904 = vunpack.c.l.b16 %v817
        %v905 = vunpack.c.l.b16 %v818
        %v906 = vunpack.c.l.b16 %v819
        %v907 = vunpack.c.l.b16 %v820
        %v908 = vunpack.c.l.b16 %v821
        %v909 = vunpack.c.l.b16 %v822
        %v910 = vunpack.c.l.b16 %v823
        %v911 = vunpack.c.l.b16 %v824
        %v912 = vunpack.c.l.b16 %v825
        %v913 = vunpack.c.l.b16 %v826
        %v914 = vpack.c.b16 %v883, %v882
        %v915 = vpack.c.b16 %v885, %v884
        %v916 = vpack.c.b16 %v887, %v886
        %v917 = vpack.c.b16 %v889, %v888
        %v918 = vpack.c.b16 %v891, %v890
        %v919 = vpack.c.b16 %v893, %v892
        %v920 = vpack.c.b16 %v895, %v894
        %v921 = vpack.c.b16 %v897, %v896
        %v922 = vpack.c.b16 %v899, %v898
        %v923 = vpack.c.b16 %v901, %v900
        %v924 = vpack.c.b16 %v903, %v902
        %v925 = vpack.c.b16 %v905, %v904
        %v926 = vpack.c.b16 %v907, %v906
        %v927 = vpack.c.b16 %v909, %v908
        %v928 = vpack.c.b16 %v911, %v910
        %v929 = vpack.c.b16 %v913, %v912
        %v962 = vunpack.c.l.b16 %v827
        %v963 = vunpack.c.l.b16 %v828
        %v964 = vunpack.c.l.b16 %v829
        %v965 = vunpack.c.l.b16 %v830
        %v966 = vunpack.c.l.b16 %v831
        %v967 = vunpack.c.l.b16 %v832
        %v968 = vunpack.c.l.b16 %v833
        %v969 = vunpack.c.l.b16 %v834
        %v970 = vunpack.c.l.b16 %v835
        %v971 = vunpack.c.l.b16 %v836
        %v972 = vunpack.c.l.b16 %v837
        %v973 = vunpack.c.l.b16 %v838
        %v974 = vunpack.c.l.b16 %v839
        %v975 = vunpack.c.l.b16 %v840
        %v976 = vunpack.c.l.b16 %v841
        %v977 = vunpack.c.l.b16 %v842
        %v978 = vpack.c.b16 %v963, %v962
        %v979 = vpack.c.b16 %v965, %v964
        %v980 = vpack.c.b16 %v967, %v966
        %v981 = vpack.c.b16 %v969, %v968
        %v982 = vpack.c.b16 %v971, %v970
        %v983 = vpack.c.b16 %v973, %v972
        %v984 = vpack.c.b16 %v975, %v974
        %v985 = vpack.c.b16 %v977, %v976
        %994 = vmatprep.subr.bf16.mxu0 0
        %995 = vmatpush1.bf16.msra.mxu0 %v978
        %996 = vmatprep.subr.bf16.mxu0 0
        %997 = vmatpush1.bf16.msra.mxu0 %v979
        %998 = vmatprep.subr.bf16.mxu0 0
        %999 = vmatpush1.bf16.msra.mxu0 %v980
        %1000 = vmatprep.subr.bf16.mxu0 0
        %1001 = vmatpush1.bf16.msra.mxu0 %v981
        %1002 = vmatprep.subr.bf16.mxu0 0
        %1003 = vmatpush1.bf16.msra.mxu0 %v982
        %1004 = vmatprep.subr.bf16.mxu0 0
        %1005 = vmatpush1.bf16.msra.mxu0 %v983
        %1006 = vmatprep.subr.bf16.mxu0 0
        %1007 = vmatpush1.bf16.msra.mxu0 %v984
        %1008 = vmatprep.subr.bf16.mxu0 0
        %1009 = vmatpush1.bf16.msra.mxu0 %v985
        %1010 = vmatprep.subr.bf16.mxu0 0
        %1011 = vmatpush1.bf16.msra.mxu0 0
        %1012 = vmatprep.subr.bf16.mxu0 0
        %1013 = vmatpush1.bf16.msra.mxu0 0
        %1014 = vmatprep.subr.bf16.mxu0 0
        %1015 = vmatpush1.bf16.msra.mxu0 0
        %1016 = vmatprep.subr.bf16.mxu0 0
        %1017 = vmatpush1.bf16.msra.mxu0 0
        %1018 = vmatprep.subr.bf16.mxu0 0
        %1019 = vmatpush1.bf16.msra.mxu0 0
        %1020 = vmatprep.subr.bf16.mxu0 0
        %1021 = vmatpush1.bf16.msra.mxu0 0
        %1022 = vmatprep.subr.bf16.mxu0 0
        %1023 = vmatpush1.bf16.msra.mxu0 0
        %1024 = vmatprep.subr.bf16.mxu0 0
        %1025 = vmatpush1.bf16.msra.mxu0 0
        %1026 = vmatprep.mubr.bf16.mxu0 0
        %1027 = vmatmul.mubr.bf16.gmra.mrb[0].mxu0 %v914
        %v1028 = vpop.f32.mrb[0].mxu0
        %v1029 = vadd.f32 %v848, %v1028
        %v1030 = vpop.f32.mrb[0].mxu0
        %v1031 = vpop.f32.mrb[0].mxu0
        %v1032 = vadd.f32 %v848, %v1031
        %v1033 = vpop.f32.mrb[0].mxu0
        %1034 = vmatprep.mubr.bf16.mxu0 0
        %1035 = vmatmul.mubr.bf16.gmra.mrb[0].mxu0 %v915
        %v1036 = vpop.f32.mrb[0].mxu0
        %v1037 = vadd.f32 %v848, %v1036
        %v1038 = vpop.f32.mrb[0].mxu0
        %v1039 = vpop.f32.mrb[0].mxu0
        %v1040 = vadd.f32 %v848, %v1039
        %v1041 = vpop.f32.mrb[0].mxu0
        %1042 = vmatprep.mubr.bf16.mxu0 0
        %1043 = vmatmul.mubr.bf16.gmra.mrb[0].mxu0 %v916
        %v1044 = vpop.f32.mrb[0].mxu0
        %v1045 = vadd.f32 %v848, %v1044
        %v1046 = vpop.f32.mrb[0].mxu0
        %v1047 = vpop.f32.mrb[0].mxu0
        %v1048 = vadd.f32 %v848, %v1047
        %v1049 = vpop.f32.mrb[0].mxu0
        %1050 = vmatprep.mubr.bf16.mxu0 0
        %1051 = vmatmul.mubr.bf16.gmra.mrb[0].mxu0 %v917
        %v1052 = vpop.f32.mrb[0].mxu0
        %v1053 = vadd.f32 %v848, %v1052
        %v1054 = vpop.f32.mrb[0].mxu0
        %v1055 = vpop.f32.mrb[0].mxu0
        %v1056 = vadd.f32 %v848, %v1055
        %v1057 = vpop.f32.mrb[0].mxu0
        %1058 = vmatprep.mubr.bf16.mxu0 0
        %1059 = vmatmul.mubr.bf16.gmra.mrb[0].mxu0 %v918
        %v1060 = vpop.f32.mrb[0].mxu0
        %v1061 = vadd.f32 %v848, %v1060
        %v1062 = vpop.f32.mrb[0].mxu0
        %v1063 = vpop.f32.mrb[0].mxu0
        %v1064 = vadd.f32 %v848, %v1063
        %v1065 = vpop.f32.mrb[0].mxu0
        %1066 = vmatprep.mubr.bf16.mxu0 0
        %1067 = vmatmul.mubr.bf16.gmra.mrb[0].mxu0 %v919
        %v1068 = vpop.f32.mrb[0].mxu0
        %v1069 = vadd.f32 %v848, %v1068
        %v1070 = vpop.f32.mrb[0].mxu0
        %v1071 = vpop.f32.mrb[0].mxu0
        %v1072 = vadd.f32 %v848, %v1071
        %v1073 = vpop.f32.mrb[0].mxu0
        %1074 = vmatprep.mubr.bf16.mxu0 0
        %1075 = vmatmul.mubr.bf16.gmra.mrb[0].mxu0 %v920
        %v1076 = vpop.f32.mrb[0].mxu0
        %v1077 = vadd.f32 %v848, %v1076
        %v1078 = vpop.f32.mrb[0].mxu0
        %v1079 = vpop.f32.mrb[0].mxu0
        %v1080 = vadd.f32 %v848, %v1079
        %v1081 = vpop.f32.mrb[0].mxu0
        %1082 = vmatprep.mubr.bf16.mxu0 0
        %1083 = vmatmul.mubr.bf16.gmra.mrb[0].mxu0 %v921
        %v1084 = vpop.f32.mrb[0].mxu0
        %v1085 = vadd.f32 %v848, %v1084
        %v1086 = vpop.f32.mrb[0].mxu0
        %v1087 = vpop.f32.mrb[0].mxu0
        %v1088 = vadd.f32 %v848, %v1087
        %v1089 = vpop.f32.mrb[0].mxu0
        %1090 = vmatprep.mubr.bf16.mxu0 0
        %1091 = vmatmul.mubr.bf16.gmra.mrb[0].mxu0 %v922
        %v1092 = vpop.f32.mrb[0].mxu0
        %v1093 = vadd.f32 %v848, %v1092
        %v1094 = vpop.f32.mrb[0].mxu0
        %v1095 = vpop.f32.mrb[0].mxu0
        %v1096 = vadd.f32 %v848, %v1095
        %v1097 = vpop.f32.mrb[0].mxu0
        %1098 = vmatprep.mubr.bf16.mxu0 0
        %1099 = vmatmul.mubr.bf16.gmra.mrb[0].mxu0 %v923
        %v1100 = vpop.f32.mrb[0].mxu0
        %v1101 = vadd.f32 %v848, %v1100
        %v1102 = vpop.f32.mrb[0].mxu0
        %v1103 = vpop.f32.mrb[0].mxu0
        %v1104 = vadd.f32 %v848, %v1103
        %v1105 = vpop.f32.mrb[0].mxu0
        %1106 = vmatprep.mubr.bf16.mxu0 0
        %1107 = vmatmul.mubr.bf16.gmra.mrb[0].mxu0 %v924
        %v1108 = vpop.f32.mrb[0].mxu0
        %v1109 = vadd.f32 %v848, %v1108
        %v1110 = vpop.f32.mrb[0].mxu0
        %v1111 = vpop.f32.mrb[0].mxu0
        %v1112 = vadd.f32 %v848, %v1111
        %v1113 = vpop.f32.mrb[0].mxu0
        %1114 = vmatprep.mubr.bf16.mxu0 0
        %1115 = vmatmul.mubr.bf16.gmra.mrb[0].mxu0 %v925
        %v1116 = vpop.f32.mrb[0].mxu0
        %v1117 = vadd.f32 %v848, %v1116
        %v1118 = vpop.f32.mrb[0].mxu0
        %v1119 = vpop.f32.mrb[0].mxu0
        %v1120 = vadd.f32 %v848, %v1119
        %v1121 = vpop.f32.mrb[0].mxu0
        %1122 = vmatprep.mubr.bf16.mxu0 0
        %1123 = vmatmul.mubr.bf16.gmra.mrb[0].mxu0 %v926
        %v1124 = vpop.f32.mrb[0].mxu0
        %v1125 = vadd.f32 %v848, %v1124
        %v1126 = vpop.f32.mrb[0].mxu0
        %v1127 = vpop.f32.mrb[0].mxu0
        %v1128 = vadd.f32 %v848, %v1127
        %v1129 = vpop.f32.mrb[0].mxu0
        %1130 = vmatprep.mubr.bf16.mxu0 0
        %1131 = vmatmul.mubr.bf16.gmra.mrb[0].mxu0 %v927
        %v1132 = vpop.f32.mrb[0].mxu0
        %v1133 = vadd.f32 %v848, %v1132
        %v1134 = vpop.f32.mrb[0].mxu0
        %v1135 = vpop.f32.mrb[0].mxu0
        %v1136 = vadd.f32 %v848, %v1135
        %v1137 = vpop.f32.mrb[0].mxu0
        %1138 = vmatprep.mubr.bf16.mxu0 0
        %1139 = vmatmul.mubr.bf16.gmra.mrb[0].mxu0 %v928
        %v1140 = vpop.f32.mrb[0].mxu0
        %v1141 = vadd.f32 %v848, %v1140
        %v1142 = vpop.f32.mrb[0].mxu0
        %v1143 = vpop.f32.mrb[0].mxu0
        %v1144 = vadd.f32 %v848, %v1143
        %v1145 = vpop.f32.mrb[0].mxu0
        %1146 = vmatprep.mubr.bf16.mxu0 0
        %1147 = vmatmul.mubr.bf16.gmra.mrb[0].mxu0 %v929
        %v1148 = vpop.f32.mrb[0].mxu0
        %v1149 = vadd.f32 %v848, %v1148
        %v1150 = vpop.f32.mrb[0].mxu0
        %v1151 = vpop.f32.mrb[0].mxu0
        %v1152 = vadd.f32 %v848, %v1151
        %v1153 = vpop.f32.mrb[0].mxu0
        %1154 = vdwg.mxu0
        %1155 = vst.msk [vmem:[#allocation2 + $0x100] sm:$0xff] %vm762, %v1029
        %1156 = vst.msk [vmem:[#allocation2 + $0x108] sm:$0xff] %vm762, %v1032
        %1157 = vst.msk [vmem:[#allocation2 + $0x110] sm:$0xff] %vm762, %v1037
        %1158 = vst.msk [vmem:[#allocation2 + $0x118] sm:$0xff] %vm762, %v1040
        %1159 = vst.msk [vmem:[#allocation2 + $0x120] sm:$0xff] %vm762, %v1045
        %1160 = vst.msk [vmem:[#allocation2 + $0x128] sm:$0xff] %vm762, %v1048
        %1161 = vst.msk [vmem:[#allocation2 + $0x130] sm:$0xff] %vm762, %v1053
        %1162 = vst.msk [vmem:[#allocation2 + $0x138] sm:$0xff] %vm762, %v1056
        %1163 = vst.msk [vmem:[#allocation2 + $0x140] sm:$0xff] %vm762, %v1061
        %1164 = vst.msk [vmem:[#allocation2 + $0x148] sm:$0xff] %vm762, %v1064
        %1165 = vst.msk [vmem:[#allocation2 + $0x150] sm:$0xff] %vm762, %v1069
        %1166 = vst.msk [vmem:[#allocation2 + $0x158] sm:$0xff] %vm762, %v1072
        %1167 = vst.msk [vmem:[#allocation2 + $0x160] sm:$0xff] %vm762, %v1077
        %1168 = vst.msk [vmem:[#allocation2 + $0x168] sm:$0xff] %vm762, %v1080
        %1169 = vst.msk [vmem:[#allocation2 + $0x170] sm:$0xff] %vm762, %v1085
        %1170 = vst.msk [vmem:[#allocation2 + $0x178] sm:$0xff] %vm762, %v1088
        %1171 = vst.msk [vmem:[#allocation2 + $0x180] sm:$0xff] %vm762, %v1093
        %1172 = vst.msk [vmem:[#allocation2 + $0x188] sm:$0xff] %vm762, %v1096
        %1173 = vst.msk [vmem:[#allocation2 + $0x190] sm:$0xff] %vm762, %v1101
        %1174 = vst.msk [vmem:[#allocation2 + $0x198] sm:$0xff] %vm762, %v1104
        %1175 = vst.msk [vmem:[#allocation2 + $0x1a0] sm:$0xff] %vm762, %v1109
        %1176 = vst.msk [vmem:[#allocation2 + $0x1a8] sm:$0xff] %vm762, %v1112
        %1177 = vst.msk [vmem:[#allocation2 + $0x1b0] sm:$0xff] %vm762, %v1117
        %1178 = vst.msk [vmem:[#allocation2 + $0x1b8] sm:$0xff] %vm762, %v1120
        %1179 = vst.msk [vmem:[#allocation2 + $0x1c0] sm:$0xff] %vm762, %v1125
        %1180 = vst.msk [vmem:[#allocation2 + $0x1c8] sm:$0xff] %vm762, %v1128
        %1181 = vst.msk [vmem:[#allocation2 + $0x1d0] sm:$0xff] %vm762, %v1133
        %1182 = vst.msk [vmem:[#allocation2 + $0x1d8] sm:$0xff] %vm762, %v1136
        %1183 = vst.msk [vmem:[#allocation2 + $0x1e0] sm:$0xff] %vm762, %v1141
        %1184 = vst.msk [vmem:[#allocation2 + $0x1e8] sm:$0xff] %vm762, %v1144
        %1185 = vst.msk [vmem:[#allocation2 + $0x1f0] sm:$0xff] %vm762, %v1149
        %1186 = vst.msk [vmem:[#allocation2 + $0x1f8] sm:$0xff] %vm762, %v1152
        %v1187 = vld [vmem:[%s329 + $0x100] sm:$0xf]
        %v1188 = vld [vmem:[%s329 + $0x104] sm:$0xf]
        %v1189 = vld [vmem:[%s329 + $0x108] sm:$0xf]
        %v1190 = vld [vmem:[%s329 + $0x10c] sm:$0xf]
        %v1191 = vld [vmem:[%s329 + $0x110] sm:$0xf]
        %v1192 = vld [vmem:[%s329 + $0x114] sm:$0xf]
        %v1193 = vld [vmem:[%s329 + $0x118] sm:$0xf]
        %v1194 = vld [vmem:[%s329 + $0x11c] sm:$0xf]
        %v1195 = vld [vmem:[%s329 + $0x120] sm:$0xf]
        %v1196 = vld [vmem:[%s329 + $0x124] sm:$0xf]
        %v1197 = vld [vmem:[%s329 + $0x128] sm:$0xf]
        %v1198 = vld [vmem:[%s329 + $0x12c] sm:$0xf]
        %v1199 = vld [vmem:[%s329 + $0x130] sm:$0xf]
        %v1200 = vld [vmem:[%s329 + $0x134] sm:$0xf]
        %v1201 = vld [vmem:[%s329 + $0x138] sm:$0xf]
        %v1202 = vld [vmem:[%s329 + $0x13c] sm:$0xf]
        %v1203 = vld [vmem:[%s329 + $0x140] sm:$0xf]
        %v1204 = vld [vmem:[%s329 + $0x144] sm:$0xf]
        %v1205 = vld [vmem:[%s329 + $0x148] sm:$0xf]
        %v1206 = vld [vmem:[%s329 + $0x14c] sm:$0xf]
        %v1207 = vld [vmem:[%s329 + $0x150] sm:$0xf]
        %v1208 = vld [vmem:[%s329 + $0x154] sm:$0xf]
        %v1209 = vld [vmem:[%s329 + $0x158] sm:$0xf]
        %v1210 = vld [vmem:[%s329 + $0x15c] sm:$0xf]
        %v1211 = vld [vmem:[%s329 + $0x160] sm:$0xf]
        %v1212 = vld [vmem:[%s329 + $0x164] sm:$0xf]
        %v1213 = vld [vmem:[%s329 + $0x168] sm:$0xf]
        %v1214 = vld [vmem:[%s329 + $0x16c] sm:$0xf]
        %v1215 = vld [vmem:[%s329 + $0x170] sm:$0xf]
        %v1216 = vld [vmem:[%s329 + $0x174] sm:$0xf]
        %v1217 = vld [vmem:[%s329 + $0x178] sm:$0xf]
        %v1218 = vld [vmem:[%s329 + $0x17c] sm:$0xf]
        %v1219 = vld [vmem:[%s1] sm:$0xf]
        %v1220 = vld [vmem:[%s1 + $0x4] sm:$0xf]
        %v1221 = vld [vmem:[%s1 + $0x8] sm:$0xf]
        %v1222 = vld [vmem:[%s1 + $0xc] sm:$0xf]
        %v1223 = vld [vmem:[%s1 + $0x10] sm:$0xf]
        %v1224 = vld [vmem:[%s1 + $0x14] sm:$0xf]
        %v1225 = vld [vmem:[%s1 + $0x18] sm:$0xf]
        %v1226 = vld [vmem:[%s1 + $0x1c] sm:$0xf]
        %v1227 = vld [vmem:[%s1 + $0x20] sm:$0xf]
        %v1228 = vld [vmem:[%s1 + $0x24] sm:$0xf]
        %v1229 = vld [vmem:[%s1 + $0x28] sm:$0xf]
        %v1230 = vld [vmem:[%s1 + $0x2c] sm:$0xf]
        %v1231 = vld [vmem:[%s1 + $0x30] sm:$0xf]
        %v1232 = vld [vmem:[%s1 + $0x34] sm:$0xf]
        %v1233 = vld [vmem:[%s1 + $0x38] sm:$0xf]
        %v1234 = vld [vmem:[%s1 + $0x3c] sm:$0xf]
        %v1235 = vld [vmem:[%s2] sm:$0x1]
        %v1237 = vlaneseq
        %v1238 = vshrl.u32 %v1237, 7
        %v1239 = vsub.s32 0, %v1238
        %v1240 = vrot.slane %v1235, %v1239
        %v1274 = vunpack.c.l.b16 %v1187
        %v1275 = vunpack.c.l.b16 %v1188
        %v1276 = vunpack.c.l.b16 %v1189
        %v1277 = vunpack.c.l.b16 %v1190
        %v1278 = vunpack.c.l.b16 %v1191
        %v1279 = vunpack.c.l.b16 %v1192
        %v1280 = vunpack.c.l.b16 %v1193
        %v1281 = vunpack.c.l.b16 %v1194
        %v1282 = vunpack.c.l.b16 %v1195
        %v1283 = vunpack.c.l.b16 %v1196
        %v1284 = vunpack.c.l.b16 %v1197
        %v1285 = vunpack.c.l.b16 %v1198
        %v1286 = vunpack.c.l.b16 %v1199
        %v1287 = vunpack.c.l.b16 %v1200
        %v1288 = vunpack.c.l.b16 %v1201
        %v1289 = vunpack.c.l.b16 %v1202
        %v1290 = vunpack.c.l.b16 %v1203
        %v1291 = vunpack.c.l.b16 %v1204
        %v1292 = vunpack.c.l.b16 %v1205
        %v1293 = vunpack.c.l.b16 %v1206
        %v1294 = vunpack.c.l.b16 %v1207
        %v1295 = vunpack.c.l.b16 %v1208
        %v1296 = vunpack.c.l.b16 %v1209
        %v1297 = vunpack.c.l.b16 %v1210
        %v1298 = vunpack.c.l.b16 %v1211
        %v1299 = vunpack.c.l.b16 %v1212
        %v1300 = vunpack.c.l.b16 %v1213
        %v1301 = vunpack.c.l.b16 %v1214
        %v1302 = vunpack.c.l.b16 %v1215
        %v1303 = vunpack.c.l.b16 %v1216
        %v1304 = vunpack.c.l.b16 %v1217
        %v1305 = vunpack.c.l.b16 %v1218
        %v1306 = vpack.c.b16 %v1275, %v1274
        %v1307 = vpack.c.b16 %v1277, %v1276
        %v1308 = vpack.c.b16 %v1279, %v1278
        %v1309 = vpack.c.b16 %v1281, %v1280
        %v1310 = vpack.c.b16 %v1283, %v1282
        %v1311 = vpack.c.b16 %v1285, %v1284
        %v1312 = vpack.c.b16 %v1287, %v1286
        %v1313 = vpack.c.b16 %v1289, %v1288
        %v1314 = vpack.c.b16 %v1291, %v1290
        %v1315 = vpack.c.b16 %v1293, %v1292
        %v1316 = vpack.c.b16 %v1295, %v1294
        %v1317 = vpack.c.b16 %v1297, %v1296
        %v1318 = vpack.c.b16 %v1299, %v1298
        %v1319 = vpack.c.b16 %v1301, %v1300
        %v1320 = vpack.c.b16 %v1303, %v1302
        %v1321 = vpack.c.b16 %v1305, %v1304
        %v1354 = vunpack.c.l.b16 %v1219
        %v1355 = vunpack.c.l.b16 %v1220
        %v1356 = vunpack.c.l.b16 %v1221
        %v1357 = vunpack.c.l.b16 %v1222
        %v1358 = vunpack.c.l.b16 %v1223
        %v1359 = vunpack.c.l.b16 %v1224
        %v1360 = vunpack.c.l.b16 %v1225
        %v1361 = vunpack.c.l.b16 %v1226
        %v1362 = vunpack.c.l.b16 %v1227
        %v1363 = vunpack.c.l.b16 %v1228
        %v1364 = vunpack.c.l.b16 %v1229
        %v1365 = vunpack.c.l.b16 %v1230
        %v1366 = vunpack.c.l.b16 %v1231
        %v1367 = vunpack.c.l.b16 %v1232
        %v1368 = vunpack.c.l.b16 %v1233
        %v1369 = vunpack.c.l.b16 %v1234
        %v1370 = vpack.c.b16 %v1355, %v1354
        %v1371 = vpack.c.b16 %v1357, %v1356
        %v1372 = vpack.c.b16 %v1359, %v1358
        %v1373 = vpack.c.b16 %v1361, %v1360
        %v1374 = vpack.c.b16 %v1363, %v1362
        %v1375 = vpack.c.b16 %v1365, %v1364
        %v1376 = vpack.c.b16 %v1367, %v1366
        %v1377 = vpack.c.b16 %v1369, %v1368
        %1386 = vmatprep.subr.bf16.mxu0 0
        %1387 = vmatpush1.bf16.msra.mxu0 %v1370
        %1388 = vmatprep.subr.bf16.mxu0 0
        %1389 = vmatpush1.bf16.msra.mxu0 %v1371
        %1390 = vmatprep.subr.bf16.mxu0 0
        %1391 = vmatpush1.bf16.msra.mxu0 %v1372
        %1392 = vmatprep.subr.bf16.mxu0 0
        %1393 = vmatpush1.bf16.msra.mxu0 %v1373
        %1394 = vmatprep.subr.bf16.mxu0 0
        %1395 = vmatpush1.bf16.msra.mxu0 %v1374
        %1396 = vmatprep.subr.bf16.mxu0 0
        %1397 = vmatpush1.bf16.msra.mxu0 %v1375
        %1398 = vmatprep.subr.bf16.mxu0 0
        %1399 = vmatpush1.bf16.msra.mxu0 %v1376
        %1400 = vmatprep.subr.bf16.mxu0 0
        %1401 = vmatpush1.bf16.msra.mxu0 %v1377
        %1402 = vmatprep.subr.bf16.mxu0 0
        %1403 = vmatpush1.bf16.msra.mxu0 0
        %1404 = vmatprep.subr.bf16.mxu0 0
        %1405 = vmatpush1.bf16.msra.mxu0 0
        %1406 = vmatprep.subr.bf16.mxu0 0
        %1407 = vmatpush1.bf16.msra.mxu0 0
        %1408 = vmatprep.subr.bf16.mxu0 0
        %1409 = vmatpush1.bf16.msra.mxu0 0
        %1410 = vmatprep.subr.bf16.mxu0 0
        %1411 = vmatpush1.bf16.msra.mxu0 0
        %1412 = vmatprep.subr.bf16.mxu0 0
        %1413 = vmatpush1.bf16.msra.mxu0 0
        %1414 = vmatprep.subr.bf16.mxu0 0
        %1415 = vmatpush1.bf16.msra.mxu0 0
        %1416 = vmatprep.subr.bf16.mxu0 0
        %1417 = vmatpush1.bf16.msra.mxu0 0
        %1418 = vmatprep.mubr.bf16.mxu0 0
        %1419 = vmatmul.mubr.bf16.gmra.mrb[0].mxu0 %v1306
        %v1420 = vpop.f32.mrb[0].mxu0
        %v1421 = vadd.f32 %v1240, %v1420
        %v1422 = vpop.f32.mrb[0].mxu0
        %v1423 = vpop.f32.mrb[0].mxu0
        %v1424 = vadd.f32 %v1240, %v1423
        %v1425 = vpop.f32.mrb[0].mxu0
        %1426 = vmatprep.mubr.bf16.mxu0 0
        %1427 = vmatmul.mubr.bf16.gmra.mrb[0].mxu0 %v1307
        %v1428 = vpop.f32.mrb[0].mxu0
        %v1429 = vadd.f32 %v1240, %v1428
        %v1430 = vpop.f32.mrb[0].mxu0
        %v1431 = vpop.f32.mrb[0].mxu0
        %v1432 = vadd.f32 %v1240, %v1431
        %v1433 = vpop.f32.mrb[0].mxu0
        %1434 = vmatprep.mubr.bf16.mxu0 0
        %1435 = vmatmul.mubr.bf16.gmra.mrb[0].mxu0 %v1308
        %v1436 = vpop.f32.mrb[0].mxu0
        %v1437 = vadd.f32 %v1240, %v1436
        %v1438 = vpop.f32.mrb[0].mxu0
        %v1439 = vpop.f32.mrb[0].mxu0
        %v1440 = vadd.f32 %v1240, %v1439
        %v1441 = vpop.f32.mrb[0].mxu0
        %1442 = vmatprep.mubr.bf16.mxu0 0
        %1443 = vmatmul.mubr.bf16.gmra.mrb[0].mxu0 %v1309
        %v1444 = vpop.f32.mrb[0].mxu0
        %v1445 = vadd.f32 %v1240, %v1444
        %v1446 = vpop.f32.mrb[0].mxu0
        %v1447 = vpop.f32.mrb[0].mxu0
        %v1448 = vadd.f32 %v1240, %v1447
        %v1449 = vpop.f32.mrb[0].mxu0
        %1450 = vmatprep.mubr.bf16.mxu0 0
        %1451 = vmatmul.mubr.bf16.gmra.mrb[0].mxu0 %v1310
        %v1452 = vpop.f32.mrb[0].mxu0
        %v1453 = vadd.f32 %v1240, %v1452
        %v1454 = vpop.f32.mrb[0].mxu0
        %v1455 = vpop.f32.mrb[0].mxu0
        %v1456 = vadd.f32 %v1240, %v1455
        %v1457 = vpop.f32.mrb[0].mxu0
        %1458 = vmatprep.mubr.bf16.mxu0 0
        %1459 = vmatmul.mubr.bf16.gmra.mrb[0].mxu0 %v1311
        %v1460 = vpop.f32.mrb[0].mxu0
        %v1461 = vadd.f32 %v1240, %v1460
        %v1462 = vpop.f32.mrb[0].mxu0
        %v1463 = vpop.f32.mrb[0].mxu0
        %v1464 = vadd.f32 %v1240, %v1463
        %v1465 = vpop.f32.mrb[0].mxu0
        %1466 = vmatprep.mubr.bf16.mxu0 0
        %1467 = vmatmul.mubr.bf16.gmra.mrb[0].mxu0 %v1312
        %v1468 = vpop.f32.mrb[0].mxu0
        %v1469 = vadd.f32 %v1240, %v1468
        %v1470 = vpop.f32.mrb[0].mxu0
        %v1471 = vpop.f32.mrb[0].mxu0
        %v1472 = vadd.f32 %v1240, %v1471
        %v1473 = vpop.f32.mrb[0].mxu0
        %1474 = vmatprep.mubr.bf16.mxu0 0
        %1475 = vmatmul.mubr.bf16.gmra.mrb[0].mxu0 %v1313
        %v1476 = vpop.f32.mrb[0].mxu0
        %v1477 = vadd.f32 %v1240, %v1476
        %v1478 = vpop.f32.mrb[0].mxu0
        %v1479 = vpop.f32.mrb[0].mxu0
        %v1480 = vadd.f32 %v1240, %v1479
        %v1481 = vpop.f32.mrb[0].mxu0
        %1482 = vmatprep.mubr.bf16.mxu0 0
        %1483 = vmatmul.mubr.bf16.gmra.mrb[0].mxu0 %v1314
        %v1484 = vpop.f32.mrb[0].mxu0
        %v1485 = vadd.f32 %v1240, %v1484
        %v1486 = vpop.f32.mrb[0].mxu0
        %v1487 = vpop.f32.mrb[0].mxu0
        %v1488 = vadd.f32 %v1240, %v1487
        %v1489 = vpop.f32.mrb[0].mxu0
        %1490 = vmatprep.mubr.bf16.mxu0 0
        %1491 = vmatmul.mubr.bf16.gmra.mrb[0].mxu0 %v1315
        %v1492 = vpop.f32.mrb[0].mxu0
        %v1493 = vadd.f32 %v1240, %v1492
        %v1494 = vpop.f32.mrb[0].mxu0
        %v1495 = vpop.f32.mrb[0].mxu0
        %v1496 = vadd.f32 %v1240, %v1495
        %v1497 = vpop.f32.mrb[0].mxu0
        %1498 = vmatprep.mubr.bf16.mxu0 0
        %1499 = vmatmul.mubr.bf16.gmra.mrb[0].mxu0 %v1316
        %v1500 = vpop.f32.mrb[0].mxu0
        %v1501 = vadd.f32 %v1240, %v1500
        %v1502 = vpop.f32.mrb[0].mxu0
        %v1503 = vpop.f32.mrb[0].mxu0
        %v1504 = vadd.f32 %v1240, %v1503
        %v1505 = vpop.f32.mrb[0].mxu0
        %1506 = vmatprep.mubr.bf16.mxu0 0
        %1507 = vmatmul.mubr.bf16.gmra.mrb[0].mxu0 %v1317
        %v1508 = vpop.f32.mrb[0].mxu0
        %v1509 = vadd.f32 %v1240, %v1508
        %v1510 = vpop.f32.mrb[0].mxu0
        %v1511 = vpop.f32.mrb[0].mxu0
        %v1512 = vadd.f32 %v1240, %v1511
        %v1513 = vpop.f32.mrb[0].mxu0
        %1514 = vmatprep.mubr.bf16.mxu0 0
        %1515 = vmatmul.mubr.bf16.gmra.mrb[0].mxu0 %v1318
        %v1516 = vpop.f32.mrb[0].mxu0
        %v1517 = vadd.f32 %v1240, %v1516
        %v1518 = vpop.f32.mrb[0].mxu0
        %v1519 = vpop.f32.mrb[0].mxu0
        %v1520 = vadd.f32 %v1240, %v1519
        %v1521 = vpop.f32.mrb[0].mxu0
        %1522 = vmatprep.mubr.bf16.mxu0 0
        %1523 = vmatmul.mubr.bf16.gmra.mrb[0].mxu0 %v1319
        %v1524 = vpop.f32.mrb[0].mxu0
        %v1525 = vadd.f32 %v1240, %v1524
        %v1526 = vpop.f32.mrb[0].mxu0
        %v1527 = vpop.f32.mrb[0].mxu0
        %v1528 = vadd.f32 %v1240, %v1527
        %v1529 = vpop.f32.mrb[0].mxu0
        %1530 = vmatprep.mubr.bf16.mxu0 0
        %1531 = vmatmul.mubr.bf16.gmra.mrb[0].mxu0 %v1320
        %v1532 = vpop.f32.mrb[0].mxu0
        %v1533 = vadd.f32 %v1240, %v1532
        %v1534 = vpop.f32.mrb[0].mxu0
        %v1535 = vpop.f32.mrb[0].mxu0
        %v1536 = vadd.f32 %v1240, %v1535
        %v1537 = vpop.f32.mrb[0].mxu0
        %1538 = vmatprep.mubr.bf16.mxu0 0
        %1539 = vmatmul.mubr.bf16.gmra.mrb[0].mxu0 %v1321
        %v1540 = vpop.f32.mrb[0].mxu0
        %v1541 = vadd.f32 %v1240, %v1540
        %v1542 = vpop.f32.mrb[0].mxu0
        %v1543 = vpop.f32.mrb[0].mxu0
        %v1544 = vadd.f32 %v1240, %v1543
        %v1545 = vpop.f32.mrb[0].mxu0
        %1546 = vdwg.mxu0
        %1547 = vst.msk [vmem:[#allocation2 + $0x200] sm:$0xff] %vm762, %v1421
        %1548 = vst.msk [vmem:[#allocation2 + $0x208] sm:$0xff] %vm762, %v1424
        %1549 = vst.msk [vmem:[#allocation2 + $0x210] sm:$0xff] %vm762, %v1429
        %1550 = vst.msk [vmem:[#allocation2 + $0x218] sm:$0xff] %vm762, %v1432
        %1551 = vst.msk [vmem:[#allocation2 + $0x220] sm:$0xff] %vm762, %v1437
        %1552 = vst.msk [vmem:[#allocation2 + $0x228] sm:$0xff] %vm762, %v1440
        %1553 = vst.msk [vmem:[#allocation2 + $0x230] sm:$0xff] %vm762, %v1445
        %1554 = vst.msk [vmem:[#allocation2 + $0x238] sm:$0xff] %vm762, %v1448
        %1555 = vst.msk [vmem:[#allocation2 + $0x240] sm:$0xff] %vm762, %v1453
        %1556 = vst.msk [vmem:[#allocation2 + $0x248] sm:$0xff] %vm762, %v1456
        %1557 = vst.msk [vmem:[#allocation2 + $0x250] sm:$0xff] %vm762, %v1461
        %1558 = vst.msk [vmem:[#allocation2 + $0x258] sm:$0xff] %vm762, %v1464
        %1559 = vst.msk [vmem:[#allocation2 + $0x260] sm:$0xff] %vm762, %v1469
        %1560 = vst.msk [vmem:[#allocation2 + $0x268] sm:$0xff] %vm762, %v1472
        %1561 = vst.msk [vmem:[#allocation2 + $0x270] sm:$0xff] %vm762, %v1477
        %1562 = vst.msk [vmem:[#allocation2 + $0x278] sm:$0xff] %vm762, %v1480
        %1563 = vst.msk [vmem:[#allocation2 + $0x280] sm:$0xff] %vm762, %v1485
        %1564 = vst.msk [vmem:[#allocation2 + $0x288] sm:$0xff] %vm762, %v1488
        %1565 = vst.msk [vmem:[#allocation2 + $0x290] sm:$0xff] %vm762, %v1493
        %1566 = vst.msk [vmem:[#allocation2 + $0x298] sm:$0xff] %vm762, %v1496
        %1567 = vst.msk [vmem:[#allocation2 + $0x2a0] sm:$0xff] %vm762, %v1501
        %1568 = vst.msk [vmem:[#allocation2 + $0x2a8] sm:$0xff] %vm762, %v1504
        %1569 = vst.msk [vmem:[#allocation2 + $0x2b0] sm:$0xff] %vm762, %v1509
        %1570 = vst.msk [vmem:[#allocation2 + $0x2b8] sm:$0xff] %vm762, %v1512
        %1571 = vst.msk [vmem:[#allocation2 + $0x2c0] sm:$0xff] %vm762, %v1517
        %1572 = vst.msk [vmem:[#allocation2 + $0x2c8] sm:$0xff] %vm762, %v1520
        %1573 = vst.msk [vmem:[#allocation2 + $0x2d0] sm:$0xff] %vm762, %v1525
        %1574 = vst.msk [vmem:[#allocation2 + $0x2d8] sm:$0xff] %vm762, %v1528
        %1575 = vst.msk [vmem:[#allocation2 + $0x2e0] sm:$0xff] %vm762, %v1533
        %1576 = vst.msk [vmem:[#allocation2 + $0x2e8] sm:$0xff] %vm762, %v1536
        %1577 = vst.msk [vmem:[#allocation2 + $0x2f0] sm:$0xff] %vm762, %v1541
        %1578 = vst.msk [vmem:[#allocation2 + $0x2f8] sm:$0xff] %vm762, %v1544
        %v1579 = vld [vmem:[%s329 + $0x180] sm:$0xf]
        %v1580 = vld [vmem:[%s329 + $0x184] sm:$0xf]
        %v1581 = vld [vmem:[%s329 + $0x188] sm:$0xf]
        %v1582 = vld [vmem:[%s329 + $0x18c] sm:$0xf]
        %v1583 = vld [vmem:[%s329 + $0x190] sm:$0xf]
        %v1584 = vld [vmem:[%s329 + $0x194] sm:$0xf]
        %v1585 = vld [vmem:[%s329 + $0x198] sm:$0xf]
        %v1586 = vld [vmem:[%s329 + $0x19c] sm:$0xf]
        %v1587 = vld [vmem:[%s329 + $0x1a0] sm:$0xf]
        %v1588 = vld [vmem:[%s329 + $0x1a4] sm:$0xf]
        %v1589 = vld [vmem:[%s329 + $0x1a8] sm:$0xf]
        %v1590 = vld [vmem:[%s329 + $0x1ac] sm:$0xf]
        %v1591 = vld [vmem:[%s329 + $0x1b0] sm:$0xf]
        %v1592 = vld [vmem:[%s329 + $0x1b4] sm:$0xf]
        %v1593 = vld [vmem:[%s329 + $0x1b8] sm:$0xf]
        %v1594 = vld [vmem:[%s329 + $0x1bc] sm:$0xf]
        %v1595 = vld [vmem:[%s329 + $0x1c0] sm:$0xf]
        %v1596 = vld [vmem:[%s329 + $0x1c4] sm:$0xf]
        %v1597 = vld [vmem:[%s329 + $0x1c8] sm:$0xf]
        %v1598 = vld [vmem:[%s329 + $0x1cc] sm:$0xf]
        %v1599 = vld [vmem:[%s329 + $0x1d0] sm:$0xf]
        %v1600 = vld [vmem:[%s329 + $0x1d4] sm:$0xf]
        %v1601 = vld [vmem:[%s329 + $0x1d8] sm:$0xf]
        %v1602 = vld [vmem:[%s329 + $0x1dc] sm:$0xf]
        %v1603 = vld [vmem:[%s329 + $0x1e0] sm:$0xf]
        %v1604 = vld [vmem:[%s329 + $0x1e4] sm:$0xf]
        %v1605 = vld [vmem:[%s329 + $0x1e8] sm:$0xf]
        %v1606 = vld [vmem:[%s329 + $0x1ec] sm:$0xf]
        %v1607 = vld [vmem:[%s329 + $0x1f0] sm:$0xf]
        %v1608 = vld [vmem:[%s329 + $0x1f4] sm:$0xf]
        %v1609 = vld [vmem:[%s329 + $0x1f8] sm:$0xf]
        %v1610 = vld [vmem:[%s329 + $0x1fc] sm:$0xf]
        %v1611 = vld [vmem:[%s1] sm:$0xf]
        %v1612 = vld [vmem:[%s1 + $0x4] sm:$0xf]
        %v1613 = vld [vmem:[%s1 + $0x8] sm:$0xf]
        %v1614 = vld [vmem:[%s1 + $0xc] sm:$0xf]
        %v1615 = vld [vmem:[%s1 + $0x10] sm:$0xf]
        %v1616 = vld [vmem:[%s1 + $0x14] sm:$0xf]
        %v1617 = vld [vmem:[%s1 + $0x18] sm:$0xf]
        %v1618 = vld [vmem:[%s1 + $0x1c] sm:$0xf]
        %v1619 = vld [vmem:[%s1 + $0x20] sm:$0xf]
        %v1620 = vld [vmem:[%s1 + $0x24] sm:$0xf]
        %v1621 = vld [vmem:[%s1 + $0x28] sm:$0xf]
        %v1622 = vld [vmem:[%s1 + $0x2c] sm:$0xf]
        %v1623 = vld [vmem:[%s1 + $0x30] sm:$0xf]
        %v1624 = vld [vmem:[%s1 + $0x34] sm:$0xf]
        %v1625 = vld [vmem:[%s1 + $0x38] sm:$0xf]
        %v1626 = vld [vmem:[%s1 + $0x3c] sm:$0xf]
        %v1627 = vld [vmem:[%s2] sm:$0x1]
        %v1629 = vlaneseq
        %v1630 = vshrl.u32 %v1629, 7
        %v1631 = vsub.s32 0, %v1630
        %v1632 = vrot.slane %v1627, %v1631
        %v1666 = vunpack.c.l.b16 %v1579
        %v1667 = vunpack.c.l.b16 %v1580
        %v1668 = vunpack.c.l.b16 %v1581
        %v1669 = vunpack.c.l.b16 %v1582
        %v1670 = vunpack.c.l.b16 %v1583
        %v1671 = vunpack.c.l.b16 %v1584
        %v1672 = vunpack.c.l.b16 %v1585
        %v1673 = vunpack.c.l.b16 %v1586
        %v1674 = vunpack.c.l.b16 %v1587
        %v1675 = vunpack.c.l.b16 %v1588
        %v1676 = vunpack.c.l.b16 %v1589
        %v1677 = vunpack.c.l.b16 %v1590
        %v1678 = vunpack.c.l.b16 %v1591
        %v1679 = vunpack.c.l.b16 %v1592
        %v1680 = vunpack.c.l.b16 %v1593
        %v1681 = vunpack.c.l.b16 %v1594
        %v1682 = vunpack.c.l.b16 %v1595
        %v1683 = vunpack.c.l.b16 %v1596
        %v1684 = vunpack.c.l.b16 %v1597
        %v1685 = vunpack.c.l.b16 %v1598
        %v1686 = vunpack.c.l.b16 %v1599
        %v1687 = vunpack.c.l.b16 %v1600
        %v1688 = vunpack.c.l.b16 %v1601
        %v1689 = vunpack.c.l.b16 %v1602
        %v1690 = vunpack.c.l.b16 %v1603
        %v1691 = vunpack.c.l.b16 %v1604
        %v1692 = vunpack.c.l.b16 %v1605
        %v1693 = vunpack.c.l.b16 %v1606
        %v1694 = vunpack.c.l.b16 %v1607
        %v1695 = vunpack.c.l.b16 %v1608
        %v1696 = vunpack.c.l.b16 %v1609
        %v1697 = vunpack.c.l.b16 %v1610
        %v1698 = vpack.c.b16 %v1667, %v1666
        %v1699 = vpack.c.b16 %v1669, %v1668
        %v1700 = vpack.c.b16 %v1671, %v1670
        %v1701 = vpack.c.b16 %v1673, %v1672
        %v1702 = vpack.c.b16 %v1675, %v1674
        %v1703 = vpack.c.b16 %v1677, %v1676
        %v1704 = vpack.c.b16 %v1679, %v1678
        %v1705 = vpack.c.b16 %v1681, %v1680
        %v1706 = vpack.c.b16 %v1683, %v1682
        %v1707 = vpack.c.b16 %v1685, %v1684
        %v1708 = vpack.c.b16 %v1687, %v1686
        %v1709 = vpack.c.b16 %v1689, %v1688
        %v1710 = vpack.c.b16 %v1691, %v1690
        %v1711 = vpack.c.b16 %v1693, %v1692
        %v1712 = vpack.c.b16 %v1695, %v1694
        %v1713 = vpack.c.b16 %v1697, %v1696
        %v1746 = vunpack.c.l.b16 %v1611
        %v1747 = vunpack.c.l.b16 %v1612
        %v1748 = vunpack.c.l.b16 %v1613
        %v1749 = vunpack.c.l.b16 %v1614
        %v1750 = vunpack.c.l.b16 %v1615
        %v1751 = vunpack.c.l.b16 %v1616
        %v1752 = vunpack.c.l.b16 %v1617
        %v1753 = vunpack.c.l.b16 %v1618
        %v1754 = vunpack.c.l.b16 %v1619
        %v1755 = vunpack.c.l.b16 %v1620
        %v1756 = vunpack.c.l.b16 %v1621
        %v1757 = vunpack.c.l.b16 %v1622
        %v1758 = vunpack.c.l.b16 %v1623
        %v1759 = vunpack.c.l.b16 %v1624
        %v1760 = vunpack.c.l.b16 %v1625
        %v1761 = vunpack.c.l.b16 %v1626
        %v1762 = vpack.c.b16 %v1747, %v1746
        %v1763 = vpack.c.b16 %v1749, %v1748
        %v1764 = vpack.c.b16 %v1751, %v1750
        %v1765 = vpack.c.b16 %v1753, %v1752
        %v1766 = vpack.c.b16 %v1755, %v1754
        %v1767 = vpack.c.b16 %v1757, %v1756
        %v1768 = vpack.c.b16 %v1759, %v1758
        %v1769 = vpack.c.b16 %v1761, %v1760
        %1778 = vmatprep.subr.bf16.mxu0 0
        %1779 = vmatpush1.bf16.msra.mxu0 %v1762
        %1780 = vmatprep.subr.bf16.mxu0 0
        %1781 = vmatpush1.bf16.msra.mxu0 %v1763
        %1782 = vmatprep.subr.bf16.mxu0 0
        %1783 = vmatpush1.bf16.msra.mxu0 %v1764
        %1784 = vmatprep.subr.bf16.mxu0 0
        %1785 = vmatpush1.bf16.msra.mxu0 %v1765
        %1786 = vmatprep.subr.bf16.mxu0 0
        %1787 = vmatpush1.bf16.msra.mxu0 %v1766
        %1788 = vmatprep.subr.bf16.mxu0 0
        %1789 = vmatpush1.bf16.msra.mxu0 %v1767
        %1790 = vmatprep.subr.bf16.mxu0 0
        %1791 = vmatpush1.bf16.msra.mxu0 %v1768
        %1792 = vmatprep.subr.bf16.mxu0 0
        %1793 = vmatpush1.bf16.msra.mxu0 %v1769
        %1794 = vmatprep.subr.bf16.mxu0 0
        %1795 = vmatpush1.bf16.msra.mxu0 0
        %1796 = vmatprep.subr.bf16.mxu0 0
        %1797 = vmatpush1.bf16.msra.mxu0 0
        %1798 = vmatprep.subr.bf16.mxu0 0
        %1799 = vmatpush1.bf16.msra.mxu0 0
        %1800 = vmatprep.subr.bf16.mxu0 0
        %1801 = vmatpush1.bf16.msra.mxu0 0
        %1802 = vmatprep.subr.bf16.mxu0 0
        %1803 = vmatpush1.bf16.msra.mxu0 0
        %1804 = vmatprep.subr.bf16.mxu0 0
        %1805 = vmatpush1.bf16.msra.mxu0 0
        %1806 = vmatprep.subr.bf16.mxu0 0
        %1807 = vmatpush1.bf16.msra.mxu0 0
        %1808 = vmatprep.subr.bf16.mxu0 0
        %1809 = vmatpush1.bf16.msra.mxu0 0
        %1810 = vmatprep.mubr.bf16.mxu0 0
        %1811 = vmatmul.mubr.bf16.gmra.mrb[0].mxu0 %v1698
        %v1812 = vpop.f32.mrb[0].mxu0
        %v1813 = vadd.f32 %v1632, %v1812
        %v1814 = vpop.f32.mrb[0].mxu0
        %v1815 = vpop.f32.mrb[0].mxu0
        %v1816 = vadd.f32 %v1632, %v1815
        %v1817 = vpop.f32.mrb[0].mxu0
        %1818 = vmatprep.mubr.bf16.mxu0 0
        %1819 = vmatmul.mubr.bf16.gmra.mrb[0].mxu0 %v1699
        %v1820 = vpop.f32.mrb[0].mxu0
        %v1821 = vadd.f32 %v1632, %v1820
        %v1822 = vpop.f32.mrb[0].mxu0
        %v1823 = vpop.f32.mrb[0].mxu0
        %v1824 = vadd.f32 %v1632, %v1823
        %v1825 = vpop.f32.mrb[0].mxu0
        %1826 = vmatprep.mubr.bf16.mxu0 0
        %1827 = vmatmul.mubr.bf16.gmra.mrb[0].mxu0 %v1700
        %v1828 = vpop.f32.mrb[0].mxu0
        %v1829 = vadd.f32 %v1632, %v1828
        %v1830 = vpop.f32.mrb[0].mxu0
        %v1831 = vpop.f32.mrb[0].mxu0
        %v1832 = vadd.f32 %v1632, %v1831
        %v1833 = vpop.f32.mrb[0].mxu0
        %1834 = vmatprep.mubr.bf16.mxu0 0
        %1835 = vmatmul.mubr.bf16.gmra.mrb[0].mxu0 %v1701
        %v1836 = vpop.f32.mrb[0].mxu0
        %v1837 = vadd.f32 %v1632, %v1836
        %v1838 = vpop.f32.mrb[0].mxu0
        %v1839 = vpop.f32.mrb[0].mxu0
        %v1840 = vadd.f32 %v1632, %v1839
        %v1841 = vpop.f32.mrb[0].mxu0
        %1842 = vmatprep.mubr.bf16.mxu0 0
        %1843 = vmatmul.mubr.bf16.gmra.mrb[0].mxu0 %v1702
        %v1844 = vpop.f32.mrb[0].mxu0
        %v1845 = vadd.f32 %v1632, %v1844
        %v1846 = vpop.f32.mrb[0].mxu0
        %v1847 = vpop.f32.mrb[0].mxu0
        %v1848 = vadd.f32 %v1632, %v1847
        %v1849 = vpop.f32.mrb[0].mxu0
        %1850 = vmatprep.mubr.bf16.mxu0 0
        %1851 = vmatmul.mubr.bf16.gmra.mrb[0].mxu0 %v1703
        %v1852 = vpop.f32.mrb[0].mxu0
        %v1853 = vadd.f32 %v1632, %v1852
        %v1854 = vpop.f32.mrb[0].mxu0
        %v1855 = vpop.f32.mrb[0].mxu0
        %v1856 = vadd.f32 %v1632, %v1855
        %v1857 = vpop.f32.mrb[0].mxu0
        %1858 = vmatprep.mubr.bf16.mxu0 0
        %1859 = vmatmul.mubr.bf16.gmra.mrb[0].mxu0 %v1704
        %v1860 = vpop.f32.mrb[0].mxu0
        %v1861 = vadd.f32 %v1632, %v1860
        %v1862 = vpop.f32.mrb[0].mxu0
        %v1863 = vpop.f32.mrb[0].mxu0
        %v1864 = vadd.f32 %v1632, %v1863
        %v1865 = vpop.f32.mrb[0].mxu0
        %1866 = vmatprep.mubr.bf16.mxu0 0
        %1867 = vmatmul.mubr.bf16.gmra.mrb[0].mxu0 %v1705
        %v1868 = vpop.f32.mrb[0].mxu0
        %v1869 = vadd.f32 %v1632, %v1868
        %v1870 = vpop.f32.mrb[0].mxu0
        %v1871 = vpop.f32.mrb[0].mxu0
        %v1872 = vadd.f32 %v1632, %v1871
        %v1873 = vpop.f32.mrb[0].mxu0
        %1874 = vmatprep.mubr.bf16.mxu0 0
        %1875 = vmatmul.mubr.bf16.gmra.mrb[0].mxu0 %v1706
        %v1876 = vpop.f32.mrb[0].mxu0
        %v1877 = vadd.f32 %v1632, %v1876
        %v1878 = vpop.f32.mrb[0].mxu0
        %v1879 = vpop.f32.mrb[0].mxu0
        %v1880 = vadd.f32 %v1632, %v1879
        %v1881 = vpop.f32.mrb[0].mxu0
        %1882 = vmatprep.mubr.bf16.mxu0 0
        %1883 = vmatmul.mubr.bf16.gmra.mrb[0].mxu0 %v1707
        %v1884 = vpop.f32.mrb[0].mxu0
        %v1885 = vadd.f32 %v1632, %v1884
        %v1886 = vpop.f32.mrb[0].mxu0
        %v1887 = vpop.f32.mrb[0].mxu0
        %v1888 = vadd.f32 %v1632, %v1887
        %v1889 = vpop.f32.mrb[0].mxu0
        %1890 = vmatprep.mubr.bf16.mxu0 0
        %1891 = vmatmul.mubr.bf16.gmra.mrb[0].mxu0 %v1708
        %v1892 = vpop.f32.mrb[0].mxu0
        %v1893 = vadd.f32 %v1632, %v1892
        %v1894 = vpop.f32.mrb[0].mxu0
        %v1895 = vpop.f32.mrb[0].mxu0
        %v1896 = vadd.f32 %v1632, %v1895
        %v1897 = vpop.f32.mrb[0].mxu0
        %1898 = vmatprep.mubr.bf16.mxu0 0
        %1899 = vmatmul.mubr.bf16.gmra.mrb[0].mxu0 %v1709
        %v1900 = vpop.f32.mrb[0].mxu0
        %v1901 = vadd.f32 %v1632, %v1900
        %v1902 = vpop.f32.mrb[0].mxu0
        %v1903 = vpop.f32.mrb[0].mxu0
        %v1904 = vadd.f32 %v1632, %v1903
        %v1905 = vpop.f32.mrb[0].mxu0
        %1906 = vmatprep.mubr.bf16.mxu0 0
        %1907 = vmatmul.mubr.bf16.gmra.mrb[0].mxu0 %v1710
        %v1908 = vpop.f32.mrb[0].mxu0
        %v1909 = vadd.f32 %v1632, %v1908
        %v1910 = vpop.f32.mrb[0].mxu0
        %v1911 = vpop.f32.mrb[0].mxu0
        %v1912 = vadd.f32 %v1632, %v1911
        %v1913 = vpop.f32.mrb[0].mxu0
        %1914 = vmatprep.mubr.bf16.mxu0 0
        %1915 = vmatmul.mubr.bf16.gmra.mrb[0].mxu0 %v1711
        %v1916 = vpop.f32.mrb[0].mxu0
        %v1917 = vadd.f32 %v1632, %v1916
        %v1918 = vpop.f32.mrb[0].mxu0
        %v1919 = vpop.f32.mrb[0].mxu0
        %v1920 = vadd.f32 %v1632, %v1919
        %v1921 = vpop.f32.mrb[0].mxu0
        %1922 = vmatprep.mubr.bf16.mxu0 0
        %1923 = vmatmul.mubr.bf16.gmra.mrb[0].mxu0 %v1712
        %v1924 = vpop.f32.mrb[0].mxu0
        %v1925 = vadd.f32 %v1632, %v1924
        %v1926 = vpop.f32.mrb[0].mxu0
        %v1927 = vpop.f32.mrb[0].mxu0
        %v1928 = vadd.f32 %v1632, %v1927
        %v1929 = vpop.f32.mrb[0].mxu0
        %1930 = vmatprep.mubr.bf16.mxu0 0
        %1931 = vmatmul.mubr.bf16.gmra.mrb[0].mxu0 %v1713
        %v1932 = vpop.f32.mrb[0].mxu0
        %v1933 = vadd.f32 %v1632, %v1932
        %v1934 = vpop.f32.mrb[0].mxu0
        %v1935 = vpop.f32.mrb[0].mxu0
        %v1936 = vadd.f32 %v1632, %v1935
        %v1937 = vpop.f32.mrb[0].mxu0
        %1938 = vdwg.mxu0
        %1939 = vst.msk [vmem:[#allocation2 + $0x300] sm:$0xff] %vm762, %v1813
        %1940 = vst.msk [vmem:[#allocation2 + $0x308] sm:$0xff] %vm762, %v1816
        %1941 = vst.msk [vmem:[#allocation2 + $0x310] sm:$0xff] %vm762, %v1821
        %1942 = vst.msk [vmem:[#allocation2 + $0x318] sm:$0xff] %vm762, %v1824
        %1943 = vst.msk [vmem:[#allocation2 + $0x320] sm:$0xff] %vm762, %v1829
        %1944 = vst.msk [vmem:[#allocation2 + $0x328] sm:$0xff] %vm762, %v1832
        %1945 = vst.msk [vmem:[#allocation2 + $0x330] sm:$0xff] %vm762, %v1837
        %1946 = vst.msk [vmem:[#allocation2 + $0x338] sm:$0xff] %vm762, %v1840
        %1947 = vst.msk [vmem:[#allocation2 + $0x340] sm:$0xff] %vm762, %v1845
        %1948 = vst.msk [vmem:[#allocation2 + $0x348] sm:$0xff] %vm762, %v1848
        %1949 = vst.msk [vmem:[#allocation2 + $0x350] sm:$0xff] %vm762, %v1853
        %1950 = vst.msk [vmem:[#allocation2 + $0x358] sm:$0xff] %vm762, %v1856
        %1951 = vst.msk [vmem:[#allocation2 + $0x360] sm:$0xff] %vm762, %v1861
        %1952 = vst.msk [vmem:[#allocation2 + $0x368] sm:$0xff] %vm762, %v1864
        %1953 = vst.msk [vmem:[#allocation2 + $0x370] sm:$0xff] %vm762, %v1869
        %1954 = vst.msk [vmem:[#allocation2 + $0x378] sm:$0xff] %vm762, %v1872
        %1955 = vst.msk [vmem:[#allocation2 + $0x380] sm:$0xff] %vm762, %v1877
        %1956 = vst.msk [vmem:[#allocation2 + $0x388] sm:$0xff] %vm762, %v1880
        %1957 = vst.msk [vmem:[#allocation2 + $0x390] sm:$0xff] %vm762, %v1885
        %1958 = vst.msk [vmem:[#allocation2 + $0x398] sm:$0xff] %vm762, %v1888
        %1959 = vst.msk [vmem:[#allocation2 + $0x3a0] sm:$0xff] %vm762, %v1893
        %1960 = vst.msk [vmem:[#allocation2 + $0x3a8] sm:$0xff] %vm762, %v1896
        %1961 = vst.msk [vmem:[#allocation2 + $0x3b0] sm:$0xff] %vm762, %v1901
        %1962 = vst.msk [vmem:[#allocation2 + $0x3b8] sm:$0xff] %vm762, %v1904
        %1963 = vst.msk [vmem:[#allocation2 + $0x3c0] sm:$0xff] %vm762, %v1909
        %1964 = vst.msk [vmem:[#allocation2 + $0x3c8] sm:$0xff] %vm762, %v1912
        %1965 = vst.msk [vmem:[#allocation2 + $0x3d0] sm:$0xff] %vm762, %v1917
        %1966 = vst.msk [vmem:[#allocation2 + $0x3d8] sm:$0xff] %vm762, %v1920
        %1967 = vst.msk [vmem:[#allocation2 + $0x3e0] sm:$0xff] %vm762, %v1925
        %1968 = vst.msk [vmem:[#allocation2 + $0x3e8] sm:$0xff] %vm762, %v1928
        %1969 = vst.msk [vmem:[#allocation2 + $0x3f0] sm:$0xff] %vm762, %v1933
        %1970 = vst.msk [vmem:[#allocation2 + $0x3f8] sm:$0xff] %vm762, %v1936
        %v1971 = vld [vmem:[#allocation2] ss:$2 sm:$0xff]
        %s1972 = scalar_lea.vmem [#allocation2], 16
        %v1973 = vld [vmem:[%s1972] ss:$2 sm:$0xff]
        %s1974 = scalar_lea.vmem [#allocation2], 1
        %v1975 = vld [vmem:[%s1974] ss:$2 sm:$0xff]
        %s1976 = scalar_lea.vmem [#allocation2], 17
        %v1977 = vld [vmem:[%s1976] ss:$2 sm:$0xff]
        %v1978 = vmax.f32 %v1971, %v1975
        %v1979 = vmax.f32 %v1973, %v1977
        %s1980 = scalar_lea.vmem [#allocation2], 32
        %v1981 = vld [vmem:[%s1980] ss:$2 sm:$0xff]
        %s1982 = scalar_lea.vmem [#allocation2], 48
        %v1983 = vld [vmem:[%s1982] ss:$2 sm:$0xff]
        %s1984 = scalar_lea.vmem [#allocation2], 33
        %v1985 = vld [vmem:[%s1984] ss:$2 sm:$0xff]
        %s1986 = scalar_lea.vmem [#allocation2], 49
        %v1987 = vld [vmem:[%s1986] ss:$2 sm:$0xff]
        %v1988 = vmax.f32 %v1981, %v1985
        %v1989 = vmax.f32 %v1983, %v1987
        %v1990 = vmax.f32 %v1978, %v1988
        %v1991 = vmax.f32 %v1979, %v1989
        %v1992 = vpack.c.bf16 %v1991, %v1990
        %v1994 = vunpack.c.l.b16 %v1992
        %v1995 = vunpack.c.h.b16 %v1992
        %v1996 = vpack.c.b16 %v1994, %v1994
        %v1997 = vpack.c.b16 %v1995, %v1995
        %vm1998 = vcmask 1040384
        %vm1999 = vcmask 1044484
        %vm2000 = vmor %vm1998, %vm1999
        %v2001 = vrot.slane %v1996, 7
        %v2002 = vrot.slane %v2001, 4
        %v2003 = vrot.slane %v1997, 7
        %v2004 = vsel %vm2000, %v2002, %v2003
        %v2005 = vrot.slane %v2003, 4
        %vm2009 = vcmask 257025
        %2010 = vst.msk [vmem:[#allocation3 + $0x14] sm:$0xe] %vm2009, %v2001
        %2011 = vst.msk [vmem:[#allocation3 + $0x18] sm:$0xf] %vm331, %v2004
        %vm2012 = vcmask 253952
        %2013 = vst.msk [vmem:[#allocation3 + $0x1c] sm:$0x1] %vm2012, %v2005
        %s2014 = scalar_lea.vmem [#allocation2], 64
        %v2015 = vld [vmem:[%s2014] ss:$2 sm:$0xff]
        %s2016 = scalar_lea.vmem [#allocation2], 80
        %v2017 = vld [vmem:[%s2016] ss:$2 sm:$0xff]
        %s2018 = scalar_lea.vmem [#allocation2], 65
        %v2019 = vld [vmem:[%s2018] ss:$2 sm:$0xff]
        %s2020 = scalar_lea.vmem [#allocation2], 81
        %v2021 = vld [vmem:[%s2020] ss:$2 sm:$0xff]
        %v2022 = vmax.f32 %v2015, %v2019
        %v2023 = vmax.f32 %v2017, %v2021
        %s2024 = scalar_lea.vmem [#allocation2], 96
        %v2025 = vld [vmem:[%s2024] ss:$2 sm:$0xff]
        %s2026 = scalar_lea.vmem [#allocation2], 112
        %v2027 = vld [vmem:[%s2026] ss:$2 sm:$0xff]
        %s2028 = scalar_lea.vmem [#allocation2], 97
        %v2029 = vld [vmem:[%s2028] ss:$2 sm:$0xff]
        %s2030 = scalar_lea.vmem [#allocation2], 113
        %v2031 = vld [vmem:[%s2030] ss:$2 sm:$0xff]
        %v2032 = vmax.f32 %v2025, %v2029
        %v2033 = vmax.f32 %v2027, %v2031
        %v2034 = vmax.f32 %v2022, %v2032
        %v2035 = vmax.f32 %v2023, %v2033
        %v2036 = vpack.c.bf16 %v2035, %v2034
        %v2038 = vunpack.c.l.b16 %v2036
        %v2039 = vunpack.c.h.b16 %v2036
        %v2040 = vpack.c.b16 %v2038, %v2038
        %v2041 = vpack.c.b16 %v2039, %v2039
        %vm2042 = vcmask 1042432
        %vm2043 = vcmask 1046532
        %vm2044 = vmor %vm2042, %vm2043
        %v2045 = vrot.slane %v2040, 5
        %v2046 = vrot.slane %v2045, 4
        %v2047 = vrot.slane %v2041, 5
        %v2048 = vsel %vm2044, %v2046, %v2047
        %v2049 = vrot.slane %v2047, 4
        %vm2053 = vcmask 257027
        %2054 = vst.msk [vmem:[#allocation3 + $0x1c] sm:$0x8] %vm2053, %v2045
        %2055 = vst.msk [vmem:[#allocation3 + $0x20] sm:$0xf] %vm331, %v2048
        %vm2056 = vcmask 256000
        %2057 = vst.msk [vmem:[#allocation3 + $0x24] sm:$0x7] %vm2056, %v2049
        %s2058 = scalar_lea.vmem [#allocation2], 128
        %v2059 = vld [vmem:[%s2058] ss:$2 sm:$0xff]
        %s2060 = scalar_lea.vmem [#allocation2], 144
        %v2061 = vld [vmem:[%s2060] ss:$2 sm:$0xff]
        %s2062 = scalar_lea.vmem [#allocation2], 129
        %v2063 = vld [vmem:[%s2062] ss:$2 sm:$0xff]
        %s2064 = scalar_lea.vmem [#allocation2], 145
        %v2065 = vld [vmem:[%s2064] ss:$2 sm:$0xff]
        %v2066 = vmax.f32 %v2059, %v2063
        %v2067 = vmax.f32 %v2061, %v2065
        %s2068 = scalar_lea.vmem [#allocation2], 160
        %v2069 = vld [vmem:[%s2068] ss:$2 sm:$0xff]
        %s2070 = scalar_lea.vmem [#allocation2], 176
        %v2071 = vld [vmem:[%s2070] ss:$2 sm:$0xff]
        %s2072 = scalar_lea.vmem [#allocation2], 161
        %v2073 = vld [vmem:[%s2072] ss:$2 sm:$0xff]
        %s2074 = scalar_lea.vmem [#allocation2], 177
        %v2075 = vld [vmem:[%s2074] ss:$2 sm:$0xff]
        %v2076 = vmax.f32 %v2069, %v2073
        %v2077 = vmax.f32 %v2071, %v2075
        %v2078 = vmax.f32 %v2066, %v2076
        %v2079 = vmax.f32 %v2067, %v2077
        %v2080 = vpack.c.bf16 %v2079, %v2078
        %v2082 = vunpack.c.l.b16 %v2080
        %v2083 = vunpack.c.h.b16 %v2080
        %v2084 = vpack.c.b16 %v2082, %v2082
        %v2085 = vpack.c.b16 %v2083, %v2083
        %v2086 = vrot.slane %v2084, 7
        %v2087 = vrot.slane %v2086, 4
        %v2088 = vrot.slane %v2085, 7
        %v2089 = vsel %vm2000, %v2087, %v2088
        %v2090 = vrot.slane %v2088, 4
        %2094 = vst.msk [vmem:[#allocation3 + $0x28] sm:$0xe] %vm2009, %v2086
        %2095 = vst.msk [vmem:[#allocation3 + $0x2c] sm:$0xf] %vm331, %v2089
        %2096 = vst.msk [vmem:[#allocation3 + $0x30] sm:$0x1] %vm2012, %v2090
        %s2097 = scalar_lea.vmem [#allocation2], 192
        %v2098 = vld [vmem:[%s2097] ss:$2 sm:$0xff]
        %s2099 = scalar_lea.vmem [#allocation2], 208
        %v2100 = vld [vmem:[%s2099] ss:$2 sm:$0xff]
        %s2101 = scalar_lea.vmem [#allocation2], 193
        %v2102 = vld [vmem:[%s2101] ss:$2 sm:$0xff]
        %s2103 = scalar_lea.vmem [#allocation2], 209
        %v2104 = vld [vmem:[%s2103] ss:$2 sm:$0xff]
        %v2105 = vmax.f32 %v2098, %v2102
        %v2106 = vmax.f32 %v2100, %v2104
        %s2107 = scalar_lea.vmem [#allocation2], 224
        %v2108 = vld [vmem:[%s2107] ss:$2 sm:$0xff]
        %s2109 = scalar_lea.vmem [#allocation2], 240
        %v2110 = vld [vmem:[%s2109] ss:$2 sm:$0xff]
        %s2111 = scalar_lea.vmem [#allocation2], 225
        %v2112 = vld [vmem:[%s2111] ss:$2 sm:$0xff]
        %s2113 = scalar_lea.vmem [#allocation2], 241
        %v2114 = vld [vmem:[%s2113] ss:$2 sm:$0xff]
        %v2115 = vmax.f32 %v2108, %v2112
        %v2116 = vmax.f32 %v2110, %v2114
        %v2117 = vmax.f32 %v2105, %v2115
        %v2118 = vmax.f32 %v2106, %v2116
        %v2119 = vpack.c.bf16 %v2118, %v2117
        %v2121 = vunpack.c.l.b16 %v2119
        %v2122 = vunpack.c.h.b16 %v2119
        %v2123 = vpack.c.b16 %v2121, %v2121
        %v2124 = vpack.c.b16 %v2122, %v2122
        %v2125 = vrot.slane %v2123, 5
        %v2126 = vrot.slane %v2125, 4
        %v2127 = vrot.slane %v2124, 5
        %v2128 = vsel %vm2044, %v2126, %v2127
        %v2129 = vrot.slane %v2127, 4
        %2133 = vst.msk [vmem:[#allocation3 + $0x30] sm:$0x8] %vm2053, %v2125
        %2134 = vst.msk [vmem:[#allocation3 + $0x34] sm:$0xf] %vm331, %v2128
        %2135 = vst.msk [vmem:[#allocation3 + $0x38] sm:$0x7] %vm2056, %v2129
        %s2136 = scalar_lea.vmem [#allocation2], 256
        %v2137 = vld [vmem:[%s2136] ss:$2 sm:$0xff]
        %s2138 = scalar_lea.vmem [#allocation2], 272
        %v2139 = vld [vmem:[%s2138] ss:$2 sm:$0xff]
        %s2140 = scalar_lea.vmem [#allocation2], 257
        %v2141 = vld [vmem:[%s2140] ss:$2 sm:$0xff]
        %s2142 = scalar_lea.vmem [#allocation2], 273
        %v2143 = vld [vmem:[%s2142] ss:$2 sm:$0xff]
        %v2144 = vmax.f32 %v2137, %v2141
        %v2145 = vmax.f32 %v2139, %v2143
        %s2146 = scalar_lea.vmem [#allocation2], 288
        %v2147 = vld [vmem:[%s2146] ss:$2 sm:$0xff]
        %s2148 = scalar_lea.vmem [#allocation2], 304
        %v2149 = vld [vmem:[%s2148] ss:$2 sm:$0xff]
        %s2150 = scalar_lea.vmem [#allocation2], 289
        %v2151 = vld [vmem:[%s2150] ss:$2 sm:$0xff]
        %s2152 = scalar_lea.vmem [#allocation2], 305
        %v2153 = vld [vmem:[%s2152] ss:$2 sm:$0xff]
        %v2154 = vmax.f32 %v2147, %v2151
        %v2155 = vmax.f32 %v2149, %v2153
        %v2156 = vmax.f32 %v2144, %v2154
        %v2157 = vmax.f32 %v2145, %v2155
        %v2158 = vpack.c.bf16 %v2157, %v2156
        %v2160 = vunpack.c.l.b16 %v2158
        %v2161 = vunpack.c.h.b16 %v2158
        %v2162 = vpack.c.b16 %v2160, %v2160
        %v2163 = vpack.c.b16 %v2161, %v2161
        %v2164 = vrot.slane %v2162, 7
        %v2165 = vrot.slane %v2164, 4
        %v2166 = vrot.slane %v2163, 7
        %v2167 = vsel %vm2000, %v2165, %v2166
        %v2168 = vrot.slane %v2166, 4
        %2172 = vst.msk [vmem:[#allocation3 + $0x3c] sm:$0xe] %vm2009, %v2164
        %2173 = vst.msk [vmem:[#allocation3 + $0x40] sm:$0xf] %vm331, %v2167
        %2174 = vst.msk [vmem:[#allocation3 + $0x44] sm:$0x1] %vm2012, %v2168
        %s2175 = scalar_lea.vmem [#allocation2], 320
        %v2176 = vld [vmem:[%s2175] ss:$2 sm:$0xff]
        %s2177 = scalar_lea.vmem [#allocation2], 336
        %v2178 = vld [vmem:[%s2177] ss:$2 sm:$0xff]
        %s2179 = scalar_lea.vmem [#allocation2], 321
        %v2180 = vld [vmem:[%s2179] ss:$2 sm:$0xff]
        %s2181 = scalar_lea.vmem [#allocation2], 337
        %v2182 = vld [vmem:[%s2181] ss:$2 sm:$0xff]
        %v2183 = vmax.f32 %v2176, %v2180
        %v2184 = vmax.f32 %v2178, %v2182
        %s2185 = scalar_lea.vmem [#allocation2], 352
        %v2186 = vld [vmem:[%s2185] ss:$2 sm:$0xff]
        %s2187 = scalar_lea.vmem [#allocation2], 368
        %v2188 = vld [vmem:[%s2187] ss:$2 sm:$0xff]
        %s2189 = scalar_lea.vmem [#allocation2], 353
        %v2190 = vld [vmem:[%s2189] ss:$2 sm:$0xff]
        %s2191 = scalar_lea.vmem [#allocation2], 369
        %v2192 = vld [vmem:[%s2191] ss:$2 sm:$0xff]
        %v2193 = vmax.f32 %v2186, %v2190
        %v2194 = vmax.f32 %v2188, %v2192
        %v2195 = vmax.f32 %v2183, %v2193
        %v2196 = vmax.f32 %v2184, %v2194
        %v2197 = vpack.c.bf16 %v2196, %v2195
        %v2199 = vunpack.c.l.b16 %v2197
        %v2200 = vunpack.c.h.b16 %v2197
        %v2201 = vpack.c.b16 %v2199, %v2199
        %v2202 = vpack.c.b16 %v2200, %v2200
        %v2203 = vrot.slane %v2201, 5
        %v2204 = vrot.slane %v2203, 4
        %v2205 = vrot.slane %v2202, 5
        %v2206 = vsel %vm2044, %v2204, %v2205
        %v2207 = vrot.slane %v2205, 4
        %2211 = vst.msk [vmem:[#allocation3 + $0x44] sm:$0x8] %vm2053, %v2203
        %2212 = vst.msk [vmem:[#allocation3 + $0x48] sm:$0xf] %vm331, %v2206
        %2213 = vst.msk [vmem:[#allocation3 + $0x4c] sm:$0x7] %vm2056, %v2207
        %s2214 = scalar_lea.vmem [#allocation2], 384
        %v2215 = vld [vmem:[%s2214] ss:$2 sm:$0xff]
        %s2216 = scalar_lea.vmem [#allocation2], 400
        %v2217 = vld [vmem:[%s2216] ss:$2 sm:$0xff]
        %s2218 = scalar_lea.vmem [#allocation2], 385
        %v2219 = vld [vmem:[%s2218] ss:$2 sm:$0xff]
        %s2220 = scalar_lea.vmem [#allocation2], 401
        %v2221 = vld [vmem:[%s2220] ss:$2 sm:$0xff]
        %v2222 = vmax.f32 %v2215, %v2219
        %v2223 = vmax.f32 %v2217, %v2221
        %s2224 = scalar_lea.vmem [#allocation2], 416
        %v2225 = vld [vmem:[%s2224] ss:$2 sm:$0xff]
        %s2226 = scalar_lea.vmem [#allocation2], 432
        %v2227 = vld [vmem:[%s2226] ss:$2 sm:$0xff]
        %s2228 = scalar_lea.vmem [#allocation2], 417
        %v2229 = vld [vmem:[%s2228] ss:$2 sm:$0xff]
        %s2230 = scalar_lea.vmem [#allocation2], 433
        %v2231 = vld [vmem:[%s2230] ss:$2 sm:$0xff]
        %v2232 = vmax.f32 %v2225, %v2229
        %v2233 = vmax.f32 %v2227, %v2231
        %v2234 = vmax.f32 %v2222, %v2232
        %v2235 = vmax.f32 %v2223, %v2233
        %v2236 = vpack.c.bf16 %v2235, %v2234
        %v2238 = vunpack.c.l.b16 %v2236
        %v2239 = vunpack.c.h.b16 %v2236
        %v2240 = vpack.c.b16 %v2238, %v2238
        %v2241 = vpack.c.b16 %v2239, %v2239
        %v2242 = vrot.slane %v2240, 7
        %v2243 = vrot.slane %v2242, 4
        %v2244 = vrot.slane %v2241, 7
        %v2245 = vsel %vm2000, %v2243, %v2244
        %v2246 = vrot.slane %v2244, 4
        %2250 = vst.msk [vmem:[#allocation3 + $0x50] sm:$0xe] %vm2009, %v2242
        %2251 = vst.msk [vmem:[#allocation3 + $0x54] sm:$0xf] %vm331, %v2245
        %2252 = vst.msk [vmem:[#allocation3 + $0x58] sm:$0x1] %vm2012, %v2246
        %s2253 = scalar_lea.vmem [#allocation2], 448
        %v2254 = vld [vmem:[%s2253] ss:$2 sm:$0xff]
        %s2255 = scalar_lea.vmem [#allocation2], 464
        %v2256 = vld [vmem:[%s2255] ss:$2 sm:$0xff]
        %s2257 = scalar_lea.vmem [#allocation2], 449
        %v2258 = vld [vmem:[%s2257] ss:$2 sm:$0xff]
        %s2259 = scalar_lea.vmem [#allocation2], 465
        %v2260 = vld [vmem:[%s2259] ss:$2 sm:$0xff]
        %v2261 = vmax.f32 %v2254, %v2258
        %v2262 = vmax.f32 %v2256, %v2260
        %s2263 = scalar_lea.vmem [#allocation2], 480
        %v2264 = vld [vmem:[%s2263] ss:$2 sm:$0xff]
        %s2265 = scalar_lea.vmem [#allocation2], 496
        %v2266 = vld [vmem:[%s2265] ss:$2 sm:$0xff]
        %s2267 = scalar_lea.vmem [#allocation2], 481
        %v2268 = vld [vmem:[%s2267] ss:$2 sm:$0xff]
        %s2269 = scalar_lea.vmem [#allocation2], 497
        %v2270 = vld [vmem:[%s2269] ss:$2 sm:$0xff]
        %v2271 = vmax.f32 %v2264, %v2268
        %v2272 = vmax.f32 %v2266, %v2270
        %v2273 = vmax.f32 %v2261, %v2271
        %v2274 = vmax.f32 %v2262, %v2272
        %v2275 = vpack.c.bf16 %v2274, %v2273
        %v2277 = vunpack.c.l.b16 %v2275
        %v2278 = vunpack.c.h.b16 %v2275
        %v2279 = vpack.c.b16 %v2277, %v2277
        %v2280 = vpack.c.b16 %v2278, %v2278
        %v2281 = vrot.slane %v2279, 5
        %v2282 = vrot.slane %v2281, 4
        %v2283 = vrot.slane %v2280, 5
        %v2284 = vsel %vm2044, %v2282, %v2283
        %v2285 = vrot.slane %v2283, 4
        %2289 = vst.msk [vmem:[#allocation3 + $0x58] sm:$0x8] %vm2053, %v2281
        %2290 = vst.msk [vmem:[#allocation3 + $0x5c] sm:$0xf] %vm331, %v2284
        %2291 = vst.msk [vmem:[#allocation3 + $0x60] sm:$0x7] %vm2056, %v2285
        %s2292 = scalar_lea.vmem [#allocation2], 512
        %v2293 = vld [vmem:[%s2292] ss:$2 sm:$0xff]
        %s2294 = scalar_lea.vmem [#allocation2], 528
        %v2295 = vld [vmem:[%s2294] ss:$2 sm:$0xff]
        %s2296 = scalar_lea.vmem [#allocation2], 513
        %v2297 = vld [vmem:[%s2296] ss:$2 sm:$0xff]
        %s2298 = scalar_lea.vmem [#allocation2], 529
        %v2299 = vld [vmem:[%s2298] ss:$2 sm:$0xff]
        %v2300 = vmax.f32 %v2293, %v2297
        %v2301 = vmax.f32 %v2295, %v2299
        %s2302 = scalar_lea.vmem [#allocation2], 544
        %v2303 = vld [vmem:[%s2302] ss:$2 sm:$0xff]
        %s2304 = scalar_lea.vmem [#allocation2], 560
        %v2305 = vld [vmem:[%s2304] ss:$2 sm:$0xff]
        %s2306 = scalar_lea.vmem [#allocation2], 545
        %v2307 = vld [vmem:[%s2306] ss:$2 sm:$0xff]
        %s2308 = scalar_lea.vmem [#allocation2], 561
        %v2309 = vld [vmem:[%s2308] ss:$2 sm:$0xff]
        %v2310 = vmax.f32 %v2303, %v2307
        %v2311 = vmax.f32 %v2305, %v2309
        %v2312 = vmax.f32 %v2300, %v2310
        %v2313 = vmax.f32 %v2301, %v2311
        %v2314 = vpack.c.bf16 %v2313, %v2312
        %v2316 = vunpack.c.l.b16 %v2314
        %v2317 = vunpack.c.h.b16 %v2314
        %v2318 = vpack.c.b16 %v2316, %v2316
        %v2319 = vpack.c.b16 %v2317, %v2317
        %v2320 = vrot.slane %v2318, 7
        %v2321 = vrot.slane %v2320, 4
        %v2322 = vrot.slane %v2319, 7
        %v2323 = vsel %vm2000, %v2321, %v2322
        %v2324 = vrot.slane %v2322, 4
        %2328 = vst.msk [vmem:[#allocation3 + $0x64] sm:$0xe] %vm2009, %v2320
        %2329 = vst.msk [vmem:[#allocation3 + $0x68] sm:$0xf] %vm331, %v2323
        %2330 = vst.msk [vmem:[#allocation3 + $0x6c] sm:$0x1] %vm2012, %v2324
        %s2331 = scalar_lea.vmem [#allocation2], 576
        %v2332 = vld [vmem:[%s2331] ss:$2 sm:$0xff]
        %s2333 = scalar_lea.vmem [#allocation2], 592
        %v2334 = vld [vmem:[%s2333] ss:$2 sm:$0xff]
        %s2335 = scalar_lea.vmem [#allocation2], 577
        %v2336 = vld [vmem:[%s2335] ss:$2 sm:$0xff]
        %s2337 = scalar_lea.vmem [#allocation2], 593
        %v2338 = vld [vmem:[%s2337] ss:$2 sm:$0xff]
        %v2339 = vmax.f32 %v2332, %v2336
        %v2340 = vmax.f32 %v2334, %v2338
        %s2341 = scalar_lea.vmem [#allocation2], 608
        %v2342 = vld [vmem:[%s2341] ss:$2 sm:$0xff]
        %s2343 = scalar_lea.vmem [#allocation2], 624
        %v2344 = vld [vmem:[%s2343] ss:$2 sm:$0xff]
        %s2345 = scalar_lea.vmem [#allocation2], 609
        %v2346 = vld [vmem:[%s2345] ss:$2 sm:$0xff]
        %s2347 = scalar_lea.vmem [#allocation2], 625
        %v2348 = vld [vmem:[%s2347] ss:$2 sm:$0xff]
        %v2349 = vmax.f32 %v2342, %v2346
        %v2350 = vmax.f32 %v2344, %v2348
        %v2351 = vmax.f32 %v2339, %v2349
        %v2352 = vmax.f32 %v2340, %v2350
        %v2353 = vpack.c.bf16 %v2352, %v2351
        %v2355 = vunpack.c.l.b16 %v2353
        %v2356 = vunpack.c.h.b16 %v2353
        %v2357 = vpack.c.b16 %v2355, %v2355
        %v2358 = vpack.c.b16 %v2356, %v2356
        %v2359 = vrot.slane %v2357, 5
        %v2360 = vrot.slane %v2359, 4
        %v2361 = vrot.slane %v2358, 5
        %v2362 = vsel %vm2044, %v2360, %v2361
        %v2363 = vrot.slane %v2361, 4
        %2367 = vst.msk [vmem:[#allocation3 + $0x6c] sm:$0x8] %vm2053, %v2359
        %2368 = vst.msk [vmem:[#allocation3 + $0x70] sm:$0xf] %vm331, %v2362
        %2369 = vst.msk [vmem:[#allocation3 + $0x74] sm:$0x7] %vm2056, %v2363
        %s2370 = scalar_lea.vmem [#allocation2], 640
        %v2371 = vld [vmem:[%s2370] ss:$2 sm:$0xff]
        %s2372 = scalar_lea.vmem [#allocation2], 656
        %v2373 = vld [vmem:[%s2372] ss:$2 sm:$0xff]
        %s2374 = scalar_lea.vmem [#allocation2], 641
        %v2375 = vld [vmem:[%s2374] ss:$2 sm:$0xff]
        %s2376 = scalar_lea.vmem [#allocation2], 657
        %v2377 = vld [vmem:[%s2376] ss:$2 sm:$0xff]
        %v2378 = vmax.f32 %v2371, %v2375
        %v2379 = vmax.f32 %v2373, %v2377
        %s2380 = scalar_lea.vmem [#allocation2], 672
        %v2381 = vld [vmem:[%s2380] ss:$2 sm:$0xff]
        %s2382 = scalar_lea.vmem [#allocation2], 688
        %v2383 = vld [vmem:[%s2382] ss:$2 sm:$0xff]
        %s2384 = scalar_lea.vmem [#allocation2], 673
        %v2385 = vld [vmem:[%s2384] ss:$2 sm:$0xff]
        %s2386 = scalar_lea.vmem [#allocation2], 689
        %v2387 = vld [vmem:[%s2386] ss:$2 sm:$0xff]
        %v2388 = vmax.f32 %v2381, %v2385
        %v2389 = vmax.f32 %v2383, %v2387
        %v2390 = vmax.f32 %v2378, %v2388
        %v2391 = vmax.f32 %v2379, %v2389
        %v2392 = vpack.c.bf16 %v2391, %v2390
        %v2394 = vunpack.c.l.b16 %v2392
        %v2395 = vunpack.c.h.b16 %v2392
        %v2396 = vpack.c.b16 %v2394, %v2394
        %v2397 = vpack.c.b16 %v2395, %v2395
        %v2398 = vrot.slane %v2396, 7
        %v2399 = vrot.slane %v2398, 4
        %v2400 = vrot.slane %v2397, 7
        %v2401 = vsel %vm2000, %v2399, %v2400
        %v2402 = vrot.slane %v2400, 4
        %2406 = vst.msk [vmem:[#allocation3 + $0x78] sm:$0xe] %vm2009, %v2398
        %2407 = vst.msk [vmem:[#allocation3 + $0x7c] sm:$0xf] %vm331, %v2401
        %2408 = vst.msk [vmem:[#allocation3 + $0x80] sm:$0x1] %vm2012, %v2402
        %s2409 = scalar_lea.vmem [#allocation2], 704
        %v2410 = vld [vmem:[%s2409] ss:$2 sm:$0xff]
        %s2411 = scalar_lea.vmem [#allocation2], 720
        %v2412 = vld [vmem:[%s2411] ss:$2 sm:$0xff]
        %s2413 = scalar_lea.vmem [#allocation2], 705
        %v2414 = vld [vmem:[%s2413] ss:$2 sm:$0xff]
        %s2415 = scalar_lea.vmem [#allocation2], 721
        %v2416 = vld [vmem:[%s2415] ss:$2 sm:$0xff]
        %v2417 = vmax.f32 %v2410, %v2414
        %v2418 = vmax.f32 %v2412, %v2416
        %s2419 = scalar_lea.vmem [#allocation2], 736
        %v2420 = vld [vmem:[%s2419] ss:$2 sm:$0xff]
        %s2421 = scalar_lea.vmem [#allocation2], 752
        %v2422 = vld [vmem:[%s2421] ss:$2 sm:$0xff]
        %s2423 = scalar_lea.vmem [#allocation2], 737
        %v2424 = vld [vmem:[%s2423] ss:$2 sm:$0xff]
        %s2425 = scalar_lea.vmem [#allocation2], 753
        %v2426 = vld [vmem:[%s2425] ss:$2 sm:$0xff]
        %v2427 = vmax.f32 %v2420, %v2424
        %v2428 = vmax.f32 %v2422, %v2426
        %v2429 = vmax.f32 %v2417, %v2427
        %v2430 = vmax.f32 %v2418, %v2428
        %v2431 = vpack.c.bf16 %v2430, %v2429
        %v2433 = vunpack.c.l.b16 %v2431
        %v2434 = vunpack.c.h.b16 %v2431
        %v2435 = vpack.c.b16 %v2433, %v2433
        %v2436 = vpack.c.b16 %v2434, %v2434
        %v2437 = vrot.slane %v2435, 5
        %v2438 = vrot.slane %v2437, 4
        %v2439 = vrot.slane %v2436, 5
        %v2440 = vsel %vm2044, %v2438, %v2439
        %v2441 = vrot.slane %v2439, 4
        %2445 = vst.msk [vmem:[#allocation3 + $0x80] sm:$0x8] %vm2053, %v2437
        %2446 = vst.msk [vmem:[#allocation3 + $0x84] sm:$0xf] %vm331, %v2440
        %2447 = vst.msk [vmem:[#allocation3 + $0x88] sm:$0x7] %vm2056, %v2441
        %s2448 = scalar_lea.vmem [#allocation2], 768
        %v2449 = vld [vmem:[%s2448] ss:$2 sm:$0xff]
        %s2450 = scalar_lea.vmem [#allocation2], 784
        %v2451 = vld [vmem:[%s2450] ss:$2 sm:$0xff]
        %s2452 = scalar_lea.vmem [#allocation2], 769
        %v2453 = vld [vmem:[%s2452] ss:$2 sm:$0xff]
        %s2454 = scalar_lea.vmem [#allocation2], 785
        %v2455 = vld [vmem:[%s2454] ss:$2 sm:$0xff]
        %v2456 = vmax.f32 %v2449, %v2453
        %v2457 = vmax.f32 %v2451, %v2455
        %s2458 = scalar_lea.vmem [#allocation2], 800
        %v2459 = vld [vmem:[%s2458] ss:$2 sm:$0xff]
        %s2460 = scalar_lea.vmem [#allocation2], 816
        %v2461 = vld [vmem:[%s2460] ss:$2 sm:$0xff]
        %s2462 = scalar_lea.vmem [#allocation2], 801
        %v2463 = vld [vmem:[%s2462] ss:$2 sm:$0xff]
        %s2464 = scalar_lea.vmem [#allocation2], 817
        %v2465 = vld [vmem:[%s2464] ss:$2 sm:$0xff]
        %v2466 = vmax.f32 %v2459, %v2463
        %v2467 = vmax.f32 %v2461, %v2465
        %v2468 = vmax.f32 %v2456, %v2466
        %v2469 = vmax.f32 %v2457, %v2467
        %v2470 = vpack.c.bf16 %v2469, %v2468
        %v2472 = vunpack.c.l.b16 %v2470
        %v2473 = vunpack.c.h.b16 %v2470
        %v2474 = vpack.c.b16 %v2472, %v2472
        %v2475 = vpack.c.b16 %v2473, %v2473
        %v2476 = vrot.slane %v2474, 7
        %v2477 = vrot.slane %v2476, 4
        %v2478 = vrot.slane %v2475, 7
        %v2479 = vsel %vm2000, %v2477, %v2478
        %v2480 = vrot.slane %v2478, 4
        %2484 = vst.msk [vmem:[#allocation3 + $0x8c] sm:$0xe] %vm2009, %v2476
        %2485 = vst.msk [vmem:[#allocation3 + $0x90] sm:$0xf] %vm331, %v2479
        %2486 = vst.msk [vmem:[#allocation3 + $0x94] sm:$0x1] %vm2012, %v2480
        %s2487 = scalar_lea.vmem [#allocation2], 832
        %v2488 = vld [vmem:[%s2487] ss:$2 sm:$0xff]
        %s2489 = scalar_lea.vmem [#allocation2], 848
        %v2490 = vld [vmem:[%s2489] ss:$2 sm:$0xff]
        %s2491 = scalar_lea.vmem [#allocation2], 833
        %v2492 = vld [vmem:[%s2491] ss:$2 sm:$0xff]
        %s2493 = scalar_lea.vmem [#allocation2], 849
        %v2494 = vld [vmem:[%s2493] ss:$2 sm:$0xff]
        %v2495 = vmax.f32 %v2488, %v2492
        %v2496 = vmax.f32 %v2490, %v2494
        %s2497 = scalar_lea.vmem [#allocation2], 864
        %v2498 = vld [vmem:[%s2497] ss:$2 sm:$0xff]
        %s2499 = scalar_lea.vmem [#allocation2], 880
        %v2500 = vld [vmem:[%s2499] ss:$2 sm:$0xff]
        %s2501 = scalar_lea.vmem [#allocation2], 865
        %v2502 = vld [vmem:[%s2501] ss:$2 sm:$0xff]
        %s2503 = scalar_lea.vmem [#allocation2], 881
        %v2504 = vld [vmem:[%s2503] ss:$2 sm:$0xff]
        %v2505 = vmax.f32 %v2498, %v2502
        %v2506 = vmax.f32 %v2500, %v2504
        %v2507 = vmax.f32 %v2495, %v2505
        %v2508 = vmax.f32 %v2496, %v2506
        %v2509 = vpack.c.bf16 %v2508, %v2507
        %v2511 = vunpack.c.l.b16 %v2509
        %v2512 = vunpack.c.h.b16 %v2509
        %v2513 = vpack.c.b16 %v2511, %v2511
        %v2514 = vpack.c.b16 %v2512, %v2512
        %v2515 = vrot.slane %v2513, 5
        %v2516 = vrot.slane %v2515, 4
        %v2517 = vrot.slane %v2514, 5
        %v2518 = vsel %vm2044, %v2516, %v2517
        %v2519 = vrot.slane %v2517, 4
        %2523 = vst.msk [vmem:[#allocation3 + $0x94] sm:$0x8] %vm2053, %v2515
        %2524 = vst.msk [vmem:[#allocation3 + $0x98] sm:$0xf] %vm331, %v2518
        %2525 = vst.msk [vmem:[#allocation3 + $0x9c] sm:$0x7] %vm2056, %v2519
        %s2526 = scalar_lea.vmem [#allocation2], 896
        %v2527 = vld [vmem:[%s2526] ss:$2 sm:$0xff]
        %s2528 = scalar_lea.vmem [#allocation2], 912
        %v2529 = vld [vmem:[%s2528] ss:$2 sm:$0xff]
        %s2530 = scalar_lea.vmem [#allocation2], 897
        %v2531 = vld [vmem:[%s2530] ss:$2 sm:$0xff]
        %s2532 = scalar_lea.vmem [#allocation2], 913
        %v2533 = vld [vmem:[%s2532] ss:$2 sm:$0xff]
        %v2534 = vmax.f32 %v2527, %v2531
        %v2535 = vmax.f32 %v2529, %v2533
        %s2536 = scalar_lea.vmem [#allocation2], 928
        %v2537 = vld [vmem:[%s2536] ss:$2 sm:$0xff]
        %s2538 = scalar_lea.vmem [#allocation2], 944
        %v2539 = vld [vmem:[%s2538] ss:$2 sm:$0xff]
        %s2540 = scalar_lea.vmem [#allocation2], 929
        %v2541 = vld [vmem:[%s2540] ss:$2 sm:$0xff]
        %s2542 = scalar_lea.vmem [#allocation2], 945
        %v2543 = vld [vmem:[%s2542] ss:$2 sm:$0xff]
        %v2544 = vmax.f32 %v2537, %v2541
        %v2545 = vmax.f32 %v2539, %v2543
        %v2546 = vmax.f32 %v2534, %v2544
        %v2547 = vmax.f32 %v2535, %v2545
        %v2548 = vpack.c.bf16 %v2547, %v2546
        %v2550 = vunpack.c.l.b16 %v2548
        %v2551 = vunpack.c.h.b16 %v2548
        %v2552 = vpack.c.b16 %v2550, %v2550
        %v2553 = vpack.c.b16 %v2551, %v2551
        %v2554 = vrot.slane %v2552, 7
        %v2555 = vrot.slane %v2554, 4
        %v2556 = vrot.slane %v2553, 7
        %v2557 = vsel %vm2000, %v2555, %v2556
        %v2558 = vrot.slane %v2556, 4
        %2562 = vst.msk [vmem:[#allocation3 + $0xa0] sm:$0xe] %vm2009, %v2554
        %2563 = vst.msk [vmem:[#allocation3 + $0xa4] sm:$0xf] %vm331, %v2557
        %2564 = vst.msk [vmem:[#allocation3 + $0xa8] sm:$0x1] %vm2012, %v2558
        %s2565 = scalar_lea.vmem [#allocation2], 960
        %v2566 = vld [vmem:[%s2565] ss:$2 sm:$0xff]
        %s2567 = scalar_lea.vmem [#allocation2], 976
        %v2568 = vld [vmem:[%s2567] ss:$2 sm:$0xff]
        %s2569 = scalar_lea.vmem [#allocation2], 961
        %v2570 = vld [vmem:[%s2569] ss:$2 sm:$0xff]
        %s2571 = scalar_lea.vmem [#allocation2], 977
        %v2572 = vld [vmem:[%s2571] ss:$2 sm:$0xff]
        %v2573 = vmax.f32 %v2566, %v2570
        %v2574 = vmax.f32 %v2568, %v2572
        %s2575 = scalar_lea.vmem [#allocation2], 992
        %v2576 = vld [vmem:[%s2575] ss:$2 sm:$0xff]
        %s2577 = scalar_lea.vmem [#allocation2], 1008
        %v2578 = vld [vmem:[%s2577] ss:$2 sm:$0xff]
        %s2579 = scalar_lea.vmem [#allocation2], 993
        %v2580 = vld [vmem:[%s2579] ss:$2 sm:$0xff]
        %s2581 = scalar_lea.vmem [#allocation2], 1009
        %v2582 = vld [vmem:[%s2581] ss:$2 sm:$0xff]
        %v2583 = vmax.f32 %v2576, %v2580
        %v2584 = vmax.f32 %v2578, %v2582
        %v2585 = vmax.f32 %v2573, %v2583
        %v2586 = vmax.f32 %v2574, %v2584
        %v2587 = vpack.c.bf16 %v2586, %v2585
        %v2589 = vunpack.c.l.b16 %v2587
        %v2590 = vunpack.c.h.b16 %v2587
        %v2591 = vpack.c.b16 %v2589, %v2589
        %v2592 = vpack.c.b16 %v2590, %v2590
        %v2593 = vrot.slane %v2591, 5
        %v2594 = vrot.slane %v2593, 4
        %v2595 = vrot.slane %v2592, 5
        %v2596 = vsel %vm2044, %v2594, %v2595
        %v2597 = vrot.slane %v2595, 4
        %2601 = vst.msk [vmem:[#allocation3 + $0xa8] sm:$0x8] %vm2053, %v2593
        %2602 = vst.msk [vmem:[#allocation3 + $0xac] sm:$0xf] %vm331, %v2596
        %2603 = vst.msk [vmem:[#allocation3 + $0xb0] sm:$0x7] %vm2056, %v2597
        %v2604 = vld [vmem:[#allocation3] sm:$0xf]
        %v2605 = vld [vmem:[#allocation3 + $0x4] sm:$0xf]
        %v2606 = vld [vmem:[#allocation3 + $0x8] sm:$0xf]
        %v2607 = vld [vmem:[#allocation3 + $0xc] sm:$0xf]
        %v2608 = vld [vmem:[#allocation3 + $0x10] sm:$0xf]
        %v2609 = vld [vmem:[#allocation3 + $0x14] sm:$0xf]
        %v2610 = vld [vmem:[#allocation3 + $0x18] sm:$0xf]
        %v2611 = vld [vmem:[#allocation3 + $0x1c] sm:$0xf]
        %v2612 = vld [vmem:[#allocation3 + $0x20] sm:$0xf]
        %v2613 = vld [vmem:[#allocation3 + $0x24] sm:$0xf]
        %v2614 = vld [vmem:[#allocation3 + $0x28] sm:$0xf]
        %v2615 = vld [vmem:[#allocation3 + $0x2c] sm:$0xf]
        %v2616 = vld [vmem:[#allocation3 + $0x30] sm:$0xf]
        %v2617 = vld [vmem:[#allocation3 + $0x34] sm:$0xf]
        %v2618 = vld [vmem:[#allocation3 + $0x38] sm:$0xf]
        %v2619 = vld [vmem:[#allocation3 + $0x3c] sm:$0xf]
        %v2620 = vld [vmem:[#allocation3 + $0x40] sm:$0xf]
        %v2621 = vld [vmem:[#allocation3 + $0x44] sm:$0xf]
        %v2622 = vld [vmem:[#allocation3 + $0x48] sm:$0xf]
        %v2623 = vld [vmem:[#allocation3 + $0x4c] sm:$0xf]
        %v2624 = vld [vmem:[#allocation3 + $0x50] sm:$0xf]
        %v2625 = vld [vmem:[#allocation3 + $0x54] sm:$0xf]
        %v2626 = vld [vmem:[#allocation3 + $0x58] sm:$0xf]
        %v2627 = vld [vmem:[#allocation3 + $0x5c] sm:$0xf]
        %v2628 = vld [vmem:[#allocation3 + $0x60] sm:$0xf]
        %v2629 = vld [vmem:[#allocation3 + $0x64] sm:$0xf]
        %v2630 = vld [vmem:[#allocation3 + $0x68] sm:$0xf]
        %v2631 = vld [vmem:[#allocation3 + $0x6c] sm:$0xf]
        %v2632 = vld [vmem:[#allocation3 + $0x70] sm:$0xf]
        %v2633 = vld [vmem:[#allocation3 + $0x74] sm:$0xf]
        %v2634 = vld [vmem:[#allocation3 + $0x78] sm:$0xf]
        %v2635 = vld [vmem:[#allocation3 + $0x7c] sm:$0xf]
        %v2636 = vld [vmem:[#allocation3 + $0x80] sm:$0xf]
        %v2637 = vld [vmem:[#allocation3 + $0x84] sm:$0xf]
        %v2638 = vld [vmem:[#allocation3 + $0x88] sm:$0xf]
        %v2639 = vld [vmem:[#allocation3 + $0x8c] sm:$0xf]
        %v2640 = vld [vmem:[#allocation3 + $0x90] sm:$0xf]
        %v2641 = vld [vmem:[#allocation3 + $0x94] sm:$0xf]
        %v2642 = vld [vmem:[#allocation3 + $0x98] sm:$0xf]
        %v2643 = vld [vmem:[#allocation3 + $0x9c] sm:$0xf]
        %v2644 = vld [vmem:[#allocation3 + $0xa0] sm:$0xf]
        %v2645 = vld [vmem:[#allocation3 + $0xa4] sm:$0xf]
        %v2646 = vld [vmem:[#allocation3 + $0xa8] sm:$0xf]
        %v2647 = vld [vmem:[#allocation3 + $0xac] sm:$0xf]
        %v2648 = vld [vmem:[#allocation3 + $0xb0] sm:$0xf]
        %v2649 = vld [vmem:[#allocation3 + $0xb4] sm:$0xf]
        %v2650 = vld [vmem:[#allocation3 + $0xb8] sm:$0xf]
        %v2651 = vld [vmem:[#allocation3 + $0xbc] sm:$0xf]
        %v2652 = vld [vmem:[#allocation3 + $0xc0] sm:$0xf]
        %v2653 = vld [vmem:[#allocation3 + $0xc4] sm:$0xf]
        %v2704 = vunpack.c.l.b16 %v2604
        %v2705 = vunpack.c.l.b16 %v2605
        %v2706 = vunpack.c.l.b16 %v2606
        %v2707 = vunpack.c.l.b16 %v2607
        %v2708 = vunpack.c.l.b16 %v2608
        %v2709 = vunpack.c.l.b16 %v2609
        %v2710 = vunpack.c.l.b16 %v2610
        %v2711 = vunpack.c.l.b16 %v2611
        %v2712 = vunpack.c.l.b16 %v2612
        %v2713 = vunpack.c.l.b16 %v2613
        %v2714 = vunpack.c.l.b16 %v2614
        %v2715 = vunpack.c.l.b16 %v2615
        %v2716 = vunpack.c.l.b16 %v2616
        %v2717 = vunpack.c.l.b16 %v2617
        %v2718 = vunpack.c.l.b16 %v2618
        %v2719 = vunpack.c.l.b16 %v2619
        %v2720 = vunpack.c.l.b16 %v2620
        %v2721 = vunpack.c.l.b16 %v2621
        %v2722 = vunpack.c.l.b16 %v2622
        %v2723 = vunpack.c.l.b16 %v2623
        %v2724 = vunpack.c.l.b16 %v2624
        %v2725 = vunpack.c.l.b16 %v2625
        %v2726 = vunpack.c.l.b16 %v2626
        %v2727 = vunpack.c.l.b16 %v2627
        %v2728 = vunpack.c.l.b16 %v2628
        %v2729 = vunpack.c.l.b16 %v2629
        %v2730 = vunpack.c.l.b16 %v2630
        %v2731 = vunpack.c.l.b16 %v2631
        %v2732 = vunpack.c.l.b16 %v2632
        %v2733 = vunpack.c.l.b16 %v2633
        %v2734 = vunpack.c.l.b16 %v2634
        %v2735 = vunpack.c.l.b16 %v2635
        %v2736 = vunpack.c.l.b16 %v2636
        %v2737 = vunpack.c.l.b16 %v2637
        %v2738 = vunpack.c.l.b16 %v2638
        %v2739 = vunpack.c.l.b16 %v2639
        %v2740 = vunpack.c.l.b16 %v2640
        %v2741 = vunpack.c.l.b16 %v2641
        %v2742 = vunpack.c.l.b16 %v2642
        %v2743 = vunpack.c.l.b16 %v2643
        %v2744 = vunpack.c.l.b16 %v2644
        %v2745 = vunpack.c.l.b16 %v2645
        %v2746 = vunpack.c.l.b16 %v2646
        %v2747 = vunpack.c.l.b16 %v2647
        %v2748 = vunpack.c.l.b16 %v2648
        %v2749 = vunpack.c.l.b16 %v2649
        %v2750 = vunpack.c.l.b16 %v2650
        %v2751 = vunpack.c.l.b16 %v2651
        %v2752 = vunpack.c.l.b16 %v2652
        %v2753 = vunpack.c.l.b16 %v2653
        %v2754 = vpack.c.b16 %v2705, %v2704
        %v2755 = vpack.c.b16 %v2707, %v2706
        %v2756 = vpack.c.b16 %v2709, %v2708
        %v2757 = vpack.c.b16 %v2711, %v2710
        %v2758 = vpack.c.b16 %v2713, %v2712
        %v2759 = vpack.c.b16 %v2715, %v2714
        %v2760 = vpack.c.b16 %v2717, %v2716
        %v2761 = vpack.c.b16 %v2719, %v2718
        %v2762 = vpack.c.b16 %v2721, %v2720
        %v2763 = vpack.c.b16 %v2723, %v2722
        %v2764 = vpack.c.b16 %v2725, %v2724
        %v2765 = vpack.c.b16 %v2727, %v2726
        %v2766 = vpack.c.b16 %v2729, %v2728
        %v2767 = vpack.c.b16 %v2731, %v2730
        %v2768 = vpack.c.b16 %v2733, %v2732
        %v2769 = vpack.c.b16 %v2735, %v2734
        %v2770 = vpack.c.b16 %v2737, %v2736
        %v2771 = vpack.c.b16 %v2739, %v2738
        %v2772 = vpack.c.b16 %v2741, %v2740
        %v2773 = vpack.c.b16 %v2743, %v2742
        %v2774 = vpack.c.b16 %v2745, %v2744
        %v2775 = vpack.c.b16 %v2747, %v2746
        %v2776 = vpack.c.b16 %v2749, %v2748
        %v2777 = vpack.c.b16 %v2751, %v2750
        %v2778 = vpack.c.b16 %v2753, %v2752
        %2804 = vst.msk [vmem:[#allocation5] sm:$0xff] %vm762, %v2754
        %2805 = vst.msk [vmem:[#allocation5 + $0x10] sm:$0xff] %vm762, %v2755
        %2806 = vst.msk [vmem:[#allocation5 + $0x20] sm:$0xff] %vm762, %v2756
        %2807 = vst.msk [vmem:[#allocation5 + $0x30] sm:$0xff] %vm762, %v2757
        %2808 = vst.msk [vmem:[#allocation5 + $0x40] sm:$0xff] %vm762, %v2758
        %2809 = vst.msk [vmem:[#allocation5 + $0x50] sm:$0xff] %vm762, %v2759
        %2810 = vst.msk [vmem:[#allocation5 + $0x60] sm:$0xff] %vm762, %v2760
        %2811 = vst.msk [vmem:[#allocation5 + $0x70] sm:$0xff] %vm762, %v2761
        %2812 = vst.msk [vmem:[#allocation5 + $0x80] sm:$0xff] %vm762, %v2762
        %2813 = vst.msk [vmem:[#allocation5 + $0x90] sm:$0xff] %vm762, %v2763
        %2814 = vst.msk [vmem:[#allocation5 + $0xa0] sm:$0xff] %vm762, %v2764
        %2815 = vst.msk [vmem:[#allocation5 + $0xb0] sm:$0xff] %vm762, %v2765
        %2816 = vst.msk [vmem:[#allocation5 + $0xc0] sm:$0xff] %vm762, %v2766
        %2817 = vst.msk [vmem:[#allocation5 + $0xd0] sm:$0xff] %vm762, %v2767
        %2818 = vst.msk [vmem:[#allocation5 + $0xe0] sm:$0xff] %vm762, %v2768
        %2819 = vst.msk [vmem:[#allocation5 + $0xf0] sm:$0xff] %vm762, %v2769
        %2820 = vst.msk [vmem:[#allocation5 + $0x100] sm:$0xff] %vm762, %v2770
        %2821 = vst.msk [vmem:[#allocation5 + $0x110] sm:$0xff] %vm762, %v2771
        %2822 = vst.msk [vmem:[#allocation5 + $0x120] sm:$0xff] %vm762, %v2772
        %2823 = vst.msk [vmem:[#allocation5 + $0x130] sm:$0xff] %vm762, %v2773
        %2824 = vst.msk [vmem:[#allocation5 + $0x140] sm:$0xff] %vm762, %v2774
        %2825 = vst.msk [vmem:[#allocation5 + $0x150] sm:$0xff] %vm762, %v2775
        %2826 = vst.msk [vmem:[#allocation5 + $0x160] sm:$0xff] %vm762, %v2776
        %2827 = vst.msk [vmem:[#allocation5 + $0x170] sm:$0xff] %vm762, %v2777
        %2828 = vst.msk [vmem:[#allocation5 + $0x180] sm:$0xff] %vm762, %v2778
        %v2829 = vld [vmem:[#allocation3] sm:$0xf]
        %v2830 = vld [vmem:[#allocation3 + $0x4] sm:$0xf]
        %v2831 = vld [vmem:[#allocation3 + $0x8] sm:$0xf]
        %v2832 = vld [vmem:[#allocation3 + $0xc] sm:$0xf]
        %v2833 = vld [vmem:[#allocation3 + $0x10] sm:$0xf]
        %v2834 = vld [vmem:[#allocation3 + $0x14] sm:$0xf]
        %v2835 = vld [vmem:[#allocation3 + $0x18] sm:$0xf]
        %v2836 = vld [vmem:[#allocation3 + $0x1c] sm:$0xf]
        %v2837 = vld [vmem:[#allocation3 + $0x20] sm:$0xf]
        %v2838 = vld [vmem:[#allocation3 + $0x24] sm:$0xf]
        %v2839 = vld [vmem:[#allocation3 + $0x28] sm:$0xf]
        %v2840 = vld [vmem:[#allocation3 + $0x2c] sm:$0xf]
        %v2841 = vld [vmem:[#allocation3 + $0x30] sm:$0xf]
        %v2842 = vld [vmem:[#allocation3 + $0x34] sm:$0xf]
        %v2843 = vld [vmem:[#allocation3 + $0x38] sm:$0xf]
        %v2844 = vld [vmem:[#allocation3 + $0x3c] sm:$0xf]
        %v2845 = vld [vmem:[#allocation3 + $0x40] sm:$0xf]
        %v2846 = vld [vmem:[#allocation3 + $0x44] sm:$0xf]
        %v2847 = vld [vmem:[#allocation3 + $0x48] sm:$0xf]
        %v2848 = vld [vmem:[#allocation3 + $0x4c] sm:$0xf]
        %v2849 = vld [vmem:[#allocation3 + $0x50] sm:$0xf]
        %v2850 = vld [vmem:[#allocation3 + $0x54] sm:$0xf]
        %v2851 = vld [vmem:[#allocation3 + $0x58] sm:$0xf]
        %v2852 = vld [vmem:[#allocation3 + $0x5c] sm:$0xf]
        %v2853 = vld [vmem:[#allocation3 + $0x60] sm:$0xf]
        %v2854 = vld [vmem:[#allocation3 + $0x64] sm:$0xf]
        %v2855 = vld [vmem:[#allocation3 + $0x68] sm:$0xf]
        %v2856 = vld [vmem:[#allocation3 + $0x6c] sm:$0xf]
        %v2857 = vld [vmem:[#allocation3 + $0x70] sm:$0xf]
        %v2858 = vld [vmem:[#allocation3 + $0x74] sm:$0xf]
        %v2859 = vld [vmem:[#allocation3 + $0x78] sm:$0xf]
        %v2860 = vld [vmem:[#allocation3 + $0x7c] sm:$0xf]
        %v2861 = vld [vmem:[#allocation3 + $0x80] sm:$0xf]
        %v2862 = vld [vmem:[#allocation3 + $0x84] sm:$0xf]
        %v2863 = vld [vmem:[#allocation3 + $0x88] sm:$0xf]
        %v2864 = vld [vmem:[#allocation3 + $0x8c] sm:$0xf]
        %v2865 = vld [vmem:[#allocation3 + $0x90] sm:$0xf]
        %v2866 = vld [vmem:[#allocation3 + $0x94] sm:$0xf]
        %v2867 = vld [vmem:[#allocation3 + $0x98] sm:$0xf]
        %v2868 = vld [vmem:[#allocation3 + $0x9c] sm:$0xf]
        %v2869 = vld [vmem:[#allocation3 + $0xa0] sm:$0xf]
        %v2870 = vld [vmem:[#allocation3 + $0xa4] sm:$0xf]
        %v2871 = vld [vmem:[#allocation3 + $0xa8] sm:$0xf]
        %v2872 = vld [vmem:[#allocation3 + $0xac] sm:$0xf]
        %v2873 = vld [vmem:[#allocation3 + $0xb0] sm:$0xf]
        %v2874 = vld [vmem:[#allocation3 + $0xb4] sm:$0xf]
        %v2875 = vld [vmem:[#allocation3 + $0xb8] sm:$0xf]
        %v2876 = vld [vmem:[#allocation3 + $0xbc] sm:$0xf]
        %v2877 = vld [vmem:[#allocation3 + $0xc0] sm:$0xf]
        %v2878 = vld [vmem:[#allocation3 + $0xc4] sm:$0xf]
        %v2879 = vld [vmem:[#allocation3 + $0xc8] sm:$0x1]
        %v2931 = vunpack.c.l.b16 %v2829
        %v2932 = vunpack.c.l.b16 %v2830
        %v2933 = vunpack.c.l.b16 %v2831
        %v2934 = vunpack.c.l.b16 %v2832
        %v2935 = vunpack.c.l.b16 %v2833
        %v2936 = vunpack.c.l.b16 %v2834
        %v2937 = vunpack.c.l.b16 %v2835
        %v2938 = vunpack.c.l.b16 %v2836
        %v2939 = vunpack.c.l.b16 %v2837
        %v2940 = vunpack.c.l.b16 %v2838
        %v2941 = vunpack.c.l.b16 %v2839
        %v2942 = vunpack.c.l.b16 %v2840
        %v2943 = vunpack.c.l.b16 %v2841
        %v2944 = vunpack.c.l.b16 %v2842
        %v2945 = vunpack.c.l.b16 %v2843
        %v2946 = vunpack.c.l.b16 %v2844
        %v2947 = vunpack.c.l.b16 %v2845
        %v2948 = vunpack.c.l.b16 %v2846
        %v2949 = vunpack.c.l.b16 %v2847
        %v2950 = vunpack.c.l.b16 %v2848
        %v2951 = vunpack.c.l.b16 %v2849
        %v2952 = vunpack.c.l.b16 %v2850
        %v2953 = vunpack.c.l.b16 %v2851
        %v2954 = vunpack.c.l.b16 %v2852
        %v2955 = vunpack.c.l.b16 %v2853
        %v2956 = vunpack.c.l.b16 %v2854
        %v2957 = vunpack.c.l.b16 %v2855
        %v2958 = vunpack.c.l.b16 %v2856
        %v2959 = vunpack.c.l.b16 %v2857
        %v2960 = vunpack.c.l.b16 %v2858
        %v2961 = vunpack.c.l.b16 %v2859
        %v2962 = vunpack.c.l.b16 %v2860
        %v2963 = vunpack.c.l.b16 %v2861
        %v2964 = vunpack.c.l.b16 %v2862
        %v2965 = vunpack.c.l.b16 %v2863
        %v2966 = vunpack.c.l.b16 %v2864
        %v2967 = vunpack.c.l.b16 %v2865
        %v2968 = vunpack.c.l.b16 %v2866
        %v2969 = vunpack.c.l.b16 %v2867
        %v2970 = vunpack.c.l.b16 %v2868
        %v2971 = vunpack.c.l.b16 %v2869
        %v2972 = vunpack.c.l.b16 %v2870
        %v2973 = vunpack.c.l.b16 %v2871
        %v2974 = vunpack.c.l.b16 %v2872
        %v2975 = vunpack.c.l.b16 %v2873
        %v2976 = vunpack.c.l.b16 %v2874
        %v2977 = vunpack.c.l.b16 %v2875
        %v2978 = vunpack.c.l.b16 %v2876
        %v2979 = vunpack.c.l.b16 %v2877
        %v2980 = vunpack.c.l.b16 %v2878
        %v2981 = vunpack.c.l.b16 %v2879
        %v2982 = vpack.c.b16 %v2932, %v2931
        %v2983 = vpack.c.b16 %v2934, %v2933
        %v2984 = vpack.c.b16 %v2936, %v2935
        %v2985 = vpack.c.b16 %v2938, %v2937
        %v2986 = vpack.c.b16 %v2940, %v2939
        %v2987 = vpack.c.b16 %v2942, %v2941
        %v2988 = vpack.c.b16 %v2944, %v2943
        %v2989 = vpack.c.b16 %v2946, %v2945
        %v2990 = vpack.c.b16 %v2948, %v2947
        %v2991 = vpack.c.b16 %v2950, %v2949
        %v2992 = vpack.c.b16 %v2952, %v2951
        %v2993 = vpack.c.b16 %v2954, %v2953
        %v2994 = vpack.c.b16 %v2956, %v2955
        %v2995 = vpack.c.b16 %v2958, %v2957
        %v2996 = vpack.c.b16 %v2960, %v2959
        %v2997 = vpack.c.b16 %v2962, %v2961
        %v2998 = vpack.c.b16 %v2964, %v2963
        %v2999 = vpack.c.b16 %v2966, %v2965
        %v3000 = vpack.c.b16 %v2968, %v2967
        %v3001 = vpack.c.b16 %v2970, %v2969
        %v3002 = vpack.c.b16 %v2972, %v2971
        %v3003 = vpack.c.b16 %v2974, %v2973
        %v3004 = vpack.c.b16 %v2976, %v2975
        %v3005 = vpack.c.b16 %v2978, %v2977
        %v3006 = vpack.c.b16 %v2980, %v2979
        %v3007 = vpack.c.b16 %v2981, %v2981
        %vm3008 = vsmask.f32 7424
        %v3010 = vshrl.u32 %v2982, 16
        %v3012 = vshll.u32 %v2982, 16
        %v3014 = vrot.slane %v3012, 1
        %v3015 = vor.u32 %v3010, %v3014
        %v3017 = vshll.u32 %v2983, 16
        %v3019 = vrot.slane %v3017, 1
        %v3020 = vsel %vm3008, %v3015, %v3019
        %v3021 = vshrl.u32 %v2983, 16
        %v3023 = vor.u32 %v3021, %v3019
        %v3025 = vshll.u32 %v2984, 16
        %v3027 = vrot.slane %v3025, 1
        %v3028 = vsel %vm3008, %v3023, %v3027
        %v3029 = vshrl.u32 %v2984, 16
        %v3031 = vor.u32 %v3029, %v3027
        %v3033 = vshll.u32 %v2985, 16
        %v3035 = vrot.slane %v3033, 1
        %v3036 = vsel %vm3008, %v3031, %v3035
        %v3037 = vshrl.u32 %v2985, 16
        %v3039 = vor.u32 %v3037, %v3035
        %v3041 = vshll.u32 %v2986, 16
        %v3043 = vrot.slane %v3041, 1
        %v3044 = vsel %vm3008, %v3039, %v3043
        %v3045 = vshrl.u32 %v2986, 16
        %v3047 = vor.u32 %v3045, %v3043
        %v3049 = vshll.u32 %v2987, 16
        %v3051 = vrot.slane %v3049, 1
        %v3052 = vsel %vm3008, %v3047, %v3051
        %v3053 = vshrl.u32 %v2987, 16
        %v3055 = vor.u32 %v3053, %v3051
        %v3057 = vshll.u32 %v2988, 16
        %v3059 = vrot.slane %v3057, 1
        %v3060 = vsel %vm3008, %v3055, %v3059
        %v3061 = vshrl.u32 %v2988, 16
        %v3063 = vor.u32 %v3061, %v3059
        %v3065 = vshll.u32 %v2989, 16
        %v3067 = vrot.slane %v3065, 1
        %v3068 = vsel %vm3008, %v3063, %v3067
        %v3069 = vshrl.u32 %v2989, 16
        %v3071 = vor.u32 %v3069, %v3067
        %v3073 = vshll.u32 %v2990, 16
        %v3075 = vrot.slane %v3073, 1
        %v3076 = vsel %vm3008, %v3071, %v3075
        %v3077 = vshrl.u32 %v2990, 16
        %v3079 = vor.u32 %v3077, %v3075
        %v3081 = vshll.u32 %v2991, 16
        %v3083 = vrot.slane %v3081, 1
        %v3084 = vsel %vm3008, %v3079, %v3083
        %v3085 = vshrl.u32 %v2991, 16
        %v3087 = vor.u32 %v3085, %v3083
        %v3089 = vshll.u32 %v2992, 16
        %v3091 = vrot.slane %v3089, 1
        %v3092 = vsel %vm3008, %v3087, %v3091
        %v3093 = vshrl.u32 %v2992, 16
        %v3095 = vor.u32 %v3093, %v3091
        %v3097 = vshll.u32 %v2993, 16
        %v3099 = vrot.slane %v3097, 1
        %v3100 = vsel %vm3008, %v3095, %v3099
        %v3101 = vshrl.u32 %v2993, 16
        %v3103 = vor.u32 %v3101, %v3099
        %v3105 = vshll.u32 %v2994, 16
        %v3107 = vrot.slane %v3105, 1
        %v3108 = vsel %vm3008, %v3103, %v3107
        %v3109 = vshrl.u32 %v2994, 16
        %v3111 = vor.u32 %v3109, %v3107
        %v3113 = vshll.u32 %v2995, 16
        %v3115 = vrot.slane %v3113, 1
        %v3116 = vsel %vm3008, %v3111, %v3115
        %v3117 = vshrl.u32 %v2995, 16
        %v3119 = vor.u32 %v3117, %v3115
        %v3121 = vshll.u32 %v2996, 16
        %v3123 = vrot.slane %v3121, 1
        %v3124 = vsel %vm3008, %v3119, %v3123
        %v3125 = vshrl.u32 %v2996, 16
        %v3127 = vor.u32 %v3125, %v3123
        %v3129 = vshll.u32 %v2997, 16
        %v3131 = vrot.slane %v3129, 1
        %v3132 = vsel %vm3008, %v3127, %v3131
        %v3133 = vshrl.u32 %v2997, 16
        %v3135 = vor.u32 %v3133, %v3131
        %v3137 = vshll.u32 %v2998, 16
        %v3139 = vrot.slane %v3137, 1
        %v3140 = vsel %vm3008, %v3135, %v3139
        %v3141 = vshrl.u32 %v2998, 16
        %v3143 = vor.u32 %v3141, %v3139
        %v3145 = vshll.u32 %v2999, 16
        %v3147 = vrot.slane %v3145, 1
        %v3148 = vsel %vm3008, %v3143, %v3147
        %v3149 = vshrl.u32 %v2999, 16
        %v3151 = vor.u32 %v3149, %v3147
        %v3153 = vshll.u32 %v3000, 16
        %v3155 = vrot.slane %v3153, 1
        %v3156 = vsel %vm3008, %v3151, %v3155
        %v3157 = vshrl.u32 %v3000, 16
        %v3159 = vor.u32 %v3157, %v3155
        %v3161 = vshll.u32 %v3001, 16
        %v3163 = vrot.slane %v3161, 1
        %v3164 = vsel %vm3008, %v3159, %v3163
        %v3165 = vshrl.u32 %v3001, 16
        %v3167 = vor.u32 %v3165, %v3163
        %v3169 = vshll.u32 %v3002, 16
        %v3171 = vrot.slane %v3169, 1
        %v3172 = vsel %vm3008, %v3167, %v3171
        %v3173 = vshrl.u32 %v3002, 16
        %v3175 = vor.u32 %v3173, %v3171
        %v3177 = vshll.u32 %v3003, 16
        %v3179 = vrot.slane %v3177, 1
        %v3180 = vsel %vm3008, %v3175, %v3179
        %v3181 = vshrl.u32 %v3003, 16
        %v3183 = vor.u32 %v3181, %v3179
        %v3185 = vshll.u32 %v3004, 16
        %v3187 = vrot.slane %v3185, 1
        %v3188 = vsel %vm3008, %v3183, %v3187
        %v3189 = vshrl.u32 %v3004, 16
        %v3191 = vor.u32 %v3189, %v3187
        %v3193 = vshll.u32 %v3005, 16
        %v3195 = vrot.slane %v3193, 1
        %v3196 = vsel %vm3008, %v3191, %v3195
        %v3197 = vshrl.u32 %v3005, 16
        %v3199 = vor.u32 %v3197, %v3195
        %v3201 = vshll.u32 %v3006, 16
        %v3203 = vrot.slane %v3201, 1
        %v3204 = vsel %vm3008, %v3199, %v3203
        %v3205 = vshrl.u32 %v3006, 16
        %v3207 = vor.u32 %v3205, %v3203
        %v3209 = vshll.u32 %v3007, 16
        %v3211 = vrot.slane %v3209, 1
        %v3212 = vsel %vm3008, %v3207, %v3211
        %3213 = vrot.lane.b32.xlu0 %v3020, 32
        %v3214 = vpop.permute.xlu0 %3213
        %3215 = vrot.lane.b32.xlu0 %v3028, 32
        %v3216 = vpop.permute.xlu0 %3215
        %3217 = vrot.lane.b32.xlu0 %v3036, 32
        %v3218 = vpop.permute.xlu0 %3217
        %3219 = vrot.lane.b32.xlu0 %v3044, 32
        %v3220 = vpop.permute.xlu0 %3219
        %3221 = vrot.lane.b32.xlu0 %v3052, 32
        %v3222 = vpop.permute.xlu0 %3221
        %3223 = vrot.lane.b32.xlu0 %v3060, 32
        %v3224 = vpop.permute.xlu0 %3223
        %3225 = vrot.lane.b32.xlu0 %v3068, 32
        %v3226 = vpop.permute.xlu0 %3225
        %3227 = vrot.lane.b32.xlu0 %v3076, 32
        %v3228 = vpop.permute.xlu0 %3227
        %3229 = vrot.lane.b32.xlu0 %v3084, 32
        %v3230 = vpop.permute.xlu0 %3229
        %3231 = vrot.lane.b32.xlu0 %v3092, 32
        %v3232 = vpop.permute.xlu0 %3231
        %3233 = vrot.lane.b32.xlu0 %v3100, 32
        %v3234 = vpop.permute.xlu0 %3233
        %3235 = vrot.lane.b32.xlu0 %v3108, 32
        %v3236 = vpop.permute.xlu0 %3235
        %3237 = vrot.lane.b32.xlu0 %v3116, 32
        %v3238 = vpop.permute.xlu0 %3237
        %3239 = vrot.lane.b32.xlu0 %v3124, 32
        %v3240 = vpop.permute.xlu0 %3239
        %3241 = vrot.lane.b32.xlu0 %v3132, 32
        %v3242 = vpop.permute.xlu0 %3241
        %3243 = vrot.lane.b32.xlu0 %v3140, 32
        %v3244 = vpop.permute.xlu0 %3243
        %3245 = vrot.lane.b32.xlu0 %v3148, 32
        %v3246 = vpop.permute.xlu0 %3245
        %3247 = vrot.lane.b32.xlu0 %v3156, 32
        %v3248 = vpop.permute.xlu0 %3247
        %3249 = vrot.lane.b32.xlu0 %v3164, 32
        %v3250 = vpop.permute.xlu0 %3249
        %3251 = vrot.lane.b32.xlu0 %v3172, 32
        %v3252 = vpop.permute.xlu0 %3251
        %3253 = vrot.lane.b32.xlu0 %v3180, 32
        %v3254 = vpop.permute.xlu0 %3253
        %3255 = vrot.lane.b32.xlu0 %v3188, 32
        %v3256 = vpop.permute.xlu0 %3255
        %3257 = vrot.lane.b32.xlu0 %v3196, 32
        %v3258 = vpop.permute.xlu0 %3257
        %3259 = vrot.lane.b32.xlu0 %v3204, 32
        %v3260 = vpop.permute.xlu0 %3259
        %3261 = vrot.lane.b32.xlu0 %v3212, 32
        %v3262 = vpop.permute.xlu0 %3261
        %vm3288 = vcmask 523520
        %3289 = vst.msk [vmem:[#allocation5] sm:$0xff] %vm3288, %v3214
        %3290 = vst.msk [vmem:[#allocation5 + $0x10] sm:$0xff] %vm3288, %v3216
        %3291 = vst.msk [vmem:[#allocation5 + $0x20] sm:$0xff] %vm3288, %v3218
        %3292 = vst.msk [vmem:[#allocation5 + $0x30] sm:$0xff] %vm3288, %v3220
        %3293 = vst.msk [vmem:[#allocation5 + $0x40] sm:$0xff] %vm3288, %v3222
        %3294 = vst.msk [vmem:[#allocation5 + $0x50] sm:$0xff] %vm3288, %v3224
        %3295 = vst.msk [vmem:[#allocation5 + $0x60] sm:$0xff] %vm3288, %v3226
        %3296 = vst.msk [vmem:[#allocation5 + $0x70] sm:$0xff] %vm3288, %v3228
        %3297 = vst.msk [vmem:[#allocation5 + $0x80] sm:$0xff] %vm3288, %v3230
        %3298 = vst.msk [vmem:[#allocation5 + $0x90] sm:$0xff] %vm3288, %v3232
        %3299 = vst.msk [vmem:[#allocation5 + $0xa0] sm:$0xff] %vm3288, %v3234
        %3300 = vst.msk [vmem:[#allocation5 + $0xb0] sm:$0xff] %vm3288, %v3236
        %3301 = vst.msk [vmem:[#allocation5 + $0xc0] sm:$0xff] %vm3288, %v3238
        %3302 = vst.msk [vmem:[#allocation5 + $0xd0] sm:$0xff] %vm3288, %v3240
        %3303 = vst.msk [vmem:[#allocation5 + $0xe0] sm:$0xff] %vm3288, %v3242
        %3304 = vst.msk [vmem:[#allocation5 + $0xf0] sm:$0xff] %vm3288, %v3244
        %3305 = vst.msk [vmem:[#allocation5 + $0x100] sm:$0xff] %vm3288, %v3246
        %3306 = vst.msk [vmem:[#allocation5 + $0x110] sm:$0xff] %vm3288, %v3248
        %3307 = vst.msk [vmem:[#allocation5 + $0x120] sm:$0xff] %vm3288, %v3250
        %3308 = vst.msk [vmem:[#allocation5 + $0x130] sm:$0xff] %vm3288, %v3252
        %3309 = vst.msk [vmem:[#allocation5 + $0x140] sm:$0xff] %vm3288, %v3254
        %3310 = vst.msk [vmem:[#allocation5 + $0x150] sm:$0xff] %vm3288, %v3256
        %3311 = vst.msk [vmem:[#allocation5 + $0x160] sm:$0xff] %vm3288, %v3258
        %3312 = vst.msk [vmem:[#allocation5 + $0x170] sm:$0xff] %vm3288, %v3260
        %3313 = vst.msk [vmem:[#allocation5 + $0x180] sm:$0xff] %vm3288, %v3262
        %v3314 = vld [vmem:[#allocation3] sm:$0xe]
        %v3315 = vld [vmem:[#allocation3 + $0x4] sm:$0xf]
        %v3316 = vld [vmem:[#allocation3 + $0x8] sm:$0xf]
        %v3317 = vld [vmem:[#allocation3 + $0xc] sm:$0xf]
        %v3318 = vld [vmem:[#allocation3 + $0x10] sm:$0xf]
        %v3319 = vld [vmem:[#allocation3 + $0x14] sm:$0xf]
        %v3320 = vld [vmem:[#allocation3 + $0x18] sm:$0xf]
        %v3321 = vld [vmem:[#allocation3 + $0x1c] sm:$0xf]
        %v3322 = vld [vmem:[#allocation3 + $0x20] sm:$0xf]
        %v3323 = vld [vmem:[#allocation3 + $0x24] sm:$0xf]
        %v3324 = vld [vmem:[#allocation3 + $0x28] sm:$0xf]
        %v3325 = vld [vmem:[#allocation3 + $0x2c] sm:$0xf]
        %v3326 = vld [vmem:[#allocation3 + $0x30] sm:$0xf]
        %v3327 = vld [vmem:[#allocation3 + $0x34] sm:$0xf]
        %v3328 = vld [vmem:[#allocation3 + $0x38] sm:$0xf]
        %v3329 = vld [vmem:[#allocation3 + $0x3c] sm:$0xf]
        %v3330 = vld [vmem:[#allocation3 + $0x40] sm:$0xf]
        %v3331 = vld [vmem:[#allocation3 + $0x44] sm:$0xf]
        %v3332 = vld [vmem:[#allocation3 + $0x48] sm:$0xf]
        %v3333 = vld [vmem:[#allocation3 + $0x4c] sm:$0xf]
        %v3334 = vld [vmem:[#allocation3 + $0x50] sm:$0xf]
        %v3335 = vld [vmem:[#allocation3 + $0x54] sm:$0xf]
        %v3336 = vld [vmem:[#allocation3 + $0x58] sm:$0xf]
        %v3337 = vld [vmem:[#allocation3 + $0x5c] sm:$0xf]
        %v3338 = vld [vmem:[#allocation3 + $0x60] sm:$0xf]
        %v3339 = vld [vmem:[#allocation3 + $0x64] sm:$0xf]
        %v3340 = vld [vmem:[#allocation3 + $0x68] sm:$0xf]
        %v3341 = vld [vmem:[#allocation3 + $0x6c] sm:$0xf]
        %v3342 = vld [vmem:[#allocation3 + $0x70] sm:$0xf]
        %v3343 = vld [vmem:[#allocation3 + $0x74] sm:$0xf]
        %v3344 = vld [vmem:[#allocation3 + $0x78] sm:$0xf]
        %v3345 = vld [vmem:[#allocation3 + $0x7c] sm:$0xf]
        %v3346 = vld [vmem:[#allocation3 + $0x80] sm:$0xf]
        %v3347 = vld [vmem:[#allocation3 + $0x84] sm:$0xf]
        %v3348 = vld [vmem:[#allocation3 + $0x88] sm:$0xf]
        %v3349 = vld [vmem:[#allocation3 + $0x8c] sm:$0xf]
        %v3350 = vld [vmem:[#allocation3 + $0x90] sm:$0xf]
        %v3351 = vld [vmem:[#allocation3 + $0x94] sm:$0xf]
        %v3352 = vld [vmem:[#allocation3 + $0x98] sm:$0xf]
        %v3353 = vld [vmem:[#allocation3 + $0x9c] sm:$0xf]
        %v3354 = vld [vmem:[#allocation3 + $0xa0] sm:$0xf]
        %v3355 = vld [vmem:[#allocation3 + $0xa4] sm:$0xf]
        %v3356 = vld [vmem:[#allocation3 + $0xa8] sm:$0xf]
        %v3357 = vld [vmem:[#allocation3 + $0xac] sm:$0xf]
        %v3358 = vld [vmem:[#allocation3 + $0xb0] sm:$0xf]
        %v3359 = vld [vmem:[#allocation3 + $0xb4] sm:$0xf]
        %v3360 = vld [vmem:[#allocation3 + $0xb8] sm:$0xf]
        %v3361 = vld [vmem:[#allocation3 + $0xbc] sm:$0xf]
        %v3362 = vld [vmem:[#allocation3 + $0xc0] sm:$0xf]
        %v3363 = vld [vmem:[#allocation3 + $0xc4] sm:$0xf]
        %v3364 = vld [vmem:[#allocation3 + $0xc8] sm:$0x1]
        %v3416 = vunpack.c.l.b16 %v3314
        %v3417 = vunpack.c.l.b16 %v3315
        %v3418 = vunpack.c.l.b16 %v3316
        %v3419 = vunpack.c.l.b16 %v3317
        %v3420 = vunpack.c.l.b16 %v3318
        %v3421 = vunpack.c.l.b16 %v3319
        %v3422 = vunpack.c.l.b16 %v3320
        %v3423 = vunpack.c.l.b16 %v3321
        %v3424 = vunpack.c.l.b16 %v3322
        %v3425 = vunpack.c.l.b16 %v3323
        %v3426 = vunpack.c.l.b16 %v3324
        %v3427 = vunpack.c.l.b16 %v3325
        %v3428 = vunpack.c.l.b16 %v3326
        %v3429 = vunpack.c.l.b16 %v3327
        %v3430 = vunpack.c.l.b16 %v3328
        %v3431 = vunpack.c.l.b16 %v3329
        %v3432 = vunpack.c.l.b16 %v3330
        %v3433 = vunpack.c.l.b16 %v3331
        %v3434 = vunpack.c.l.b16 %v3332
        %v3435 = vunpack.c.l.b16 %v3333
        %v3436 = vunpack.c.l.b16 %v3334
        %v3437 = vunpack.c.l.b16 %v3335
        %v3438 = vunpack.c.l.b16 %v3336
        %v3439 = vunpack.c.l.b16 %v3337
        %v3440 = vunpack.c.l.b16 %v3338
        %v3441 = vunpack.c.l.b16 %v3339
        %v3442 = vunpack.c.l.b16 %v3340
        %v3443 = vunpack.c.l.b16 %v3341
        %v3444 = vunpack.c.l.b16 %v3342
        %v3445 = vunpack.c.l.b16 %v3343
        %v3446 = vunpack.c.l.b16 %v3344
        %v3447 = vunpack.c.l.b16 %v3345
        %v3448 = vunpack.c.l.b16 %v3346
        %v3449 = vunpack.c.l.b16 %v3347
        %v3450 = vunpack.c.l.b16 %v3348
        %v3451 = vunpack.c.l.b16 %v3349
        %v3452 = vunpack.c.l.b16 %v3350
        %v3453 = vunpack.c.l.b16 %v3351
        %v3454 = vunpack.c.l.b16 %v3352
        %v3455 = vunpack.c.l.b16 %v3353
        %v3456 = vunpack.c.l.b16 %v3354
        %v3457 = vunpack.c.l.b16 %v3355
        %v3458 = vunpack.c.l.b16 %v3356
        %v3459 = vunpack.c.l.b16 %v3357
        %v3460 = vunpack.c.l.b16 %v3358
        %v3461 = vunpack.c.l.b16 %v3359
        %v3462 = vunpack.c.l.b16 %v3360
        %v3463 = vunpack.c.l.b16 %v3361
        %v3464 = vunpack.c.l.b16 %v3362
        %v3465 = vunpack.c.l.b16 %v3363
        %v3466 = vunpack.c.l.b16 %v3364
        %v3467 = vpack.c.b16 %v3417, %v3416
        %v3468 = vpack.c.b16 %v3419, %v3418
        %v3469 = vpack.c.b16 %v3421, %v3420
        %v3470 = vpack.c.b16 %v3423, %v3422
        %v3471 = vpack.c.b16 %v3425, %v3424
        %v3472 = vpack.c.b16 %v3427, %v3426
        %v3473 = vpack.c.b16 %v3429, %v3428
        %v3474 = vpack.c.b16 %v3431, %v3430
        %v3475 = vpack.c.b16 %v3433, %v3432
        %v3476 = vpack.c.b16 %v3435, %v3434
        %v3477 = vpack.c.b16 %v3437, %v3436
        %v3478 = vpack.c.b16 %v3439, %v3438
        %v3479 = vpack.c.b16 %v3441, %v3440
        %v3480 = vpack.c.b16 %v3443, %v3442
        %v3481 = vpack.c.b16 %v3445, %v3444
        %v3482 = vpack.c.b16 %v3447, %v3446
        %v3483 = vpack.c.b16 %v3449, %v3448
        %v3484 = vpack.c.b16 %v3451, %v3450
        %v3485 = vpack.c.b16 %v3453, %v3452
        %v3486 = vpack.c.b16 %v3455, %v3454
        %v3487 = vpack.c.b16 %v3457, %v3456
        %v3488 = vpack.c.b16 %v3459, %v3458
        %v3489 = vpack.c.b16 %v3461, %v3460
        %v3490 = vpack.c.b16 %v3463, %v3462
        %v3491 = vpack.c.b16 %v3465, %v3464
        %v3492 = vpack.c.b16 %v3466, %v3466
        %vm3493 = vcmask 1046528
        %v3494 = vrot.slane %v3467, 1
        %v3495 = vrot.slane %v3468, 1
        %v3496 = vsel %vm3493, %v3494, %v3495
        %v3497 = vrot.slane %v3469, 1
        %v3498 = vsel %vm3493, %v3495, %v3497
        %v3499 = vrot.slane %v3470, 1
        %v3500 = vsel %vm3493, %v3497, %v3499
        %v3501 = vrot.slane %v3471, 1
        %v3502 = vsel %vm3493, %v3499, %v3501
        %v3503 = vrot.slane %v3472, 1
        %v3504 = vsel %vm3493, %v3501, %v3503
        %v3505 = vrot.slane %v3473, 1
        %v3506 = vsel %vm3493, %v3503, %v3505
        %v3507 = vrot.slane %v3474, 1
        %v3508 = vsel %vm3493, %v3505, %v3507
        %v3509 = vrot.slane %v3475, 1
        %v3510 = vsel %vm3493, %v3507, %v3509
        %v3511 = vrot.slane %v3476, 1
        %v3512 = vsel %vm3493, %v3509, %v3511
        %v3513 = vrot.slane %v3477, 1
        %v3514 = vsel %vm3493, %v3511, %v3513
        %v3515 = vrot.slane %v3478, 1
        %v3516 = vsel %vm3493, %v3513, %v3515
        %v3517 = vrot.slane %v3479, 1
        %v3518 = vsel %vm3493, %v3515, %v3517
        %v3519 = vrot.slane %v3480, 1
        %v3520 = vsel %vm3493, %v3517, %v3519
        %v3521 = vrot.slane %v3481, 1
        %v3522 = vsel %vm3493, %v3519, %v3521
        %v3523 = vrot.slane %v3482, 1
        %v3524 = vsel %vm3493, %v3521, %v3523
        %v3525 = vrot.slane %v3483, 1
        %v3526 = vsel %vm3493, %v3523, %v3525
        %v3527 = vrot.slane %v3484, 1
        %v3528 = vsel %vm3493, %v3525, %v3527
        %v3529 = vrot.slane %v3485, 1
        %v3530 = vsel %vm3493, %v3527, %v3529
        %v3531 = vrot.slane %v3486, 1
        %v3532 = vsel %vm3493, %v3529, %v3531
        %v3533 = vrot.slane %v3487, 1
        %v3534 = vsel %vm3493, %v3531, %v3533
        %v3535 = vrot.slane %v3488, 1
        %v3536 = vsel %vm3493, %v3533, %v3535
        %v3537 = vrot.slane %v3489, 1
        %v3538 = vsel %vm3493, %v3535, %v3537
        %v3539 = vrot.slane %v3490, 1
        %v3540 = vsel %vm3493, %v3537, %v3539
        %v3541 = vrot.slane %v3491, 1
        %v3542 = vsel %vm3493, %v3539, %v3541
        %v3543 = vrot.slane %v3492, 1
        %v3544 = vsel %vm3493, %v3541, %v3543
        %3545 = vrot.lane.b32.xlu0 %v3496, 64
        %v3546 = vpop.permute.xlu0 %3545
        %3547 = vrot.lane.b32.xlu0 %v3498, 64
        %v3548 = vpop.permute.xlu0 %3547
        %3549 = vrot.lane.b32.xlu0 %v3500, 64
        %v3550 = vpop.permute.xlu0 %3549
        %3551 = vrot.lane.b32.xlu0 %v3502, 64
        %v3552 = vpop.permute.xlu0 %3551
        %3553 = vrot.lane.b32.xlu0 %v3504, 64
        %v3554 = vpop.permute.xlu0 %3553
        %3555 = vrot.lane.b32.xlu0 %v3506, 64
        %v3556 = vpop.permute.xlu0 %3555
        %3557 = vrot.lane.b32.xlu0 %v3508, 64
        %v3558 = vpop.permute.xlu0 %3557
        %3559 = vrot.lane.b32.xlu0 %v3510, 64
        %v3560 = vpop.permute.xlu0 %3559
        %3561 = vrot.lane.b32.xlu0 %v3512, 64
        %v3562 = vpop.permute.xlu0 %3561
        %3563 = vrot.lane.b32.xlu0 %v3514, 64
        %v3564 = vpop.permute.xlu0 %3563
        %3565 = vrot.lane.b32.xlu0 %v3516, 64
        %v3566 = vpop.permute.xlu0 %3565
        %3567 = vrot.lane.b32.xlu0 %v3518, 64
        %v3568 = vpop.permute.xlu0 %3567
        %3569 = vrot.lane.b32.xlu0 %v3520, 64
        %v3570 = vpop.permute.xlu0 %3569
        %3571 = vrot.lane.b32.xlu0 %v3522, 64
        %v3572 = vpop.permute.xlu0 %3571
        %3573 = vrot.lane.b32.xlu0 %v3524, 64
        %v3574 = vpop.permute.xlu0 %3573
        %3575 = vrot.lane.b32.xlu0 %v3526, 64
        %v3576 = vpop.permute.xlu0 %3575
        %3577 = vrot.lane.b32.xlu0 %v3528, 64
        %v3578 = vpop.permute.xlu0 %3577
        %3579 = vrot.lane.b32.xlu0 %v3530, 64
        %v3580 = vpop.permute.xlu0 %3579
        %3581 = vrot.lane.b32.xlu0 %v3532, 64
        %v3582 = vpop.permute.xlu0 %3581
        %3583 = vrot.lane.b32.xlu0 %v3534, 64
        %v3584 = vpop.permute.xlu0 %3583
        %3585 = vrot.lane.b32.xlu0 %v3536, 64
        %v3586 = vpop.permute.xlu0 %3585
        %3587 = vrot.lane.b32.xlu0 %v3538, 64
        %v3588 = vpop.permute.xlu0 %3587
        %3589 = vrot.lane.b32.xlu0 %v3540, 64
        %v3590 = vpop.permute.xlu0 %3589
        %3591 = vrot.lane.b32.xlu0 %v3542, 64
        %v3592 = vpop.permute.xlu0 %3591
        %3593 = vrot.lane.b32.xlu0 %v3544, 64
        %v3594 = vpop.permute.xlu0 %3593
        %vm3620 = vcmask 785920
        %3621 = vst.msk [vmem:[#allocation5] sm:$0xff] %vm3620, %v3546
        %3622 = vst.msk [vmem:[#allocation5 + $0x10] sm:$0xff] %vm3620, %v3548
        %3623 = vst.msk [vmem:[#allocation5 + $0x20] sm:$0xff] %vm3620, %v3550
        %3624 = vst.msk [vmem:[#allocation5 + $0x30] sm:$0xff] %vm3620, %v3552
        %3625 = vst.msk [vmem:[#allocation5 + $0x40] sm:$0xff] %vm3620, %v3554
        %3626 = vst.msk [vmem:[#allocation5 + $0x50] sm:$0xff] %vm3620, %v3556
        %3627 = vst.msk [vmem:[#allocation5 + $0x60] sm:$0xff] %vm3620, %v3558
        %3628 = vst.msk [vmem:[#allocation5 + $0x70] sm:$0xff] %vm3620, %v3560
        %3629 = vst.msk [vmem:[#allocation5 + $0x80] sm:$0xff] %vm3620, %v3562
        %3630 = vst.msk [vmem:[#allocation5 + $0x90] sm:$0xff] %vm3620, %v3564
        %3631 = vst.msk [vmem:[#allocation5 + $0xa0] sm:$0xff] %vm3620, %v3566
        %3632 = vst.msk [vmem:[#allocation5 + $0xb0] sm:$0xff] %vm3620, %v3568
        %3633 = vst.msk [vmem:[#allocation5 + $0xc0] sm:$0xff] %vm3620, %v3570
        %3634 = vst.msk [vmem:[#allocation5 + $0xd0] sm:$0xff] %vm3620, %v3572
        %3635 = vst.msk [vmem:[#allocation5 + $0xe0] sm:$0xff] %vm3620, %v3574
        %3636 = vst.msk [vmem:[#allocation5 + $0xf0] sm:$0xff] %vm3620, %v3576
        %3637 = vst.msk [vmem:[#allocation5 + $0x100] sm:$0xff] %vm3620, %v3578
        %3638 = vst.msk [vmem:[#allocation5 + $0x110] sm:$0xff] %vm3620, %v3580
        %3639 = vst.msk [vmem:[#allocation5 + $0x120] sm:$0xff] %vm3620, %v3582
        %3640 = vst.msk [vmem:[#allocation5 + $0x130] sm:$0xff] %vm3620, %v3584
        %3641 = vst.msk [vmem:[#allocation5 + $0x140] sm:$0xff] %vm3620, %v3586
        %3642 = vst.msk [vmem:[#allocation5 + $0x150] sm:$0xff] %vm3620, %v3588
        %3643 = vst.msk [vmem:[#allocation5 + $0x160] sm:$0xff] %vm3620, %v3590
        %3644 = vst.msk [vmem:[#allocation5 + $0x170] sm:$0xff] %vm3620, %v3592
        %3645 = vst.msk [vmem:[#allocation5 + $0x180] sm:$0xff] %vm3620, %v3594
        %v3646 = vld [vmem:[#allocation3] sm:$0xe]
        %v3647 = vld [vmem:[#allocation3 + $0x4] sm:$0xf]
        %v3648 = vld [vmem:[#allocation3 + $0x8] sm:$0xf]
        %v3649 = vld [vmem:[#allocation3 + $0xc] sm:$0xf]
        %v3650 = vld [vmem:[#allocation3 + $0x10] sm:$0xf]
        %v3651 = vld [vmem:[#allocation3 + $0x14] sm:$0xf]
        %v3652 = vld [vmem:[#allocation3 + $0x18] sm:$0xf]
        %v3653 = vld [vmem:[#allocation3 + $0x1c] sm:$0xf]
        %v3654 = vld [vmem:[#allocation3 + $0x20] sm:$0xf]
        %v3655 = vld [vmem:[#allocation3 + $0x24] sm:$0xf]
        %v3656 = vld [vmem:[#allocation3 + $0x28] sm:$0xf]
        %v3657 = vld [vmem:[#allocation3 + $0x2c] sm:$0xf]
        %v3658 = vld [vmem:[#allocation3 + $0x30] sm:$0xf]
        %v3659 = vld [vmem:[#allocation3 + $0x34] sm:$0xf]
        %v3660 = vld [vmem:[#allocation3 + $0x38] sm:$0xf]
        %v3661 = vld [vmem:[#allocation3 + $0x3c] sm:$0xf]
        %v3662 = vld [vmem:[#allocation3 + $0x40] sm:$0xf]
        %v3663 = vld [vmem:[#allocation3 + $0x44] sm:$0xf]
        %v3664 = vld [vmem:[#allocation3 + $0x48] sm:$0xf]
        %v3665 = vld [vmem:[#allocation3 + $0x4c] sm:$0xf]
        %v3666 = vld [vmem:[#allocation3 + $0x50] sm:$0xf]
        %v3667 = vld [vmem:[#allocation3 + $0x54] sm:$0xf]
        %v3668 = vld [vmem:[#allocation3 + $0x58] sm:$0xf]
        %v3669 = vld [vmem:[#allocation3 + $0x5c] sm:$0xf]
        %v3670 = vld [vmem:[#allocation3 + $0x60] sm:$0xf]
        %v3671 = vld [vmem:[#allocation3 + $0x64] sm:$0xf]
        %v3672 = vld [vmem:[#allocation3 + $0x68] sm:$0xf]
        %v3673 = vld [vmem:[#allocation3 + $0x6c] sm:$0xf]
        %v3674 = vld [vmem:[#allocation3 + $0x70] sm:$0xf]
        %v3675 = vld [vmem:[#allocation3 + $0x74] sm:$0xf]
        %v3676 = vld [vmem:[#allocation3 + $0x78] sm:$0xf]
        %v3677 = vld [vmem:[#allocation3 + $0x7c] sm:$0xf]
        %v3678 = vld [vmem:[#allocation3 + $0x80] sm:$0xf]
        %v3679 = vld [vmem:[#allocation3 + $0x84] sm:$0xf]
        %v3680 = vld [vmem:[#allocation3 + $0x88] sm:$0xf]
        %v3681 = vld [vmem:[#allocation3 + $0x8c] sm:$0xf]
        %v3682 = vld [vmem:[#allocation3 + $0x90] sm:$0xf]
        %v3683 = vld [vmem:[#allocation3 + $0x94] sm:$0xf]
        %v3684 = vld [vmem:[#allocation3 + $0x98] sm:$0xf]
        %v3685 = vld [vmem:[#allocation3 + $0x9c] sm:$0xf]
        %v3686 = vld [vmem:[#allocation3 + $0xa0] sm:$0xf]
        %v3687 = vld [vmem:[#allocation3 + $0xa4] sm:$0xf]
        %v3688 = vld [vmem:[#allocation3 + $0xa8] sm:$0xf]
        %v3689 = vld [vmem:[#allocation3 + $0xac] sm:$0xf]
        %v3690 = vld [vmem:[#allocation3 + $0xb0] sm:$0xf]
        %v3691 = vld [vmem:[#allocation3 + $0xb4] sm:$0xf]
        %v3692 = vld [vmem:[#allocation3 + $0xb8] sm:$0xf]
        %v3693 = vld [vmem:[#allocation3 + $0xbc] sm:$0xf]
        %v3694 = vld [vmem:[#allocation3 + $0xc0] sm:$0xf]
        %v3695 = vld [vmem:[#allocation3 + $0xc4] sm:$0xf]
        %v3696 = vld [vmem:[#allocation3 + $0xc8] sm:$0x3]
        %v3748 = vunpack.c.l.b16 %v3646
        %v3749 = vunpack.c.l.b16 %v3647
        %v3750 = vunpack.c.l.b16 %v3648
        %v3751 = vunpack.c.l.b16 %v3649
        %v3752 = vunpack.c.l.b16 %v3650
        %v3753 = vunpack.c.l.b16 %v3651
        %v3754 = vunpack.c.l.b16 %v3652
        %v3755 = vunpack.c.l.b16 %v3653
        %v3756 = vunpack.c.l.b16 %v3654
        %v3757 = vunpack.c.l.b16 %v3655
        %v3758 = vunpack.c.l.b16 %v3656
        %v3759 = vunpack.c.l.b16 %v3657
        %v3760 = vunpack.c.l.b16 %v3658
        %v3761 = vunpack.c.l.b16 %v3659
        %v3762 = vunpack.c.l.b16 %v3660
        %v3763 = vunpack.c.l.b16 %v3661
        %v3764 = vunpack.c.l.b16 %v3662
        %v3765 = vunpack.c.l.b16 %v3663
        %v3766 = vunpack.c.l.b16 %v3664
        %v3767 = vunpack.c.l.b16 %v3665
        %v3768 = vunpack.c.l.b16 %v3666
        %v3769 = vunpack.c.l.b16 %v3667
        %v3770 = vunpack.c.l.b16 %v3668
        %v3771 = vunpack.c.l.b16 %v3669
        %v3772 = vunpack.c.l.b16 %v3670
        %v3773 = vunpack.c.l.b16 %v3671
        %v3774 = vunpack.c.l.b16 %v3672
        %v3775 = vunpack.c.l.b16 %v3673
        %v3776 = vunpack.c.l.b16 %v3674
        %v3777 = vunpack.c.l.b16 %v3675
        %v3778 = vunpack.c.l.b16 %v3676
        %v3779 = vunpack.c.l.b16 %v3677
        %v3780 = vunpack.c.l.b16 %v3678
        %v3781 = vunpack.c.l.b16 %v3679
        %v3782 = vunpack.c.l.b16 %v3680
        %v3783 = vunpack.c.l.b16 %v3681
        %v3784 = vunpack.c.l.b16 %v3682
        %v3785 = vunpack.c.l.b16 %v3683
        %v3786 = vunpack.c.l.b16 %v3684
        %v3787 = vunpack.c.l.b16 %v3685
        %v3788 = vunpack.c.l.b16 %v3686
        %v3789 = vunpack.c.l.b16 %v3687
        %v3790 = vunpack.c.l.b16 %v3688
        %v3791 = vunpack.c.l.b16 %v3689
        %v3792 = vunpack.c.l.b16 %v3690
        %v3793 = vunpack.c.l.b16 %v3691
        %v3794 = vunpack.c.l.b16 %v3692
        %v3795 = vunpack.c.l.b16 %v3693
        %v3796 = vunpack.c.l.b16 %v3694
        %v3797 = vunpack.c.l.b16 %v3695
        %v3798 = vunpack.c.l.b16 %v3696
        %v3799 = vpack.c.b16 %v3749, %v3748
        %v3800 = vpack.c.b16 %v3751, %v3750
        %v3801 = vpack.c.b16 %v3753, %v3752
        %v3802 = vpack.c.b16 %v3755, %v3754
        %v3803 = vpack.c.b16 %v3757, %v3756
        %v3804 = vpack.c.b16 %v3759, %v3758
        %v3805 = vpack.c.b16 %v3761, %v3760
        %v3806 = vpack.c.b16 %v3763, %v3762
        %v3807 = vpack.c.b16 %v3765, %v3764
        %v3808 = vpack.c.b16 %v3767, %v3766
        %v3809 = vpack.c.b16 %v3769, %v3768
        %v3810 = vpack.c.b16 %v3771, %v3770
        %v3811 = vpack.c.b16 %v3773, %v3772
        %v3812 = vpack.c.b16 %v3775, %v3774
        %v3813 = vpack.c.b16 %v3777, %v3776
        %v3814 = vpack.c.b16 %v3779, %v3778
        %v3815 = vpack.c.b16 %v3781, %v3780
        %v3816 = vpack.c.b16 %v3783, %v3782
        %v3817 = vpack.c.b16 %v3785, %v3784
        %v3818 = vpack.c.b16 %v3787, %v3786
        %v3819 = vpack.c.b16 %v3789, %v3788
        %v3820 = vpack.c.b16 %v3791, %v3790
        %v3821 = vpack.c.b16 %v3793, %v3792
        %v3822 = vpack.c.b16 %v3795, %v3794
        %v3823 = vpack.c.b16 %v3797, %v3796
        %v3824 = vpack.c.b16 %v3798, %v3798
        %vm3825 = vsmask.f32 6400
        %v3827 = vshrl.u32 %v3799, 16
        %v3829 = vrot.slane %v3827, 1
        %v3830 = vshll.u32 %v3799, 16
        %v3832 = vrot.slane %v3830, 2
        %v3833 = vor.u32 %v3829, %v3832
        %v3835 = vshrl.u32 %v3800, 16
        %v3837 = vrot.slane %v3835, 1
        %v3838 = vshll.u32 %v3800, 16
        %v3840 = vrot.slane %v3838, 2
        %v3841 = vor.u32 %v3837, %v3840
        %v3842 = vsel %vm3825, %v3833, %v3841
        %v3844 = vshrl.u32 %v3801, 16
        %v3846 = vrot.slane %v3844, 1
        %v3847 = vshll.u32 %v3801, 16
        %v3849 = vrot.slane %v3847, 2
        %v3850 = vor.u32 %v3846, %v3849
        %v3851 = vsel %vm3825, %v3841, %v3850
        %v3853 = vshrl.u32 %v3802, 16
        %v3855 = vrot.slane %v3853, 1
        %v3856 = vshll.u32 %v3802, 16
        %v3858 = vrot.slane %v3856, 2
        %v3859 = vor.u32 %v3855, %v3858
        %v3860 = vsel %vm3825, %v3850, %v3859
        %v3862 = vshrl.u32 %v3803, 16
        %v3864 = vrot.slane %v3862, 1
        %v3865 = vshll.u32 %v3803, 16
        %v3867 = vrot.slane %v3865, 2
        %v3868 = vor.u32 %v3864, %v3867
        %v3869 = vsel %vm3825, %v3859, %v3868
        %v3871 = vshrl.u32 %v3804, 16
        %v3873 = vrot.slane %v3871, 1
        %v3874 = vshll.u32 %v3804, 16
        %v3876 = vrot.slane %v3874, 2
        %v3877 = vor.u32 %v3873, %v3876
        %v3878 = vsel %vm3825, %v3868, %v3877
        %v3880 = vshrl.u32 %v3805, 16
        %v3882 = vrot.slane %v3880, 1
        %v3883 = vshll.u32 %v3805, 16
        %v3885 = vrot.slane %v3883, 2
        %v3886 = vor.u32 %v3882, %v3885
        %v3887 = vsel %vm3825, %v3877, %v3886
        %v3889 = vshrl.u32 %v3806, 16
        %v3891 = vrot.slane %v3889, 1
        %v3892 = vshll.u32 %v3806, 16
        %v3894 = vrot.slane %v3892, 2
        %v3895 = vor.u32 %v3891, %v3894
        %v3896 = vsel %vm3825, %v3886, %v3895
        %v3898 = vshrl.u32 %v3807, 16
        %v3900 = vrot.slane %v3898, 1
        %v3901 = vshll.u32 %v3807, 16
        %v3903 = vrot.slane %v3901, 2
        %v3904 = vor.u32 %v3900, %v3903
        %v3905 = vsel %vm3825, %v3895, %v3904
        %v3907 = vshrl.u32 %v3808, 16
        %v3909 = vrot.slane %v3907, 1
        %v3910 = vshll.u32 %v3808, 16
        %v3912 = vrot.slane %v3910, 2
        %v3913 = vor.u32 %v3909, %v3912
        %v3914 = vsel %vm3825, %v3904, %v3913
        %v3916 = vshrl.u32 %v3809, 16
        %v3918 = vrot.slane %v3916, 1
        %v3919 = vshll.u32 %v3809, 16
        %v3921 = vrot.slane %v3919, 2
        %v3922 = vor.u32 %v3918, %v3921
        %v3923 = vsel %vm3825, %v3913, %v3922
        %v3925 = vshrl.u32 %v3810, 16
        %v3927 = vrot.slane %v3925, 1
        %v3928 = vshll.u32 %v3810, 16
        %v3930 = vrot.slane %v3928, 2
        %v3931 = vor.u32 %v3927, %v3930
        %v3932 = vsel %vm3825, %v3922, %v3931
        %v3934 = vshrl.u32 %v3811, 16
        %v3936 = vrot.slane %v3934, 1
        %v3937 = vshll.u32 %v3811, 16
        %v3939 = vrot.slane %v3937, 2
        %v3940 = vor.u32 %v3936, %v3939
        %v3941 = vsel %vm3825, %v3931, %v3940
        %v3943 = vshrl.u32 %v3812, 16
        %v3945 = vrot.slane %v3943, 1
        %v3946 = vshll.u32 %v3812, 16
        %v3948 = vrot.slane %v3946, 2
        %v3949 = vor.u32 %v3945, %v3948
        %v3950 = vsel %vm3825, %v3940, %v3949
        %v3952 = vshrl.u32 %v3813, 16
        %v3954 = vrot.slane %v3952, 1
        %v3955 = vshll.u32 %v3813, 16
        %v3957 = vrot.slane %v3955, 2
        %v3958 = vor.u32 %v3954, %v3957
        %v3959 = vsel %vm3825, %v3949, %v3958
        %v3961 = vshrl.u32 %v3814, 16
        %v3963 = vrot.slane %v3961, 1
        %v3964 = vshll.u32 %v3814, 16
        %v3966 = vrot.slane %v3964, 2
        %v3967 = vor.u32 %v3963, %v3966
        %v3968 = vsel %vm3825, %v3958, %v3967
        %v3970 = vshrl.u32 %v3815, 16
        %v3972 = vrot.slane %v3970, 1
        %v3973 = vshll.u32 %v3815, 16
        %v3975 = vrot.slane %v3973, 2
        %v3976 = vor.u32 %v3972, %v3975
        %v3977 = vsel %vm3825, %v3967, %v3976
        %v3979 = vshrl.u32 %v3816, 16
        %v3981 = vrot.slane %v3979, 1
        %v3982 = vshll.u32 %v3816, 16
        %v3984 = vrot.slane %v3982, 2
        %v3985 = vor.u32 %v3981, %v3984
        %v3986 = vsel %vm3825, %v3976, %v3985
        %v3988 = vshrl.u32 %v3817, 16
        %v3990 = vrot.slane %v3988, 1
        %v3991 = vshll.u32 %v3817, 16
        %v3993 = vrot.slane %v3991, 2
        %v3994 = vor.u32 %v3990, %v3993
        %v3995 = vsel %vm3825, %v3985, %v3994
        %v3997 = vshrl.u32 %v3818, 16
        %v3999 = vrot.slane %v3997, 1
        %v4000 = vshll.u32 %v3818, 16
        %v4002 = vrot.slane %v4000, 2
        %v4003 = vor.u32 %v3999, %v4002
        %v4004 = vsel %vm3825, %v3994, %v4003
        %v4006 = vshrl.u32 %v3819, 16
        %v4008 = vrot.slane %v4006, 1
        %v4009 = vshll.u32 %v3819, 16
        %v4011 = vrot.slane %v4009, 2
        %v4012 = vor.u32 %v4008, %v4011
        %v4013 = vsel %vm3825, %v4003, %v4012
        %v4015 = vshrl.u32 %v3820, 16
        %v4017 = vrot.slane %v4015, 1
        %v4018 = vshll.u32 %v3820, 16
        %v4020 = vrot.slane %v4018, 2
        %v4021 = vor.u32 %v4017, %v4020
        %v4022 = vsel %vm3825, %v4012, %v4021
        %v4024 = vshrl.u32 %v3821, 16
        %v4026 = vrot.slane %v4024, 1
        %v4027 = vshll.u32 %v3821, 16
        %v4029 = vrot.slane %v4027, 2
        %v4030 = vor.u32 %v4026, %v4029
        %v4031 = vsel %vm3825, %v4021, %v4030
        %v4033 = vshrl.u32 %v3822, 16
        %v4035 = vrot.slane %v4033, 1
        %v4036 = vshll.u32 %v3822, 16
        %v4038 = vrot.slane %v4036, 2
        %v4039 = vor.u32 %v4035, %v4038
        %v4040 = vsel %vm3825, %v4030, %v4039
        %v4042 = vshrl.u32 %v3823, 16
        %v4044 = vrot.slane %v4042, 1
        %v4045 = vshll.u32 %v3823, 16
        %v4047 = vrot.slane %v4045, 2
        %v4048 = vor.u32 %v4044, %v4047
        %v4049 = vsel %vm3825, %v4039, %v4048
        %v4051 = vshrl.u32 %v3824, 16
        %v4053 = vrot.slane %v4051, 1
        %v4054 = vshll.u32 %v3824, 16
        %v4056 = vrot.slane %v4054, 2
        %v4057 = vor.u32 %v4053, %v4056
        %v4058 = vsel %vm3825, %v4048, %v4057
        %4059 = vrot.lane.b32.xlu0 %v3842, 96
        %v4060 = vpop.permute.xlu0 %4059
        %4061 = vrot.lane.b32.xlu0 %v3851, 96
        %v4062 = vpop.permute.xlu0 %4061
        %4063 = vrot.lane.b32.xlu0 %v3860, 96
        %v4064 = vpop.permute.xlu0 %4063
        %4065 = vrot.lane.b32.xlu0 %v3869, 96
        %v4066 = vpop.permute.xlu0 %4065
        %4067 = vrot.lane.b32.xlu0 %v3878, 96
        %v4068 = vpop.permute.xlu0 %4067
        %4069 = vrot.lane.b32.xlu0 %v3887, 96
        %v4070 = vpop.permute.xlu0 %4069
        %4071 = vrot.lane.b32.xlu0 %v3896, 96
        %v4072 = vpop.permute.xlu0 %4071
        %4073 = vrot.lane.b32.xlu0 %v3905, 96
        %v4074 = vpop.permute.xlu0 %4073
        %4075 = vrot.lane.b32.xlu0 %v3914, 96
        %v4076 = vpop.permute.xlu0 %4075
        %4077 = vrot.lane.b32.xlu0 %v3923, 96
        %v4078 = vpop.permute.xlu0 %4077
        %4079 = vrot.lane.b32.xlu0 %v3932, 96
        %v4080 = vpop.permute.xlu0 %4079
        %4081 = vrot.lane.b32.xlu0 %v3941, 96
        %v4082 = vpop.permute.xlu0 %4081
        %4083 = vrot.lane.b32.xlu0 %v3950, 96
        %v4084 = vpop.permute.xlu0 %4083
        %4085 = vrot.lane.b32.xlu0 %v3959, 96
        %v4086 = vpop.permute.xlu0 %4085
        %4087 = vrot.lane.b32.xlu0 %v3968, 96
        %v4088 = vpop.permute.xlu0 %4087
        %4089 = vrot.lane.b32.xlu0 %v3977, 96
        %v4090 = vpop.permute.xlu0 %4089
        %4091 = vrot.lane.b32.xlu0 %v3986, 96
        %v4092 = vpop.permute.xlu0 %4091
        %4093 = vrot.lane.b32.xlu0 %v3995, 96
        %v4094 = vpop.permute.xlu0 %4093
        %4095 = vrot.lane.b32.xlu0 %v4004, 96
        %v4096 = vpop.permute.xlu0 %4095
        %4097 = vrot.lane.b32.xlu0 %v4013, 96
        %v4098 = vpop.permute.xlu0 %4097
        %4099 = vrot.lane.b32.xlu0 %v4022, 96
        %v4100 = vpop.permute.xlu0 %4099
        %4101 = vrot.lane.b32.xlu0 %v4031, 96
        %v4102 = vpop.permute.xlu0 %4101
        %4103 = vrot.lane.b32.xlu0 %v4040, 96
        %v4104 = vpop.permute.xlu0 %4103
        %4105 = vrot.lane.b32.xlu0 %v4049, 96
        %v4106 = vpop.permute.xlu0 %4105
        %4107 = vrot.lane.b32.xlu0 %v4058, 96
        %v4108 = vpop.permute.xlu0 %4107
        %vm4134 = vcmask 1048320
        %4135 = vst.msk [vmem:[#allocation5] sm:$0xff] %vm4134, %v4060
        %4136 = vst.msk [vmem:[#allocation5 + $0x10] sm:$0xff] %vm4134, %v4062
        %4137 = vst.msk [vmem:[#allocation5 + $0x20] sm:$0xff] %vm4134, %v4064
        %4138 = vst.msk [vmem:[#allocation5 + $0x30] sm:$0xff] %vm4134, %v4066
        %4139 = vst.msk [vmem:[#allocation5 + $0x40] sm:$0xff] %vm4134, %v4068
        %4140 = vst.msk [vmem:[#allocation5 + $0x50] sm:$0xff] %vm4134, %v4070
        %4141 = vst.msk [vmem:[#allocation5 + $0x60] sm:$0xff] %vm4134, %v4072
        %4142 = vst.msk [vmem:[#allocation5 + $0x70] sm:$0xff] %vm4134, %v4074
        %4143 = vst.msk [vmem:[#allocation5 + $0x80] sm:$0xff] %vm4134, %v4076
        %4144 = vst.msk [vmem:[#allocation5 + $0x90] sm:$0xff] %vm4134, %v4078
        %4145 = vst.msk [vmem:[#allocation5 + $0xa0] sm:$0xff] %vm4134, %v4080
        %4146 = vst.msk [vmem:[#allocation5 + $0xb0] sm:$0xff] %vm4134, %v4082
        %4147 = vst.msk [vmem:[#allocation5 + $0xc0] sm:$0xff] %vm4134, %v4084
        %4148 = vst.msk [vmem:[#allocation5 + $0xd0] sm:$0xff] %vm4134, %v4086
        %4149 = vst.msk [vmem:[#allocation5 + $0xe0] sm:$0xff] %vm4134, %v4088
        %4150 = vst.msk [vmem:[#allocation5 + $0xf0] sm:$0xff] %vm4134, %v4090
        %4151 = vst.msk [vmem:[#allocation5 + $0x100] sm:$0xff] %vm4134, %v4092
        %4152 = vst.msk [vmem:[#allocation5 + $0x110] sm:$0xff] %vm4134, %v4094
        %4153 = vst.msk [vmem:[#allocation5 + $0x120] sm:$0xff] %vm4134, %v4096
        %4154 = vst.msk [vmem:[#allocation5 + $0x130] sm:$0xff] %vm4134, %v4098
        %4155 = vst.msk [vmem:[#allocation5 + $0x140] sm:$0xff] %vm4134, %v4100
        %4156 = vst.msk [vmem:[#allocation5 + $0x150] sm:$0xff] %vm4134, %v4102
        %4157 = vst.msk [vmem:[#allocation5 + $0x160] sm:$0xff] %vm4134, %v4104
        %4158 = vst.msk [vmem:[#allocation5 + $0x170] sm:$0xff] %vm4134, %v4106
        %4159 = vst.msk [vmem:[#allocation5 + $0x180] sm:$0xff] %vm4134, %v4108
        %v4160 = vld [vmem:[#allocation3] sm:$0xc]
        %v4161 = vld [vmem:[#allocation3 + $0x4] sm:$0xf]
        %v4162 = vld [vmem:[#allocation3 + $0x8] sm:$0xf]
        %v4163 = vld [vmem:[#allocation3 + $0xc] sm:$0xf]
        %v4164 = vld [vmem:[#allocation3 + $0x10] sm:$0xf]
        %v4165 = vld [vmem:[#allocation3 + $0x14] sm:$0xf]
        %v4166 = vld [vmem:[#allocation3 + $0x18] sm:$0xf]
        %v4167 = vld [vmem:[#allocation3 + $0x1c] sm:$0xf]
        %v4168 = vld [vmem:[#allocation3 + $0x20] sm:$0xf]
        %v4169 = vld [vmem:[#allocation3 + $0x24] sm:$0xf]
        %v4170 = vld [vmem:[#allocation3 + $0x28] sm:$0xf]
        %v4171 = vld [vmem:[#allocation3 + $0x2c] sm:$0xf]
        %v4172 = vld [vmem:[#allocation3 + $0x30] sm:$0xf]
        %v4173 = vld [vmem:[#allocation3 + $0x34] sm:$0xf]
        %v4174 = vld [vmem:[#allocation3 + $0x38] sm:$0xf]
        %v4175 = vld [vmem:[#allocation3 + $0x3c] sm:$0xf]
        %v4176 = vld [vmem:[#allocation3 + $0x40] sm:$0xf]
        %v4177 = vld [vmem:[#allocation3 + $0x44] sm:$0xf]
        %v4178 = vld [vmem:[#allocation3 + $0x48] sm:$0xf]
        %v4179 = vld [vmem:[#allocation3 + $0x4c] sm:$0xf]
        %v4180 = vld [vmem:[#allocation3 + $0x50] sm:$0xf]
        %v4181 = vld [vmem:[#allocation3 + $0x54] sm:$0xf]
        %v4182 = vld [vmem:[#allocation3 + $0x58] sm:$0xf]
        %v4183 = vld [vmem:[#allocation3 + $0x5c] sm:$0xf]
        %v4184 = vld [vmem:[#allocation3 + $0x60] sm:$0xf]
        %v4185 = vld [vmem:[#allocation3 + $0x64] sm:$0xf]
        %v4186 = vld [vmem:[#allocation3 + $0x68] sm:$0xf]
        %v4187 = vld [vmem:[#allocation3 + $0x6c] sm:$0xf]
        %v4188 = vld [vmem:[#allocation3 + $0x70] sm:$0xf]
        %v4189 = vld [vmem:[#allocation3 + $0x74] sm:$0xf]
        %v4190 = vld [vmem:[#allocation3 + $0x78] sm:$0xf]
        %v4191 = vld [vmem:[#allocation3 + $0x7c] sm:$0xf]
        %v4192 = vld [vmem:[#allocation3 + $0x80] sm:$0xf]
        %v4193 = vld [vmem:[#allocation3 + $0x84] sm:$0xf]
        %v4194 = vld [vmem:[#allocation3 + $0x88] sm:$0xf]
        %v4195 = vld [vmem:[#allocation3 + $0x8c] sm:$0xf]
        %v4196 = vld [vmem:[#allocation3 + $0x90] sm:$0xf]
        %v4197 = vld [vmem:[#allocation3 + $0x94] sm:$0xf]
        %v4198 = vld [vmem:[#allocation3 + $0x98] sm:$0xf]
        %v4199 = vld [vmem:[#allocation3 + $0x9c] sm:$0xf]
        %v4200 = vld [vmem:[#allocation3 + $0xa0] sm:$0xf]
        %v4201 = vld [vmem:[#allocation3 + $0xa4] sm:$0xf]
        %v4202 = vld [vmem:[#allocation3 + $0xa8] sm:$0xf]
        %v4203 = vld [vmem:[#allocation3 + $0xac] sm:$0xf]
        %v4204 = vld [vmem:[#allocation3 + $0xb0] sm:$0xf]
        %v4205 = vld [vmem:[#allocation3 + $0xb4] sm:$0xf]
        %v4206 = vld [vmem:[#allocation3 + $0xb8] sm:$0xf]
        %v4207 = vld [vmem:[#allocation3 + $0xbc] sm:$0xf]
        %v4208 = vld [vmem:[#allocation3 + $0xc0] sm:$0xf]
        %v4209 = vld [vmem:[#allocation3 + $0xc4] sm:$0xf]
        %v4210 = vld [vmem:[#allocation3 + $0xc8] sm:$0x3]
        %v4262 = vunpack.c.l.b16 %v4160
        %v4263 = vunpack.c.l.b16 %v4161
        %v4264 = vunpack.c.l.b16 %v4162
        %v4265 = vunpack.c.l.b16 %v4163
        %v4266 = vunpack.c.l.b16 %v4164
        %v4267 = vunpack.c.l.b16 %v4165
        %v4268 = vunpack.c.l.b16 %v4166
        %v4269 = vunpack.c.l.b16 %v4167
        %v4270 = vunpack.c.l.b16 %v4168
        %v4271 = vunpack.c.l.b16 %v4169
        %v4272 = vunpack.c.l.b16 %v4170
        %v4273 = vunpack.c.l.b16 %v4171
        %v4274 = vunpack.c.l.b16 %v4172
        %v4275 = vunpack.c.l.b16 %v4173
        %v4276 = vunpack.c.l.b16 %v4174
        %v4277 = vunpack.c.l.b16 %v4175
        %v4278 = vunpack.c.l.b16 %v4176
        %v4279 = vunpack.c.l.b16 %v4177
        %v4280 = vunpack.c.l.b16 %v4178
        %v4281 = vunpack.c.l.b16 %v4179
        %v4282 = vunpack.c.l.b16 %v4180
        %v4283 = vunpack.c.l.b16 %v4181
        %v4284 = vunpack.c.l.b16 %v4182
        %v4285 = vunpack.c.l.b16 %v4183
        %v4286 = vunpack.c.l.b16 %v4184
        %v4287 = vunpack.c.l.b16 %v4185
        %v4288 = vunpack.c.l.b16 %v4186
        %v4289 = vunpack.c.l.b16 %v4187
        %v4290 = vunpack.c.l.b16 %v4188
        %v4291 = vunpack.c.l.b16 %v4189
        %v4292 = vunpack.c.l.b16 %v4190
        %v4293 = vunpack.c.l.b16 %v4191
        %v4294 = vunpack.c.l.b16 %v4192
        %v4295 = vunpack.c.l.b16 %v4193
        %v4296 = vunpack.c.l.b16 %v4194
        %v4297 = vunpack.c.l.b16 %v4195
        %v4298 = vunpack.c.l.b16 %v4196
        %v4299 = vunpack.c.l.b16 %v4197
        %v4300 = vunpack.c.l.b16 %v4198
        %v4301 = vunpack.c.l.b16 %v4199
        %v4302 = vunpack.c.l.b16 %v4200
        %v4303 = vunpack.c.l.b16 %v4201
        %v4304 = vunpack.c.l.b16 %v4202
        %v4305 = vunpack.c.l.b16 %v4203
        %v4306 = vunpack.c.l.b16 %v4204
        %v4307 = vunpack.c.l.b16 %v4205
        %v4308 = vunpack.c.l.b16 %v4206
        %v4309 = vunpack.c.l.b16 %v4207
        %v4310 = vunpack.c.l.b16 %v4208
        %v4311 = vunpack.c.l.b16 %v4209
        %v4312 = vunpack.c.l.b16 %v4210
        %v4313 = vpack.c.b16 %v4263, %v4262
        %v4314 = vpack.c.b16 %v4265, %v4264
        %v4315 = vpack.c.b16 %v4267, %v4266
        %v4316 = vpack.c.b16 %v4269, %v4268
        %v4317 = vpack.c.b16 %v4271, %v4270
        %v4318 = vpack.c.b16 %v4273, %v4272
        %v4319 = vpack.c.b16 %v4275, %v4274
        %v4320 = vpack.c.b16 %v4277, %v4276
        %v4321 = vpack.c.b16 %v4279, %v4278
        %v4322 = vpack.c.b16 %v4281, %v4280
        %v4323 = vpack.c.b16 %v4283, %v4282
        %v4324 = vpack.c.b16 %v4285, %v4284
        %v4325 = vpack.c.b16 %v4287, %v4286
        %v4326 = vpack.c.b16 %v4289, %v4288
        %v4327 = vpack.c.b16 %v4291, %v4290
        %v4328 = vpack.c.b16 %v4293, %v4292
        %v4329 = vpack.c.b16 %v4295, %v4294
        %v4330 = vpack.c.b16 %v4297, %v4296
        %v4331 = vpack.c.b16 %v4299, %v4298
        %v4332 = vpack.c.b16 %v4301, %v4300
        %v4333 = vpack.c.b16 %v4303, %v4302
        %v4334 = vpack.c.b16 %v4305, %v4304
        %v4335 = vpack.c.b16 %v4307, %v4306
        %v4336 = vpack.c.b16 %v4309, %v4308
        %v4337 = vpack.c.b16 %v4311, %v4310
        %v4338 = vpack.c.b16 %v4312, %v4312
        %vm4339 = vcmask 1045504
        %v4340 = vrot.slane %v4313, 2
        %v4341 = vrot.slane %v4314, 2
        %v4342 = vsel %vm4339, %v4340, %v4341
        %v4343 = vrot.slane %v4315, 2
        %v4344 = vsel %vm4339, %v4341, %v4343
        %v4345 = vrot.slane %v4316, 2
        %v4346 = vsel %vm4339, %v4343, %v4345
        %v4347 = vrot.slane %v4317, 2
        %v4348 = vsel %vm4339, %v4345, %v4347
        %v4349 = vrot.slane %v4318, 2
        %v4350 = vsel %vm4339, %v4347, %v4349
        %v4351 = vrot.slane %v4319, 2
        %v4352 = vsel %vm4339, %v4349, %v4351
        %v4353 = vrot.slane %v4320, 2
        %v4354 = vsel %vm4339, %v4351, %v4353
        %v4355 = vrot.slane %v4321, 2
        %v4356 = vsel %vm4339, %v4353, %v4355
        %v4357 = vrot.slane %v4322, 2
        %v4358 = vsel %vm4339, %v4355, %v4357
        %v4359 = vrot.slane %v4323, 2
        %v4360 = vsel %vm4339, %v4357, %v4359
        %v4361 = vrot.slane %v4324, 2
        %v4362 = vsel %vm4339, %v4359, %v4361
        %v4363 = vrot.slane %v4325, 2
        %v4364 = vsel %vm4339, %v4361, %v4363
        %v4365 = vrot.slane %v4326, 2
        %v4366 = vsel %vm4339, %v4363, %v4365
        %v4367 = vrot.slane %v4327, 2
        %v4368 = vsel %vm4339, %v4365, %v4367
        %v4369 = vrot.slane %v4328, 2
        %v4370 = vsel %vm4339, %v4367, %v4369
        %v4371 = vrot.slane %v4329, 2
        %v4372 = vsel %vm4339, %v4369, %v4371
        %v4373 = vrot.slane %v4330, 2
        %v4374 = vsel %vm4339, %v4371, %v4373
        %v4375 = vrot.slane %v4331, 2
        %v4376 = vsel %vm4339, %v4373, %v4375
        %v4377 = vrot.slane %v4332, 2
        %v4378 = vsel %vm4339, %v4375, %v4377
        %v4379 = vrot.slane %v4333, 2
        %v4380 = vsel %vm4339, %v4377, %v4379
        %v4381 = vrot.slane %v4334, 2
        %v4382 = vsel %vm4339, %v4379, %v4381
        %v4383 = vrot.slane %v4335, 2
        %v4384 = vsel %vm4339, %v4381, %v4383
        %v4385 = vrot.slane %v4336, 2
        %v4386 = vsel %vm4339, %v4383, %v4385
        %v4387 = vrot.slane %v4337, 2
        %v4388 = vsel %vm4339, %v4385, %v4387
        %v4389 = vrot.slane %v4338, 2
        %v4390 = vsel %vm4339, %v4387, %v4389
        %4416 = vst.msk [vmem:[#allocation5 + $0x8] sm:$0xff] %vm762, %v4342
        %4417 = vst.msk [vmem:[#allocation5 + $0x18] sm:$0xff] %vm762, %v4344
        %4418 = vst.msk [vmem:[#allocation5 + $0x28] sm:$0xff] %vm762, %v4346
        %4419 = vst.msk [vmem:[#allocation5 + $0x38] sm:$0xff] %vm762, %v4348
        %4420 = vst.msk [vmem:[#allocation5 + $0x48] sm:$0xff] %vm762, %v4350
        %4421 = vst.msk [vmem:[#allocation5 + $0x58] sm:$0xff] %vm762, %v4352
        %4422 = vst.msk [vmem:[#allocation5 + $0x68] sm:$0xff] %vm762, %v4354
        %4423 = vst.msk [vmem:[#allocation5 + $0x78] sm:$0xff] %vm762, %v4356
        %4424 = vst.msk [vmem:[#allocation5 + $0x88] sm:$0xff] %vm762, %v4358
        %4425 = vst.msk [vmem:[#allocation5 + $0x98] sm:$0xff] %vm762, %v4360
        %4426 = vst.msk [vmem:[#allocation5 + $0xa8] sm:$0xff] %vm762, %v4362
        %4427 = vst.msk [vmem:[#allocation5 + $0xb8] sm:$0xff] %vm762, %v4364
        %4428 = vst.msk [vmem:[#allocation5 + $0xc8] sm:$0xff] %vm762, %v4366
        %4429 = vst.msk [vmem:[#allocation5 + $0xd8] sm:$0xff] %vm762, %v4368
        %4430 = vst.msk [vmem:[#allocation5 + $0xe8] sm:$0xff] %vm762, %v4370
        %4431 = vst.msk [vmem:[#allocation5 + $0xf8] sm:$0xff] %vm762, %v4372
        %4432 = vst.msk [vmem:[#allocation5 + $0x108] sm:$0xff] %vm762, %v4374
        %4433 = vst.msk [vmem:[#allocation5 + $0x118] sm:$0xff] %vm762, %v4376
        %4434 = vst.msk [vmem:[#allocation5 + $0x128] sm:$0xff] %vm762, %v4378
        %4435 = vst.msk [vmem:[#allocation5 + $0x138] sm:$0xff] %vm762, %v4380
        %4436 = vst.msk [vmem:[#allocation5 + $0x148] sm:$0xff] %vm762, %v4382
        %4437 = vst.msk [vmem:[#allocation5 + $0x158] sm:$0xff] %vm762, %v4384
        %4438 = vst.msk [vmem:[#allocation5 + $0x168] sm:$0xff] %vm762, %v4386
        %4439 = vst.msk [vmem:[#allocation5 + $0x178] sm:$0xff] %vm762, %v4388
        %4440 = vst.msk [vmem:[#allocation5 + $0x188] sm:$0xff] %vm762, %v4390
        %v4441 = vld [vmem:[#allocation5] sm:$0xff]
        %v4442 = vld [vmem:[#allocation5 + $0x8] sm:$0xff]
        %v4443 = vld [vmem:[#allocation5 + $0x10] sm:$0xff]
        %v4444 = vld [vmem:[#allocation5 + $0x18] sm:$0xff]
        %v4445 = vld [vmem:[#allocation5 + $0x20] sm:$0xff]
        %v4446 = vld [vmem:[#allocation5 + $0x28] sm:$0xff]
        %v4447 = vld [vmem:[#allocation5 + $0x30] sm:$0xff]
        %v4448 = vld [vmem:[#allocation5 + $0x38] sm:$0xff]
        %v4449 = vld [vmem:[#allocation5 + $0x40] sm:$0xff]
        %v4450 = vld [vmem:[#allocation5 + $0x48] sm:$0xff]
        %v4451 = vld [vmem:[#allocation5 + $0x50] sm:$0xff]
        %v4452 = vld [vmem:[#allocation5 + $0x58] sm:$0xff]
        %v4453 = vld [vmem:[#allocation5 + $0x60] sm:$0xff]
        %v4454 = vld [vmem:[#allocation5 + $0x68] sm:$0xff]
        %v4455 = vld [vmem:[#allocation5 + $0x70] sm:$0xff]
        %v4456 = vld [vmem:[#allocation5 + $0x78] sm:$0xff]
        %v4457 = vld [vmem:[#allocation5 + $0x80] sm:$0xff]
        %v4458 = vld [vmem:[#allocation5 + $0x88] sm:$0xff]
        %v4459 = vld [vmem:[#allocation5 + $0x90] sm:$0xff]
        %v4460 = vld [vmem:[#allocation5 + $0x98] sm:$0xff]
        %v4461 = vld [vmem:[#allocation5 + $0xa0] sm:$0xff]
        %v4462 = vld [vmem:[#allocation5 + $0xa8] sm:$0xff]
        %v4463 = vld [vmem:[#allocation5 + $0xb0] sm:$0xff]
        %v4464 = vld [vmem:[#allocation5 + $0xb8] sm:$0xff]
        %v4465 = vld [vmem:[#allocation5 + $0xc0] sm:$0xff]
        %v4466 = vld [vmem:[#allocation5 + $0xc8] sm:$0xff]
        %v4467 = vld [vmem:[#allocation5 + $0xd0] sm:$0xff]
        %v4468 = vld [vmem:[#allocation5 + $0xd8] sm:$0xff]
        %v4469 = vld [vmem:[#allocation5 + $0xe0] sm:$0xff]
        %v4470 = vld [vmem:[#allocation5 + $0xe8] sm:$0xff]
        %v4471 = vld [vmem:[#allocation5 + $0xf0] sm:$0xff]
        %v4472 = vld [vmem:[#allocation5 + $0xf8] sm:$0xff]
        %v4473 = vld [vmem:[#allocation5 + $0x100] sm:$0xff]
        %v4474 = vld [vmem:[#allocation5 + $0x108] sm:$0xff]
        %v4475 = vld [vmem:[#allocation5 + $0x110] sm:$0xff]
        %v4476 = vld [vmem:[#allocation5 + $0x118] sm:$0xff]
        %v4477 = vld [vmem:[#allocation5 + $0x120] sm:$0xff]
        %v4478 = vld [vmem:[#allocation5 + $0x128] sm:$0xff]
        %v4479 = vld [vmem:[#allocation5 + $0x130] sm:$0xff]
        %v4480 = vld [vmem:[#allocation5 + $0x138] sm:$0xff]
        %v4481 = vld [vmem:[%s3] sm:$0xf]
        %v4482 = vld [vmem:[%s3 + $0x4] sm:$0xf]
        %v4483 = vld [vmem:[%s3 + $0x8] sm:$0xf]
        %v4484 = vld [vmem:[%s3 + $0xc] sm:$0xf]
        %v4485 = vld [vmem:[%s3 + $0x10] sm:$0xf]
        %v4486 = vld [vmem:[%s3 + $0x14] sm:$0xf]
        %v4487 = vld [vmem:[%s3 + $0x18] sm:$0xf]
        %v4488 = vld [vmem:[%s3 + $0x1c] sm:$0xf]
        %v4489 = vld [vmem:[%s3 + $0x20] sm:$0xf]
        %v4490 = vld [vmem:[%s3 + $0x24] sm:$0xf]
        %v4491 = vld [vmem:[%s3 + $0x28] sm:$0xf]
        %v4492 = vld [vmem:[%s3 + $0x2c] sm:$0xf]
        %v4493 = vld [vmem:[%s3 + $0x30] sm:$0xf]
        %v4494 = vld [vmem:[%s3 + $0x34] sm:$0xf]
        %v4495 = vld [vmem:[%s3 + $0x38] sm:$0xf]
        %v4496 = vld [vmem:[%s3 + $0x3c] sm:$0xf]
        %v4497 = vld [vmem:[%s3 + $0x40] sm:$0xf]
        %v4498 = vld [vmem:[%s3 + $0x44] sm:$0xf]
        %v4499 = vld [vmem:[%s3 + $0x48] sm:$0xf]
        %v4500 = vld [vmem:[%s3 + $0x4c] sm:$0xf]
        %v4501 = vld [vmem:[#allocation5 + $0x10] sm:$0xfc]
        %v4502 = vld [vmem:[#allocation5 + $0x18] sm:$0xfc]
        %v4503 = vld [vmem:[#allocation5 + $0x140] sm:$0xff]
        %v4504 = vld [vmem:[#allocation5 + $0x148] sm:$0xff]
        %v4505 = vld [vmem:[#allocation5 + $0x150] sm:$0x3]
        %v4506 = vld [vmem:[#allocation5 + $0x158] sm:$0x3]
        %s4507 = scalar_lea.vmem %s3, 80
        %v4508 = vld [vmem:[%s4507] sm:$0xf]
        %v4509 = vld [vmem:[%s4507 + $0x4] sm:$0xf]
        %v4510 = vld [vmem:[%s4507 + $0x8] sm:$0xf]
        %v4511 = vld [vmem:[%s4507 + $0xc] sm:$0xf]
        %v4512 = vld [vmem:[%s4507 + $0x10] sm:$0xf]
        %v4513 = vld [vmem:[%s4507 + $0x14] sm:$0xf]
        %v4514 = vld [vmem:[%s4507 + $0x18] sm:$0xf]
        %v4515 = vld [vmem:[%s4507 + $0x1c] sm:$0xf]
        %v4516 = vld [vmem:[%s4507 + $0x20] sm:$0xf]
        %v4517 = vld [vmem:[%s4507 + $0x24] sm:$0xf]
        %v4518 = vld [vmem:[%s4507 + $0x28] sm:$0xf]
        %v4519 = vld [vmem:[%s4507 + $0x2c] sm:$0xf]
        %v4520 = vld [vmem:[%s4507 + $0x30] sm:$0xf]
        %v4521 = vld [vmem:[%s4507 + $0x34] sm:$0xf]
        %v4522 = vld [vmem:[%s4507 + $0x38] sm:$0xf]
        %v4523 = vld [vmem:[%s4507 + $0x3c] sm:$0xf]
        %v4524 = vld [vmem:[%s4507 + $0x40] sm:$0xf]
        %v4525 = vld [vmem:[%s4507 + $0x44] sm:$0xf]
        %v4526 = vld [vmem:[%s4507 + $0x48] sm:$0xf]
        %v4527 = vld [vmem:[%s4507 + $0x4c] sm:$0xf]
        %v4570 = vrot.slane %v4501, 2
        %v4571 = vrot.slane %v4445, 2
        %v4572 = vsel %vm4339, %v4570, %v4571
        %v4573 = vrot.slane %v4502, 2
        %v4574 = vrot.slane %v4446, 2
        %v4575 = vsel %vm4339, %v4573, %v4574
        %v4576 = vrot.slane %v4447, 2
        %v4577 = vsel %vm4339, %v4571, %v4576
        %v4578 = vrot.slane %v4448, 2
        %v4579 = vsel %vm4339, %v4574, %v4578
        %v4580 = vrot.slane %v4449, 2
        %v4581 = vsel %vm4339, %v4576, %v4580
        %v4582 = vrot.slane %v4450, 2
        %v4583 = vsel %vm4339, %v4578, %v4582
        %v4584 = vrot.slane %v4451, 2
        %v4585 = vsel %vm4339, %v4580, %v4584
        %v4586 = vrot.slane %v4452, 2
        %v4587 = vsel %vm4339, %v4582, %v4586
        %v4588 = vrot.slane %v4453, 2
        %v4589 = vsel %vm4339, %v4584, %v4588
        %v4590 = vrot.slane %v4454, 2
        %v4591 = vsel %vm4339, %v4586, %v4590
        %v4592 = vrot.slane %v4455, 2
        %v4593 = vsel %vm4339, %v4588, %v4592
        %v4594 = vrot.slane %v4456, 2
        %v4595 = vsel %vm4339, %v4590, %v4594
        %v4596 = vrot.slane %v4457, 2
        %v4597 = vsel %vm4339, %v4592, %v4596
        %v4598 = vrot.slane %v4458, 2
        %v4599 = vsel %vm4339, %v4594, %v4598
        %v4600 = vrot.slane %v4459, 2
        %v4601 = vsel %vm4339, %v4596, %v4600
        %v4602 = vrot.slane %v4460, 2
        %v4603 = vsel %vm4339, %v4598, %v4602
        %v4604 = vrot.slane %v4461, 2
        %v4605 = vsel %vm4339, %v4600, %v4604
        %v4606 = vrot.slane %v4462, 2
        %v4607 = vsel %vm4339, %v4602, %v4606
        %v4608 = vrot.slane %v4463, 2
        %v4609 = vsel %vm4339, %v4604, %v4608
        %v4610 = vrot.slane %v4464, 2
        %v4611 = vsel %vm4339, %v4606, %v4610
        %v4612 = vrot.slane %v4465, 2
        %v4613 = vsel %vm4339, %v4608, %v4612
        %v4614 = vrot.slane %v4466, 2
        %v4615 = vsel %vm4339, %v4610, %v4614
        %v4616 = vrot.slane %v4467, 2
        %v4617 = vsel %vm4339, %v4612, %v4616
        %v4618 = vrot.slane %v4468, 2
        %v4619 = vsel %vm4339, %v4614, %v4618
        %v4620 = vrot.slane %v4469, 2
        %v4621 = vsel %vm4339, %v4616, %v4620
        %v4622 = vrot.slane %v4470, 2
        %v4623 = vsel %vm4339, %v4618, %v4622
        %v4624 = vrot.slane %v4471, 2
        %v4625 = vsel %vm4339, %v4620, %v4624
        %v4626 = vrot.slane %v4472, 2
        %v4627 = vsel %vm4339, %v4622, %v4626
        %v4628 = vrot.slane %v4473, 2
        %v4629 = vsel %vm4339, %v4624, %v4628
        %v4630 = vrot.slane %v4474, 2
        %v4631 = vsel %vm4339, %v4626, %v4630
        %v4632 = vrot.slane %v4475, 2
        %v4633 = vsel %vm4339, %v4628, %v4632
        %v4634 = vrot.slane %v4476, 2
        %v4635 = vsel %vm4339, %v4630, %v4634
        %v4636 = vrot.slane %v4477, 2
        %v4637 = vsel %vm4339, %v4632, %v4636
        %v4638 = vrot.slane %v4478, 2
        %v4639 = vsel %vm4339, %v4634, %v4638
        %v4640 = vrot.slane %v4479, 2
        %v4641 = vsel %vm4339, %v4636, %v4640
        %v4642 = vrot.slane %v4480, 2
        %v4643 = vsel %vm4339, %v4638, %v4642
        %v4644 = vrot.slane %v4503, 2
        %v4645 = vsel %vm4339, %v4640, %v4644
        %v4646 = vrot.slane %v4504, 2
        %v4647 = vsel %vm4339, %v4642, %v4646
        %v4648 = vrot.slane %v4505, 2
        %v4649 = vsel %vm4339, %v4644, %v4648
        %v4650 = vrot.slane %v4506, 2
        %v4651 = vsel %vm4339, %v4646, %v4650
        %v4692 = vunpack.c.l.b16 %v4508
        %v4693 = vunpack.c.l.b16 %v4509
        %v4694 = vunpack.c.l.b16 %v4510
        %v4695 = vunpack.c.l.b16 %v4511
        %v4696 = vunpack.c.l.b16 %v4512
        %v4697 = vunpack.c.l.b16 %v4513
        %v4698 = vunpack.c.l.b16 %v4514
        %v4699 = vunpack.c.l.b16 %v4515
        %v4700 = vunpack.c.l.b16 %v4516
        %v4701 = vunpack.c.l.b16 %v4517
        %v4702 = vunpack.c.l.b16 %v4518
        %v4703 = vunpack.c.l.b16 %v4519
        %v4704 = vunpack.c.l.b16 %v4520
        %v4705 = vunpack.c.l.b16 %v4521
        %v4706 = vunpack.c.l.b16 %v4522
        %v4707 = vunpack.c.l.b16 %v4523
        %v4708 = vunpack.c.l.b16 %v4524
        %v4709 = vunpack.c.l.b16 %v4525
        %v4710 = vunpack.c.l.b16 %v4526
        %v4711 = vunpack.c.l.b16 %v4527
        %v4712 = vpack.c.b16 %v4693, %v4692
        %v4713 = vpack.c.b16 %v4695, %v4694
        %v4714 = vpack.c.b16 %v4697, %v4696
        %v4715 = vpack.c.b16 %v4699, %v4698
        %v4716 = vpack.c.b16 %v4701, %v4700
        %v4717 = vpack.c.b16 %v4703, %v4702
        %v4718 = vpack.c.b16 %v4705, %v4704
        %v4719 = vpack.c.b16 %v4707, %v4706
        %v4720 = vpack.c.b16 %v4709, %v4708
        %v4721 = vpack.c.b16 %v4711, %v4710
        %v4733 = vsel %vm762, %v4575, 0
        %v4736 = vsel %vm762, %v4579, 0
        %v4739 = vsel %vm762, %v4583, 0
        %v4742 = vsel %vm762, %v4587, 0
        %v4745 = vsel %vm762, %v4591, 0
        %v4748 = vsel %vm762, %v4595, 0
        %v4751 = vsel %vm762, %v4599, 0
        %v4754 = vsel %vm762, %v4603, 0
        %v4757 = vsel %vm762, %v4607, 0
        %v4760 = vsel %vm762, %v4611, 0
        %v4763 = vsel %vm762, %v4615, 0
        %v4766 = vsel %vm762, %v4619, 0
        %v4769 = vsel %vm762, %v4623, 0
        %v4772 = vsel %vm762, %v4627, 0
        %v4775 = vsel %vm762, %v4631, 0
        %v4778 = vsel %vm762, %v4635, 0
        %v4781 = vsel %vm762, %v4639, 0
        %v4784 = vsel %vm762, %v4643, 0
        %v4787 = vsel %vm762, %v4647, 0
        %v4790 = vsel %vm762, %v4651, 0
        %4792 = vmatprep.subr.bf16.mxu0 0
        %4793 = vmatpush1.bf16.msra.mxu0 %v4712
        %4794 = vmatprep.subr.bf16.mxu0 0
        %4795 = vmatpush1.bf16.msra.mxu0 %v4713
        %4796 = vmatprep.subr.bf16.mxu0 0
        %4797 = vmatpush1.bf16.msra.mxu0 %v4714
        %4798 = vmatprep.subr.bf16.mxu0 0
        %4799 = vmatpush1.bf16.msra.mxu0 %v4715
        %4800 = vmatprep.subr.bf16.mxu0 0
        %4801 = vmatpush1.bf16.msra.mxu0 %v4716
        %4802 = vmatprep.subr.bf16.mxu0 0
        %4803 = vmatpush1.bf16.msra.mxu0 %v4717
        %4804 = vmatprep.subr.bf16.mxu0 0
        %4805 = vmatpush1.bf16.msra.mxu0 %v4718
        %4806 = vmatprep.subr.bf16.mxu0 0
        %4807 = vmatpush1.bf16.msra.mxu0 %v4719
        %4808 = vmatprep.subr.bf16.mxu0 0
        %4809 = vmatpush1.bf16.msra.mxu0 %v4720
        %4810 = vmatprep.subr.bf16.mxu0 0
        %4811 = vmatpush1.bf16.msra.mxu0 %v4721
        %4812 = vmatprep.subr.bf16.mxu0 0
        %4813 = vmatpush1.bf16.msra.mxu0 0
        %4814 = vmatprep.subr.bf16.mxu0 0
        %4815 = vmatpush1.bf16.msra.mxu0 0
        %4816 = vmatprep.subr.bf16.mxu0 0
        %4817 = vmatpush1.bf16.msra.mxu0 0
        %4818 = vmatprep.subr.bf16.mxu0 0
        %4819 = vmatpush1.bf16.msra.mxu0 0
        %4820 = vmatprep.subr.bf16.mxu0 0
        %4821 = vmatpush1.bf16.msra.mxu0 0
        %4822 = vmatprep.subr.bf16.mxu0 0
        %4823 = vmatpush1.bf16.msra.mxu0 0
        %4824 = vmatprep.mubr.bf16.mxu0 %v4733
        %4825 = vmatmul.mubr.bf16.gmra.mrb[0].mxu0 %v4572
        %v4826 = vpop.f32.mrb[0].mxu0
        %v4827 = vadd.f32 0.0, %v4826
        %v4828 = vpop.f32.mrb[0].mxu0
        %v4829 = vpop.f32.mrb[0].mxu0
        %v4830 = vadd.f32 0.0, %v4829
        %v4831 = vpop.f32.mrb[0].mxu0
        %4832 = vmatprep.mubr.bf16.mxu0 %v4736
        %4833 = vmatmul.mubr.bf16.gmra.mrb[0].mxu0 %v4577
        %v4834 = vpop.f32.mrb[0].mxu0
        %v4835 = vadd.f32 0.0, %v4834
        %v4836 = vpop.f32.mrb[0].mxu0
        %v4837 = vpop.f32.mrb[0].mxu0
        %v4838 = vadd.f32 0.0, %v4837
        %v4839 = vpop.f32.mrb[0].mxu0
        %4840 = vmatprep.mubr.bf16.mxu0 %v4739
        %4841 = vmatmul.mubr.bf16.gmra.mrb[0].mxu0 %v4581
        %v4842 = vpop.f32.mrb[0].mxu0
        %v4843 = vadd.f32 0.0, %v4842
        %v4844 = vpop.f32.mrb[0].mxu0
        %v4845 = vpop.f32.mrb[0].mxu0
        %v4846 = vadd.f32 0.0, %v4845
        %v4847 = vpop.f32.mrb[0].mxu0
        %4848 = vmatprep.mubr.bf16.mxu0 %v4742
        %4849 = vmatmul.mubr.bf16.gmra.mrb[0].mxu0 %v4585
        %v4850 = vpop.f32.mrb[0].mxu0
        %v4851 = vadd.f32 0.0, %v4850
        %v4852 = vpop.f32.mrb[0].mxu0
        %v4853 = vpop.f32.mrb[0].mxu0
        %v4854 = vadd.f32 0.0, %v4853
        %v4855 = vpop.f32.mrb[0].mxu0
        %4856 = vmatprep.mubr.bf16.mxu0 %v4745
        %4857 = vmatmul.mubr.bf16.gmra.mrb[0].mxu0 %v4589
        %v4858 = vpop.f32.mrb[0].mxu0
        %v4859 = vadd.f32 0.0, %v4858
        %v4860 = vpop.f32.mrb[0].mxu0
        %v4861 = vpop.f32.mrb[0].mxu0
        %v4862 = vadd.f32 0.0, %v4861
        %v4863 = vpop.f32.mrb[0].mxu0
        %4864 = vmatprep.mubr.bf16.mxu0 %v4748
        %4865 = vmatmul.mubr.bf16.gmra.mrb[0].mxu0 %v4593
        %v4866 = vpop.f32.mrb[0].mxu0
        %v4867 = vadd.f32 0.0, %v4866
        %v4868 = vpop.f32.mrb[0].mxu0
        %v4869 = vpop.f32.mrb[0].mxu0
        %v4870 = vadd.f32 0.0, %v4869
        %v4871 = vpop.f32.mrb[0].mxu0
        %4872 = vmatprep.mubr.bf16.mxu0 %v4751
        %4873 = vmatmul.mubr.bf16.gmra.mrb[0].mxu0 %v4597
        %v4874 = vpop.f32.mrb[0].mxu0
        %v4875 = vadd.f32 0.0, %v4874
        %v4876 = vpop.f32.mrb[0].mxu0
        %v4877 = vpop.f32.mrb[0].mxu0
        %v4878 = vadd.f32 0.0, %v4877
        %v4879 = vpop.f32.mrb[0].mxu0
        %4880 = vmatprep.mubr.bf16.mxu0 %v4754
        %4881 = vmatmul.mubr.bf16.gmra.mrb[0].mxu0 %v4601
        %v4882 = vpop.f32.mrb[0].mxu0
        %v4883 = vadd.f32 0.0, %v4882
        %v4884 = vpop.f32.mrb[0].mxu0
        %v4885 = vpop.f32.mrb[0].mxu0
        %v4886 = vadd.f32 0.0, %v4885
        %v4887 = vpop.f32.mrb[0].mxu0
        %4888 = vmatprep.mubr.bf16.mxu0 %v4757
        %4889 = vmatmul.mubr.bf16.gmra.mrb[0].mxu0 %v4605
        %v4890 = vpop.f32.mrb[0].mxu0
        %v4891 = vadd.f32 0.0, %v4890
        %v4892 = vpop.f32.mrb[0].mxu0
        %v4893 = vpop.f32.mrb[0].mxu0
        %v4894 = vadd.f32 0.0, %v4893
        %v4895 = vpop.f32.mrb[0].mxu0
        %4896 = vmatprep.mubr.bf16.mxu0 %v4760
        %4897 = vmatmul.mubr.bf16.gmra.mrb[0].mxu0 %v4609
        %v4898 = vpop.f32.mrb[0].mxu0
        %v4899 = vadd.f32 0.0, %v4898
        %v4900 = vpop.f32.mrb[0].mxu0
        %v4901 = vpop.f32.mrb[0].mxu0
        %v4902 = vadd.f32 0.0, %v4901
        %v4903 = vpop.f32.mrb[0].mxu0
        %4904 = vmatprep.mubr.bf16.mxu0 %v4763
        %4905 = vmatmul.mubr.bf16.gmra.mrb[0].mxu0 %v4613
        %v4906 = vpop.f32.mrb[0].mxu0
        %v4907 = vadd.f32 0.0, %v4906
        %v4908 = vpop.f32.mrb[0].mxu0
        %v4909 = vpop.f32.mrb[0].mxu0
        %v4910 = vadd.f32 0.0, %v4909
        %v4911 = vpop.f32.mrb[0].mxu0
        %4912 = vmatprep.mubr.bf16.mxu0 %v4766
        %4913 = vmatmul.mubr.bf16.gmra.mrb[0].mxu0 %v4617
        %v4914 = vpop.f32.mrb[0].mxu0
        %v4915 = vadd.f32 0.0, %v4914
        %v4916 = vpop.f32.mrb[0].mxu0
        %v4917 = vpop.f32.mrb[0].mxu0
        %v4918 = vadd.f32 0.0, %v4917
        %v4919 = vpop.f32.mrb[0].mxu0
        %4920 = vmatprep.mubr.bf16.mxu0 %v4769
        %4921 = vmatmul.mubr.bf16.gmra.mrb[0].mxu0 %v4621
        %v4922 = vpop.f32.mrb[0].mxu0
        %v4923 = vadd.f32 0.0, %v4922
        %v4924 = vpop.f32.mrb[0].mxu0
        %v4925 = vpop.f32.mrb[0].mxu0
        %v4926 = vadd.f32 0.0, %v4925
        %v4927 = vpop.f32.mrb[0].mxu0
        %4928 = vmatprep.mubr.bf16.mxu0 %v4772
        %4929 = vmatmul.mubr.bf16.gmra.mrb[0].mxu0 %v4625
        %v4930 = vpop.f32.mrb[0].mxu0
        %v4931 = vadd.f32 0.0, %v4930
        %v4932 = vpop.f32.mrb[0].mxu0
        %v4933 = vpop.f32.mrb[0].mxu0
        %v4934 = vadd.f32 0.0, %v4933
        %v4935 = vpop.f32.mrb[0].mxu0
        %4936 = vmatprep.mubr.bf16.mxu0 %v4775
        %4937 = vmatmul.mubr.bf16.gmra.mrb[0].mxu0 %v4629
        %v4938 = vpop.f32.mrb[0].mxu0
        %v4939 = vadd.f32 0.0, %v4938
        %v4940 = vpop.f32.mrb[0].mxu0
        %v4941 = vpop.f32.mrb[0].mxu0
        %v4942 = vadd.f32 0.0, %v4941
        %v4943 = vpop.f32.mrb[0].mxu0
        %4944 = vmatprep.mubr.bf16.mxu0 %v4778
        %4945 = vmatmul.mubr.bf16.gmra.mrb[0].mxu0 %v4633
        %v4946 = vpop.f32.mrb[0].mxu0
        %v4947 = vadd.f32 0.0, %v4946
        %v4948 = vpop.f32.mrb[0].mxu0
        %v4949 = vpop.f32.mrb[0].mxu0
        %v4950 = vadd.f32 0.0, %v4949
        %v4951 = vpop.f32.mrb[0].mxu0
        %4952 = vmatprep.mubr.bf16.mxu0 %v4781
        %4953 = vmatmul.mubr.bf16.gmra.mrb[0].mxu0 %v4637
        %v4954 = vpop.f32.mrb[0].mxu0
        %v4955 = vadd.f32 0.0, %v4954
        %v4956 = vpop.f32.mrb[0].mxu0
        %v4957 = vpop.f32.mrb[0].mxu0
        %v4958 = vadd.f32 0.0, %v4957
        %v4959 = vpop.f32.mrb[0].mxu0
        %4960 = vmatprep.mubr.bf16.mxu0 %v4784
        %4961 = vmatmul.mubr.bf16.gmra.mrb[0].mxu0 %v4641
        %v4962 = vpop.f32.mrb[0].mxu0
        %v4963 = vadd.f32 0.0, %v4962
        %v4964 = vpop.f32.mrb[0].mxu0
        %v4965 = vpop.f32.mrb[0].mxu0
        %v4966 = vadd.f32 0.0, %v4965
        %v4967 = vpop.f32.mrb[0].mxu0
        %4968 = vmatprep.mubr.bf16.mxu0 %v4787
        %4969 = vmatmul.mubr.bf16.gmra.mrb[0].mxu0 %v4645
        %v4970 = vpop.f32.mrb[0].mxu0
        %v4971 = vadd.f32 0.0, %v4970
        %v4972 = vpop.f32.mrb[0].mxu0
        %v4973 = vpop.f32.mrb[0].mxu0
        %v4974 = vadd.f32 0.0, %v4973
        %v4975 = vpop.f32.mrb[0].mxu0
        %4976 = vmatprep.mubr.bf16.mxu0 %v4790
        %4977 = vmatmul.mubr.bf16.gmra.mrb[0].mxu0 %v4649
        %v4978 = vpop.f32.mrb[0].mxu0
        %v4979 = vadd.f32 0.0, %v4978
        %v4980 = vpop.f32.mrb[0].mxu0
        %v4981 = vpop.f32.mrb[0].mxu0
        %v4982 = vadd.f32 0.0, %v4981
        %v4983 = vpop.f32.mrb[0].mxu0
        %4984 = vdwg.mxu0
        %v5005 = vunpack.c.l.b16 %v4481
        %v5006 = vunpack.c.l.b16 %v4482
        %v5007 = vunpack.c.l.b16 %v4483
        %v5008 = vunpack.c.l.b16 %v4484
        %v5009 = vunpack.c.l.b16 %v4485
        %v5010 = vunpack.c.l.b16 %v4486
        %v5011 = vunpack.c.l.b16 %v4487
        %v5012 = vunpack.c.l.b16 %v4488
        %v5013 = vunpack.c.l.b16 %v4489
        %v5014 = vunpack.c.l.b16 %v4490
        %v5015 = vunpack.c.l.b16 %v4491
        %v5016 = vunpack.c.l.b16 %v4492
        %v5017 = vunpack.c.l.b16 %v4493
        %v5018 = vunpack.c.l.b16 %v4494
        %v5019 = vunpack.c.l.b16 %v4495
        %v5020 = vunpack.c.l.b16 %v4496
        %v5021 = vunpack.c.l.b16 %v4497
        %v5022 = vunpack.c.l.b16 %v4498
        %v5023 = vunpack.c.l.b16 %v4499
        %v5024 = vunpack.c.l.b16 %v4500
        %v5025 = vpack.c.b16 %v5006, %v5005
        %v5026 = vpack.c.b16 %v5008, %v5007
        %v5027 = vpack.c.b16 %v5010, %v5009
        %v5028 = vpack.c.b16 %v5012, %v5011
        %v5029 = vpack.c.b16 %v5014, %v5013
        %v5030 = vpack.c.b16 %v5016, %v5015
        %v5031 = vpack.c.b16 %v5018, %v5017
        %v5032 = vpack.c.b16 %v5020, %v5019
        %v5033 = vpack.c.b16 %v5022, %v5021
        %v5034 = vpack.c.b16 %v5024, %v5023
        %v5046 = vsel %vm762, %v4442, 0
        %v5049 = vsel %vm762, %v4444, 0
        %v5052 = vsel %vm762, %v4446, 0
        %v5055 = vsel %vm762, %v4448, 0
        %v5058 = vsel %vm762, %v4450, 0
        %v5061 = vsel %vm762, %v4452, 0
        %v5064 = vsel %vm762, %v4454, 0
        %v5067 = vsel %vm762, %v4456, 0
        %v5070 = vsel %vm762, %v4458, 0
        %v5073 = vsel %vm762, %v4460, 0
        %v5076 = vsel %vm762, %v4462, 0
        %v5079 = vsel %vm762, %v4464, 0
        %v5082 = vsel %vm762, %v4466, 0
        %v5085 = vsel %vm762, %v4468, 0
        %v5088 = vsel %vm762, %v4470, 0
        %v5091 = vsel %vm762, %v4472, 0
        %v5094 = vsel %vm762, %v4474, 0
        %v5097 = vsel %vm762, %v4476, 0
        %v5100 = vsel %vm762, %v4478, 0
        %v5103 = vsel %vm762, %v4480, 0
        %5105 = vmatprep.subr.bf16.mxu0 0
        %5106 = vmatpush1.bf16.msra.mxu0 %v5025
        %5107 = vmatprep.subr.bf16.mxu0 0
        %5108 = vmatpush1.bf16.msra.mxu0 %v5026
        %5109 = vmatprep.subr.bf16.mxu0 0
        %5110 = vmatpush1.bf16.msra.mxu0 %v5027
        %5111 = vmatprep.subr.bf16.mxu0 0
        %5112 = vmatpush1.bf16.msra.mxu0 %v5028
        %5113 = vmatprep.subr.bf16.mxu0 0
        %5114 = vmatpush1.bf16.msra.mxu0 %v5029
        %5115 = vmatprep.subr.bf16.mxu0 0
        %5116 = vmatpush1.bf16.msra.mxu0 %v5030
        %5117 = vmatprep.subr.bf16.mxu0 0
        %5118 = vmatpush1.bf16.msra.mxu0 %v5031
        %5119 = vmatprep.subr.bf16.mxu0 0
        %5120 = vmatpush1.bf16.msra.mxu0 %v5032
        %5121 = vmatprep.subr.bf16.mxu0 0
        %5122 = vmatpush1.bf16.msra.mxu0 %v5033
        %5123 = vmatprep.subr.bf16.mxu0 0
        %5124 = vmatpush1.bf16.msra.mxu0 %v5034
        %5125 = vmatprep.subr.bf16.mxu0 0
        %5126 = vmatpush1.bf16.msra.mxu0 0
        %5127 = vmatprep.subr.bf16.mxu0 0
        %5128 = vmatpush1.bf16.msra.mxu0 0
        %5129 = vmatprep.subr.bf16.mxu0 0
        %5130 = vmatpush1.bf16.msra.mxu0 0
        %5131 = vmatprep.subr.bf16.mxu0 0
        %5132 = vmatpush1.bf16.msra.mxu0 0
        %5133 = vmatprep.subr.bf16.mxu0 0
        %5134 = vmatpush1.bf16.msra.mxu0 0
        %5135 = vmatprep.subr.bf16.mxu0 0
        %5136 = vmatpush1.bf16.msra.mxu0 0
        %5137 = vmatprep.mubr.bf16.mxu0 %v5046
        %5138 = vmatmul.mubr.bf16.gmra.mrb[0].mxu0 %v4441
        %v5139 = vpop.f32.mrb[0].mxu0
        %v5140 = vadd.f32 %v4827, %v5139
        %v5141 = vpop.f32.mrb[0].mxu0
        %v5142 = vpop.f32.mrb[0].mxu0
        %v5143 = vadd.f32 %v4830, %v5142
        %v5144 = vpop.f32.mrb[0].mxu0
        %5145 = vmatprep.mubr.bf16.mxu0 %v5049
        %5146 = vmatmul.mubr.bf16.gmra.mrb[0].mxu0 %v4443
        %v5147 = vpop.f32.mrb[0].mxu0
        %v5148 = vadd.f32 %v4835, %v5147
        %v5149 = vpop.f32.mrb[0].mxu0
        %v5150 = vpop.f32.mrb[0].mxu0
        %v5151 = vadd.f32 %v4838, %v5150
        %v5152 = vpop.f32.mrb[0].mxu0
        %5153 = vmatprep.mubr.bf16.mxu0 %v5052
        %5154 = vmatmul.mubr.bf16.gmra.mrb[0].mxu0 %v4445
        %v5155 = vpop.f32.mrb[0].mxu0
        %v5156 = vadd.f32 %v4843, %v5155
        %v5157 = vpop.f32.mrb[0].mxu0
        %v5158 = vpop.f32.mrb[0].mxu0
        %v5159 = vadd.f32 %v4846, %v5158
        %v5160 = vpop.f32.mrb[0].mxu0
        %5161 = vmatprep.mubr.bf16.mxu0 %v5055
        %5162 = vmatmul.mubr.bf16.gmra.mrb[0].mxu0 %v4447
        %v5163 = vpop.f32.mrb[0].mxu0
        %v5164 = vadd.f32 %v4851, %v5163
        %v5165 = vpop.f32.mrb[0].mxu0
        %v5166 = vpop.f32.mrb[0].mxu0
        %v5167 = vadd.f32 %v4854, %v5166
        %v5168 = vpop.f32.mrb[0].mxu0
        %5169 = vmatprep.mubr.bf16.mxu0 %v5058
        %5170 = vmatmul.mubr.bf16.gmra.mrb[0].mxu0 %v4449
        %v5171 = vpop.f32.mrb[0].mxu0
        %v5172 = vadd.f32 %v4859, %v5171
        %v5173 = vpop.f32.mrb[0].mxu0
        %v5174 = vpop.f32.mrb[0].mxu0
        %v5175 = vadd.f32 %v4862, %v5174
        %v5176 = vpop.f32.mrb[0].mxu0
        %5177 = vmatprep.mubr.bf16.mxu0 %v5061
        %5178 = vmatmul.mubr.bf16.gmra.mrb[0].mxu0 %v4451
        %v5179 = vpop.f32.mrb[0].mxu0
        %v5180 = vadd.f32 %v4867, %v5179
        %v5181 = vpop.f32.mrb[0].mxu0
        %v5182 = vpop.f32.mrb[0].mxu0
        %v5183 = vadd.f32 %v4870, %v5182
        %v5184 = vpop.f32.mrb[0].mxu0
        %5185 = vmatprep.mubr.bf16.mxu0 %v5064
        %5186 = vmatmul.mubr.bf16.gmra.mrb[0].mxu0 %v4453
        %v5187 = vpop.f32.mrb[0].mxu0
        %v5188 = vadd.f32 %v4875, %v5187
        %v5189 = vpop.f32.mrb[0].mxu0
        %v5190 = vpop.f32.mrb[0].mxu0
        %v5191 = vadd.f32 %v4878, %v5190
        %v5192 = vpop.f32.mrb[0].mxu0
        %5193 = vmatprep.mubr.bf16.mxu0 %v5067
        %5194 = vmatmul.mubr.bf16.gmra.mrb[0].mxu0 %v4455
        %v5195 = vpop.f32.mrb[0].mxu0
        %v5196 = vadd.f32 %v4883, %v5195
        %v5197 = vpop.f32.mrb[0].mxu0
        %v5198 = vpop.f32.mrb[0].mxu0
        %v5199 = vadd.f32 %v4886, %v5198
        %v5200 = vpop.f32.mrb[0].mxu0
        %5201 = vmatprep.mubr.bf16.mxu0 %v5070
        %5202 = vmatmul.mubr.bf16.gmra.mrb[0].mxu0 %v4457
        %v5203 = vpop.f32.mrb[0].mxu0
        %v5204 = vadd.f32 %v4891, %v5203
        %v5205 = vpop.f32.mrb[0].mxu0
        %v5206 = vpop.f32.mrb[0].mxu0
        %v5207 = vadd.f32 %v4894, %v5206
        %v5208 = vpop.f32.mrb[0].mxu0
        %5209 = vmatprep.mubr.bf16.mxu0 %v5073
        %5210 = vmatmul.mubr.bf16.gmra.mrb[0].mxu0 %v4459
        %v5211 = vpop.f32.mrb[0].mxu0
        %v5212 = vadd.f32 %v4899, %v5211
        %v5213 = vpop.f32.mrb[0].mxu0
        %v5214 = vpop.f32.mrb[0].mxu0
        %v5215 = vadd.f32 %v4902, %v5214
        %v5216 = vpop.f32.mrb[0].mxu0
        %5217 = vmatprep.mubr.bf16.mxu0 %v5076
        %5218 = vmatmul.mubr.bf16.gmra.mrb[0].mxu0 %v4461
        %v5219 = vpop.f32.mrb[0].mxu0
        %v5220 = vadd.f32 %v4907, %v5219
        %v5221 = vpop.f32.mrb[0].mxu0
        %v5222 = vpop.f32.mrb[0].mxu0
        %v5223 = vadd.f32 %v4910, %v5222
        %v5224 = vpop.f32.mrb[0].mxu0
        %5225 = vmatprep.mubr.bf16.mxu0 %v5079
        %5226 = vmatmul.mubr.bf16.gmra.mrb[0].mxu0 %v4463
        %v5227 = vpop.f32.mrb[0].mxu0
        %v5228 = vadd.f32 %v4915, %v5227
        %v5229 = vpop.f32.mrb[0].mxu0
        %v5230 = vpop.f32.mrb[0].mxu0
        %v5231 = vadd.f32 %v4918, %v5230
        %v5232 = vpop.f32.mrb[0].mxu0
        %5233 = vmatprep.mubr.bf16.mxu0 %v5082
        %5234 = vmatmul.mubr.bf16.gmra.mrb[0].mxu0 %v4465
        %v5235 = vpop.f32.mrb[0].mxu0
        %v5236 = vadd.f32 %v4923, %v5235
        %v5237 = vpop.f32.mrb[0].mxu0
        %v5238 = vpop.f32.mrb[0].mxu0
        %v5239 = vadd.f32 %v4926, %v5238
        %v5240 = vpop.f32.mrb[0].mxu0
        %5241 = vmatprep.mubr.bf16.mxu0 %v5085
        %5242 = vmatmul.mubr.bf16.gmra.mrb[0].mxu0 %v4467
        %v5243 = vpop.f32.mrb[0].mxu0
        %v5244 = vadd.f32 %v4931, %v5243
        %v5245 = vpop.f32.mrb[0].mxu0
        %v5246 = vpop.f32.mrb[0].mxu0
        %v5247 = vadd.f32 %v4934, %v5246
        %v5248 = vpop.f32.mrb[0].mxu0
        %5249 = vmatprep.mubr.bf16.mxu0 %v5088
        %5250 = vmatmul.mubr.bf16.gmra.mrb[0].mxu0 %v4469
        %v5251 = vpop.f32.mrb[0].mxu0
        %v5252 = vadd.f32 %v4939, %v5251
        %v5253 = vpop.f32.mrb[0].mxu0
        %v5254 = vpop.f32.mrb[0].mxu0
        %v5255 = vadd.f32 %v4942, %v5254
        %v5256 = vpop.f32.mrb[0].mxu0
        %5257 = vmatprep.mubr.bf16.mxu0 %v5091
        %5258 = vmatmul.mubr.bf16.gmra.mrb[0].mxu0 %v4471
        %v5259 = vpop.f32.mrb[0].mxu0
        %v5260 = vadd.f32 %v4947, %v5259
        %v5261 = vpop.f32.mrb[0].mxu0
        %v5262 = vpop.f32.mrb[0].mxu0
        %v5263 = vadd.f32 %v4950, %v5262
        %v5264 = vpop.f32.mrb[0].mxu0
        %5265 = vmatprep.mubr.bf16.mxu0 %v5094
        %5266 = vmatmul.mubr.bf16.gmra.mrb[0].mxu0 %v4473
        %v5267 = vpop.f32.mrb[0].mxu0
        %v5268 = vadd.f32 %v4955, %v5267
        %v5269 = vpop.f32.mrb[0].mxu0
        %v5270 = vpop.f32.mrb[0].mxu0
        %v5271 = vadd.f32 %v4958, %v5270
        %v5272 = vpop.f32.mrb[0].mxu0
        %5273 = vmatprep.mubr.bf16.mxu0 %v5097
        %5274 = vmatmul.mubr.bf16.gmra.mrb[0].mxu0 %v4475
        %v5275 = vpop.f32.mrb[0].mxu0
        %v5276 = vadd.f32 %v4963, %v5275
        %v5277 = vpop.f32.mrb[0].mxu0
        %v5278 = vpop.f32.mrb[0].mxu0
        %v5279 = vadd.f32 %v4966, %v5278
        %v5280 = vpop.f32.mrb[0].mxu0
        %5281 = vmatprep.mubr.bf16.mxu0 %v5100
        %5282 = vmatmul.mubr.bf16.gmra.mrb[0].mxu0 %v4477
        %v5283 = vpop.f32.mrb[0].mxu0
        %v5284 = vadd.f32 %v4971, %v5283
        %v5285 = vpop.f32.mrb[0].mxu0
        %v5286 = vpop.f32.mrb[0].mxu0
        %v5287 = vadd.f32 %v4974, %v5286
        %v5288 = vpop.f32.mrb[0].mxu0
        %5289 = vmatprep.mubr.bf16.mxu0 %v5103
        %5290 = vmatmul.mubr.bf16.gmra.mrb[0].mxu0 %v4479
        %v5291 = vpop.f32.mrb[0].mxu0
        %v5292 = vadd.f32 %v4979, %v5291
        %v5293 = vpop.f32.mrb[0].mxu0
        %v5294 = vpop.f32.mrb[0].mxu0
        %v5295 = vadd.f32 %v4982, %v5294
        %v5296 = vpop.f32.mrb[0].mxu0
        %5297 = vdwg.mxu0
        %v5298 = vld [vmem:[#allocation5 + $0x20] sm:$0xf0]
        %v5299 = vld [vmem:[#allocation5 + $0x28] sm:$0xf0]
        %v5300 = vld [vmem:[#allocation5 + $0x30] sm:$0xff]
        %v5301 = vld [vmem:[#allocation5 + $0x38] sm:$0xff]
        %v5302 = vld [vmem:[#allocation5 + $0x40] sm:$0xff]
        %v5303 = vld [vmem:[#allocation5 + $0x48] sm:$0xff]
        %v5304 = vld [vmem:[#allocation5 + $0x50] sm:$0xff]
        %v5305 = vld [vmem:[#allocation5 + $0x58] sm:$0xff]
        %v5306 = vld [vmem:[#allocation5 + $0x60] sm:$0xff]
        %v5307 = vld [vmem:[#allocation5 + $0x68] sm:$0xff]
        %v5308 = vld [vmem:[#allocation5 + $0x70] sm:$0xff]
        %v5309 = vld [vmem:[#allocation5 + $0x78] sm:$0xff]
        %v5310 = vld [vmem:[#allocation5 + $0x80] sm:$0xff]
        %v5311 = vld [vmem:[#allocation5 + $0x88] sm:$0xff]
        %v5312 = vld [vmem:[#allocation5 + $0x90] sm:$0xff]
        %v5313 = vld [vmem:[#allocation5 + $0x98] sm:$0xff]
        %v5314 = vld [vmem:[#allocation5 + $0xa0] sm:$0xff]
        %v5315 = vld [vmem:[#allocation5 + $0xa8] sm:$0xff]
        %v5316 = vld [vmem:[#allocation5 + $0xb0] sm:$0xff]
        %v5317 = vld [vmem:[#allocation5 + $0xb8] sm:$0xff]
        %v5318 = vld [vmem:[#allocation5 + $0xc0] sm:$0xff]
        %v5319 = vld [vmem:[#allocation5 + $0xc8] sm:$0xff]
        %v5320 = vld [vmem:[#allocation5 + $0xd0] sm:$0xff]
        %v5321 = vld [vmem:[#allocation5 + $0xd8] sm:$0xff]
        %v5322 = vld [vmem:[#allocation5 + $0xe0] sm:$0xff]
        %v5323 = vld [vmem:[#allocation5 + $0xe8] sm:$0xff]
        %v5324 = vld [vmem:[#allocation5 + $0xf0] sm:$0xff]
        %v5325 = vld [vmem:[#allocation5 + $0xf8] sm:$0xff]
        %v5326 = vld [vmem:[#allocation5 + $0x100] sm:$0xff]
        %v5327 = vld [vmem:[#allocation5 + $0x108] sm:$0xff]
        %v5328 = vld [vmem:[#allocation5 + $0x110] sm:$0xff]
        %v5329 = vld [vmem:[#allocation5 + $0x118] sm:$0xff]
        %v5330 = vld [vmem:[#allocation5 + $0x120] sm:$0xff]
        %v5331 = vld [vmem:[#allocation5 + $0x128] sm:$0xff]
        %v5332 = vld [vmem:[#allocation5 + $0x130] sm:$0xff]
        %v5333 = vld [vmem:[#allocation5 + $0x138] sm:$0xff]
        %v5334 = vld [vmem:[#allocation5 + $0x140] sm:$0xff]
        %v5335 = vld [vmem:[#allocation5 + $0x148] sm:$0xff]
        %v5336 = vld [vmem:[#allocation5 + $0x150] sm:$0xff]
        %v5337 = vld [vmem:[#allocation5 + $0x158] sm:$0xff]
        %v5338 = vld [vmem:[#allocation5 + $0x160] sm:$0xf]
        %v5339 = vld [vmem:[#allocation5 + $0x168] sm:$0xf]
        %s5340 = scalar_lea.vmem %s3, 160
        %v5341 = vld [vmem:[%s5340] sm:$0xf]
        %v5342 = vld [vmem:[%s5340 + $0x4] sm:$0xf]
        %v5343 = vld [vmem:[%s5340 + $0x8] sm:$0xf]
        %v5344 = vld [vmem:[%s5340 + $0xc] sm:$0xf]
        %v5345 = vld [vmem:[%s5340 + $0x10] sm:$0xf]
        %v5346 = vld [vmem:[%s5340 + $0x14] sm:$0xf]
        %v5347 = vld [vmem:[%s5340 + $0x18] sm:$0xf]
        %v5348 = vld [vmem:[%s5340 + $0x1c] sm:$0xf]
        %v5349 = vld [vmem:[%s5340 + $0x20] sm:$0xf]
        %v5350 = vld [vmem:[%s5340 + $0x24] sm:$0xf]
        %v5351 = vld [vmem:[%s5340 + $0x28] sm:$0xf]
        %v5352 = vld [vmem:[%s5340 + $0x2c] sm:$0xf]
        %v5353 = vld [vmem:[%s5340 + $0x30] sm:$0xf]
        %v5354 = vld [vmem:[%s5340 + $0x34] sm:$0xf]
        %v5355 = vld [vmem:[%s5340 + $0x38] sm:$0xf]
        %v5356 = vld [vmem:[%s5340 + $0x3c] sm:$0xf]
        %v5357 = vld [vmem:[%s5340 + $0x40] sm:$0xf]
        %v5358 = vld [vmem:[%s5340 + $0x44] sm:$0xf]
        %v5359 = vld [vmem:[%s5340 + $0x48] sm:$0xf]
        %v5360 = vld [vmem:[%s5340 + $0x4c] sm:$0xf]
        %vm5403 = vcmask 1043456
        %v5404 = vrot.slane %v5298, 4
        %v5405 = vrot.slane %v5300, 4
        %v5406 = vsel %vm5403, %v5404, %v5405
        %v5407 = vrot.slane %v5299, 4
        %v5408 = vrot.slane %v5301, 4
        %v5409 = vsel %vm5403, %v5407, %v5408
        %v5410 = vrot.slane %v5302, 4
        %v5411 = vsel %vm5403, %v5405, %v5410
        %v5412 = vrot.slane %v5303, 4
        %v5413 = vsel %vm5403, %v5408, %v5412
        %v5414 = vrot.slane %v5304, 4
        %v5415 = vsel %vm5403, %v5410, %v5414
        %v5416 = vrot.slane %v5305, 4
        %v5417 = vsel %vm5403, %v5412, %v5416
        %v5418 = vrot.slane %v5306, 4
        %v5419 = vsel %vm5403, %v5414, %v5418
        %v5420 = vrot.slane %v5307, 4
        %v5421 = vsel %vm5403, %v5416, %v5420
        %v5422 = vrot.slane %v5308, 4
        %v5423 = vsel %vm5403, %v5418, %v5422
        %v5424 = vrot.slane %v5309, 4
        %v5425 = vsel %vm5403, %v5420, %v5424
        %v5426 = vrot.slane %v5310, 4
        %v5427 = vsel %vm5403, %v5422, %v5426
        %v5428 = vrot.slane %v5311, 4
        %v5429 = vsel %vm5403, %v5424, %v5428
        %v5430 = vrot.slane %v5312, 4
        %v5431 = vsel %vm5403, %v5426, %v5430
        %v5432 = vrot.slane %v5313, 4
        %v5433 = vsel %vm5403, %v5428, %v5432
        %v5434 = vrot.slane %v5314, 4
        %v5435 = vsel %vm5403, %v5430, %v5434
        %v5436 = vrot.slane %v5315, 4
        %v5437 = vsel %vm5403, %v5432, %v5436
        %v5438 = vrot.slane %v5316, 4
        %v5439 = vsel %vm5403, %v5434, %v5438
        %v5440 = vrot.slane %v5317, 4
        %v5441 = vsel %vm5403, %v5436, %v5440
        %v5442 = vrot.slane %v5318, 4
        %v5443 = vsel %vm5403, %v5438, %v5442
        %v5444 = vrot.slane %v5319, 4
        %v5445 = vsel %vm5403, %v5440, %v5444
        %v5446 = vrot.slane %v5320, 4
        %v5447 = vsel %vm5403, %v5442, %v5446
        %v5448 = vrot.slane %v5321, 4
        %v5449 = vsel %vm5403, %v5444, %v5448
        %v5450 = vrot.slane %v5322, 4
        %v5451 = vsel %vm5403, %v5446, %v5450
        %v5452 = vrot.slane %v5323, 4
        %v5453 = vsel %vm5403, %v5448, %v5452
        %v5454 = vrot.slane %v5324, 4
        %v5455 = vsel %vm5403, %v5450, %v5454
        %v5456 = vrot.slane %v5325, 4
        %v5457 = vsel %vm5403, %v5452, %v5456
        %v5458 = vrot.slane %v5326, 4
        %v5459 = vsel %vm5403, %v5454, %v5458
        %v5460 = vrot.slane %v5327, 4
        %v5461 = vsel %vm5403, %v5456, %v5460
        %v5462 = vrot.slane %v5328, 4
        %v5463 = vsel %vm5403, %v5458, %v5462
        %v5464 = vrot.slane %v5329, 4
        %v5465 = vsel %vm5403, %v5460, %v5464
        %v5466 = vrot.slane %v5330, 4
        %v5467 = vsel %vm5403, %v5462, %v5466
        %v5468 = vrot.slane %v5331, 4
        %v5469 = vsel %vm5403, %v5464, %v5468
        %v5470 = vrot.slane %v5332, 4
        %v5471 = vsel %vm5403, %v5466, %v5470
        %v5472 = vrot.slane %v5333, 4
        %v5473 = vsel %vm5403, %v5468, %v5472
        %v5474 = vrot.slane %v5334, 4
        %v5475 = vsel %vm5403, %v5470, %v5474
        %v5476 = vrot.slane %v5335, 4
        %v5477 = vsel %vm5403, %v5472, %v5476
        %v5478 = vrot.slane %v5336, 4
        %v5479 = vsel %vm5403, %v5474, %v5478
        %v5480 = vrot.slane %v5337, 4
        %v5481 = vsel %vm5403, %v5476, %v5480
        %v5482 = vrot.slane %v5338, 4
        %v5483 = vsel %vm5403, %v5478, %v5482
        %v5484 = vrot.slane %v5339, 4
        %v5485 = vsel %vm5403, %v5480, %v5484
        %v5526 = vunpack.c.l.b16 %v5341
        %v5527 = vunpack.c.l.b16 %v5342
        %v5528 = vunpack.c.l.b16 %v5343
        %v5529 = vunpack.c.l.b16 %v5344
        %v5530 = vunpack.c.l.b16 %v5345
        %v5531 = vunpack.c.l.b16 %v5346
        %v5532 = vunpack.c.l.b16 %v5347
        %v5533 = vunpack.c.l.b16 %v5348
        %v5534 = vunpack.c.l.b16 %v5349
        %v5535 = vunpack.c.l.b16 %v5350
        %v5536 = vunpack.c.l.b16 %v5351
        %v5537 = vunpack.c.l.b16 %v5352
        %v5538 = vunpack.c.l.b16 %v5353
        %v5539 = vunpack.c.l.b16 %v5354
        %v5540 = vunpack.c.l.b16 %v5355
        %v5541 = vunpack.c.l.b16 %v5356
        %v5542 = vunpack.c.l.b16 %v5357
        %v5543 = vunpack.c.l.b16 %v5358
        %v5544 = vunpack.c.l.b16 %v5359
        %v5545 = vunpack.c.l.b16 %v5360
        %v5546 = vpack.c.b16 %v5527, %v5526
        %v5547 = vpack.c.b16 %v5529, %v5528
        %v5548 = vpack.c.b16 %v5531, %v5530
        %v5549 = vpack.c.b16 %v5533, %v5532
        %v5550 = vpack.c.b16 %v5535, %v5534
        %v5551 = vpack.c.b16 %v5537, %v5536
        %v5552 = vpack.c.b16 %v5539, %v5538
        %v5553 = vpack.c.b16 %v5541, %v5540
        %v5554 = vpack.c.b16 %v5543, %v5542
        %v5555 = vpack.c.b16 %v5545, %v5544
        %v5567 = vsel %vm762, %v5409, 0
        %v5570 = vsel %vm762, %v5413, 0
        %v5573 = vsel %vm762, %v5417, 0
        %v5576 = vsel %vm762, %v5421, 0
        %v5579 = vsel %vm762, %v5425, 0
        %v5582 = vsel %vm762, %v5429, 0
        %v5585 = vsel %vm762, %v5433, 0
        %v5588 = vsel %vm762, %v5437, 0
        %v5591 = vsel %vm762, %v5441, 0
        %v5594 = vsel %vm762, %v5445, 0
        %v5597 = vsel %vm762, %v5449, 0
        %v5600 = vsel %vm762, %v5453, 0
        %v5603 = vsel %vm762, %v5457, 0
        %v5606 = vsel %vm762, %v5461, 0
        %v5609 = vsel %vm762, %v5465, 0
        %v5612 = vsel %vm762, %v5469, 0
        %v5615 = vsel %vm762, %v5473, 0
        %v5618 = vsel %vm762, %v5477, 0
        %v5621 = vsel %vm762, %v5481, 0
        %v5624 = vsel %vm762, %v5485, 0
        %5626 = vmatprep.subr.bf16.mxu0 0
        %5627 = vmatpush1.bf16.msra.mxu0 %v5546
        %5628 = vmatprep.subr.bf16.mxu0 0
        %5629 = vmatpush1.bf16.msra.mxu0 %v5547
        %5630 = vmatprep.subr.bf16.mxu0 0
        %5631 = vmatpush1.bf16.msra.mxu0 %v5548
        %5632 = vmatprep.subr.bf16.mxu0 0
        %5633 = vmatpush1.bf16.msra.mxu0 %v5549
        %5634 = vmatprep.subr.bf16.mxu0 0
        %5635 = vmatpush1.bf16.msra.mxu0 %v5550
        %5636 = vmatprep.subr.bf16.mxu0 0
        %5637 = vmatpush1.bf16.msra.mxu0 %v5551
        %5638 = vmatprep.subr.bf16.mxu0 0
        %5639 = vmatpush1.bf16.msra.mxu0 %v5552
        %5640 = vmatprep.subr.bf16.mxu0 0
        %5641 = vmatpush1.bf16.msra.mxu0 %v5553
        %5642 = vmatprep.subr.bf16.mxu0 0
        %5643 = vmatpush1.bf16.msra.mxu0 %v5554
        %5644 = vmatprep.subr.bf16.mxu0 0
        %5645 = vmatpush1.bf16.msra.mxu0 %v5555
        %5646 = vmatprep.subr.bf16.mxu0 0
        %5647 = vmatpush1.bf16.msra.mxu0 0
        %5648 = vmatprep.subr.bf16.mxu0 0
        %5649 = vmatpush1.bf16.msra.mxu0 0
        %5650 = vmatprep.subr.bf16.mxu0 0
        %5651 = vmatpush1.bf16.msra.mxu0 0
        %5652 = vmatprep.subr.bf16.mxu0 0
        %5653 = vmatpush1.bf16.msra.mxu0 0
        %5654 = vmatprep.subr.bf16.mxu0 0
        %5655 = vmatpush1.bf16.msra.mxu0 0
        %5656 = vmatprep.subr.bf16.mxu0 0
        %5657 = vmatpush1.bf16.msra.mxu0 0
        %5658 = vmatprep.mubr.bf16.mxu0 %v5567
        %5659 = vmatmul.mubr.bf16.gmra.mrb[0].mxu0 %v5406
        %v5660 = vpop.f32.mrb[0].mxu0
        %v5661 = vadd.f32 0.0, %v5660
        %v5662 = vpop.f32.mrb[0].mxu0
        %v5663 = vpop.f32.mrb[0].mxu0
        %v5664 = vadd.f32 0.0, %v5663
        %v5665 = vpop.f32.mrb[0].mxu0
        %5666 = vmatprep.mubr.bf16.mxu0 %v5570
        %5667 = vmatmul.mubr.bf16.gmra.mrb[0].mxu0 %v5411
        %v5668 = vpop.f32.mrb[0].mxu0
        %v5669 = vadd.f32 0.0, %v5668
        %v5670 = vpop.f32.mrb[0].mxu0
        %v5671 = vpop.f32.mrb[0].mxu0
        %v5672 = vadd.f32 0.0, %v5671
        %v5673 = vpop.f32.mrb[0].mxu0
        %5674 = vmatprep.mubr.bf16.mxu0 %v5573
        %5675 = vmatmul.mubr.bf16.gmra.mrb[0].mxu0 %v5415
        %v5676 = vpop.f32.mrb[0].mxu0
        %v5677 = vadd.f32 0.0, %v5676
        %v5678 = vpop.f32.mrb[0].mxu0
        %v5679 = vpop.f32.mrb[0].mxu0
        %v5680 = vadd.f32 0.0, %v5679
        %v5681 = vpop.f32.mrb[0].mxu0
        %5682 = vmatprep.mubr.bf16.mxu0 %v5576
        %5683 = vmatmul.mubr.bf16.gmra.mrb[0].mxu0 %v5419
        %v5684 = vpop.f32.mrb[0].mxu0
        %v5685 = vadd.f32 0.0, %v5684
        %v5686 = vpop.f32.mrb[0].mxu0
        %v5687 = vpop.f32.mrb[0].mxu0
        %v5688 = vadd.f32 0.0, %v5687
        %v5689 = vpop.f32.mrb[0].mxu0
        %5690 = vmatprep.mubr.bf16.mxu0 %v5579
        %5691 = vmatmul.mubr.bf16.gmra.mrb[0].mxu0 %v5423
        %v5692 = vpop.f32.mrb[0].mxu0
        %v5693 = vadd.f32 0.0, %v5692
        %v5694 = vpop.f32.mrb[0].mxu0
        %v5695 = vpop.f32.mrb[0].mxu0
        %v5696 = vadd.f32 0.0, %v5695
        %v5697 = vpop.f32.mrb[0].mxu0
        %5698 = vmatprep.mubr.bf16.mxu0 %v5582
        %5699 = vmatmul.mubr.bf16.gmra.mrb[0].mxu0 %v5427
        %v5700 = vpop.f32.mrb[0].mxu0
        %v5701 = vadd.f32 0.0, %v5700
        %v5702 = vpop.f32.mrb[0].mxu0
        %v5703 = vpop.f32.mrb[0].mxu0
        %v5704 = vadd.f32 0.0, %v5703
        %v5705 = vpop.f32.mrb[0].mxu0
        %5706 = vmatprep.mubr.bf16.mxu0 %v5585
        %5707 = vmatmul.mubr.bf16.gmra.mrb[0].mxu0 %v5431
        %v5708 = vpop.f32.mrb[0].mxu0
        %v5709 = vadd.f32 0.0, %v5708
        %v5710 = vpop.f32.mrb[0].mxu0
        %v5711 = vpop.f32.mrb[0].mxu0
        %v5712 = vadd.f32 0.0, %v5711
        %v5713 = vpop.f32.mrb[0].mxu0
        %5714 = vmatprep.mubr.bf16.mxu0 %v5588
        %5715 = vmatmul.mubr.bf16.gmra.mrb[0].mxu0 %v5435
        %v5716 = vpop.f32.mrb[0].mxu0
        %v5717 = vadd.f32 0.0, %v5716
        %v5718 = vpop.f32.mrb[0].mxu0
        %v5719 = vpop.f32.mrb[0].mxu0
        %v5720 = vadd.f32 0.0, %v5719
        %v5721 = vpop.f32.mrb[0].mxu0
        %5722 = vmatprep.mubr.bf16.mxu0 %v5591
        %5723 = vmatmul.mubr.bf16.gmra.mrb[0].mxu0 %v5439
        %v5724 = vpop.f32.mrb[0].mxu0
        %v5725 = vadd.f32 0.0, %v5724
        %v5726 = vpop.f32.mrb[0].mxu0
        %v5727 = vpop.f32.mrb[0].mxu0
        %v5728 = vadd.f32 0.0, %v5727
        %v5729 = vpop.f32.mrb[0].mxu0
        %5730 = vmatprep.mubr.bf16.mxu0 %v5594
        %5731 = vmatmul.mubr.bf16.gmra.mrb[0].mxu0 %v5443
        %v5732 = vpop.f32.mrb[0].mxu0
        %v5733 = vadd.f32 0.0, %v5732
        %v5734 = vpop.f32.mrb[0].mxu0
        %v5735 = vpop.f32.mrb[0].mxu0
        %v5736 = vadd.f32 0.0, %v5735
        %v5737 = vpop.f32.mrb[0].mxu0
        %5738 = vmatprep.mubr.bf16.mxu0 %v5597
        %5739 = vmatmul.mubr.bf16.gmra.mrb[0].mxu0 %v5447
        %v5740 = vpop.f32.mrb[0].mxu0
        %v5741 = vadd.f32 0.0, %v5740
        %v5742 = vpop.f32.mrb[0].mxu0
        %v5743 = vpop.f32.mrb[0].mxu0
        %v5744 = vadd.f32 0.0, %v5743
        %v5745 = vpop.f32.mrb[0].mxu0
        %5746 = vmatprep.mubr.bf16.mxu0 %v5600
        %5747 = vmatmul.mubr.bf16.gmra.mrb[0].mxu0 %v5451
        %v5748 = vpop.f32.mrb[0].mxu0
        %v5749 = vadd.f32 0.0, %v5748
        %v5750 = vpop.f32.mrb[0].mxu0
        %v5751 = vpop.f32.mrb[0].mxu0
        %v5752 = vadd.f32 0.0, %v5751
        %v5753 = vpop.f32.mrb[0].mxu0
        %5754 = vmatprep.mubr.bf16.mxu0 %v5603
        %5755 = vmatmul.mubr.bf16.gmra.mrb[0].mxu0 %v5455
        %v5756 = vpop.f32.mrb[0].mxu0
        %v5757 = vadd.f32 0.0, %v5756
        %v5758 = vpop.f32.mrb[0].mxu0
        %v5759 = vpop.f32.mrb[0].mxu0
        %v5760 = vadd.f32 0.0, %v5759
        %v5761 = vpop.f32.mrb[0].mxu0
        %5762 = vmatprep.mubr.bf16.mxu0 %v5606
        %5763 = vmatmul.mubr.bf16.gmra.mrb[0].mxu0 %v5459
        %v5764 = vpop.f32.mrb[0].mxu0
        %v5765 = vadd.f32 0.0, %v5764
        %v5766 = vpop.f32.mrb[0].mxu0
        %v5767 = vpop.f32.mrb[0].mxu0
        %v5768 = vadd.f32 0.0, %v5767
        %v5769 = vpop.f32.mrb[0].mxu0
        %5770 = vmatprep.mubr.bf16.mxu0 %v5609
        %5771 = vmatmul.mubr.bf16.gmra.mrb[0].mxu0 %v5463
        %v5772 = vpop.f32.mrb[0].mxu0
        %v5773 = vadd.f32 0.0, %v5772
        %v5774 = vpop.f32.mrb[0].mxu0
        %v5775 = vpop.f32.mrb[0].mxu0
        %v5776 = vadd.f32 0.0, %v5775
        %v5777 = vpop.f32.mrb[0].mxu0
        %5778 = vmatprep.mubr.bf16.mxu0 %v5612
        %5779 = vmatmul.mubr.bf16.gmra.mrb[0].mxu0 %v5467
        %v5780 = vpop.f32.mrb[0].mxu0
        %v5781 = vadd.f32 0.0, %v5780
        %v5782 = vpop.f32.mrb[0].mxu0
        %v5783 = vpop.f32.mrb[0].mxu0
        %v5784 = vadd.f32 0.0, %v5783
        %v5785 = vpop.f32.mrb[0].mxu0
        %5786 = vmatprep.mubr.bf16.mxu0 %v5615
        %5787 = vmatmul.mubr.bf16.gmra.mrb[0].mxu0 %v5471
        %v5788 = vpop.f32.mrb[0].mxu0
        %v5789 = vadd.f32 0.0, %v5788
        %v5790 = vpop.f32.mrb[0].mxu0
        %v5791 = vpop.f32.mrb[0].mxu0
        %v5792 = vadd.f32 0.0, %v5791
        %v5793 = vpop.f32.mrb[0].mxu0
        %5794 = vmatprep.mubr.bf16.mxu0 %v5618
        %5795 = vmatmul.mubr.bf16.gmra.mrb[0].mxu0 %v5475
        %v5796 = vpop.f32.mrb[0].mxu0
        %v5797 = vadd.f32 0.0, %v5796
        %v5798 = vpop.f32.mrb[0].mxu0
        %v5799 = vpop.f32.mrb[0].mxu0
        %v5800 = vadd.f32 0.0, %v5799
        %v5801 = vpop.f32.mrb[0].mxu0
        %5802 = vmatprep.mubr.bf16.mxu0 %v5621
        %5803 = vmatmul.mubr.bf16.gmra.mrb[0].mxu0 %v5479
        %v5804 = vpop.f32.mrb[0].mxu0
        %v5805 = vadd.f32 0.0, %v5804
        %v5806 = vpop.f32.mrb[0].mxu0
        %v5807 = vpop.f32.mrb[0].mxu0
        %v5808 = vadd.f32 0.0, %v5807
        %v5809 = vpop.f32.mrb[0].mxu0
        %5810 = vmatprep.mubr.bf16.mxu0 %v5624
        %5811 = vmatmul.mubr.bf16.gmra.mrb[0].mxu0 %v5483
        %v5812 = vpop.f32.mrb[0].mxu0
        %v5813 = vadd.f32 0.0, %v5812
        %v5814 = vpop.f32.mrb[0].mxu0
        %v5815 = vpop.f32.mrb[0].mxu0
        %v5816 = vadd.f32 0.0, %v5815
        %v5817 = vpop.f32.mrb[0].mxu0
        %5818 = vdwg.mxu0
        %v5819 = vadd.f32 %v5140, %v5661
        %v5820 = vadd.f32 %v5143, %v5664
        %v5821 = vadd.f32 %v5148, %v5669
        %v5822 = vadd.f32 %v5151, %v5672
        %v5823 = vadd.f32 %v5156, %v5677
        %v5824 = vadd.f32 %v5159, %v5680
        %v5825 = vadd.f32 %v5164, %v5685
        %v5826 = vadd.f32 %v5167, %v5688
        %v5827 = vadd.f32 %v5172, %v5693
        %v5828 = vadd.f32 %v5175, %v5696
        %v5829 = vadd.f32 %v5180, %v5701
        %v5830 = vadd.f32 %v5183, %v5704
        %v5831 = vadd.f32 %v5188, %v5709
        %v5832 = vadd.f32 %v5191, %v5712
        %v5833 = vadd.f32 %v5196, %v5717
        %v5834 = vadd.f32 %v5199, %v5720
        %v5835 = vadd.f32 %v5204, %v5725
        %v5836 = vadd.f32 %v5207, %v5728
        %v5837 = vadd.f32 %v5212, %v5733
        %v5838 = vadd.f32 %v5215, %v5736
        %v5839 = vadd.f32 %v5220, %v5741
        %v5840 = vadd.f32 %v5223, %v5744
        %v5841 = vadd.f32 %v5228, %v5749
        %v5842 = vadd.f32 %v5231, %v5752
        %v5843 = vadd.f32 %v5236, %v5757
        %v5844 = vadd.f32 %v5239, %v5760
        %v5845 = vadd.f32 %v5244, %v5765
        %v5846 = vadd.f32 %v5247, %v5768
        %v5847 = vadd.f32 %v5252, %v5773
        %v5848 = vadd.f32 %v5255, %v5776
        %v5849 = vadd.f32 %v5260, %v5781
        %v5850 = vadd.f32 %v5263, %v5784
        %v5851 = vadd.f32 %v5268, %v5789
        %v5852 = vadd.f32 %v5271, %v5792
        %v5853 = vadd.f32 %v5276, %v5797
        %v5854 = vadd.f32 %v5279, %v5800
        %v5855 = vadd.f32 %v5284, %v5805
        %v5856 = vadd.f32 %v5287, %v5808
        %v5857 = vadd.f32 %v5292, %v5813
        %v5858 = vadd.f32 %v5295, %v5816
        %v5859 = vld [vmem:[#allocation5 + $0x30] sm:$0xc0]
        %v5860 = vld [vmem:[#allocation5 + $0x38] sm:$0xc0]
        %v5861 = vld [vmem:[#allocation5 + $0x40] sm:$0xff]
        %v5862 = vld [vmem:[#allocation5 + $0x48] sm:$0xff]
        %v5863 = vld [vmem:[#allocation5 + $0x50] sm:$0xff]
        %v5864 = vld [vmem:[#allocation5 + $0x58] sm:$0xff]
        %v5865 = vld [vmem:[#allocation5 + $0x60] sm:$0xff]
        %v5866 = vld [vmem:[#allocation5 + $0x68] sm:$0xff]
        %v5867 = vld [vmem:[#allocation5 + $0x70] sm:$0xff]
        %v5868 = vld [vmem:[#allocation5 + $0x78] sm:$0xff]
        %v5869 = vld [vmem:[#allocation5 + $0x80] sm:$0xff]
        %v5870 = vld [vmem:[#allocation5 + $0x88] sm:$0xff]
        %v5871 = vld [vmem:[#allocation5 + $0x90] sm:$0xff]
        %v5872 = vld [vmem:[#allocation5 + $0x98] sm:$0xff]
        %v5873 = vld [vmem:[#allocation5 + $0xa0] sm:$0xff]
        %v5874 = vld [vmem:[#allocation5 + $0xa8] sm:$0xff]
        %v5875 = vld [vmem:[#allocation5 + $0xb0] sm:$0xff]
        %v5876 = vld [vmem:[#allocation5 + $0xb8] sm:$0xff]
        %v5877 = vld [vmem:[#allocation5 + $0xc0] sm:$0xff]
        %v5878 = vld [vmem:[#allocation5 + $0xc8] sm:$0xff]
        %v5879 = vld [vmem:[#allocation5 + $0xd0] sm:$0xff]
        %v5880 = vld [vmem:[#allocation5 + $0xd8] sm:$0xff]
        %v5881 = vld [vmem:[#allocation5 + $0xe0] sm:$0xff]
        %v5882 = vld [vmem:[#allocation5 + $0xe8] sm:$0xff]
        %v5883 = vld [vmem:[#allocation5 + $0xf0] sm:$0xff]
        %v5884 = vld [vmem:[#allocation5 + $0xf8] sm:$0xff]
        %v5885 = vld [vmem:[#allocation5 + $0x100] sm:$0xff]
        %v5886 = vld [vmem:[#allocation5 + $0x108] sm:$0xff]
        %v5887 = vld [vmem:[#allocation5 + $0x110] sm:$0xff]
        %v5888 = vld [vmem:[#allocation5 + $0x118] sm:$0xff]
        %v5889 = vld [vmem:[#allocation5 + $0x120] sm:$0xff]
        %v5890 = vld [vmem:[#allocation5 + $0x128] sm:$0xff]
        %v5891 = vld [vmem:[#allocation5 + $0x130] sm:$0xff]
        %v5892 = vld [vmem:[#allocation5 + $0x138] sm:$0xff]
        %v5893 = vld [vmem:[#allocation5 + $0x140] sm:$0xff]
        %v5894 = vld [vmem:[#allocation5 + $0x148] sm:$0xff]
        %v5895 = vld [vmem:[#allocation5 + $0x150] sm:$0xff]
        %v5896 = vld [vmem:[#allocation5 + $0x158] sm:$0xff]
        %v5897 = vld [vmem:[#allocation5 + $0x160] sm:$0xff]
        %v5898 = vld [vmem:[#allocation5 + $0x168] sm:$0xff]
        %v5899 = vld [vmem:[#allocation5 + $0x170] sm:$0x3f]
        %v5900 = vld [vmem:[#allocation5 + $0x178] sm:$0x3f]
        %s5901 = scalar_lea.vmem %s3, 240
        %v5902 = vld [vmem:[%s5901] sm:$0xf]
        %v5903 = vld [vmem:[%s5901 + $0x4] sm:$0xf]
        %v5904 = vld [vmem:[%s5901 + $0x8] sm:$0xf]
        %v5905 = vld [vmem:[%s5901 + $0xc] sm:$0xf]
        %v5906 = vld [vmem:[%s5901 + $0x10] sm:$0xf]
        %v5907 = vld [vmem:[%s5901 + $0x14] sm:$0xf]
        %v5908 = vld [vmem:[%s5901 + $0x18] sm:$0xf]
        %v5909 = vld [vmem:[%s5901 + $0x1c] sm:$0xf]
        %v5910 = vld [vmem:[%s5901 + $0x20] sm:$0xf]
        %v5911 = vld [vmem:[%s5901 + $0x24] sm:$0xf]
        %v5912 = vld [vmem:[%s5901 + $0x28] sm:$0xf]
        %v5913 = vld [vmem:[%s5901 + $0x2c] sm:$0xf]
        %v5914 = vld [vmem:[%s5901 + $0x30] sm:$0xf]
        %v5915 = vld [vmem:[%s5901 + $0x34] sm:$0xf]
        %v5916 = vld [vmem:[%s5901 + $0x38] sm:$0xf]
        %v5917 = vld [vmem:[%s5901 + $0x3c] sm:$0xf]
        %v5918 = vld [vmem:[%s5901 + $0x40] sm:$0xf]
        %v5919 = vld [vmem:[%s5901 + $0x44] sm:$0xf]
        %v5920 = vld [vmem:[%s5901 + $0x48] sm:$0xf]
        %v5921 = vld [vmem:[%s5901 + $0x4c] sm:$0xf]
        %vm5964 = vcmask 1041408
        %v5965 = vrot.slane %v5859, 6
        %v5966 = vrot.slane %v5861, 6
        %v5967 = vsel %vm5964, %v5965, %v5966
        %v5968 = vrot.slane %v5860, 6
        %v5969 = vrot.slane %v5862, 6
        %v5970 = vsel %vm5964, %v5968, %v5969
        %v5971 = vrot.slane %v5863, 6
        %v5972 = vsel %vm5964, %v5966, %v5971
        %v5973 = vrot.slane %v5864, 6
        %v5974 = vsel %vm5964, %v5969, %v5973
        %v5975 = vrot.slane %v5865, 6
        %v5976 = vsel %vm5964, %v5971, %v5975
        %v5977 = vrot.slane %v5866, 6
        %v5978 = vsel %vm5964, %v5973, %v5977
        %v5979 = vrot.slane %v5867, 6
        %v5980 = vsel %vm5964, %v5975, %v5979
        %v5981 = vrot.slane %v5868, 6
        %v5982 = vsel %vm5964, %v5977, %v5981
        %v5983 = vrot.slane %v5869, 6
        %v5984 = vsel %vm5964, %v5979, %v5983
        %v5985 = vrot.slane %v5870, 6
        %v5986 = vsel %vm5964, %v5981, %v5985
        %v5987 = vrot.slane %v5871, 6
        %v5988 = vsel %vm5964, %v5983, %v5987
        %v5989 = vrot.slane %v5872, 6
        %v5990 = vsel %vm5964, %v5985, %v5989
        %v5991 = vrot.slane %v5873, 6
        %v5992 = vsel %vm5964, %v5987, %v5991
        %v5993 = vrot.slane %v5874, 6
        %v5994 = vsel %vm5964, %v5989, %v5993
        %v5995 = vrot.slane %v5875, 6
        %v5996 = vsel %vm5964, %v5991, %v5995
        %v5997 = vrot.slane %v5876, 6
        %v5998 = vsel %vm5964, %v5993, %v5997
        %v5999 = vrot.slane %v5877, 6
        %v6000 = vsel %vm5964, %v5995, %v5999
        %v6001 = vrot.slane %v5878, 6
        %v6002 = vsel %vm5964, %v5997, %v6001
        %v6003 = vrot.slane %v5879, 6
        %v6004 = vsel %vm5964, %v5999, %v6003
        %v6005 = vrot.slane %v5880, 6
        %v6006 = vsel %vm5964, %v6001, %v6005
        %v6007 = vrot.slane %v5881, 6
        %v6008 = vsel %vm5964, %v6003, %v6007
        %v6009 = vrot.slane %v5882, 6
        %v6010 = vsel %vm5964, %v6005, %v6009
        %v6011 = vrot.slane %v5883, 6
        %v6012 = vsel %vm5964, %v6007, %v6011
        %v6013 = vrot.slane %v5884, 6
        %v6014 = vsel %vm5964, %v6009, %v6013
        %v6015 = vrot.slane %v5885, 6
        %v6016 = vsel %vm5964, %v6011, %v6015
        %v6017 = vrot.slane %v5886, 6
        %v6018 = vsel %vm5964, %v6013, %v6017
        %v6019 = vrot.slane %v5887, 6
        %v6020 = vsel %vm5964, %v6015, %v6019
        %v6021 = vrot.slane %v5888, 6
        %v6022 = vsel %vm5964, %v6017, %v6021
        %v6023 = vrot.slane %v5889, 6
        %v6024 = vsel %vm5964, %v6019, %v6023
        %v6025 = vrot.slane %v5890, 6
        %v6026 = vsel %vm5964, %v6021, %v6025
        %v6027 = vrot.slane %v5891, 6
        %v6028 = vsel %vm5964, %v6023, %v6027
        %v6029 = vrot.slane %v5892, 6
        %v6030 = vsel %vm5964, %v6025, %v6029
        %v6031 = vrot.slane %v5893, 6
        %v6032 = vsel %vm5964, %v6027, %v6031
        %v6033 = vrot.slane %v5894, 6
        %v6034 = vsel %vm5964, %v6029, %v6033
        %v6035 = vrot.slane %v5895, 6
        %v6036 = vsel %vm5964, %v6031, %v6035
        %v6037 = vrot.slane %v5896, 6
        %v6038 = vsel %vm5964, %v6033, %v6037
        %v6039 = vrot.slane %v5897, 6
        %v6040 = vsel %vm5964, %v6035, %v6039
        %v6041 = vrot.slane %v5898, 6
        %v6042 = vsel %vm5964, %v6037, %v6041
        %v6043 = vrot.slane %v5899, 6
        %v6044 = vsel %vm5964, %v6039, %v6043
        %v6045 = vrot.slane %v5900, 6
        %v6046 = vsel %vm5964, %v6041, %v6045
        %v6087 = vunpack.c.l.b16 %v5902
        %v6088 = vunpack.c.l.b16 %v5903
        %v6089 = vunpack.c.l.b16 %v5904
        %v6090 = vunpack.c.l.b16 %v5905
        %v6091 = vunpack.c.l.b16 %v5906
        %v6092 = vunpack.c.l.b16 %v5907
        %v6093 = vunpack.c.l.b16 %v5908
        %v6094 = vunpack.c.l.b16 %v5909
        %v6095 = vunpack.c.l.b16 %v5910
        %v6096 = vunpack.c.l.b16 %v5911
        %v6097 = vunpack.c.l.b16 %v5912
        %v6098 = vunpack.c.l.b16 %v5913
        %v6099 = vunpack.c.l.b16 %v5914
        %v6100 = vunpack.c.l.b16 %v5915
        %v6101 = vunpack.c.l.b16 %v5916
        %v6102 = vunpack.c.l.b16 %v5917
        %v6103 = vunpack.c.l.b16 %v5918
        %v6104 = vunpack.c.l.b16 %v5919
        %v6105 = vunpack.c.l.b16 %v5920
        %v6106 = vunpack.c.l.b16 %v5921
        %v6107 = vpack.c.b16 %v6088, %v6087
        %v6108 = vpack.c.b16 %v6090, %v6089
        %v6109 = vpack.c.b16 %v6092, %v6091
        %v6110 = vpack.c.b16 %v6094, %v6093
        %v6111 = vpack.c.b16 %v6096, %v6095
        %v6112 = vpack.c.b16 %v6098, %v6097
        %v6113 = vpack.c.b16 %v6100, %v6099
        %v6114 = vpack.c.b16 %v6102, %v6101
        %v6115 = vpack.c.b16 %v6104, %v6103
        %v6116 = vpack.c.b16 %v6106, %v6105
        %v6128 = vsel %vm762, %v5970, 0
        %v6131 = vsel %vm762, %v5974, 0
        %v6134 = vsel %vm762, %v5978, 0
        %v6137 = vsel %vm762, %v5982, 0
        %v6140 = vsel %vm762, %v5986, 0
        %v6143 = vsel %vm762, %v5990, 0
        %v6146 = vsel %vm762, %v5994, 0
        %v6149 = vsel %vm762, %v5998, 0
        %v6152 = vsel %vm762, %v6002, 0
        %v6155 = vsel %vm762, %v6006, 0
        %v6158 = vsel %vm762, %v6010, 0
        %v6161 = vsel %vm762, %v6014, 0
        %v6164 = vsel %vm762, %v6018, 0
        %v6167 = vsel %vm762, %v6022, 0
        %v6170 = vsel %vm762, %v6026, 0
        %v6173 = vsel %vm762, %v6030, 0
        %v6176 = vsel %vm762, %v6034, 0
        %v6179 = vsel %vm762, %v6038, 0
        %v6182 = vsel %vm762, %v6042, 0
        %v6185 = vsel %vm762, %v6046, 0
        %6187 = vmatprep.subr.bf16.mxu0 0
        %6188 = vmatpush1.bf16.msra.mxu0 %v6107
        %6189 = vmatprep.subr.bf16.mxu0 0
        %6190 = vmatpush1.bf16.msra.mxu0 %v6108
        %6191 = vmatprep.subr.bf16.mxu0 0
        %6192 = vmatpush1.bf16.msra.mxu0 %v6109
        %6193 = vmatprep.subr.bf16.mxu0 0
        %6194 = vmatpush1.bf16.msra.mxu0 %v6110
        %6195 = vmatprep.subr.bf16.mxu0 0
        %6196 = vmatpush1.bf16.msra.mxu0 %v6111
        %6197 = vmatprep.subr.bf16.mxu0 0
        %6198 = vmatpush1.bf16.msra.mxu0 %v6112
        %6199 = vmatprep.subr.bf16.mxu0 0
        %6200 = vmatpush1.bf16.msra.mxu0 %v6113
        %6201 = vmatprep.subr.bf16.mxu0 0
        %6202 = vmatpush1.bf16.msra.mxu0 %v6114
        %6203 = vmatprep.subr.bf16.mxu0 0
        %6204 = vmatpush1.bf16.msra.mxu0 %v6115
        %6205 = vmatprep.subr.bf16.mxu0 0
        %6206 = vmatpush1.bf16.msra.mxu0 %v6116
        %6207 = vmatprep.subr.bf16.mxu0 0
        %6208 = vmatpush1.bf16.msra.mxu0 0
        %6209 = vmatprep.subr.bf16.mxu0 0
        %6210 = vmatpush1.bf16.msra.mxu0 0
        %6211 = vmatprep.subr.bf16.mxu0 0
        %6212 = vmatpush1.bf16.msra.mxu0 0
        %6213 = vmatprep.subr.bf16.mxu0 0
        %6214 = vmatpush1.bf16.msra.mxu0 0
        %6215 = vmatprep.subr.bf16.mxu0 0
        %6216 = vmatpush1.bf16.msra.mxu0 0
        %6217 = vmatprep.subr.bf16.mxu0 0
        %6218 = vmatpush1.bf16.msra.mxu0 0
        %6219 = vmatprep.mubr.bf16.mxu0 %v6128
        %6220 = vmatmul.mubr.bf16.gmra.mrb[0].mxu0 %v5967
        %v6221 = vpop.f32.mrb[0].mxu0
        %v6222 = vadd.f32 0.0, %v6221
        %v6223 = vpop.f32.mrb[0].mxu0
        %v6224 = vpop.f32.mrb[0].mxu0
        %v6225 = vadd.f32 0.0, %v6224
        %v6226 = vpop.f32.mrb[0].mxu0
        %6227 = vmatprep.mubr.bf16.mxu0 %v6131
        %6228 = vmatmul.mubr.bf16.gmra.mrb[0].mxu0 %v5972
        %v6229 = vpop.f32.mrb[0].mxu0
        %v6230 = vadd.f32 0.0, %v6229
        %v6231 = vpop.f32.mrb[0].mxu0
        %v6232 = vpop.f32.mrb[0].mxu0
        %v6233 = vadd.f32 0.0, %v6232
        %v6234 = vpop.f32.mrb[0].mxu0
        %6235 = vmatprep.mubr.bf16.mxu0 %v6134
        %6236 = vmatmul.mubr.bf16.gmra.mrb[0].mxu0 %v5976
        %v6237 = vpop.f32.mrb[0].mxu0
        %v6238 = vadd.f32 0.0, %v6237
        %v6239 = vpop.f32.mrb[0].mxu0
        %v6240 = vpop.f32.mrb[0].mxu0
        %v6241 = vadd.f32 0.0, %v6240
        %v6242 = vpop.f32.mrb[0].mxu0
        %6243 = vmatprep.mubr.bf16.mxu0 %v6137
        %6244 = vmatmul.mubr.bf16.gmra.mrb[0].mxu0 %v5980
        %v6245 = vpop.f32.mrb[0].mxu0
        %v6246 = vadd.f32 0.0, %v6245
        %v6247 = vpop.f32.mrb[0].mxu0
        %v6248 = vpop.f32.mrb[0].mxu0
        %v6249 = vadd.f32 0.0, %v6248
        %v6250 = vpop.f32.mrb[0].mxu0
        %6251 = vmatprep.mubr.bf16.mxu0 %v6140
        %6252 = vmatmul.mubr.bf16.gmra.mrb[0].mxu0 %v5984
        %v6253 = vpop.f32.mrb[0].mxu0
        %v6254 = vadd.f32 0.0, %v6253
        %v6255 = vpop.f32.mrb[0].mxu0
        %v6256 = vpop.f32.mrb[0].mxu0
        %v6257 = vadd.f32 0.0, %v6256
        %v6258 = vpop.f32.mrb[0].mxu0
        %6259 = vmatprep.mubr.bf16.mxu0 %v6143
        %6260 = vmatmul.mubr.bf16.gmra.mrb[0].mxu0 %v5988
        %v6261 = vpop.f32.mrb[0].mxu0
        %v6262 = vadd.f32 0.0, %v6261
        %v6263 = vpop.f32.mrb[0].mxu0
        %v6264 = vpop.f32.mrb[0].mxu0
        %v6265 = vadd.f32 0.0, %v6264
        %v6266 = vpop.f32.mrb[0].mxu0
        %6267 = vmatprep.mubr.bf16.mxu0 %v6146
        %6268 = vmatmul.mubr.bf16.gmra.mrb[0].mxu0 %v5992
        %v6269 = vpop.f32.mrb[0].mxu0
        %v6270 = vadd.f32 0.0, %v6269
        %v6271 = vpop.f32.mrb[0].mxu0
        %v6272 = vpop.f32.mrb[0].mxu0
        %v6273 = vadd.f32 0.0, %v6272
        %v6274 = vpop.f32.mrb[0].mxu0
        %6275 = vmatprep.mubr.bf16.mxu0 %v6149
        %6276 = vmatmul.mubr.bf16.gmra.mrb[0].mxu0 %v5996
        %v6277 = vpop.f32.mrb[0].mxu0
        %v6278 = vadd.f32 0.0, %v6277
        %v6279 = vpop.f32.mrb[0].mxu0
        %v6280 = vpop.f32.mrb[0].mxu0
        %v6281 = vadd.f32 0.0, %v6280
        %v6282 = vpop.f32.mrb[0].mxu0
        %6283 = vmatprep.mubr.bf16.mxu0 %v6152
        %6284 = vmatmul.mubr.bf16.gmra.mrb[0].mxu0 %v6000
        %v6285 = vpop.f32.mrb[0].mxu0
        %v6286 = vadd.f32 0.0, %v6285
        %v6287 = vpop.f32.mrb[0].mxu0
        %v6288 = vpop.f32.mrb[0].mxu0
        %v6289 = vadd.f32 0.0, %v6288
        %v6290 = vpop.f32.mrb[0].mxu0
        %6291 = vmatprep.mubr.bf16.mxu0 %v6155
        %6292 = vmatmul.mubr.bf16.gmra.mrb[0].mxu0 %v6004
        %v6293 = vpop.f32.mrb[0].mxu0
        %v6294 = vadd.f32 0.0, %v6293
        %v6295 = vpop.f32.mrb[0].mxu0
        %v6296 = vpop.f32.mrb[0].mxu0
        %v6297 = vadd.f32 0.0, %v6296
        %v6298 = vpop.f32.mrb[0].mxu0
        %6299 = vmatprep.mubr.bf16.mxu0 %v6158
        %6300 = vmatmul.mubr.bf16.gmra.mrb[0].mxu0 %v6008
        %v6301 = vpop.f32.mrb[0].mxu0
        %v6302 = vadd.f32 0.0, %v6301
        %v6303 = vpop.f32.mrb[0].mxu0
        %v6304 = vpop.f32.mrb[0].mxu0
        %v6305 = vadd.f32 0.0, %v6304
        %v6306 = vpop.f32.mrb[0].mxu0
        %6307 = vmatprep.mubr.bf16.mxu0 %v6161
        %6308 = vmatmul.mubr.bf16.gmra.mrb[0].mxu0 %v6012
        %v6309 = vpop.f32.mrb[0].mxu0
        %v6310 = vadd.f32 0.0, %v6309
        %v6311 = vpop.f32.mrb[0].mxu0
        %v6312 = vpop.f32.mrb[0].mxu0
        %v6313 = vadd.f32 0.0, %v6312
        %v6314 = vpop.f32.mrb[0].mxu0
        %6315 = vmatprep.mubr.bf16.mxu0 %v6164
        %6316 = vmatmul.mubr.bf16.gmra.mrb[0].mxu0 %v6016
        %v6317 = vpop.f32.mrb[0].mxu0
        %v6318 = vadd.f32 0.0, %v6317
        %v6319 = vpop.f32.mrb[0].mxu0
        %v6320 = vpop.f32.mrb[0].mxu0
        %v6321 = vadd.f32 0.0, %v6320
        %v6322 = vpop.f32.mrb[0].mxu0
        %6323 = vmatprep.mubr.bf16.mxu0 %v6167
        %6324 = vmatmul.mubr.bf16.gmra.mrb[0].mxu0 %v6020
        %v6325 = vpop.f32.mrb[0].mxu0
        %v6326 = vadd.f32 0.0, %v6325
        %v6327 = vpop.f32.mrb[0].mxu0
        %v6328 = vpop.f32.mrb[0].mxu0
        %v6329 = vadd.f32 0.0, %v6328
        %v6330 = vpop.f32.mrb[0].mxu0
        %6331 = vmatprep.mubr.bf16.mxu0 %v6170
        %6332 = vmatmul.mubr.bf16.gmra.mrb[0].mxu0 %v6024
        %v6333 = vpop.f32.mrb[0].mxu0
        %v6334 = vadd.f32 0.0, %v6333
        %v6335 = vpop.f32.mrb[0].mxu0
        %v6336 = vpop.f32.mrb[0].mxu0
        %v6337 = vadd.f32 0.0, %v6336
        %v6338 = vpop.f32.mrb[0].mxu0
        %6339 = vmatprep.mubr.bf16.mxu0 %v6173
        %6340 = vmatmul.mubr.bf16.gmra.mrb[0].mxu0 %v6028
        %v6341 = vpop.f32.mrb[0].mxu0
        %v6342 = vadd.f32 0.0, %v6341
        %v6343 = vpop.f32.mrb[0].mxu0
        %v6344 = vpop.f32.mrb[0].mxu0
        %v6345 = vadd.f32 0.0, %v6344
        %v6346 = vpop.f32.mrb[0].mxu0
        %6347 = vmatprep.mubr.bf16.mxu0 %v6176
        %6348 = vmatmul.mubr.bf16.gmra.mrb[0].mxu0 %v6032
        %v6349 = vpop.f32.mrb[0].mxu0
        %v6350 = vadd.f32 0.0, %v6349
        %v6351 = vpop.f32.mrb[0].mxu0
        %v6352 = vpop.f32.mrb[0].mxu0
        %v6353 = vadd.f32 0.0, %v6352
        %v6354 = vpop.f32.mrb[0].mxu0
        %6355 = vmatprep.mubr.bf16.mxu0 %v6179
        %6356 = vmatmul.mubr.bf16.gmra.mrb[0].mxu0 %v6036
        %v6357 = vpop.f32.mrb[0].mxu0
        %v6358 = vadd.f32 0.0, %v6357
        %v6359 = vpop.f32.mrb[0].mxu0
        %v6360 = vpop.f32.mrb[0].mxu0
        %v6361 = vadd.f32 0.0, %v6360
        %v6362 = vpop.f32.mrb[0].mxu0
        %6363 = vmatprep.mubr.bf16.mxu0 %v6182
        %6364 = vmatmul.mubr.bf16.gmra.mrb[0].mxu0 %v6040
        %v6365 = vpop.f32.mrb[0].mxu0
        %v6366 = vadd.f32 0.0, %v6365
        %v6367 = vpop.f32.mrb[0].mxu0
        %v6368 = vpop.f32.mrb[0].mxu0
        %v6369 = vadd.f32 0.0, %v6368
        %v6370 = vpop.f32.mrb[0].mxu0
        %6371 = vmatprep.mubr.bf16.mxu0 %v6185
        %6372 = vmatmul.mubr.bf16.gmra.mrb[0].mxu0 %v6044
        %v6373 = vpop.f32.mrb[0].mxu0
        %v6374 = vadd.f32 0.0, %v6373
        %v6375 = vpop.f32.mrb[0].mxu0
        %v6376 = vpop.f32.mrb[0].mxu0
        %v6377 = vadd.f32 0.0, %v6376
        %v6378 = vpop.f32.mrb[0].mxu0
        %6379 = vdwg.mxu0
        %v6380 = vadd.f32 %v5819, %v6222
        %v6381 = vadd.f32 %v5820, %v6225
        %v6382 = vadd.f32 %v5821, %v6230
        %v6383 = vadd.f32 %v5822, %v6233
        %v6384 = vadd.f32 %v5823, %v6238
        %v6385 = vadd.f32 %v5824, %v6241
        %v6386 = vadd.f32 %v5825, %v6246
        %v6387 = vadd.f32 %v5826, %v6249
        %v6388 = vadd.f32 %v5827, %v6254
        %v6389 = vadd.f32 %v5828, %v6257
        %v6390 = vadd.f32 %v5829, %v6262
        %v6391 = vadd.f32 %v5830, %v6265
        %v6392 = vadd.f32 %v5831, %v6270
        %v6393 = vadd.f32 %v5832, %v6273
        %v6394 = vadd.f32 %v5833, %v6278
        %v6395 = vadd.f32 %v5834, %v6281
        %v6396 = vadd.f32 %v5835, %v6286
        %v6397 = vadd.f32 %v5836, %v6289
        %v6398 = vadd.f32 %v5837, %v6294
        %v6399 = vadd.f32 %v5838, %v6297
        %v6400 = vadd.f32 %v5839, %v6302
        %v6401 = vadd.f32 %v5840, %v6305
        %v6402 = vadd.f32 %v5841, %v6310
        %v6403 = vadd.f32 %v5842, %v6313
        %v6404 = vadd.f32 %v5843, %v6318
        %v6405 = vadd.f32 %v5844, %v6321
        %v6406 = vadd.f32 %v5845, %v6326
        %v6407 = vadd.f32 %v5846, %v6329
        %v6408 = vadd.f32 %v5847, %v6334
        %v6409 = vadd.f32 %v5848, %v6337
        %v6410 = vadd.f32 %v5849, %v6342
        %v6411 = vadd.f32 %v5850, %v6345
        %v6412 = vadd.f32 %v5851, %v6350
        %v6413 = vadd.f32 %v5852, %v6353
        %v6414 = vadd.f32 %v5853, %v6358
        %v6415 = vadd.f32 %v5854, %v6361
        %v6416 = vadd.f32 %v5855, %v6366
        %v6417 = vadd.f32 %v5856, %v6369
        %v6418 = vadd.f32 %v5857, %v6374
        %v6419 = vadd.f32 %v5858, %v6377
        %v6420 = vld [vmem:[#allocation5 + $0x50] sm:$0xff]
        %v6421 = vld [vmem:[#allocation5 + $0x58] sm:$0xff]
        %v6422 = vld [vmem:[#allocation5 + $0x60] sm:$0xff]
        %v6423 = vld [vmem:[#allocation5 + $0x68] sm:$0xff]
        %v6424 = vld [vmem:[#allocation5 + $0x70] sm:$0xff]
        %v6425 = vld [vmem:[#allocation5 + $0x78] sm:$0xff]
        %v6426 = vld [vmem:[#allocation5 + $0x80] sm:$0xff]
        %v6427 = vld [vmem:[#allocation5 + $0x88] sm:$0xff]
        %v6428 = vld [vmem:[#allocation5 + $0x90] sm:$0xff]
        %v6429 = vld [vmem:[#allocation5 + $0x98] sm:$0xff]
        %v6430 = vld [vmem:[#allocation5 + $0xa0] sm:$0xff]
        %v6431 = vld [vmem:[#allocation5 + $0xa8] sm:$0xff]
        %v6432 = vld [vmem:[#allocation5 + $0xb0] sm:$0xff]
        %v6433 = vld [vmem:[#allocation5 + $0xb8] sm:$0xff]
        %v6434 = vld [vmem:[#allocation5 + $0xc0] sm:$0xff]
        %v6435 = vld [vmem:[#allocation5 + $0xc8] sm:$0xff]
        %v6436 = vld [vmem:[#allocation5 + $0xd0] sm:$0xff]
        %v6437 = vld [vmem:[#allocation5 + $0xd8] sm:$0xff]
        %v6438 = vld [vmem:[#allocation5 + $0xe0] sm:$0xff]
        %v6439 = vld [vmem:[#allocation5 + $0xe8] sm:$0xff]
        %v6440 = vld [vmem:[#allocation5 + $0xf0] sm:$0xff]
        %v6441 = vld [vmem:[#allocation5 + $0xf8] sm:$0xff]
        %v6442 = vld [vmem:[#allocation5 + $0x100] sm:$0xff]
        %v6443 = vld [vmem:[#allocation5 + $0x108] sm:$0xff]
        %v6444 = vld [vmem:[#allocation5 + $0x110] sm:$0xff]
        %v6445 = vld [vmem:[#allocation5 + $0x118] sm:$0xff]
        %v6446 = vld [vmem:[#allocation5 + $0x120] sm:$0xff]
        %v6447 = vld [vmem:[#allocation5 + $0x128] sm:$0xff]
        %v6448 = vld [vmem:[#allocation5 + $0x130] sm:$0xff]
        %v6449 = vld [vmem:[#allocation5 + $0x138] sm:$0xff]
        %v6450 = vld [vmem:[#allocation5 + $0x140] sm:$0xff]
        %v6451 = vld [vmem:[#allocation5 + $0x148] sm:$0xff]
        %v6452 = vld [vmem:[#allocation5 + $0x150] sm:$0xff]
        %v6453 = vld [vmem:[#allocation5 + $0x158] sm:$0xff]
        %v6454 = vld [vmem:[#allocation5 + $0x160] sm:$0xff]
        %v6455 = vld [vmem:[#allocation5 + $0x168] sm:$0xff]
        %v6456 = vld [vmem:[#allocation5 + $0x170] sm:$0xff]
        %v6457 = vld [vmem:[#allocation5 + $0x178] sm:$0xff]
        %v6458 = vld [vmem:[#allocation5 + $0x180] sm:$0xff]
        %v6459 = vld [vmem:[#allocation5 + $0x188] sm:$0xff]
        %s6460 = scalar_lea.vmem %s3, 320
        %v6461 = vld [vmem:[%s6460] sm:$0xf]
        %v6462 = vld [vmem:[%s6460 + $0x4] sm:$0xf]
        %v6463 = vld [vmem:[%s6460 + $0x8] sm:$0xf]
        %v6464 = vld [vmem:[%s6460 + $0xc] sm:$0xf]
        %v6465 = vld [vmem:[%s6460 + $0x10] sm:$0xf]
        %v6466 = vld [vmem:[%s6460 + $0x14] sm:$0xf]
        %v6467 = vld [vmem:[%s6460 + $0x18] sm:$0xf]
        %v6468 = vld [vmem:[%s6460 + $0x1c] sm:$0xf]
        %v6469 = vld [vmem:[%s6460 + $0x20] sm:$0xf]
        %v6470 = vld [vmem:[%s6460 + $0x24] sm:$0xf]
        %v6471 = vld [vmem:[%s6460 + $0x28] sm:$0xf]
        %v6472 = vld [vmem:[%s6460 + $0x2c] sm:$0xf]
        %v6473 = vld [vmem:[%s6460 + $0x30] sm:$0xf]
        %v6474 = vld [vmem:[%s6460 + $0x34] sm:$0xf]
        %v6475 = vld [vmem:[%s6460 + $0x38] sm:$0xf]
        %v6476 = vld [vmem:[%s6460 + $0x3c] sm:$0xf]
        %v6477 = vld [vmem:[%s6460 + $0x40] sm:$0xf]
        %v6478 = vld [vmem:[%s6460 + $0x44] sm:$0xf]
        %v6479 = vld [vmem:[%s6460 + $0x48] sm:$0xf]
        %v6480 = vld [vmem:[%s6460 + $0x4c] sm:$0xf]
        %v6501 = vunpack.c.l.b16 %v6461
        %v6502 = vunpack.c.l.b16 %v6462
        %v6503 = vunpack.c.l.b16 %v6463
        %v6504 = vunpack.c.l.b16 %v6464
        %v6505 = vunpack.c.l.b16 %v6465
        %v6506 = vunpack.c.l.b16 %v6466
        %v6507 = vunpack.c.l.b16 %v6467
        %v6508 = vunpack.c.l.b16 %v6468
        %v6509 = vunpack.c.l.b16 %v6469
        %v6510 = vunpack.c.l.b16 %v6470
        %v6511 = vunpack.c.l.b16 %v6471
        %v6512 = vunpack.c.l.b16 %v6472
        %v6513 = vunpack.c.l.b16 %v6473
        %v6514 = vunpack.c.l.b16 %v6474
        %v6515 = vunpack.c.l.b16 %v6475
        %v6516 = vunpack.c.l.b16 %v6476
        %v6517 = vunpack.c.l.b16 %v6477
        %v6518 = vunpack.c.l.b16 %v6478
        %v6519 = vunpack.c.l.b16 %v6479
        %v6520 = vunpack.c.l.b16 %v6480
        %v6521 = vpack.c.b16 %v6502, %v6501
        %v6522 = vpack.c.b16 %v6504, %v6503
        %v6523 = vpack.c.b16 %v6506, %v6505
        %v6524 = vpack.c.b16 %v6508, %v6507
        %v6525 = vpack.c.b16 %v6510, %v6509
        %v6526 = vpack.c.b16 %v6512, %v6511
        %v6527 = vpack.c.b16 %v6514, %v6513
        %v6528 = vpack.c.b16 %v6516, %v6515
        %v6529 = vpack.c.b16 %v6518, %v6517
        %v6530 = vpack.c.b16 %v6520, %v6519
        %v6542 = vsel %vm762, %v6421, 0
        %v6545 = vsel %vm762, %v6423, 0
        %v6548 = vsel %vm762, %v6425, 0
        %v6551 = vsel %vm762, %v6427, 0
        %v6554 = vsel %vm762, %v6429, 0
        %v6557 = vsel %vm762, %v6431, 0
        %v6560 = vsel %vm762, %v6433, 0
        %v6563 = vsel %vm762, %v6435, 0
        %v6566 = vsel %vm762, %v6437, 0
        %v6569 = vsel %vm762, %v6439, 0
        %v6572 = vsel %vm762, %v6441, 0
        %v6575 = vsel %vm762, %v6443, 0
        %v6578 = vsel %vm762, %v6445, 0
        %v6581 = vsel %vm762, %v6447, 0
        %v6584 = vsel %vm762, %v6449, 0
        %v6587 = vsel %vm762, %v6451, 0
        %v6590 = vsel %vm762, %v6453, 0
        %v6593 = vsel %vm762, %v6455, 0
        %v6596 = vsel %vm762, %v6457, 0
        %v6599 = vsel %vm762, %v6459, 0
        %6601 = vmatprep.subr.bf16.mxu0 0
        %6602 = vmatpush1.bf16.msra.mxu0 %v6521
        %6603 = vmatprep.subr.bf16.mxu0 0
        %6604 = vmatpush1.bf16.msra.mxu0 %v6522
        %6605 = vmatprep.subr.bf16.mxu0 0
        %6606 = vmatpush1.bf16.msra.mxu0 %v6523
        %6607 = vmatprep.subr.bf16.mxu0 0
        %6608 = vmatpush1.bf16.msra.mxu0 %v6524
        %6609 = vmatprep.subr.bf16.mxu0 0
        %6610 = vmatpush1.bf16.msra.mxu0 %v6525
        %6611 = vmatprep.subr.bf16.mxu0 0
        %6612 = vmatpush1.bf16.msra.mxu0 %v6526
        %6613 = vmatprep.subr.bf16.mxu0 0
        %6614 = vmatpush1.bf16.msra.mxu0 %v6527
        %6615 = vmatprep.subr.bf16.mxu0 0
        %6616 = vmatpush1.bf16.msra.mxu0 %v6528
        %6617 = vmatprep.subr.bf16.mxu0 0
        %6618 = vmatpush1.bf16.msra.mxu0 %v6529
        %6619 = vmatprep.subr.bf16.mxu0 0
        %6620 = vmatpush1.bf16.msra.mxu0 %v6530
        %6621 = vmatprep.subr.bf16.mxu0 0
        %6622 = vmatpush1.bf16.msra.mxu0 0
        %6623 = vmatprep.subr.bf16.mxu0 0
        %6624 = vmatpush1.bf16.msra.mxu0 0
        %6625 = vmatprep.subr.bf16.mxu0 0
        %6626 = vmatpush1.bf16.msra.mxu0 0
        %6627 = vmatprep.subr.bf16.mxu0 0
        %6628 = vmatpush1.bf16.msra.mxu0 0
        %6629 = vmatprep.subr.bf16.mxu0 0
        %6630 = vmatpush1.bf16.msra.mxu0 0
        %6631 = vmatprep.subr.bf16.mxu0 0
        %6632 = vmatpush1.bf16.msra.mxu0 0
        %6633 = vmatprep.mubr.bf16.mxu0 %v6542
        %6634 = vmatmul.mubr.bf16.gmra.mrb[0].mxu0 %v6420
        %v6635 = vpop.f32.mrb[0].mxu0
        %v6636 = vadd.f32 0.0, %v6635
        %v6637 = vpop.f32.mrb[0].mxu0
        %v6638 = vpop.f32.mrb[0].mxu0
        %v6639 = vadd.f32 0.0, %v6638
        %v6640 = vpop.f32.mrb[0].mxu0
        %6641 = vmatprep.mubr.bf16.mxu0 %v6545
        %6642 = vmatmul.mubr.bf16.gmra.mrb[0].mxu0 %v6422
        %v6643 = vpop.f32.mrb[0].mxu0
        %v6644 = vadd.f32 0.0, %v6643
        %v6645 = vpop.f32.mrb[0].mxu0
        %v6646 = vpop.f32.mrb[0].mxu0
        %v6647 = vadd.f32 0.0, %v6646
        %v6648 = vpop.f32.mrb[0].mxu0
        %6649 = vmatprep.mubr.bf16.mxu0 %v6548
        %6650 = vmatmul.mubr.bf16.gmra.mrb[0].mxu0 %v6424
        %v6651 = vpop.f32.mrb[0].mxu0
        %v6652 = vadd.f32 0.0, %v6651
        %v6653 = vpop.f32.mrb[0].mxu0
        %v6654 = vpop.f32.mrb[0].mxu0
        %v6655 = vadd.f32 0.0, %v6654
        %v6656 = vpop.f32.mrb[0].mxu0
        %6657 = vmatprep.mubr.bf16.mxu0 %v6551
        %6658 = vmatmul.mubr.bf16.gmra.mrb[0].mxu0 %v6426
        %v6659 = vpop.f32.mrb[0].mxu0
        %v6660 = vadd.f32 0.0, %v6659
        %v6661 = vpop.f32.mrb[0].mxu0
        %v6662 = vpop.f32.mrb[0].mxu0
        %v6663 = vadd.f32 0.0, %v6662
        %v6664 = vpop.f32.mrb[0].mxu0
        %6665 = vmatprep.mubr.bf16.mxu0 %v6554
        %6666 = vmatmul.mubr.bf16.gmra.mrb[0].mxu0 %v6428
        %v6667 = vpop.f32.mrb[0].mxu0
        %v6668 = vadd.f32 0.0, %v6667
        %v6669 = vpop.f32.mrb[0].mxu0
        %v6670 = vpop.f32.mrb[0].mxu0
        %v6671 = vadd.f32 0.0, %v6670
        %v6672 = vpop.f32.mrb[0].mxu0
        %6673 = vmatprep.mubr.bf16.mxu0 %v6557
        %6674 = vmatmul.mubr.bf16.gmra.mrb[0].mxu0 %v6430
        %v6675 = vpop.f32.mrb[0].mxu0
        %v6676 = vadd.f32 0.0, %v6675
        %v6677 = vpop.f32.mrb[0].mxu0
        %v6678 = vpop.f32.mrb[0].mxu0
        %v6679 = vadd.f32 0.0, %v6678
        %v6680 = vpop.f32.mrb[0].mxu0
        %6681 = vmatprep.mubr.bf16.mxu0 %v6560
        %6682 = vmatmul.mubr.bf16.gmra.mrb[0].mxu0 %v6432
        %v6683 = vpop.f32.mrb[0].mxu0
        %v6684 = vadd.f32 0.0, %v6683
        %v6685 = vpop.f32.mrb[0].mxu0
        %v6686 = vpop.f32.mrb[0].mxu0
        %v6687 = vadd.f32 0.0, %v6686
        %v6688 = vpop.f32.mrb[0].mxu0
        %6689 = vmatprep.mubr.bf16.mxu0 %v6563
        %6690 = vmatmul.mubr.bf16.gmra.mrb[0].mxu0 %v6434
        %v6691 = vpop.f32.mrb[0].mxu0
        %v6692 = vadd.f32 0.0, %v6691
        %v6693 = vpop.f32.mrb[0].mxu0
        %v6694 = vpop.f32.mrb[0].mxu0
        %v6695 = vadd.f32 0.0, %v6694
        %v6696 = vpop.f32.mrb[0].mxu0
        %6697 = vmatprep.mubr.bf16.mxu0 %v6566
        %6698 = vmatmul.mubr.bf16.gmra.mrb[0].mxu0 %v6436
        %v6699 = vpop.f32.mrb[0].mxu0
        %v6700 = vadd.f32 0.0, %v6699
        %v6701 = vpop.f32.mrb[0].mxu0
        %v6702 = vpop.f32.mrb[0].mxu0
        %v6703 = vadd.f32 0.0, %v6702
        %v6704 = vpop.f32.mrb[0].mxu0
        %6705 = vmatprep.mubr.bf16.mxu0 %v6569
        %6706 = vmatmul.mubr.bf16.gmra.mrb[0].mxu0 %v6438
        %v6707 = vpop.f32.mrb[0].mxu0
        %v6708 = vadd.f32 0.0, %v6707
        %v6709 = vpop.f32.mrb[0].mxu0
        %v6710 = vpop.f32.mrb[0].mxu0
        %v6711 = vadd.f32 0.0, %v6710
        %v6712 = vpop.f32.mrb[0].mxu0
        %6713 = vmatprep.mubr.bf16.mxu0 %v6572
        %6714 = vmatmul.mubr.bf16.gmra.mrb[0].mxu0 %v6440
        %v6715 = vpop.f32.mrb[0].mxu0
        %v6716 = vadd.f32 0.0, %v6715
        %v6717 = vpop.f32.mrb[0].mxu0
        %v6718 = vpop.f32.mrb[0].mxu0
        %v6719 = vadd.f32 0.0, %v6718
        %v6720 = vpop.f32.mrb[0].mxu0
        %6721 = vmatprep.mubr.bf16.mxu0 %v6575
        %6722 = vmatmul.mubr.bf16.gmra.mrb[0].mxu0 %v6442
        %v6723 = vpop.f32.mrb[0].mxu0
        %v6724 = vadd.f32 0.0, %v6723
        %v6725 = vpop.f32.mrb[0].mxu0
        %v6726 = vpop.f32.mrb[0].mxu0
        %v6727 = vadd.f32 0.0, %v6726
        %v6728 = vpop.f32.mrb[0].mxu0
        %6729 = vmatprep.mubr.bf16.mxu0 %v6578
        %6730 = vmatmul.mubr.bf16.gmra.mrb[0].mxu0 %v6444
        %v6731 = vpop.f32.mrb[0].mxu0
        %v6732 = vadd.f32 0.0, %v6731
        %v6733 = vpop.f32.mrb[0].mxu0
        %v6734 = vpop.f32.mrb[0].mxu0
        %v6735 = vadd.f32 0.0, %v6734
        %v6736 = vpop.f32.mrb[0].mxu0
        %6737 = vmatprep.mubr.bf16.mxu0 %v6581
        %6738 = vmatmul.mubr.bf16.gmra.mrb[0].mxu0 %v6446
        %v6739 = vpop.f32.mrb[0].mxu0
        %v6740 = vadd.f32 0.0, %v6739
        %v6741 = vpop.f32.mrb[0].mxu0
        %v6742 = vpop.f32.mrb[0].mxu0
        %v6743 = vadd.f32 0.0, %v6742
        %v6744 = vpop.f32.mrb[0].mxu0
        %6745 = vmatprep.mubr.bf16.mxu0 %v6584
        %6746 = vmatmul.mubr.bf16.gmra.mrb[0].mxu0 %v6448
        %v6747 = vpop.f32.mrb[0].mxu0
        %v6748 = vadd.f32 0.0, %v6747
        %v6749 = vpop.f32.mrb[0].mxu0
        %v6750 = vpop.f32.mrb[0].mxu0
        %v6751 = vadd.f32 0.0, %v6750
        %v6752 = vpop.f32.mrb[0].mxu0
        %6753 = vmatprep.mubr.bf16.mxu0 %v6587
        %6754 = vmatmul.mubr.bf16.gmra.mrb[0].mxu0 %v6450
        %v6755 = vpop.f32.mrb[0].mxu0
        %v6756 = vadd.f32 0.0, %v6755
        %v6757 = vpop.f32.mrb[0].mxu0
        %v6758 = vpop.f32.mrb[0].mxu0
        %v6759 = vadd.f32 0.0, %v6758
        %v6760 = vpop.f32.mrb[0].mxu0
        %6761 = vmatprep.mubr.bf16.mxu0 %v6590
        %6762 = vmatmul.mubr.bf16.gmra.mrb[0].mxu0 %v6452
        %v6763 = vpop.f32.mrb[0].mxu0
        %v6764 = vadd.f32 0.0, %v6763
        %v6765 = vpop.f32.mrb[0].mxu0
        %v6766 = vpop.f32.mrb[0].mxu0
        %v6767 = vadd.f32 0.0, %v6766
        %v6768 = vpop.f32.mrb[0].mxu0
        %6769 = vmatprep.mubr.bf16.mxu0 %v6593
        %6770 = vmatmul.mubr.bf16.gmra.mrb[0].mxu0 %v6454
        %v6771 = vpop.f32.mrb[0].mxu0
        %v6772 = vadd.f32 0.0, %v6771
        %v6773 = vpop.f32.mrb[0].mxu0
        %v6774 = vpop.f32.mrb[0].mxu0
        %v6775 = vadd.f32 0.0, %v6774
        %v6776 = vpop.f32.mrb[0].mxu0
        %6777 = vmatprep.mubr.bf16.mxu0 %v6596
        %6778 = vmatmul.mubr.bf16.gmra.mrb[0].mxu0 %v6456
        %v6779 = vpop.f32.mrb[0].mxu0
        %v6780 = vadd.f32 0.0, %v6779
        %v6781 = vpop.f32.mrb[0].mxu0
        %v6782 = vpop.f32.mrb[0].mxu0
        %v6783 = vadd.f32 0.0, %v6782
        %v6784 = vpop.f32.mrb[0].mxu0
        %6785 = vmatprep.mubr.bf16.mxu0 %v6599
        %6786 = vmatmul.mubr.bf16.gmra.mrb[0].mxu0 %v6458
        %v6787 = vpop.f32.mrb[0].mxu0
        %v6788 = vadd.f32 0.0, %v6787
        %v6789 = vpop.f32.mrb[0].mxu0
        %v6790 = vpop.f32.mrb[0].mxu0
        %v6791 = vadd.f32 0.0, %v6790
        %v6792 = vpop.f32.mrb[0].mxu0
        %6793 = vdwg.mxu0
        %v6794 = vadd.f32 %v6380, %v6636
        %v6795 = vadd.f32 %v6381, %v6639
        %v6796 = vadd.f32 %v6382, %v6644
        %v6797 = vadd.f32 %v6383, %v6647
        %v6798 = vadd.f32 %v6384, %v6652
        %v6799 = vadd.f32 %v6385, %v6655
        %v6800 = vadd.f32 %v6386, %v6660
        %v6801 = vadd.f32 %v6387, %v6663
        %v6802 = vadd.f32 %v6388, %v6668
        %v6803 = vadd.f32 %v6389, %v6671
        %v6804 = vadd.f32 %v6390, %v6676
        %v6805 = vadd.f32 %v6391, %v6679
        %v6806 = vadd.f32 %v6392, %v6684
        %v6807 = vadd.f32 %v6393, %v6687
        %v6808 = vadd.f32 %v6394, %v6692
        %v6809 = vadd.f32 %v6395, %v6695
        %v6810 = vadd.f32 %v6396, %v6700
        %v6811 = vadd.f32 %v6397, %v6703
        %v6812 = vadd.f32 %v6398, %v6708
        %v6813 = vadd.f32 %v6399, %v6711
        %v6814 = vadd.f32 %v6400, %v6716
        %v6815 = vadd.f32 %v6401, %v6719
        %v6816 = vadd.f32 %v6402, %v6724
        %v6817 = vadd.f32 %v6403, %v6727
        %v6818 = vadd.f32 %v6404, %v6732
        %v6819 = vadd.f32 %v6405, %v6735
        %v6820 = vadd.f32 %v6406, %v6740
        %v6821 = vadd.f32 %v6407, %v6743
        %v6822 = vadd.f32 %v6408, %v6748
        %v6823 = vadd.f32 %v6409, %v6751
        %v6824 = vadd.f32 %v6410, %v6756
        %v6825 = vadd.f32 %v6411, %v6759
        %v6826 = vadd.f32 %v6412, %v6764
        %v6827 = vadd.f32 %v6413, %v6767
        %v6828 = vadd.f32 %v6414, %v6772
        %v6829 = vadd.f32 %v6415, %v6775
        %v6830 = vadd.f32 %v6416, %v6780
        %v6831 = vadd.f32 %v6417, %v6783
        %v6832 = vadd.f32 %v6418, %v6788
        %v6833 = vadd.f32 %v6419, %v6791
        %v6834 = vld [vmem:[%s4] sm:$0x1]
        %v6836 = vlaneseq
        %v6837 = vshrl.u32 %v6836, 7
        %v6838 = vsub.s32 0, %v6837
        %v6839 = vrot.slane %v6834, %v6838
        %v6841 = vadd.f32 %v6794, %v6839
        %v6842 = vadd.f32 %v6795, %v6839
        %v6843 = vadd.f32 %v6796, %v6839
        %v6844 = vadd.f32 %v6797, %v6839
        %v6845 = vadd.f32 %v6798, %v6839
        %v6846 = vadd.f32 %v6799, %v6839
        %v6847 = vadd.f32 %v6800, %v6839
        %v6848 = vadd.f32 %v6801, %v6839
        %v6849 = vadd.f32 %v6802, %v6839
        %v6850 = vadd.f32 %v6803, %v6839
        %v6851 = vadd.f32 %v6804, %v6839
        %v6852 = vadd.f32 %v6805, %v6839
        %v6853 = vadd.f32 %v6806, %v6839
        %v6854 = vadd.f32 %v6807, %v6839
        %v6855 = vadd.f32 %v6808, %v6839
        %v6856 = vadd.f32 %v6809, %v6839
        %v6857 = vadd.f32 %v6810, %v6839
        %v6858 = vadd.f32 %v6811, %v6839
        %v6859 = vadd.f32 %v6812, %v6839
        %v6860 = vadd.f32 %v6813, %v6839
        %v6861 = vadd.f32 %v6814, %v6839
        %v6862 = vadd.f32 %v6815, %v6839
        %v6863 = vadd.f32 %v6816, %v6839
        %v6864 = vadd.f32 %v6817, %v6839
        %v6865 = vadd.f32 %v6818, %v6839
        %v6866 = vadd.f32 %v6819, %v6839
        %v6867 = vadd.f32 %v6820, %v6839
        %v6868 = vadd.f32 %v6821, %v6839
        %v6869 = vadd.f32 %v6822, %v6839
        %v6870 = vadd.f32 %v6823, %v6839
        %v6871 = vadd.f32 %v6824, %v6839
        %v6872 = vadd.f32 %v6825, %v6839
        %v6873 = vadd.f32 %v6826, %v6839
        %v6874 = vadd.f32 %v6827, %v6839
        %v6875 = vadd.f32 %v6828, %v6839
        %v6876 = vadd.f32 %v6829, %v6839
        %v6877 = vadd.f32 %v6830, %v6839
        %v6878 = vadd.f32 %v6831, %v6839
        %v6879 = vadd.f32 %v6832, %v6839
        %v6880 = vadd.f32 %v6833, %v6839
        %6881 = vst.msk [vmem:[#allocation2] sm:$0xff] %vm762, %v6841
        %6882 = vst.msk [vmem:[#allocation2 + $0x8] sm:$0xff] %vm762, %v6842
        %6883 = vst.msk [vmem:[#allocation2 + $0x10] sm:$0xff] %vm762, %v6843
        %6884 = vst.msk [vmem:[#allocation2 + $0x18] sm:$0xff] %vm762, %v6844
        %6885 = vst.msk [vmem:[#allocation2 + $0x20] sm:$0xff] %vm762, %v6845
        %6886 = vst.msk [vmem:[#allocation2 + $0x28] sm:$0xff] %vm762, %v6846
        %6887 = vst.msk [vmem:[#allocation2 + $0x30] sm:$0xff] %vm762, %v6847
        %6888 = vst.msk [vmem:[#allocation2 + $0x38] sm:$0xff] %vm762, %v6848
        %6889 = vst.msk [vmem:[#allocation2 + $0x40] sm:$0xff] %vm762, %v6849
        %6890 = vst.msk [vmem:[#allocation2 + $0x48] sm:$0xff] %vm762, %v6850
        %6891 = vst.msk [vmem:[#allocation2 + $0x50] sm:$0xff] %vm762, %v6851
        %6892 = vst.msk [vmem:[#allocation2 + $0x58] sm:$0xff] %vm762, %v6852
        %6893 = vst.msk [vmem:[#allocation2 + $0x60] sm:$0xff] %vm762, %v6853
        %6894 = vst.msk [vmem:[#allocation2 + $0x68] sm:$0xff] %vm762, %v6854
        %6895 = vst.msk [vmem:[#allocation2 + $0x70] sm:$0xff] %vm762, %v6855
        %6896 = vst.msk [vmem:[#allocation2 + $0x78] sm:$0xff] %vm762, %v6856
        %6897 = vst.msk [vmem:[#allocation2 + $0x80] sm:$0xff] %vm762, %v6857
        %6898 = vst.msk [vmem:[#allocation2 + $0x88] sm:$0xff] %vm762, %v6858
        %6899 = vst.msk [vmem:[#allocation2 + $0x90] sm:$0xff] %vm762, %v6859
        %6900 = vst.msk [vmem:[#allocation2 + $0x98] sm:$0xff] %vm762, %v6860
        %6901 = vst.msk [vmem:[#allocation2 + $0xa0] sm:$0xff] %vm762, %v6861
        %6902 = vst.msk [vmem:[#allocation2 + $0xa8] sm:$0xff] %vm762, %v6862
        %6903 = vst.msk [vmem:[#allocation2 + $0xb0] sm:$0xff] %vm762, %v6863
        %6904 = vst.msk [vmem:[#allocation2 + $0xb8] sm:$0xff] %vm762, %v6864
        %6905 = vst.msk [vmem:[#allocation2 + $0xc0] sm:$0xff] %vm762, %v6865
        %6906 = vst.msk [vmem:[#allocation2 + $0xc8] sm:$0xff] %vm762, %v6866
        %6907 = vst.msk [vmem:[#allocation2 + $0xd0] sm:$0xff] %vm762, %v6867
        %6908 = vst.msk [vmem:[#allocation2 + $0xd8] sm:$0xff] %vm762, %v6868
        %6909 = vst.msk [vmem:[#allocation2 + $0xe0] sm:$0xff] %vm762, %v6869
        %6910 = vst.msk [vmem:[#allocation2 + $0xe8] sm:$0xff] %vm762, %v6870
        %6911 = vst.msk [vmem:[#allocation2 + $0xf0] sm:$0xff] %vm762, %v6871
        %6912 = vst.msk [vmem:[#allocation2 + $0xf8] sm:$0xff] %vm762, %v6872
        %6913 = vst.msk [vmem:[#allocation2 + $0x100] sm:$0xff] %vm762, %v6873
        %6914 = vst.msk [vmem:[#allocation2 + $0x108] sm:$0xff] %vm762, %v6874
        %6915 = vst.msk [vmem:[#allocation2 + $0x110] sm:$0xff] %vm762, %v6875
        %6916 = vst.msk [vmem:[#allocation2 + $0x118] sm:$0xff] %vm762, %v6876
        %6917 = vst.msk [vmem:[#allocation2 + $0x120] sm:$0xff] %vm762, %v6877
        %6918 = vst.msk [vmem:[#allocation2 + $0x128] sm:$0xff] %vm762, %v6878
        %6919 = vst.msk [vmem:[#allocation2 + $0x130] sm:$0xff] %vm762, %v6879
        %6920 = vst.msk [vmem:[#allocation2 + $0x138] sm:$0xff] %vm762, %v6880
        %v6921 = vld [vmem:[#allocation2] ss:$2 sm:$0xff]
        %v6922 = vld [vmem:[%s1974] ss:$2 sm:$0xff]
        %v6923 = vmax.f32 %v6921, %v6922
        %s6924 = scalar_lea.vmem [#allocation2], 20
        %v6925 = vld [vmem:[%s6924] ss:$2 sm:$0xff]
        %s6926 = scalar_lea.vmem [#allocation2], 21
        %v6927 = vld [vmem:[%s6926] ss:$2 sm:$0xff]
        %v6928 = vmax.f32 %v6925, %v6927
        %v6929 = vmax.f32 %v6923, %v6928
        %v6930 = vpack.c.bf16 %v6929, %v6929
        %v6932 = vunpack.c.l.b16 %v6930
        %v6933 = vpack.c.b16 %v6932, %v6932
        %v6934 = vrot.slane %v6933, 7
        %v6935 = vrot.slane %v6934, 4
        %6938 = vst.msk [vmem:[#allocation4 + $0xc] sm:$0xe] %vm2009, %v6934
        %6939 = vst.msk [vmem:[#allocation4 + $0x10] sm:$0x1] %vm2012, %v6935
        %s6940 = scalar_lea.vmem [#allocation2], 40
        %v6941 = vld [vmem:[%s6940] ss:$2 sm:$0xff]
        %s6942 = scalar_lea.vmem [#allocation2], 41
        %v6943 = vld [vmem:[%s6942] ss:$2 sm:$0xff]
        %v6944 = vmax.f32 %v6941, %v6943
        %s6945 = scalar_lea.vmem [#allocation2], 60
        %v6946 = vld [vmem:[%s6945] ss:$2 sm:$0xff]
        %s6947 = scalar_lea.vmem [#allocation2], 61
        %v6948 = vld [vmem:[%s6947] ss:$2 sm:$0xff]
        %v6949 = vmax.f32 %v6946, %v6948
        %v6950 = vmax.f32 %v6944, %v6949
        %v6951 = vpack.c.bf16 %v6950, %v6950
        %v6953 = vunpack.c.l.b16 %v6951
        %v6954 = vpack.c.b16 %v6953, %v6953
        %v6955 = vrot.slane %v6954, 5
        %v6956 = vrot.slane %v6955, 4
        %6959 = vst.msk [vmem:[#allocation4 + $0x10] sm:$0x8] %vm2053, %v6955
        %6960 = vst.msk [vmem:[#allocation4 + $0x14] sm:$0x7] %vm2056, %v6956
        %v6961 = vld [vmem:[%s2016] ss:$2 sm:$0xff]
        %v6962 = vld [vmem:[%s2020] ss:$2 sm:$0xff]
        %v6963 = vmax.f32 %v6961, %v6962
        %s6964 = scalar_lea.vmem [#allocation2], 100
        %v6965 = vld [vmem:[%s6964] ss:$2 sm:$0xff]
        %s6966 = scalar_lea.vmem [#allocation2], 101
        %v6967 = vld [vmem:[%s6966] ss:$2 sm:$0xff]
        %v6968 = vmax.f32 %v6965, %v6967
        %v6969 = vmax.f32 %v6963, %v6968
        %v6970 = vpack.c.bf16 %v6969, %v6969
        %v6972 = vunpack.c.l.b16 %v6970
        %v6973 = vpack.c.b16 %v6972, %v6972
        %v6974 = vrot.slane %v6973, 7
        %v6975 = vrot.slane %v6974, 4
        %6978 = vst.msk [vmem:[#allocation4 + $0x18] sm:$0xe] %vm2009, %v6974
        %6979 = vst.msk [vmem:[#allocation4 + $0x1c] sm:$0x1] %vm2012, %v6975
        %s6980 = scalar_lea.vmem [#allocation2], 120
        %v6981 = vld [vmem:[%s6980] ss:$2 sm:$0xff]
        %s6982 = scalar_lea.vmem [#allocation2], 121
        %v6983 = vld [vmem:[%s6982] ss:$2 sm:$0xff]
        %v6984 = vmax.f32 %v6981, %v6983
        %s6985 = scalar_lea.vmem [#allocation2], 140
        %v6986 = vld [vmem:[%s6985] ss:$2 sm:$0xff]
        %s6987 = scalar_lea.vmem [#allocation2], 141
        %v6988 = vld [vmem:[%s6987] ss:$2 sm:$0xff]
        %v6989 = vmax.f32 %v6986, %v6988
        %v6990 = vmax.f32 %v6984, %v6989
        %v6991 = vpack.c.bf16 %v6990, %v6990
        %v6993 = vunpack.c.l.b16 %v6991
        %v6994 = vpack.c.b16 %v6993, %v6993
        %v6995 = vrot.slane %v6994, 5
        %v6996 = vrot.slane %v6995, 4
        %6999 = vst.msk [vmem:[#allocation4 + $0x1c] sm:$0x8] %vm2053, %v6995
        %7000 = vst.msk [vmem:[#allocation4 + $0x20] sm:$0x7] %vm2056, %v6996
        %v7001 = vld [vmem:[%s2068] ss:$2 sm:$0xff]
        %v7002 = vld [vmem:[%s2072] ss:$2 sm:$0xff]
        %v7003 = vmax.f32 %v7001, %v7002
        %s7004 = scalar_lea.vmem [#allocation2], 180
        %v7005 = vld [vmem:[%s7004] ss:$2 sm:$0xff]
        %s7006 = scalar_lea.vmem [#allocation2], 181
        %v7007 = vld [vmem:[%s7006] ss:$2 sm:$0xff]
        %v7008 = vmax.f32 %v7005, %v7007
        %v7009 = vmax.f32 %v7003, %v7008
        %v7010 = vpack.c.bf16 %v7009, %v7009
        %v7012 = vunpack.c.l.b16 %v7010
        %v7013 = vpack.c.b16 %v7012, %v7012
        %v7014 = vrot.slane %v7013, 7
        %v7015 = vrot.slane %v7014, 4
        %7018 = vst.msk [vmem:[#allocation4 + $0x24] sm:$0xe] %vm2009, %v7014
        %7019 = vst.msk [vmem:[#allocation4 + $0x28] sm:$0x1] %vm2012, %v7015
        %s7020 = scalar_lea.vmem [#allocation2], 200
        %v7021 = vld [vmem:[%s7020] ss:$2 sm:$0xff]
        %s7022 = scalar_lea.vmem [#allocation2], 201
        %v7023 = vld [vmem:[%s7022] ss:$2 sm:$0xff]
        %v7024 = vmax.f32 %v7021, %v7023
        %s7025 = scalar_lea.vmem [#allocation2], 220
        %v7026 = vld [vmem:[%s7025] ss:$2 sm:$0xff]
        %s7027 = scalar_lea.vmem [#allocation2], 221
        %v7028 = vld [vmem:[%s7027] ss:$2 sm:$0xff]
        %v7029 = vmax.f32 %v7026, %v7028
        %v7030 = vmax.f32 %v7024, %v7029
        %v7031 = vpack.c.bf16 %v7030, %v7030
        %v7033 = vunpack.c.l.b16 %v7031
        %v7034 = vpack.c.b16 %v7033, %v7033
        %v7035 = vrot.slane %v7034, 5
        %v7036 = vrot.slane %v7035, 4
        %7039 = vst.msk [vmem:[#allocation4 + $0x28] sm:$0x8] %vm2053, %v7035
        %7040 = vst.msk [vmem:[#allocation4 + $0x2c] sm:$0x7] %vm2056, %v7036
        %v7041 = vld [vmem:[%s2109] ss:$2 sm:$0xff]
        %v7042 = vld [vmem:[%s2113] ss:$2 sm:$0xff]
        %v7043 = vmax.f32 %v7041, %v7042
        %s7044 = scalar_lea.vmem [#allocation2], 260
        %v7045 = vld [vmem:[%s7044] ss:$2 sm:$0xff]
        %s7046 = scalar_lea.vmem [#allocation2], 261
        %v7047 = vld [vmem:[%s7046] ss:$2 sm:$0xff]
        %v7048 = vmax.f32 %v7045, %v7047
        %v7049 = vmax.f32 %v7043, %v7048
        %v7050 = vpack.c.bf16 %v7049, %v7049
        %v7052 = vunpack.c.l.b16 %v7050
        %v7053 = vpack.c.b16 %v7052, %v7052
        %v7054 = vrot.slane %v7053, 7
        %v7055 = vrot.slane %v7054, 4
        %7058 = vst.msk [vmem:[#allocation4 + $0x30] sm:$0xe] %vm2009, %v7054
        %7059 = vst.msk [vmem:[#allocation4 + $0x34] sm:$0x1] %vm2012, %v7055
        %s7060 = scalar_lea.vmem [#allocation2], 280
        %v7061 = vld [vmem:[%s7060] ss:$2 sm:$0xff]
        %s7062 = scalar_lea.vmem [#allocation2], 281
        %v7063 = vld [vmem:[%s7062] ss:$2 sm:$0xff]
        %v7064 = vmax.f32 %v7061, %v7063
        %s7065 = scalar_lea.vmem [#allocation2], 300
        %v7066 = vld [vmem:[%s7065] ss:$2 sm:$0xff]
        %s7067 = scalar_lea.vmem [#allocation2], 301
        %v7068 = vld [vmem:[%s7067] ss:$2 sm:$0xff]
        %v7069 = vmax.f32 %v7066, %v7068
        %v7070 = vmax.f32 %v7064, %v7069
        %v7071 = vpack.c.bf16 %v7070, %v7070
        %v7073 = vunpack.c.l.b16 %v7071
        %v7074 = vpack.c.b16 %v7073, %v7073
        %v7075 = vrot.slane %v7074, 5
        %v7076 = vrot.slane %v7075, 4
        %7079 = vst.msk [vmem:[#allocation4 + $0x34] sm:$0x8] %vm2053, %v7075
        %7080 = vst.msk [vmem:[#allocation4 + $0x38] sm:$0x7] %vm2056, %v7076
        %v7081 = vld [vmem:[#allocation4] sm:$0xf]
        %v7082 = vld [vmem:[#allocation4 + $0x4] sm:$0xf]
        %v7083 = vld [vmem:[#allocation4 + $0x8] sm:$0xf]
        %v7084 = vld [vmem:[#allocation4 + $0xc] sm:$0xf]
        %v7085 = vld [vmem:[#allocation4 + $0x10] sm:$0xf]
        %v7086 = vld [vmem:[#allocation4 + $0x14] sm:$0xf]
        %v7087 = vld [vmem:[#allocation4 + $0x18] sm:$0xf]
        %v7088 = vld [vmem:[#allocation4 + $0x1c] sm:$0xf]
        %v7089 = vld [vmem:[#allocation4 + $0x20] sm:$0xf]
        %v7090 = vld [vmem:[#allocation4 + $0x24] sm:$0xf]
        %v7091 = vld [vmem:[#allocation4 + $0x28] sm:$0xf]
        %v7092 = vld [vmem:[#allocation4 + $0x2c] sm:$0xf]
        %v7093 = vld [vmem:[#allocation4 + $0x30] sm:$0xf]
        %v7094 = vld [vmem:[#allocation4 + $0x34] sm:$0xf]
        %v7095 = vld [vmem:[#allocation4 + $0x38] sm:$0xf]
        %v7096 = vld [vmem:[#allocation4 + $0x3c] sm:$0xf]
        %v7097 = vld [vmem:[#allocation4 + $0x40] sm:$0xf]
        %v7098 = vld [vmem:[#allocation4 + $0x44] sm:$0xf]
        %v7117 = vunpack.c.l.b16 %v7081
        %v7118 = vunpack.c.l.b16 %v7082
        %v7119 = vunpack.c.l.b16 %v7083
        %v7120 = vunpack.c.l.b16 %v7084
        %v7121 = vunpack.c.l.b16 %v7085
        %v7122 = vunpack.c.l.b16 %v7086
        %v7123 = vunpack.c.l.b16 %v7087
        %v7124 = vunpack.c.l.b16 %v7088
        %v7125 = vunpack.c.l.b16 %v7089
        %v7126 = vunpack.c.l.b16 %v7090
        %v7127 = vunpack.c.l.b16 %v7091
        %v7128 = vunpack.c.l.b16 %v7092
        %v7129 = vunpack.c.l.b16 %v7093
        %v7130 = vunpack.c.l.b16 %v7094
        %v7131 = vunpack.c.l.b16 %v7095
        %v7132 = vunpack.c.l.b16 %v7096
        %v7133 = vunpack.c.l.b16 %v7097
        %v7134 = vunpack.c.l.b16 %v7098
        %v7135 = vpack.c.b16 %v7118, %v7117
        %v7136 = vpack.c.b16 %v7120, %v7119
        %v7137 = vpack.c.b16 %v7122, %v7121
        %v7138 = vpack.c.b16 %v7124, %v7123
        %v7139 = vpack.c.b16 %v7126, %v7125
        %v7140 = vpack.c.b16 %v7128, %v7127
        %v7141 = vpack.c.b16 %v7130, %v7129
        %v7142 = vpack.c.b16 %v7132, %v7131
        %v7143 = vpack.c.b16 %v7134, %v7133
        %7153 = vst.msk [vmem:[#allocation5] sm:$0xff] %vm762, %v7135
        %7154 = vst.msk [vmem:[#allocation5 + $0x10] sm:$0xff] %vm762, %v7136
        %7155 = vst.msk [vmem:[#allocation5 + $0x20] sm:$0xff] %vm762, %v7137
        %7156 = vst.msk [vmem:[#allocation5 + $0x30] sm:$0xff] %vm762, %v7138
        %7157 = vst.msk [vmem:[#allocation5 + $0x40] sm:$0xff] %vm762, %v7139
        %7158 = vst.msk [vmem:[#allocation5 + $0x50] sm:$0xff] %vm762, %v7140
        %7159 = vst.msk [vmem:[#allocation5 + $0x60] sm:$0xff] %vm762, %v7141
        %7160 = vst.msk [vmem:[#allocation5 + $0x70] sm:$0xff] %vm762, %v7142
        %7161 = vst.msk [vmem:[#allocation5 + $0x80] sm:$0xff] %vm762, %v7143
        %v7162 = vld [vmem:[#allocation4] sm:$0xf]
        %v7163 = vld [vmem:[#allocation4 + $0x4] sm:$0xf]
        %v7164 = vld [vmem:[#allocation4 + $0x8] sm:$0xf]
        %v7165 = vld [vmem:[#allocation4 + $0xc] sm:$0xf]
        %v7166 = vld [vmem:[#allocation4 + $0x10] sm:$0xf]
        %v7167 = vld [vmem:[#allocation4 + $0x14] sm:$0xf]
        %v7168 = vld [vmem:[#allocation4 + $0x18] sm:$0xf]
        %v7169 = vld [vmem:[#allocation4 + $0x1c] sm:$0xf]
        %v7170 = vld [vmem:[#allocation4 + $0x20] sm:$0xf]
        %v7171 = vld [vmem:[#allocation4 + $0x24] sm:$0xf]
        %v7172 = vld [vmem:[#allocation4 + $0x28] sm:$0xf]
        %v7173 = vld [vmem:[#allocation4 + $0x2c] sm:$0xf]
        %v7174 = vld [vmem:[#allocation4 + $0x30] sm:$0xf]
        %v7175 = vld [vmem:[#allocation4 + $0x34] sm:$0xf]
        %v7176 = vld [vmem:[#allocation4 + $0x38] sm:$0xf]
        %v7177 = vld [vmem:[#allocation4 + $0x3c] sm:$0xf]
        %v7178 = vld [vmem:[#allocation4 + $0x40] sm:$0xf]
        %v7179 = vld [vmem:[#allocation4 + $0x44] sm:$0xf]
        %v7180 = vld [vmem:[#allocation4 + $0x48] sm:$0x1]
        %v7200 = vunpack.c.l.b16 %v7162
        %v7201 = vunpack.c.l.b16 %v7163
        %v7202 = vunpack.c.l.b16 %v7164
        %v7203 = vunpack.c.l.b16 %v7165
        %v7204 = vunpack.c.l.b16 %v7166
        %v7205 = vunpack.c.l.b16 %v7167
        %v7206 = vunpack.c.l.b16 %v7168
        %v7207 = vunpack.c.l.b16 %v7169
        %v7208 = vunpack.c.l.b16 %v7170
        %v7209 = vunpack.c.l.b16 %v7171
        %v7210 = vunpack.c.l.b16 %v7172
        %v7211 = vunpack.c.l.b16 %v7173
        %v7212 = vunpack.c.l.b16 %v7174
        %v7213 = vunpack.c.l.b16 %v7175
        %v7214 = vunpack.c.l.b16 %v7176
        %v7215 = vunpack.c.l.b16 %v7177
        %v7216 = vunpack.c.l.b16 %v7178
        %v7217 = vunpack.c.l.b16 %v7179
        %v7218 = vunpack.c.l.b16 %v7180
        %v7219 = vpack.c.b16 %v7201, %v7200
        %v7220 = vpack.c.b16 %v7203, %v7202
        %v7221 = vpack.c.b16 %v7205, %v7204
        %v7222 = vpack.c.b16 %v7207, %v7206
        %v7223 = vpack.c.b16 %v7209, %v7208
        %v7224 = vpack.c.b16 %v7211, %v7210
        %v7225 = vpack.c.b16 %v7213, %v7212
        %v7226 = vpack.c.b16 %v7215, %v7214
        %v7227 = vpack.c.b16 %v7217, %v7216
        %v7228 = vpack.c.b16 %v7218, %v7218
        %v7230 = vshrl.u32 %v7219, 16
        %v7232 = vshll.u32 %v7219, 16
        %v7234 = vrot.slane %v7232, 1
        %v7235 = vor.u32 %v7230, %v7234
        %v7237 = vshll.u32 %v7220, 16
        %v7239 = vrot.slane %v7237, 1
        %v7240 = vsel %vm3008, %v7235, %v7239
        %v7241 = vshrl.u32 %v7220, 16
        %v7243 = vor.u32 %v7241, %v7239
        %v7245 = vshll.u32 %v7221, 16
        %v7247 = vrot.slane %v7245, 1
        %v7248 = vsel %vm3008, %v7243, %v7247
        %v7249 = vshrl.u32 %v7221, 16
        %v7251 = vor.u32 %v7249, %v7247
        %v7253 = vshll.u32 %v7222, 16
        %v7255 = vrot.slane %v7253, 1
        %v7256 = vsel %vm3008, %v7251, %v7255
        %v7257 = vshrl.u32 %v7222, 16
        %v7259 = vor.u32 %v7257, %v7255
        %v7261 = vshll.u32 %v7223, 16
        %v7263 = vrot.slane %v7261, 1
        %v7264 = vsel %vm3008, %v7259, %v7263
        %v7265 = vshrl.u32 %v7223, 16
        %v7267 = vor.u32 %v7265, %v7263
        %v7269 = vshll.u32 %v7224, 16
        %v7271 = vrot.slane %v7269, 1
        %v7272 = vsel %vm3008, %v7267, %v7271
        %v7273 = vshrl.u32 %v7224, 16
        %v7275 = vor.u32 %v7273, %v7271
        %v7277 = vshll.u32 %v7225, 16
        %v7279 = vrot.slane %v7277, 1
        %v7280 = vsel %vm3008, %v7275, %v7279
        %v7281 = vshrl.u32 %v7225, 16
        %v7283 = vor.u32 %v7281, %v7279
        %v7285 = vshll.u32 %v7226, 16
        %v7287 = vrot.slane %v7285, 1
        %v7288 = vsel %vm3008, %v7283, %v7287
        %v7289 = vshrl.u32 %v7226, 16
        %v7291 = vor.u32 %v7289, %v7287
        %v7293 = vshll.u32 %v7227, 16
        %v7295 = vrot.slane %v7293, 1
        %v7296 = vsel %vm3008, %v7291, %v7295
        %v7297 = vshrl.u32 %v7227, 16
        %v7299 = vor.u32 %v7297, %v7295
        %v7301 = vshll.u32 %v7228, 16
        %v7303 = vrot.slane %v7301, 1
        %v7304 = vsel %vm3008, %v7299, %v7303
        %7305 = vrot.lane.b32.xlu0 %v7240, 32
        %v7306 = vpop.permute.xlu0 %7305
        %7307 = vrot.lane.b32.xlu0 %v7248, 32
        %v7308 = vpop.permute.xlu0 %7307
        %7309 = vrot.lane.b32.xlu0 %v7256, 32
        %v7310 = vpop.permute.xlu0 %7309
        %7311 = vrot.lane.b32.xlu0 %v7264, 32
        %v7312 = vpop.permute.xlu0 %7311
        %7313 = vrot.lane.b32.xlu0 %v7272, 32
        %v7314 = vpop.permute.xlu0 %7313
        %7315 = vrot.lane.b32.xlu0 %v7280, 32
        %v7316 = vpop.permute.xlu0 %7315
        %7317 = vrot.lane.b32.xlu0 %v7288, 32
        %v7318 = vpop.permute.xlu0 %7317
        %7319 = vrot.lane.b32.xlu0 %v7296, 32
        %v7320 = vpop.permute.xlu0 %7319
        %7321 = vrot.lane.b32.xlu0 %v7304, 32
        %v7322 = vpop.permute.xlu0 %7321
        %7332 = vst.msk [vmem:[#allocation5] sm:$0xff] %vm3288, %v7306
        %7333 = vst.msk [vmem:[#allocation5 + $0x10] sm:$0xff] %vm3288, %v7308
        %7334 = vst.msk [vmem:[#allocation5 + $0x20] sm:$0xff] %vm3288, %v7310
        %7335 = vst.msk [vmem:[#allocation5 + $0x30] sm:$0xff] %vm3288, %v7312
        %7336 = vst.msk [vmem:[#allocation5 + $0x40] sm:$0xff] %vm3288, %v7314
        %7337 = vst.msk [vmem:[#allocation5 + $0x50] sm:$0xff] %vm3288, %v7316
        %7338 = vst.msk [vmem:[#allocation5 + $0x60] sm:$0xff] %vm3288, %v7318
        %7339 = vst.msk [vmem:[#allocation5 + $0x70] sm:$0xff] %vm3288, %v7320
        %7340 = vst.msk [vmem:[#allocation5 + $0x80] sm:$0xff] %vm3288, %v7322
        %v7341 = vld [vmem:[#allocation4] sm:$0xe]
        %v7342 = vld [vmem:[#allocation4 + $0x4] sm:$0xf]
        %v7343 = vld [vmem:[#allocation4 + $0x8] sm:$0xf]
        %v7344 = vld [vmem:[#allocation4 + $0xc] sm:$0xf]
        %v7345 = vld [vmem:[#allocation4 + $0x10] sm:$0xf]
        %v7346 = vld [vmem:[#allocation4 + $0x14] sm:$0xf]
        %v7347 = vld [vmem:[#allocation4 + $0x18] sm:$0xf]
        %v7348 = vld [vmem:[#allocation4 + $0x1c] sm:$0xf]
        %v7349 = vld [vmem:[#allocation4 + $0x20] sm:$0xf]
        %v7350 = vld [vmem:[#allocation4 + $0x24] sm:$0xf]
        %v7351 = vld [vmem:[#allocation4 + $0x28] sm:$0xf]
        %v7352 = vld [vmem:[#allocation4 + $0x2c] sm:$0xf]
        %v7353 = vld [vmem:[#allocation4 + $0x30] sm:$0xf]
        %v7354 = vld [vmem:[#allocation4 + $0x34] sm:$0xf]
        %v7355 = vld [vmem:[#allocation4 + $0x38] sm:$0xf]
        %v7356 = vld [vmem:[#allocation4 + $0x3c] sm:$0xf]
        %v7357 = vld [vmem:[#allocation4 + $0x40] sm:$0xf]
        %v7358 = vld [vmem:[#allocation4 + $0x44] sm:$0xf]
        %v7359 = vld [vmem:[#allocation4 + $0x48] sm:$0x1]
        %v7379 = vunpack.c.l.b16 %v7341
        %v7380 = vunpack.c.l.b16 %v7342
        %v7381 = vunpack.c.l.b16 %v7343
        %v7382 = vunpack.c.l.b16 %v7344
        %v7383 = vunpack.c.l.b16 %v7345
        %v7384 = vunpack.c.l.b16 %v7346
        %v7385 = vunpack.c.l.b16 %v7347
        %v7386 = vunpack.c.l.b16 %v7348
        %v7387 = vunpack.c.l.b16 %v7349
        %v7388 = vunpack.c.l.b16 %v7350
        %v7389 = vunpack.c.l.b16 %v7351
        %v7390 = vunpack.c.l.b16 %v7352
        %v7391 = vunpack.c.l.b16 %v7353
        %v7392 = vunpack.c.l.b16 %v7354
        %v7393 = vunpack.c.l.b16 %v7355
        %v7394 = vunpack.c.l.b16 %v7356
        %v7395 = vunpack.c.l.b16 %v7357
        %v7396 = vunpack.c.l.b16 %v7358
        %v7397 = vunpack.c.l.b16 %v7359
        %v7398 = vpack.c.b16 %v7380, %v7379
        %v7399 = vpack.c.b16 %v7382, %v7381
        %v7400 = vpack.c.b16 %v7384, %v7383
        %v7401 = vpack.c.b16 %v7386, %v7385
        %v7402 = vpack.c.b16 %v7388, %v7387
        %v7403 = vpack.c.b16 %v7390, %v7389
        %v7404 = vpack.c.b16 %v7392, %v7391
        %v7405 = vpack.c.b16 %v7394, %v7393
        %v7406 = vpack.c.b16 %v7396, %v7395
        %v7407 = vpack.c.b16 %v7397, %v7397
        %v7408 = vrot.slane %v7398, 1
        %v7409 = vrot.slane %v7399, 1
        %v7410 = vsel %vm3493, %v7408, %v7409
        %v7411 = vrot.slane %v7400, 1
        %v7412 = vsel %vm3493, %v7409, %v7411
        %v7413 = vrot.slane %v7401, 1
        %v7414 = vsel %vm3493, %v7411, %v7413
        %v7415 = vrot.slane %v7402, 1
        %v7416 = vsel %vm3493, %v7413, %v7415
        %v7417 = vrot.slane %v7403, 1
        %v7418 = vsel %vm3493, %v7415, %v7417
        %v7419 = vrot.slane %v7404, 1
        %v7420 = vsel %vm3493, %v7417, %v7419
        %v7421 = vrot.slane %v7405, 1
        %v7422 = vsel %vm3493, %v7419, %v7421
        %v7423 = vrot.slane %v7406, 1
        %v7424 = vsel %vm3493, %v7421, %v7423
        %v7425 = vrot.slane %v7407, 1
        %v7426 = vsel %vm3493, %v7423, %v7425
        %7427 = vrot.lane.b32.xlu0 %v7410, 64
        %v7428 = vpop.permute.xlu0 %7427
        %7429 = vrot.lane.b32.xlu0 %v7412, 64
        %v7430 = vpop.permute.xlu0 %7429
        %7431 = vrot.lane.b32.xlu0 %v7414, 64
        %v7432 = vpop.permute.xlu0 %7431
        %7433 = vrot.lane.b32.xlu0 %v7416, 64
        %v7434 = vpop.permute.xlu0 %7433
        %7435 = vrot.lane.b32.xlu0 %v7418, 64
        %v7436 = vpop.permute.xlu0 %7435
        %7437 = vrot.lane.b32.xlu0 %v7420, 64
        %v7438 = vpop.permute.xlu0 %7437
        %7439 = vrot.lane.b32.xlu0 %v7422, 64
        %v7440 = vpop.permute.xlu0 %7439
        %7441 = vrot.lane.b32.xlu0 %v7424, 64
        %v7442 = vpop.permute.xlu0 %7441
        %7443 = vrot.lane.b32.xlu0 %v7426, 64
        %v7444 = vpop.permute.xlu0 %7443
        %7454 = vst.msk [vmem:[#allocation5] sm:$0xff] %vm3620, %v7428
        %7455 = vst.msk [vmem:[#allocation5 + $0x10] sm:$0xff] %vm3620, %v7430
        %7456 = vst.msk [vmem:[#allocation5 + $0x20] sm:$0xff] %vm3620, %v7432
        %7457 = vst.msk [vmem:[#allocation5 + $0x30] sm:$0xff] %vm3620, %v7434
        %7458 = vst.msk [vmem:[#allocation5 + $0x40] sm:$0xff] %vm3620, %v7436
        %7459 = vst.msk [vmem:[#allocation5 + $0x50] sm:$0xff] %vm3620, %v7438
        %7460 = vst.msk [vmem:[#allocation5 + $0x60] sm:$0xff] %vm3620, %v7440
        %7461 = vst.msk [vmem:[#allocation5 + $0x70] sm:$0xff] %vm3620, %v7442
        %7462 = vst.msk [vmem:[#allocation5 + $0x80] sm:$0xff] %vm3620, %v7444
        %v7463 = vld [vmem:[#allocation4] sm:$0xe]
        %v7464 = vld [vmem:[#allocation4 + $0x4] sm:$0xf]
        %v7465 = vld [vmem:[#allocation4 + $0x8] sm:$0xf]
        %v7466 = vld [vmem:[#allocation4 + $0xc] sm:$0xf]
        %v7467 = vld [vmem:[#allocation4 + $0x10] sm:$0xf]
        %v7468 = vld [vmem:[#allocation4 + $0x14] sm:$0xf]
        %v7469 = vld [vmem:[#allocation4 + $0x18] sm:$0xf]
        %v7470 = vld [vmem:[#allocation4 + $0x1c] sm:$0xf]
        %v7471 = vld [vmem:[#allocation4 + $0x20] sm:$0xf]
        %v7472 = vld [vmem:[#allocation4 + $0x24] sm:$0xf]
        %v7473 = vld [vmem:[#allocation4 + $0x28] sm:$0xf]
        %v7474 = vld [vmem:[#allocation4 + $0x2c] sm:$0xf]
        %v7475 = vld [vmem:[#allocation4 + $0x30] sm:$0xf]
        %v7476 = vld [vmem:[#allocation4 + $0x34] sm:$0xf]
        %v7477 = vld [vmem:[#allocation4 + $0x38] sm:$0xf]
        %v7478 = vld [vmem:[#allocation4 + $0x3c] sm:$0xf]
        %v7479 = vld [vmem:[#allocation4 + $0x40] sm:$0xf]
        %v7480 = vld [vmem:[#allocation4 + $0x44] sm:$0xf]
        %v7481 = vld [vmem:[#allocation4 + $0x48] sm:$0x3]
        %v7501 = vunpack.c.l.b16 %v7463
        %v7502 = vunpack.c.l.b16 %v7464
        %v7503 = vunpack.c.l.b16 %v7465
        %v7504 = vunpack.c.l.b16 %v7466
        %v7505 = vunpack.c.l.b16 %v7467
        %v7506 = vunpack.c.l.b16 %v7468
        %v7507 = vunpack.c.l.b16 %v7469
        %v7508 = vunpack.c.l.b16 %v7470
        %v7509 = vunpack.c.l.b16 %v7471
        %v7510 = vunpack.c.l.b16 %v7472
        %v7511 = vunpack.c.l.b16 %v7473
        %v7512 = vunpack.c.l.b16 %v7474
        %v7513 = vunpack.c.l.b16 %v7475
        %v7514 = vunpack.c.l.b16 %v7476
        %v7515 = vunpack.c.l.b16 %v7477
        %v7516 = vunpack.c.l.b16 %v7478
        %v7517 = vunpack.c.l.b16 %v7479
        %v7518 = vunpack.c.l.b16 %v7480
        %v7519 = vunpack.c.l.b16 %v7481
        %v7520 = vpack.c.b16 %v7502, %v7501
        %v7521 = vpack.c.b16 %v7504, %v7503
        %v7522 = vpack.c.b16 %v7506, %v7505
        %v7523 = vpack.c.b16 %v7508, %v7507
        %v7524 = vpack.c.b16 %v7510, %v7509
        %v7525 = vpack.c.b16 %v7512, %v7511
        %v7526 = vpack.c.b16 %v7514, %v7513
        %v7527 = vpack.c.b16 %v7516, %v7515
        %v7528 = vpack.c.b16 %v7518, %v7517
        %v7529 = vpack.c.b16 %v7519, %v7519
        %v7531 = vshrl.u32 %v7520, 16
        %v7533 = vrot.slane %v7531, 1
        %v7534 = vshll.u32 %v7520, 16
        %v7536 = vrot.slane %v7534, 2
        %v7537 = vor.u32 %v7533, %v7536
        %v7539 = vshrl.u32 %v7521, 16
        %v7541 = vrot.slane %v7539, 1
        %v7542 = vshll.u32 %v7521, 16
        %v7544 = vrot.slane %v7542, 2
        %v7545 = vor.u32 %v7541, %v7544
        %v7546 = vsel %vm3825, %v7537, %v7545
        %v7548 = vshrl.u32 %v7522, 16
        %v7550 = vrot.slane %v7548, 1
        %v7551 = vshll.u32 %v7522, 16
        %v7553 = vrot.slane %v7551, 2
        %v7554 = vor.u32 %v7550, %v7553
        %v7555 = vsel %vm3825, %v7545, %v7554
        %v7557 = vshrl.u32 %v7523, 16
        %v7559 = vrot.slane %v7557, 1
        %v7560 = vshll.u32 %v7523, 16
        %v7562 = vrot.slane %v7560, 2
        %v7563 = vor.u32 %v7559, %v7562
        %v7564 = vsel %vm3825, %v7554, %v7563
        %v7566 = vshrl.u32 %v7524, 16
        %v7568 = vrot.slane %v7566, 1
        %v7569 = vshll.u32 %v7524, 16
        %v7571 = vrot.slane %v7569, 2
        %v7572 = vor.u32 %v7568, %v7571
        %v7573 = vsel %vm3825, %v7563, %v7572
        %v7575 = vshrl.u32 %v7525, 16
        %v7577 = vrot.slane %v7575, 1
        %v7578 = vshll.u32 %v7525, 16
        %v7580 = vrot.slane %v7578, 2
        %v7581 = vor.u32 %v7577, %v7580
        %v7582 = vsel %vm3825, %v7572, %v7581
        %v7584 = vshrl.u32 %v7526, 16
        %v7586 = vrot.slane %v7584, 1
        %v7587 = vshll.u32 %v7526, 16
        %v7589 = vrot.slane %v7587, 2
        %v7590 = vor.u32 %v7586, %v7589
        %v7591 = vsel %vm3825, %v7581, %v7590
        %v7593 = vshrl.u32 %v7527, 16
        %v7595 = vrot.slane %v7593, 1
        %v7596 = vshll.u32 %v7527, 16
        %v7598 = vrot.slane %v7596, 2
        %v7599 = vor.u32 %v7595, %v7598
        %v7600 = vsel %vm3825, %v7590, %v7599
        %v7602 = vshrl.u32 %v7528, 16
        %v7604 = vrot.slane %v7602, 1
        %v7605 = vshll.u32 %v7528, 16
        %v7607 = vrot.slane %v7605, 2
        %v7608 = vor.u32 %v7604, %v7607
        %v7609 = vsel %vm3825, %v7599, %v7608
        %v7611 = vshrl.u32 %v7529, 16
        %v7613 = vrot.slane %v7611, 1
        %v7614 = vshll.u32 %v7529, 16
        %v7616 = vrot.slane %v7614, 2
        %v7617 = vor.u32 %v7613, %v7616
        %v7618 = vsel %vm3825, %v7608, %v7617
        %7619 = vrot.lane.b32.xlu0 %v7546, 96
        %v7620 = vpop.permute.xlu0 %7619
        %7621 = vrot.lane.b32.xlu0 %v7555, 96
        %v7622 = vpop.permute.xlu0 %7621
        %7623 = vrot.lane.b32.xlu0 %v7564, 96
        %v7624 = vpop.permute.xlu0 %7623
        %7625 = vrot.lane.b32.xlu0 %v7573, 96
        %v7626 = vpop.permute.xlu0 %7625
        %7627 = vrot.lane.b32.xlu0 %v7582, 96
        %v7628 = vpop.permute.xlu0 %7627
        %7629 = vrot.lane.b32.xlu0 %v7591, 96
        %v7630 = vpop.permute.xlu0 %7629
        %7631 = vrot.lane.b32.xlu0 %v7600, 96
        %v7632 = vpop.permute.xlu0 %7631
        %7633 = vrot.lane.b32.xlu0 %v7609, 96
        %v7634 = vpop.permute.xlu0 %7633
        %7635 = vrot.lane.b32.xlu0 %v7618, 96
        %v7636 = vpop.permute.xlu0 %7635
        %7646 = vst.msk [vmem:[#allocation5] sm:$0xff] %vm4134, %v7620
        %7647 = vst.msk [vmem:[#allocation5 + $0x10] sm:$0xff] %vm4134, %v7622
        %7648 = vst.msk [vmem:[#allocation5 + $0x20] sm:$0xff] %vm4134, %v7624
        %7649 = vst.msk [vmem:[#allocation5 + $0x30] sm:$0xff] %vm4134, %v7626
        %7650 = vst.msk [vmem:[#allocation5 + $0x40] sm:$0xff] %vm4134, %v7628
        %7651 = vst.msk [vmem:[#allocation5 + $0x50] sm:$0xff] %vm4134, %v7630
        %7652 = vst.msk [vmem:[#allocation5 + $0x60] sm:$0xff] %vm4134, %v7632
        %7653 = vst.msk [vmem:[#allocation5 + $0x70] sm:$0xff] %vm4134, %v7634
        %7654 = vst.msk [vmem:[#allocation5 + $0x80] sm:$0xff] %vm4134, %v7636
        %v7655 = vld [vmem:[#allocation4] sm:$0xc]
        %v7656 = vld [vmem:[#allocation4 + $0x4] sm:$0xf]
        %v7657 = vld [vmem:[#allocation4 + $0x8] sm:$0xf]
        %v7658 = vld [vmem:[#allocation4 + $0xc] sm:$0xf]
        %v7659 = vld [vmem:[#allocation4 + $0x10] sm:$0xf]
        %v7660 = vld [vmem:[#allocation4 + $0x14] sm:$0xf]
        %v7661 = vld [vmem:[#allocation4 + $0x18] sm:$0xf]
        %v7662 = vld [vmem:[#allocation4 + $0x1c] sm:$0xf]
        %v7663 = vld [vmem:[#allocation4 + $0x20] sm:$0xf]
        %v7664 = vld [vmem:[#allocation4 + $0x24] sm:$0xf]
        %v7665 = vld [vmem:[#allocation4 + $0x28] sm:$0xf]
        %v7666 = vld [vmem:[#allocation4 + $0x2c] sm:$0xf]
        %v7667 = vld [vmem:[#allocation4 + $0x30] sm:$0xf]
        %v7668 = vld [vmem:[#allocation4 + $0x34] sm:$0xf]
        %v7669 = vld [vmem:[#allocation4 + $0x38] sm:$0xf]
        %v7670 = vld [vmem:[#allocation4 + $0x3c] sm:$0xf]
        %v7671 = vld [vmem:[#allocation4 + $0x40] sm:$0xf]
        %v7672 = vld [vmem:[#allocation4 + $0x44] sm:$0xf]
        %v7673 = vld [vmem:[#allocation4 + $0x48] sm:$0x3]
        %v7693 = vunpack.c.l.b16 %v7655
        %v7694 = vunpack.c.l.b16 %v7656
        %v7695 = vunpack.c.l.b16 %v7657
        %v7696 = vunpack.c.l.b16 %v7658
        %v7697 = vunpack.c.l.b16 %v7659
        %v7698 = vunpack.c.l.b16 %v7660
        %v7699 = vunpack.c.l.b16 %v7661
        %v7700 = vunpack.c.l.b16 %v7662
        %v7701 = vunpack.c.l.b16 %v7663
        %v7702 = vunpack.c.l.b16 %v7664
        %v7703 = vunpack.c.l.b16 %v7665
        %v7704 = vunpack.c.l.b16 %v7666
        %v7705 = vunpack.c.l.b16 %v7667
        %v7706 = vunpack.c.l.b16 %v7668
        %v7707 = vunpack.c.l.b16 %v7669
        %v7708 = vunpack.c.l.b16 %v7670
        %v7709 = vunpack.c.l.b16 %v7671
        %v7710 = vunpack.c.l.b16 %v7672
        %v7711 = vunpack.c.l.b16 %v7673
        %v7712 = vpack.c.b16 %v7694, %v7693
        %v7713 = vpack.c.b16 %v7696, %v7695
        %v7714 = vpack.c.b16 %v7698, %v7697
        %v7715 = vpack.c.b16 %v7700, %v7699
        %v7716 = vpack.c.b16 %v7702, %v7701
        %v7717 = vpack.c.b16 %v7704, %v7703
        %v7718 = vpack.c.b16 %v7706, %v7705
        %v7719 = vpack.c.b16 %v7708, %v7707
        %v7720 = vpack.c.b16 %v7710, %v7709
        %v7721 = vpack.c.b16 %v7711, %v7711
        %v7722 = vrot.slane %v7712, 2
        %v7723 = vrot.slane %v7713, 2
        %v7724 = vsel %vm4339, %v7722, %v7723
        %v7725 = vrot.slane %v7714, 2
        %v7726 = vsel %vm4339, %v7723, %v7725
        %v7727 = vrot.slane %v7715, 2
        %v7728 = vsel %vm4339, %v7725, %v7727
        %v7729 = vrot.slane %v7716, 2
        %v7730 = vsel %vm4339, %v7727, %v7729
        %v7731 = vrot.slane %v7717, 2
        %v7732 = vsel %vm4339, %v7729, %v7731
        %v7733 = vrot.slane %v7718, 2
        %v7734 = vsel %vm4339, %v7731, %v7733
        %v7735 = vrot.slane %v7719, 2
        %v7736 = vsel %vm4339, %v7733, %v7735
        %v7737 = vrot.slane %v7720, 2
        %v7738 = vsel %vm4339, %v7735, %v7737
        %v7739 = vrot.slane %v7721, 2
        %v7740 = vsel %vm4339, %v7737, %v7739
        %7750 = vst.msk [vmem:[#allocation5 + $0x8] sm:$0xff] %vm762, %v7724
        %7751 = vst.msk [vmem:[#allocation5 + $0x18] sm:$0xff] %vm762, %v7726
        %7752 = vst.msk [vmem:[#allocation5 + $0x28] sm:$0xff] %vm762, %v7728
        %7753 = vst.msk [vmem:[#allocation5 + $0x38] sm:$0xff] %vm762, %v7730
        %7754 = vst.msk [vmem:[#allocation5 + $0x48] sm:$0xff] %vm762, %v7732
        %7755 = vst.msk [vmem:[#allocation5 + $0x58] sm:$0xff] %vm762, %v7734
        %7756 = vst.msk [vmem:[#allocation5 + $0x68] sm:$0xff] %vm762, %v7736
        %7757 = vst.msk [vmem:[#allocation5 + $0x78] sm:$0xff] %vm762, %v7738
        %7758 = vst.msk [vmem:[#allocation5 + $0x88] sm:$0xff] %vm762, %v7740
        %v7759 = vld [vmem:[#allocation5] sm:$0xff]
        %v7760 = vld [vmem:[#allocation5 + $0x8] sm:$0xff]
        %v7761 = vld [vmem:[#allocation5 + $0x10] sm:$0xff]
        %v7762 = vld [vmem:[#allocation5 + $0x18] sm:$0xff]
        %v7763 = vld [vmem:[#allocation5 + $0x20] sm:$0xff]
        %v7764 = vld [vmem:[#allocation5 + $0x28] sm:$0xff]
        %v7765 = vld [vmem:[#allocation5 + $0x30] sm:$0xff]
        %v7766 = vld [vmem:[#allocation5 + $0x38] sm:$0xff]
        %v7767 = vld [vmem:[#allocation5 + $0x40] sm:$0xff]
        %v7768 = vld [vmem:[#allocation5 + $0x48] sm:$0xff]
        %v7769 = vld [vmem:[#allocation5 + $0x50] sm:$0xff]
        %v7770 = vld [vmem:[#allocation5 + $0x58] sm:$0xff]
        %v7771 = vld [vmem:[%s5] sm:$0xf]
        %v7772 = vld [vmem:[%s5 + $0x4] sm:$0xf]
        %v7773 = vld [vmem:[%s5 + $0x8] sm:$0xf]
        %v7774 = vld [vmem:[%s5 + $0xc] sm:$0xf]
        %v7775 = vld [vmem:[%s5 + $0x10] sm:$0xf]
        %v7776 = vld [vmem:[%s5 + $0x14] sm:$0xf]
        %v7777 = vld [vmem:[%s5 + $0x18] sm:$0xf]
        %v7778 = vld [vmem:[%s5 + $0x1c] sm:$0xf]
        %v7779 = vld [vmem:[%s5 + $0x20] sm:$0xf]
        %v7780 = vld [vmem:[%s5 + $0x24] sm:$0xf]
        %v7781 = vld [vmem:[%s5 + $0x28] sm:$0xf]
        %v7782 = vld [vmem:[%s5 + $0x2c] sm:$0xf]
        %v7783 = vld [vmem:[%s5 + $0x30] sm:$0xf]
        %v7784 = vld [vmem:[%s5 + $0x34] sm:$0xf]
        %v7785 = vld [vmem:[%s5 + $0x38] sm:$0xf]
        %v7786 = vld [vmem:[%s5 + $0x3c] sm:$0xf]
        %v7787 = vld [vmem:[%s5 + $0x40] sm:$0xf]
        %v7788 = vld [vmem:[%s5 + $0x44] sm:$0xf]
        %v7789 = vld [vmem:[%s5 + $0x48] sm:$0xf]
        %v7790 = vld [vmem:[%s5 + $0x4c] sm:$0xf]
        %v7791 = vld [vmem:[#allocation5] sm:$0xc0]
        %v7792 = vld [vmem:[#allocation5 + $0x8] sm:$0xc0]
        %v7793 = vld [vmem:[#allocation5 + $0x60] sm:$0x3f]
        %v7794 = vld [vmem:[#allocation5 + $0x68] sm:$0x3f]
        %s7795 = scalar_lea.vmem %s5, 80
        %v7796 = vld [vmem:[%s7795] sm:$0xf]
        %v7797 = vld [vmem:[%s7795 + $0x4] sm:$0xf]
        %v7798 = vld [vmem:[%s7795 + $0x8] sm:$0xf]
        %v7799 = vld [vmem:[%s7795 + $0xc] sm:$0xf]
        %v7800 = vld [vmem:[%s7795 + $0x10] sm:$0xf]
        %v7801 = vld [vmem:[%s7795 + $0x14] sm:$0xf]
        %v7802 = vld [vmem:[%s7795 + $0x18] sm:$0xf]
        %v7803 = vld [vmem:[%s7795 + $0x1c] sm:$0xf]
        %v7804 = vld [vmem:[%s7795 + $0x20] sm:$0xf]
        %v7805 = vld [vmem:[%s7795 + $0x24] sm:$0xf]
        %v7806 = vld [vmem:[%s7795 + $0x28] sm:$0xf]
        %v7807 = vld [vmem:[%s7795 + $0x2c] sm:$0xf]
        %v7808 = vld [vmem:[%s7795 + $0x30] sm:$0xf]
        %v7809 = vld [vmem:[%s7795 + $0x34] sm:$0xf]
        %v7810 = vld [vmem:[%s7795 + $0x38] sm:$0xf]
        %v7811 = vld [vmem:[%s7795 + $0x3c] sm:$0xf]
        %v7812 = vld [vmem:[%s7795 + $0x40] sm:$0xf]
        %v7813 = vld [vmem:[%s7795 + $0x44] sm:$0xf]
        %v7814 = vld [vmem:[%s7795 + $0x48] sm:$0xf]
        %v7815 = vld [vmem:[%s7795 + $0x4c] sm:$0xf]
        %v7830 = vrot.slane %v7791, 6
        %v7831 = vrot.slane %v7761, 6
        %v7832 = vsel %vm5964, %v7830, %v7831
        %v7833 = vrot.slane %v7792, 6
        %v7834 = vrot.slane %v7762, 6
        %v7835 = vsel %vm5964, %v7833, %v7834
        %v7836 = vrot.slane %v7763, 6
        %v7837 = vsel %vm5964, %v7831, %v7836
        %v7838 = vrot.slane %v7764, 6
        %v7839 = vsel %vm5964, %v7834, %v7838
        %v7840 = vrot.slane %v7765, 6
        %v7841 = vsel %vm5964, %v7836, %v7840
        %v7842 = vrot.slane %v7766, 6
        %v7843 = vsel %vm5964, %v7838, %v7842
        %v7844 = vrot.slane %v7767, 6
        %v7845 = vsel %vm5964, %v7840, %v7844
        %v7846 = vrot.slane %v7768, 6
        %v7847 = vsel %vm5964, %v7842, %v7846
        %v7848 = vrot.slane %v7769, 6
        %v7849 = vsel %vm5964, %v7844, %v7848
        %v7850 = vrot.slane %v7770, 6
        %v7851 = vsel %vm5964, %v7846, %v7850
        %v7852 = vrot.slane %v7793, 6
        %v7853 = vsel %vm5964, %v7848, %v7852
        %v7854 = vrot.slane %v7794, 6
        %v7855 = vsel %vm5964, %v7850, %v7854
        %v7882 = vunpack.c.l.b16 %v7796
        %v7883 = vunpack.c.l.b16 %v7797
        %v7884 = vunpack.c.l.b16 %v7798
        %v7885 = vunpack.c.l.b16 %v7799
        %v7886 = vunpack.c.l.b16 %v7800
        %v7887 = vunpack.c.l.b16 %v7801
        %v7888 = vunpack.c.l.b16 %v7802
        %v7889 = vunpack.c.l.b16 %v7803
        %v7890 = vunpack.c.l.b16 %v7804
        %v7891 = vunpack.c.l.b16 %v7805
        %v7892 = vunpack.c.l.b16 %v7806
        %v7893 = vunpack.c.l.b16 %v7807
        %v7894 = vunpack.c.l.b16 %v7808
        %v7895 = vunpack.c.l.b16 %v7809
        %v7896 = vunpack.c.l.b16 %v7810
        %v7897 = vunpack.c.l.b16 %v7811
        %v7898 = vunpack.c.l.b16 %v7812
        %v7899 = vunpack.c.l.b16 %v7813
        %v7900 = vunpack.c.l.b16 %v7814
        %v7901 = vunpack.c.l.b16 %v7815
        %v7902 = vpack.c.b16 %v7883, %v7882
        %v7903 = vpack.c.b16 %v7885, %v7884
        %v7904 = vpack.c.b16 %v7887, %v7886
        %v7905 = vpack.c.b16 %v7889, %v7888
        %v7906 = vpack.c.b16 %v7891, %v7890
        %v7907 = vpack.c.b16 %v7893, %v7892
        %v7908 = vpack.c.b16 %v7895, %v7894
        %v7909 = vpack.c.b16 %v7897, %v7896
        %v7910 = vpack.c.b16 %v7899, %v7898
        %v7911 = vpack.c.b16 %v7901, %v7900
        %v7923 = vsel %vm762, %v7835, 0
        %v7926 = vsel %vm762, %v7839, 0
        %v7929 = vsel %vm762, %v7843, 0
        %v7932 = vsel %vm762, %v7847, 0
        %v7935 = vsel %vm762, %v7851, 0
        %v7938 = vsel %vm762, %v7855, 0
        %7940 = vmatprep.subr.bf16.mxu0 0
        %7941 = vmatpush1.bf16.msra.mxu0 %v7902
        %7942 = vmatprep.subr.bf16.mxu0 0
        %7943 = vmatpush1.bf16.msra.mxu0 %v7903
        %7944 = vmatprep.subr.bf16.mxu0 0
        %7945 = vmatpush1.bf16.msra.mxu0 %v7904
        %7946 = vmatprep.subr.bf16.mxu0 0
        %7947 = vmatpush1.bf16.msra.mxu0 %v7905
        %7948 = vmatprep.subr.bf16.mxu0 0
        %7949 = vmatpush1.bf16.msra.mxu0 %v7906
        %7950 = vmatprep.subr.bf16.mxu0 0
        %7951 = vmatpush1.bf16.msra.mxu0 %v7907
        %7952 = vmatprep.subr.bf16.mxu0 0
        %7953 = vmatpush1.bf16.msra.mxu0 %v7908
        %7954 = vmatprep.subr.bf16.mxu0 0
        %7955 = vmatpush1.bf16.msra.mxu0 %v7909
        %7956 = vmatprep.subr.bf16.mxu0 0
        %7957 = vmatpush1.bf16.msra.mxu0 %v7910
        %7958 = vmatprep.subr.bf16.mxu0 0
        %7959 = vmatpush1.bf16.msra.mxu0 %v7911
        %7960 = vmatprep.subr.bf16.mxu0 0
        %7961 = vmatpush1.bf16.msra.mxu0 0
        %7962 = vmatprep.subr.bf16.mxu0 0
        %7963 = vmatpush1.bf16.msra.mxu0 0
        %7964 = vmatprep.subr.bf16.mxu0 0
        %7965 = vmatpush1.bf16.msra.mxu0 0
        %7966 = vmatprep.subr.bf16.mxu0 0
        %7967 = vmatpush1.bf16.msra.mxu0 0
        %7968 = vmatprep.subr.bf16.mxu0 0
        %7969 = vmatpush1.bf16.msra.mxu0 0
        %7970 = vmatprep.subr.bf16.mxu0 0
        %7971 = vmatpush1.bf16.msra.mxu0 0
        %7972 = vmatprep.mubr.bf16.mxu0 %v7923
        %7973 = vmatmul.mubr.bf16.gmra.mrb[0].mxu0 %v7832
        %v7974 = vpop.f32.mrb[0].mxu0
        %v7975 = vadd.f32 0.0, %v7974
        %v7976 = vpop.f32.mrb[0].mxu0
        %v7977 = vpop.f32.mrb[0].mxu0
        %v7978 = vadd.f32 0.0, %v7977
        %v7979 = vpop.f32.mrb[0].mxu0
        %7980 = vmatprep.mubr.bf16.mxu0 %v7926
        %7981 = vmatmul.mubr.bf16.gmra.mrb[0].mxu0 %v7837
        %v7982 = vpop.f32.mrb[0].mxu0
        %v7983 = vadd.f32 0.0, %v7982
        %v7984 = vpop.f32.mrb[0].mxu0
        %v7985 = vpop.f32.mrb[0].mxu0
        %v7986 = vadd.f32 0.0, %v7985
        %v7987 = vpop.f32.mrb[0].mxu0
        %7988 = vmatprep.mubr.bf16.mxu0 %v7929
        %7989 = vmatmul.mubr.bf16.gmra.mrb[0].mxu0 %v7841
        %v7990 = vpop.f32.mrb[0].mxu0
        %v7991 = vadd.f32 0.0, %v7990
        %v7992 = vpop.f32.mrb[0].mxu0
        %v7993 = vpop.f32.mrb[0].mxu0
        %v7994 = vadd.f32 0.0, %v7993
        %v7995 = vpop.f32.mrb[0].mxu0
        %7996 = vmatprep.mubr.bf16.mxu0 %v7932
        %7997 = vmatmul.mubr.bf16.gmra.mrb[0].mxu0 %v7845
        %v7998 = vpop.f32.mrb[0].mxu0
        %v7999 = vadd.f32 0.0, %v7998
        %v8000 = vpop.f32.mrb[0].mxu0
        %v8001 = vpop.f32.mrb[0].mxu0
        %v8002 = vadd.f32 0.0, %v8001
        %v8003 = vpop.f32.mrb[0].mxu0
        %8004 = vmatprep.mubr.bf16.mxu0 %v7935
        %8005 = vmatmul.mubr.bf16.gmra.mrb[0].mxu0 %v7849
        %v8006 = vpop.f32.mrb[0].mxu0
        %v8007 = vadd.f32 0.0, %v8006
        %v8008 = vpop.f32.mrb[0].mxu0
        %v8009 = vpop.f32.mrb[0].mxu0
        %v8010 = vadd.f32 0.0, %v8009
        %v8011 = vpop.f32.mrb[0].mxu0
        %8012 = vmatprep.mubr.bf16.mxu0 %v7938
        %8013 = vmatmul.mubr.bf16.gmra.mrb[0].mxu0 %v7853
        %v8014 = vpop.f32.mrb[0].mxu0
        %v8015 = vadd.f32 0.0, %v8014
        %v8016 = vpop.f32.mrb[0].mxu0
        %v8017 = vpop.f32.mrb[0].mxu0
        %v8018 = vadd.f32 0.0, %v8017
        %v8019 = vpop.f32.mrb[0].mxu0
        %8020 = vdwg.mxu0
        %v8041 = vunpack.c.l.b16 %v7771
        %v8042 = vunpack.c.l.b16 %v7772
        %v8043 = vunpack.c.l.b16 %v7773
        %v8044 = vunpack.c.l.b16 %v7774
        %v8045 = vunpack.c.l.b16 %v7775
        %v8046 = vunpack.c.l.b16 %v7776
        %v8047 = vunpack.c.l.b16 %v7777
        %v8048 = vunpack.c.l.b16 %v7778
        %v8049 = vunpack.c.l.b16 %v7779
        %v8050 = vunpack.c.l.b16 %v7780
        %v8051 = vunpack.c.l.b16 %v7781
        %v8052 = vunpack.c.l.b16 %v7782
        %v8053 = vunpack.c.l.b16 %v7783
        %v8054 = vunpack.c.l.b16 %v7784
        %v8055 = vunpack.c.l.b16 %v7785
        %v8056 = vunpack.c.l.b16 %v7786
        %v8057 = vunpack.c.l.b16 %v7787
        %v8058 = vunpack.c.l.b16 %v7788
        %v8059 = vunpack.c.l.b16 %v7789
        %v8060 = vunpack.c.l.b16 %v7790
        %v8061 = vpack.c.b16 %v8042, %v8041
        %v8062 = vpack.c.b16 %v8044, %v8043
        %v8063 = vpack.c.b16 %v8046, %v8045
        %v8064 = vpack.c.b16 %v8048, %v8047
        %v8065 = vpack.c.b16 %v8050, %v8049
        %v8066 = vpack.c.b16 %v8052, %v8051
        %v8067 = vpack.c.b16 %v8054, %v8053
        %v8068 = vpack.c.b16 %v8056, %v8055
        %v8069 = vpack.c.b16 %v8058, %v8057
        %v8070 = vpack.c.b16 %v8060, %v8059
        %v8082 = vsel %vm762, %v7760, 0
        %v8085 = vsel %vm762, %v7762, 0
        %v8088 = vsel %vm762, %v7764, 0
        %v8091 = vsel %vm762, %v7766, 0
        %v8094 = vsel %vm762, %v7768, 0
        %v8097 = vsel %vm762, %v7770, 0
        %8099 = vmatprep.subr.bf16.mxu0 0
        %8100 = vmatpush1.bf16.msra.mxu0 %v8061
        %8101 = vmatprep.subr.bf16.mxu0 0
        %8102 = vmatpush1.bf16.msra.mxu0 %v8062
        %8103 = vmatprep.subr.bf16.mxu0 0
        %8104 = vmatpush1.bf16.msra.mxu0 %v8063
        %8105 = vmatprep.subr.bf16.mxu0 0
        %8106 = vmatpush1.bf16.msra.mxu0 %v8064
        %8107 = vmatprep.subr.bf16.mxu0 0
        %8108 = vmatpush1.bf16.msra.mxu0 %v8065
        %8109 = vmatprep.subr.bf16.mxu0 0
        %8110 = vmatpush1.bf16.msra.mxu0 %v8066
        %8111 = vmatprep.subr.bf16.mxu0 0
        %8112 = vmatpush1.bf16.msra.mxu0 %v8067
        %8113 = vmatprep.subr.bf16.mxu0 0
        %8114 = vmatpush1.bf16.msra.mxu0 %v8068
        %8115 = vmatprep.subr.bf16.mxu0 0
        %8116 = vmatpush1.bf16.msra.mxu0 %v8069
        %8117 = vmatprep.subr.bf16.mxu0 0
        %8118 = vmatpush1.bf16.msra.mxu0 %v8070
        %8119 = vmatprep.subr.bf16.mxu0 0
        %8120 = vmatpush1.bf16.msra.mxu0 0
        %8121 = vmatprep.subr.bf16.mxu0 0
        %8122 = vmatpush1.bf16.msra.mxu0 0
        %8123 = vmatprep.subr.bf16.mxu0 0
        %8124 = vmatpush1.bf16.msra.mxu0 0
        %8125 = vmatprep.subr.bf16.mxu0 0
        %8126 = vmatpush1.bf16.msra.mxu0 0
        %8127 = vmatprep.subr.bf16.mxu0 0
        %8128 = vmatpush1.bf16.msra.mxu0 0
        %8129 = vmatprep.subr.bf16.mxu0 0
        %8130 = vmatpush1.bf16.msra.mxu0 0
        %8131 = vmatprep.mubr.bf16.mxu0 %v8082
        %8132 = vmatmul.mubr.bf16.gmra.mrb[0].mxu0 %v7759
        %v8133 = vpop.f32.mrb[0].mxu0
        %v8134 = vadd.f32 %v7975, %v8133
        %v8135 = vpop.f32.mrb[0].mxu0
        %v8136 = vpop.f32.mrb[0].mxu0
        %v8137 = vadd.f32 %v7978, %v8136
        %v8138 = vpop.f32.mrb[0].mxu0
        %8139 = vmatprep.mubr.bf16.mxu0 %v8085
        %8140 = vmatmul.mubr.bf16.gmra.mrb[0].mxu0 %v7761
        %v8141 = vpop.f32.mrb[0].mxu0
        %v8142 = vadd.f32 %v7983, %v8141
        %v8143 = vpop.f32.mrb[0].mxu0
        %v8144 = vpop.f32.mrb[0].mxu0
        %v8145 = vadd.f32 %v7986, %v8144
        %v8146 = vpop.f32.mrb[0].mxu0
        %8147 = vmatprep.mubr.bf16.mxu0 %v8088
        %8148 = vmatmul.mubr.bf16.gmra.mrb[0].mxu0 %v7763
        %v8149 = vpop.f32.mrb[0].mxu0
        %v8150 = vadd.f32 %v7991, %v8149
        %v8151 = vpop.f32.mrb[0].mxu0
        %v8152 = vpop.f32.mrb[0].mxu0
        %v8153 = vadd.f32 %v7994, %v8152
        %v8154 = vpop.f32.mrb[0].mxu0
        %8155 = vmatprep.mubr.bf16.mxu0 %v8091
        %8156 = vmatmul.mubr.bf16.gmra.mrb[0].mxu0 %v7765
        %v8157 = vpop.f32.mrb[0].mxu0
        %v8158 = vadd.f32 %v7999, %v8157
        %v8159 = vpop.f32.mrb[0].mxu0
        %v8160 = vpop.f32.mrb[0].mxu0
        %v8161 = vadd.f32 %v8002, %v8160
        %v8162 = vpop.f32.mrb[0].mxu0
        %8163 = vmatprep.mubr.bf16.mxu0 %v8094
        %8164 = vmatmul.mubr.bf16.gmra.mrb[0].mxu0 %v7767
        %v8165 = vpop.f32.mrb[0].mxu0
        %v8166 = vadd.f32 %v8007, %v8165
        %v8167 = vpop.f32.mrb[0].mxu0
        %v8168 = vpop.f32.mrb[0].mxu0
        %v8169 = vadd.f32 %v8010, %v8168
        %v8170 = vpop.f32.mrb[0].mxu0
        %8171 = vmatprep.mubr.bf16.mxu0 %v8097
        %8172 = vmatmul.mubr.bf16.gmra.mrb[0].mxu0 %v7769
        %v8173 = vpop.f32.mrb[0].mxu0
        %v8174 = vadd.f32 %v8015, %v8173
        %v8175 = vpop.f32.mrb[0].mxu0
        %v8176 = vpop.f32.mrb[0].mxu0
        %v8177 = vadd.f32 %v8018, %v8176
        %v8178 = vpop.f32.mrb[0].mxu0
        %8179 = vdwg.mxu0
        %v8180 = vld [vmem:[#allocation5 + $0x10] sm:$0xf0]
        %v8181 = vld [vmem:[#allocation5 + $0x18] sm:$0xf0]
        %v8182 = vld [vmem:[#allocation5 + $0x20] sm:$0xff]
        %v8183 = vld [vmem:[#allocation5 + $0x28] sm:$0xff]
        %v8184 = vld [vmem:[#allocation5 + $0x30] sm:$0xff]
        %v8185 = vld [vmem:[#allocation5 + $0x38] sm:$0xff]
        %v8186 = vld [vmem:[#allocation5 + $0x40] sm:$0xff]
        %v8187 = vld [vmem:[#allocation5 + $0x48] sm:$0xff]
        %v8188 = vld [vmem:[#allocation5 + $0x50] sm:$0xff]
        %v8189 = vld [vmem:[#allocation5 + $0x58] sm:$0xff]
        %v8190 = vld [vmem:[#allocation5 + $0x60] sm:$0xff]
        %v8191 = vld [vmem:[#allocation5 + $0x68] sm:$0xff]
        %v8192 = vld [vmem:[#allocation5 + $0x70] sm:$0xf]
        %v8193 = vld [vmem:[#allocation5 + $0x78] sm:$0xf]
        %s8194 = scalar_lea.vmem %s5, 160
        %v8195 = vld [vmem:[%s8194] sm:$0xf]
        %v8196 = vld [vmem:[%s8194 + $0x4] sm:$0xf]
        %v8197 = vld [vmem:[%s8194 + $0x8] sm:$0xf]
        %v8198 = vld [vmem:[%s8194 + $0xc] sm:$0xf]
        %v8199 = vld [vmem:[%s8194 + $0x10] sm:$0xf]
        %v8200 = vld [vmem:[%s8194 + $0x14] sm:$0xf]
        %v8201 = vld [vmem:[%s8194 + $0x18] sm:$0xf]
        %v8202 = vld [vmem:[%s8194 + $0x1c] sm:$0xf]
        %v8203 = vld [vmem:[%s8194 + $0x20] sm:$0xf]
        %v8204 = vld [vmem:[%s8194 + $0x24] sm:$0xf]
        %v8205 = vld [vmem:[%s8194 + $0x28] sm:$0xf]
        %v8206 = vld [vmem:[%s8194 + $0x2c] sm:$0xf]
        %v8207 = vld [vmem:[%s8194 + $0x30] sm:$0xf]
        %v8208 = vld [vmem:[%s8194 + $0x34] sm:$0xf]
        %v8209 = vld [vmem:[%s8194 + $0x38] sm:$0xf]
        %v8210 = vld [vmem:[%s8194 + $0x3c] sm:$0xf]
        %v8211 = vld [vmem:[%s8194 + $0x40] sm:$0xf]
        %v8212 = vld [vmem:[%s8194 + $0x44] sm:$0xf]
        %v8213 = vld [vmem:[%s8194 + $0x48] sm:$0xf]
        %v8214 = vld [vmem:[%s8194 + $0x4c] sm:$0xf]
        %v8229 = vrot.slane %v8180, 4
        %v8230 = vrot.slane %v8182, 4
        %v8231 = vsel %vm5403, %v8229, %v8230
        %v8232 = vrot.slane %v8181, 4
        %v8233 = vrot.slane %v8183, 4
        %v8234 = vsel %vm5403, %v8232, %v8233
        %v8235 = vrot.slane %v8184, 4
        %v8236 = vsel %vm5403, %v8230, %v8235
        %v8237 = vrot.slane %v8185, 4
        %v8238 = vsel %vm5403, %v8233, %v8237
        %v8239 = vrot.slane %v8186, 4
        %v8240 = vsel %vm5403, %v8235, %v8239
        %v8241 = vrot.slane %v8187, 4
        %v8242 = vsel %vm5403, %v8237, %v8241
        %v8243 = vrot.slane %v8188, 4
        %v8244 = vsel %vm5403, %v8239, %v8243
        %v8245 = vrot.slane %v8189, 4
        %v8246 = vsel %vm5403, %v8241, %v8245
        %v8247 = vrot.slane %v8190, 4
        %v8248 = vsel %vm5403, %v8243, %v8247
        %v8249 = vrot.slane %v8191, 4
        %v8250 = vsel %vm5403, %v8245, %v8249
        %v8251 = vrot.slane %v8192, 4
        %v8252 = vsel %vm5403, %v8247, %v8251
        %v8253 = vrot.slane %v8193, 4
        %v8254 = vsel %vm5403, %v8249, %v8253
        %v8281 = vunpack.c.l.b16 %v8195
        %v8282 = vunpack.c.l.b16 %v8196
        %v8283 = vunpack.c.l.b16 %v8197
        %v8284 = vunpack.c.l.b16 %v8198
        %v8285 = vunpack.c.l.b16 %v8199
        %v8286 = vunpack.c.l.b16 %v8200
        %v8287 = vunpack.c.l.b16 %v8201
        %v8288 = vunpack.c.l.b16 %v8202
        %v8289 = vunpack.c.l.b16 %v8203
        %v8290 = vunpack.c.l.b16 %v8204
        %v8291 = vunpack.c.l.b16 %v8205
        %v8292 = vunpack.c.l.b16 %v8206
        %v8293 = vunpack.c.l.b16 %v8207
        %v8294 = vunpack.c.l.b16 %v8208
        %v8295 = vunpack.c.l.b16 %v8209
        %v8296 = vunpack.c.l.b16 %v8210
        %v8297 = vunpack.c.l.b16 %v8211
        %v8298 = vunpack.c.l.b16 %v8212
        %v8299 = vunpack.c.l.b16 %v8213
        %v8300 = vunpack.c.l.b16 %v8214
        %v8301 = vpack.c.b16 %v8282, %v8281
        %v8302 = vpack.c.b16 %v8284, %v8283
        %v8303 = vpack.c.b16 %v8286, %v8285
        %v8304 = vpack.c.b16 %v8288, %v8287
        %v8305 = vpack.c.b16 %v8290, %v8289
        %v8306 = vpack.c.b16 %v8292, %v8291
        %v8307 = vpack.c.b16 %v8294, %v8293
        %v8308 = vpack.c.b16 %v8296, %v8295
        %v8309 = vpack.c.b16 %v8298, %v8297
        %v8310 = vpack.c.b16 %v8300, %v8299
        %v8322 = vsel %vm762, %v8234, 0
        %v8325 = vsel %vm762, %v8238, 0
        %v8328 = vsel %vm762, %v8242, 0
        %v8331 = vsel %vm762, %v8246, 0
        %v8334 = vsel %vm762, %v8250, 0
        %v8337 = vsel %vm762, %v8254, 0
        %8339 = vmatprep.subr.bf16.mxu0 0
        %8340 = vmatpush1.bf16.msra.mxu0 %v8301
        %8341 = vmatprep.subr.bf16.mxu0 0
        %8342 = vmatpush1.bf16.msra.mxu0 %v8302
        %8343 = vmatprep.subr.bf16.mxu0 0
        %8344 = vmatpush1.bf16.msra.mxu0 %v8303
        %8345 = vmatprep.subr.bf16.mxu0 0
        %8346 = vmatpush1.bf16.msra.mxu0 %v8304
        %8347 = vmatprep.subr.bf16.mxu0 0
        %8348 = vmatpush1.bf16.msra.mxu0 %v8305
        %8349 = vmatprep.subr.bf16.mxu0 0
        %8350 = vmatpush1.bf16.msra.mxu0 %v8306
        %8351 = vmatprep.subr.bf16.mxu0 0
        %8352 = vmatpush1.bf16.msra.mxu0 %v8307
        %8353 = vmatprep.subr.bf16.mxu0 0
        %8354 = vmatpush1.bf16.msra.mxu0 %v8308
        %8355 = vmatprep.subr.bf16.mxu0 0
        %8356 = vmatpush1.bf16.msra.mxu0 %v8309
        %8357 = vmatprep.subr.bf16.mxu0 0
        %8358 = vmatpush1.bf16.msra.mxu0 %v8310
        %8359 = vmatprep.subr.bf16.mxu0 0
        %8360 = vmatpush1.bf16.msra.mxu0 0
        %8361 = vmatprep.subr.bf16.mxu0 0
        %8362 = vmatpush1.bf16.msra.mxu0 0
        %8363 = vmatprep.subr.bf16.mxu0 0
        %8364 = vmatpush1.bf16.msra.mxu0 0
        %8365 = vmatprep.subr.bf16.mxu0 0
        %8366 = vmatpush1.bf16.msra.mxu0 0
        %8367 = vmatprep.subr.bf16.mxu0 0
        %8368 = vmatpush1.bf16.msra.mxu0 0
        %8369 = vmatprep.subr.bf16.mxu0 0
        %8370 = vmatpush1.bf16.msra.mxu0 0
        %8371 = vmatprep.mubr.bf16.mxu0 %v8322
        %8372 = vmatmul.mubr.bf16.gmra.mrb[0].mxu0 %v8231
        %v8373 = vpop.f32.mrb[0].mxu0
        %v8374 = vadd.f32 0.0, %v8373
        %v8375 = vpop.f32.mrb[0].mxu0
        %v8376 = vpop.f32.mrb[0].mxu0
        %v8377 = vadd.f32 0.0, %v8376
        %v8378 = vpop.f32.mrb[0].mxu0
        %8379 = vmatprep.mubr.bf16.mxu0 %v8325
        %8380 = vmatmul.mubr.bf16.gmra.mrb[0].mxu0 %v8236
        %v8381 = vpop.f32.mrb[0].mxu0
        %v8382 = vadd.f32 0.0, %v8381
        %v8383 = vpop.f32.mrb[0].mxu0
        %v8384 = vpop.f32.mrb[0].mxu0
        %v8385 = vadd.f32 0.0, %v8384
        %v8386 = vpop.f32.mrb[0].mxu0
        %8387 = vmatprep.mubr.bf16.mxu0 %v8328
        %8388 = vmatmul.mubr.bf16.gmra.mrb[0].mxu0 %v8240
        %v8389 = vpop.f32.mrb[0].mxu0
        %v8390 = vadd.f32 0.0, %v8389
        %v8391 = vpop.f32.mrb[0].mxu0
        %v8392 = vpop.f32.mrb[0].mxu0
        %v8393 = vadd.f32 0.0, %v8392
        %v8394 = vpop.f32.mrb[0].mxu0
        %8395 = vmatprep.mubr.bf16.mxu0 %v8331
        %8396 = vmatmul.mubr.bf16.gmra.mrb[0].mxu0 %v8244
        %v8397 = vpop.f32.mrb[0].mxu0
        %v8398 = vadd.f32 0.0, %v8397
        %v8399 = vpop.f32.mrb[0].mxu0
        %v8400 = vpop.f32.mrb[0].mxu0
        %v8401 = vadd.f32 0.0, %v8400
        %v8402 = vpop.f32.mrb[0].mxu0
        %8403 = vmatprep.mubr.bf16.mxu0 %v8334
        %8404 = vmatmul.mubr.bf16.gmra.mrb[0].mxu0 %v8248
        %v8405 = vpop.f32.mrb[0].mxu0
        %v8406 = vadd.f32 0.0, %v8405
        %v8407 = vpop.f32.mrb[0].mxu0
        %v8408 = vpop.f32.mrb[0].mxu0
        %v8409 = vadd.f32 0.0, %v8408
        %v8410 = vpop.f32.mrb[0].mxu0
        %8411 = vmatprep.mubr.bf16.mxu0 %v8337
        %8412 = vmatmul.mubr.bf16.gmra.mrb[0].mxu0 %v8252
        %v8413 = vpop.f32.mrb[0].mxu0
        %v8414 = vadd.f32 0.0, %v8413
        %v8415 = vpop.f32.mrb[0].mxu0
        %v8416 = vpop.f32.mrb[0].mxu0
        %v8417 = vadd.f32 0.0, %v8416
        %v8418 = vpop.f32.mrb[0].mxu0
        %8419 = vdwg.mxu0
        %v8420 = vadd.f32 %v8134, %v8374
        %v8421 = vadd.f32 %v8137, %v8377
        %v8422 = vadd.f32 %v8142, %v8382
        %v8423 = vadd.f32 %v8145, %v8385
        %v8424 = vadd.f32 %v8150, %v8390
        %v8425 = vadd.f32 %v8153, %v8393
        %v8426 = vadd.f32 %v8158, %v8398
        %v8427 = vadd.f32 %v8161, %v8401
        %v8428 = vadd.f32 %v8166, %v8406
        %v8429 = vadd.f32 %v8169, %v8409
        %v8430 = vadd.f32 %v8174, %v8414
        %v8431 = vadd.f32 %v8177, %v8417
        %v8432 = vld [vmem:[#allocation5 + $0x20] sm:$0xfc]
        %v8433 = vld [vmem:[#allocation5 + $0x28] sm:$0xfc]
        %v8434 = vld [vmem:[#allocation5 + $0x30] sm:$0xff]
        %v8435 = vld [vmem:[#allocation5 + $0x38] sm:$0xff]
        %v8436 = vld [vmem:[#allocation5 + $0x40] sm:$0xff]
        %v8437 = vld [vmem:[#allocation5 + $0x48] sm:$0xff]
        %v8438 = vld [vmem:[#allocation5 + $0x50] sm:$0xff]
        %v8439 = vld [vmem:[#allocation5 + $0x58] sm:$0xff]
        %v8440 = vld [vmem:[#allocation5 + $0x60] sm:$0xff]
        %v8441 = vld [vmem:[#allocation5 + $0x68] sm:$0xff]
        %v8442 = vld [vmem:[#allocation5 + $0x70] sm:$0xff]
        %v8443 = vld [vmem:[#allocation5 + $0x78] sm:$0xff]
        %v8444 = vld [vmem:[#allocation5 + $0x80] sm:$0x3]
        %v8445 = vld [vmem:[#allocation5 + $0x88] sm:$0x3]
        %s8446 = scalar_lea.vmem %s5, 240
        %v8447 = vld [vmem:[%s8446] sm:$0xf]
        %v8448 = vld [vmem:[%s8446 + $0x4] sm:$0xf]
        %v8449 = vld [vmem:[%s8446 + $0x8] sm:$0xf]
        %v8450 = vld [vmem:[%s8446 + $0xc] sm:$0xf]
        %v8451 = vld [vmem:[%s8446 + $0x10] sm:$0xf]
        %v8452 = vld [vmem:[%s8446 + $0x14] sm:$0xf]
        %v8453 = vld [vmem:[%s8446 + $0x18] sm:$0xf]
        %v8454 = vld [vmem:[%s8446 + $0x1c] sm:$0xf]
        %v8455 = vld [vmem:[%s8446 + $0x20] sm:$0xf]
        %v8456 = vld [vmem:[%s8446 + $0x24] sm:$0xf]
        %v8457 = vld [vmem:[%s8446 + $0x28] sm:$0xf]
        %v8458 = vld [vmem:[%s8446 + $0x2c] sm:$0xf]
        %v8459 = vld [vmem:[%s8446 + $0x30] sm:$0xf]
        %v8460 = vld [vmem:[%s8446 + $0x34] sm:$0xf]
        %v8461 = vld [vmem:[%s8446 + $0x38] sm:$0xf]
        %v8462 = vld [vmem:[%s8446 + $0x3c] sm:$0xf]
        %v8463 = vld [vmem:[%s8446 + $0x40] sm:$0xf]
        %v8464 = vld [vmem:[%s8446 + $0x44] sm:$0xf]
        %v8465 = vld [vmem:[%s8446 + $0x48] sm:$0xf]
        %v8466 = vld [vmem:[%s8446 + $0x4c] sm:$0xf]
        %v8481 = vrot.slane %v8432, 2
        %v8482 = vrot.slane %v8434, 2
        %v8483 = vsel %vm4339, %v8481, %v8482
        %v8484 = vrot.slane %v8433, 2
        %v8485 = vrot.slane %v8435, 2
        %v8486 = vsel %vm4339, %v8484, %v8485
        %v8487 = vrot.slane %v8436, 2
        %v8488 = vsel %vm4339, %v8482, %v8487
        %v8489 = vrot.slane %v8437, 2
        %v8490 = vsel %vm4339, %v8485, %v8489
        %v8491 = vrot.slane %v8438, 2
        %v8492 = vsel %vm4339, %v8487, %v8491
        %v8493 = vrot.slane %v8439, 2
        %v8494 = vsel %vm4339, %v8489, %v8493
        %v8495 = vrot.slane %v8440, 2
        %v8496 = vsel %vm4339, %v8491, %v8495
        %v8497 = vrot.slane %v8441, 2
        %v8498 = vsel %vm4339, %v8493, %v8497
        %v8499 = vrot.slane %v8442, 2
        %v8500 = vsel %vm4339, %v8495, %v8499
        %v8501 = vrot.slane %v8443, 2
        %v8502 = vsel %vm4339, %v8497, %v8501
        %v8503 = vrot.slane %v8444, 2
        %v8504 = vsel %vm4339, %v8499, %v8503
        %v8505 = vrot.slane %v8445, 2
        %v8506 = vsel %vm4339, %v8501, %v8505
        %v8533 = vunpack.c.l.b16 %v8447
        %v8534 = vunpack.c.l.b16 %v8448
        %v8535 = vunpack.c.l.b16 %v8449
        %v8536 = vunpack.c.l.b16 %v8450
        %v8537 = vunpack.c.l.b16 %v8451
        %v8538 = vunpack.c.l.b16 %v8452
        %v8539 = vunpack.c.l.b16 %v8453
        %v8540 = vunpack.c.l.b16 %v8454
        %v8541 = vunpack.c.l.b16 %v8455
        %v8542 = vunpack.c.l.b16 %v8456
        %v8543 = vunpack.c.l.b16 %v8457
        %v8544 = vunpack.c.l.b16 %v8458
        %v8545 = vunpack.c.l.b16 %v8459
        %v8546 = vunpack.c.l.b16 %v8460
        %v8547 = vunpack.c.l.b16 %v8461
        %v8548 = vunpack.c.l.b16 %v8462
        %v8549 = vunpack.c.l.b16 %v8463
        %v8550 = vunpack.c.l.b16 %v8464
        %v8551 = vunpack.c.l.b16 %v8465
        %v8552 = vunpack.c.l.b16 %v8466
        %v8553 = vpack.c.b16 %v8534, %v8533
        %v8554 = vpack.c.b16 %v8536, %v8535
        %v8555 = vpack.c.b16 %v8538, %v8537
        %v8556 = vpack.c.b16 %v8540, %v8539
        %v8557 = vpack.c.b16 %v8542, %v8541
        %v8558 = vpack.c.b16 %v8544, %v8543
        %v8559 = vpack.c.b16 %v8546, %v8545
        %v8560 = vpack.c.b16 %v8548, %v8547
        %v8561 = vpack.c.b16 %v8550, %v8549
        %v8562 = vpack.c.b16 %v8552, %v8551
        %v8574 = vsel %vm762, %v8486, 0
        %v8577 = vsel %vm762, %v8490, 0
        %v8580 = vsel %vm762, %v8494, 0
        %v8583 = vsel %vm762, %v8498, 0
        %v8586 = vsel %vm762, %v8502, 0
        %v8589 = vsel %vm762, %v8506, 0
        %8591 = vmatprep.subr.bf16.mxu0 0
        %8592 = vmatpush1.bf16.msra.mxu0 %v8553
        %8593 = vmatprep.subr.bf16.mxu0 0
        %8594 = vmatpush1.bf16.msra.mxu0 %v8554
        %8595 = vmatprep.subr.bf16.mxu0 0
        %8596 = vmatpush1.bf16.msra.mxu0 %v8555
        %8597 = vmatprep.subr.bf16.mxu0 0
        %8598 = vmatpush1.bf16.msra.mxu0 %v8556
        %8599 = vmatprep.subr.bf16.mxu0 0
        %8600 = vmatpush1.bf16.msra.mxu0 %v8557
        %8601 = vmatprep.subr.bf16.mxu0 0
        %8602 = vmatpush1.bf16.msra.mxu0 %v8558
        %8603 = vmatprep.subr.bf16.mxu0 0
        %8604 = vmatpush1.bf16.msra.mxu0 %v8559
        %8605 = vmatprep.subr.bf16.mxu0 0
        %8606 = vmatpush1.bf16.msra.mxu0 %v8560
        %8607 = vmatprep.subr.bf16.mxu0 0
        %8608 = vmatpush1.bf16.msra.mxu0 %v8561
        %8609 = vmatprep.subr.bf16.mxu0 0
        %8610 = vmatpush1.bf16.msra.mxu0 %v8562
        %8611 = vmatprep.subr.bf16.mxu0 0
        %8612 = vmatpush1.bf16.msra.mxu0 0
        %8613 = vmatprep.subr.bf16.mxu0 0
        %8614 = vmatpush1.bf16.msra.mxu0 0
        %8615 = vmatprep.subr.bf16.mxu0 0
        %8616 = vmatpush1.bf16.msra.mxu0 0
        %8617 = vmatprep.subr.bf16.mxu0 0
        %8618 = vmatpush1.bf16.msra.mxu0 0
        %8619 = vmatprep.subr.bf16.mxu0 0
        %8620 = vmatpush1.bf16.msra.mxu0 0
        %8621 = vmatprep.subr.bf16.mxu0 0
        %8622 = vmatpush1.bf16.msra.mxu0 0
        %8623 = vmatprep.mubr.bf16.mxu0 %v8574
        %8624 = vmatmul.mubr.bf16.gmra.mrb[0].mxu0 %v8483
        %v8625 = vpop.f32.mrb[0].mxu0
        %v8626 = vadd.f32 0.0, %v8625
        %v8627 = vpop.f32.mrb[0].mxu0
        %v8628 = vpop.f32.mrb[0].mxu0
        %v8629 = vadd.f32 0.0, %v8628
        %v8630 = vpop.f32.mrb[0].mxu0
        %8631 = vmatprep.mubr.bf16.mxu0 %v8577
        %8632 = vmatmul.mubr.bf16.gmra.mrb[0].mxu0 %v8488
        %v8633 = vpop.f32.mrb[0].mxu0
        %v8634 = vadd.f32 0.0, %v8633
        %v8635 = vpop.f32.mrb[0].mxu0
        %v8636 = vpop.f32.mrb[0].mxu0
        %v8637 = vadd.f32 0.0, %v8636
        %v8638 = vpop.f32.mrb[0].mxu0
        %8639 = vmatprep.mubr.bf16.mxu0 %v8580
        %8640 = vmatmul.mubr.bf16.gmra.mrb[0].mxu0 %v8492
        %v8641 = vpop.f32.mrb[0].mxu0
        %v8642 = vadd.f32 0.0, %v8641
        %v8643 = vpop.f32.mrb[0].mxu0
        %v8644 = vpop.f32.mrb[0].mxu0
        %v8645 = vadd.f32 0.0, %v8644
        %v8646 = vpop.f32.mrb[0].mxu0
        %8647 = vmatprep.mubr.bf16.mxu0 %v8583
        %8648 = vmatmul.mubr.bf16.gmra.mrb[0].mxu0 %v8496
        %v8649 = vpop.f32.mrb[0].mxu0
        %v8650 = vadd.f32 0.0, %v8649
        %v8651 = vpop.f32.mrb[0].mxu0
        %v8652 = vpop.f32.mrb[0].mxu0
        %v8653 = vadd.f32 0.0, %v8652
        %v8654 = vpop.f32.mrb[0].mxu0
        %8655 = vmatprep.mubr.bf16.mxu0 %v8586
        %8656 = vmatmul.mubr.bf16.gmra.mrb[0].mxu0 %v8500
        %v8657 = vpop.f32.mrb[0].mxu0
        %v8658 = vadd.f32 0.0, %v8657
        %v8659 = vpop.f32.mrb[0].mxu0
        %v8660 = vpop.f32.mrb[0].mxu0
        %v8661 = vadd.f32 0.0, %v8660
        %v8662 = vpop.f32.mrb[0].mxu0
        %8663 = vmatprep.mubr.bf16.mxu0 %v8589
        %8664 = vmatmul.mubr.bf16.gmra.mrb[0].mxu0 %v8504
        %v8665 = vpop.f32.mrb[0].mxu0
        %v8666 = vadd.f32 0.0, %v8665
        %v8667 = vpop.f32.mrb[0].mxu0
        %v8668 = vpop.f32.mrb[0].mxu0
        %v8669 = vadd.f32 0.0, %v8668
        %v8670 = vpop.f32.mrb[0].mxu0
        %8671 = vdwg.mxu0
        %v8672 = vadd.f32 %v8420, %v8626
        %v8673 = vadd.f32 %v8421, %v8629
        %v8674 = vadd.f32 %v8422, %v8634
        %v8675 = vadd.f32 %v8423, %v8637
        %v8676 = vadd.f32 %v8424, %v8642
        %v8677 = vadd.f32 %v8425, %v8645
        %v8678 = vadd.f32 %v8426, %v8650
        %v8679 = vadd.f32 %v8427, %v8653
        %v8680 = vadd.f32 %v8428, %v8658
        %v8681 = vadd.f32 %v8429, %v8661
        %v8682 = vadd.f32 %v8430, %v8666
        %v8683 = vadd.f32 %v8431, %v8669
        %v8684 = vld [vmem:[#allocation5 + $0x80] sm:$0xff]
        %v8685 = vld [vmem:[#allocation5 + $0x88] sm:$0xff]
        %s8686 = scalar_lea.vmem %s5, 320
        %v8687 = vld [vmem:[%s8686] sm:$0xf]
        %v8688 = vld [vmem:[%s8686 + $0x4] sm:$0xf]
        %v8689 = vld [vmem:[%s8686 + $0x8] sm:$0xf]
        %v8690 = vld [vmem:[%s8686 + $0xc] sm:$0xf]
        %v8691 = vld [vmem:[%s8686 + $0x10] sm:$0xf]
        %v8692 = vld [vmem:[%s8686 + $0x14] sm:$0xf]
        %v8693 = vld [vmem:[%s8686 + $0x18] sm:$0xf]
        %v8694 = vld [vmem:[%s8686 + $0x1c] sm:$0xf]
        %v8695 = vld [vmem:[%s8686 + $0x20] sm:$0xf]
        %v8696 = vld [vmem:[%s8686 + $0x24] sm:$0xf]
        %v8697 = vld [vmem:[%s8686 + $0x28] sm:$0xf]
        %v8698 = vld [vmem:[%s8686 + $0x2c] sm:$0xf]
        %v8699 = vld [vmem:[%s8686 + $0x30] sm:$0xf]
        %v8700 = vld [vmem:[%s8686 + $0x34] sm:$0xf]
        %v8701 = vld [vmem:[%s8686 + $0x38] sm:$0xf]
        %v8702 = vld [vmem:[%s8686 + $0x3c] sm:$0xf]
        %v8703 = vld [vmem:[%s8686 + $0x40] sm:$0xf]
        %v8704 = vld [vmem:[%s8686 + $0x44] sm:$0xf]
        %v8705 = vld [vmem:[%s8686 + $0x48] sm:$0xf]
        %v8706 = vld [vmem:[%s8686 + $0x4c] sm:$0xf]
        %v8727 = vunpack.c.l.b16 %v8687
        %v8728 = vunpack.c.l.b16 %v8688
        %v8729 = vunpack.c.l.b16 %v8689
        %v8730 = vunpack.c.l.b16 %v8690
        %v8731 = vunpack.c.l.b16 %v8691
        %v8732 = vunpack.c.l.b16 %v8692
        %v8733 = vunpack.c.l.b16 %v8693
        %v8734 = vunpack.c.l.b16 %v8694
        %v8735 = vunpack.c.l.b16 %v8695
        %v8736 = vunpack.c.l.b16 %v8696
        %v8737 = vunpack.c.l.b16 %v8697
        %v8738 = vunpack.c.l.b16 %v8698
        %v8739 = vunpack.c.l.b16 %v8699
        %v8740 = vunpack.c.l.b16 %v8700
        %v8741 = vunpack.c.l.b16 %v8701
        %v8742 = vunpack.c.l.b16 %v8702
        %v8743 = vunpack.c.l.b16 %v8703
        %v8744 = vunpack.c.l.b16 %v8704
        %v8745 = vunpack.c.l.b16 %v8705
        %v8746 = vunpack.c.l.b16 %v8706
        %v8747 = vpack.c.b16 %v8728, %v8727
        %v8748 = vpack.c.b16 %v8730, %v8729
        %v8749 = vpack.c.b16 %v8732, %v8731
        %v8750 = vpack.c.b16 %v8734, %v8733
        %v8751 = vpack.c.b16 %v8736, %v8735
        %v8752 = vpack.c.b16 %v8738, %v8737
        %v8753 = vpack.c.b16 %v8740, %v8739
        %v8754 = vpack.c.b16 %v8742, %v8741
        %v8755 = vpack.c.b16 %v8744, %v8743
        %v8756 = vpack.c.b16 %v8746, %v8745
        %v8768 = vsel %vm762, %v8435, 0
        %v8771 = vsel %vm762, %v8437, 0
        %v8774 = vsel %vm762, %v8439, 0
        %v8777 = vsel %vm762, %v8441, 0
        %v8780 = vsel %vm762, %v8443, 0
        %v8783 = vsel %vm762, %v8685, 0
        %8785 = vmatprep.subr.bf16.mxu0 0
        %8786 = vmatpush1.bf16.msra.mxu0 %v8747
        %8787 = vmatprep.subr.bf16.mxu0 0
        %8788 = vmatpush1.bf16.msra.mxu0 %v8748
        %8789 = vmatprep.subr.bf16.mxu0 0
        %8790 = vmatpush1.bf16.msra.mxu0 %v8749
        %8791 = vmatprep.subr.bf16.mxu0 0
        %8792 = vmatpush1.bf16.msra.mxu0 %v8750
        %8793 = vmatprep.subr.bf16.mxu0 0
        %8794 = vmatpush1.bf16.msra.mxu0 %v8751
        %8795 = vmatprep.subr.bf16.mxu0 0
        %8796 = vmatpush1.bf16.msra.mxu0 %v8752
        %8797 = vmatprep.subr.bf16.mxu0 0
        %8798 = vmatpush1.bf16.msra.mxu0 %v8753
        %8799 = vmatprep.subr.bf16.mxu0 0
        %8800 = vmatpush1.bf16.msra.mxu0 %v8754
        %8801 = vmatprep.subr.bf16.mxu0 0
        %8802 = vmatpush1.bf16.msra.mxu0 %v8755
        %8803 = vmatprep.subr.bf16.mxu0 0
        %8804 = vmatpush1.bf16.msra.mxu0 %v8756
        %8805 = vmatprep.subr.bf16.mxu0 0
        %8806 = vmatpush1.bf16.msra.mxu0 0
        %8807 = vmatprep.subr.bf16.mxu0 0
        %8808 = vmatpush1.bf16.msra.mxu0 0
        %8809 = vmatprep.subr.bf16.mxu0 0
        %8810 = vmatpush1.bf16.msra.mxu0 0
        %8811 = vmatprep.subr.bf16.mxu0 0
        %8812 = vmatpush1.bf16.msra.mxu0 0
        %8813 = vmatprep.subr.bf16.mxu0 0
        %8814 = vmatpush1.bf16.msra.mxu0 0
        %8815 = vmatprep.subr.bf16.mxu0 0
        %8816 = vmatpush1.bf16.msra.mxu0 0
        %8817 = vmatprep.mubr.bf16.mxu0 %v8768
        %8818 = vmatmul.mubr.bf16.gmra.mrb[0].mxu0 %v8434
        %v8819 = vpop.f32.mrb[0].mxu0
        %v8820 = vadd.f32 0.0, %v8819
        %v8821 = vpop.f32.mrb[0].mxu0
        %v8822 = vpop.f32.mrb[0].mxu0
        %v8823 = vadd.f32 0.0, %v8822
        %v8824 = vpop.f32.mrb[0].mxu0
        %8825 = vmatprep.mubr.bf16.mxu0 %v8771
        %8826 = vmatmul.mubr.bf16.gmra.mrb[0].mxu0 %v8436
        %v8827 = vpop.f32.mrb[0].mxu0
        %v8828 = vadd.f32 0.0, %v8827
        %v8829 = vpop.f32.mrb[0].mxu0
        %v8830 = vpop.f32.mrb[0].mxu0
        %v8831 = vadd.f32 0.0, %v8830
        %v8832 = vpop.f32.mrb[0].mxu0
        %8833 = vmatprep.mubr.bf16.mxu0 %v8774
        %8834 = vmatmul.mubr.bf16.gmra.mrb[0].mxu0 %v8438
        %v8835 = vpop.f32.mrb[0].mxu0
        %v8836 = vadd.f32 0.0, %v8835
        %v8837 = vpop.f32.mrb[0].mxu0
        %v8838 = vpop.f32.mrb[0].mxu0
        %v8839 = vadd.f32 0.0, %v8838
        %v8840 = vpop.f32.mrb[0].mxu0
        %8841 = vmatprep.mubr.bf16.mxu0 %v8777
        %8842 = vmatmul.mubr.bf16.gmra.mrb[0].mxu0 %v8440
        %v8843 = vpop.f32.mrb[0].mxu0
        %v8844 = vadd.f32 0.0, %v8843
        %v8845 = vpop.f32.mrb[0].mxu0
        %v8846 = vpop.f32.mrb[0].mxu0
        %v8847 = vadd.f32 0.0, %v8846
        %v8848 = vpop.f32.mrb[0].mxu0
        %8849 = vmatprep.mubr.bf16.mxu0 %v8780
        %8850 = vmatmul.mubr.bf16.gmra.mrb[0].mxu0 %v8442
        %v8851 = vpop.f32.mrb[0].mxu0
        %v8852 = vadd.f32 0.0, %v8851
        %v8853 = vpop.f32.mrb[0].mxu0
        %v8854 = vpop.f32.mrb[0].mxu0
        %v8855 = vadd.f32 0.0, %v8854
        %v8856 = vpop.f32.mrb[0].mxu0
        %8857 = vmatprep.mubr.bf16.mxu0 %v8783
        %8858 = vmatmul.mubr.bf16.gmra.mrb[0].mxu0 %v8684
        %v8859 = vpop.f32.mrb[0].mxu0
        %v8860 = vadd.f32 0.0, %v8859
        %v8861 = vpop.f32.mrb[0].mxu0
        %v8862 = vpop.f32.mrb[0].mxu0
        %v8863 = vadd.f32 0.0, %v8862
        %v8864 = vpop.f32.mrb[0].mxu0
        %8865 = vdwg.mxu0
        %v8866 = vadd.f32 %v8672, %v8820
        %v8867 = vadd.f32 %v8673, %v8823
        %v8868 = vadd.f32 %v8674, %v8828
        %v8869 = vadd.f32 %v8675, %v8831
        %v8870 = vadd.f32 %v8676, %v8836
        %v8871 = vadd.f32 %v8677, %v8839
        %v8872 = vadd.f32 %v8678, %v8844
        %v8873 = vadd.f32 %v8679, %v8847
        %v8874 = vadd.f32 %v8680, %v8852
        %v8875 = vadd.f32 %v8681, %v8855
        %v8876 = vadd.f32 %v8682, %v8860
        %v8877 = vadd.f32 %v8683, %v8863
        %v8878 = vld [vmem:[%s6] sm:$0x1]
        %v8880 = vlaneseq
        %v8881 = vshrl.u32 %v8880, 7
        %v8882 = vsub.s32 0, %v8881
        %v8883 = vrot.slane %v8878, %v8882
        %v8885 = vadd.f32 %v8866, %v8883
        %v8886 = vadd.f32 %v8867, %v8883
        %v8887 = vadd.f32 %v8868, %v8883
        %v8888 = vadd.f32 %v8869, %v8883
        %v8889 = vadd.f32 %v8870, %v8883
        %v8890 = vadd.f32 %v8871, %v8883
        %v8891 = vadd.f32 %v8872, %v8883
        %v8892 = vadd.f32 %v8873, %v8883
        %v8893 = vadd.f32 %v8874, %v8883
        %v8894 = vadd.f32 %v8875, %v8883
        %v8895 = vadd.f32 %v8876, %v8883
        %v8896 = vadd.f32 %v8877, %v8883
        %vm8897 = vcmask 523264
        %8898 = vst.msk [vmem:[#allocation2] sm:$0xff] %vm8897, %v8885
        %8899 = vst.msk [vmem:[#allocation2 + $0x8] sm:$0xff] %vm8897, %v8886
        %8900 = vst.msk [vmem:[#allocation2 + $0x10] sm:$0xff] %vm8897, %v8887
        %8901 = vst.msk [vmem:[#allocation2 + $0x18] sm:$0xff] %vm8897, %v8888
        %8902 = vst.msk [vmem:[#allocation2 + $0x20] sm:$0xff] %vm8897, %v8889
        %8903 = vst.msk [vmem:[#allocation2 + $0x28] sm:$0xff] %vm8897, %v8890
        %8904 = vst.msk [vmem:[#allocation2 + $0x30] sm:$0xff] %vm8897, %v8891
        %8905 = vst.msk [vmem:[#allocation2 + $0x38] sm:$0xff] %vm8897, %v8892
        %8906 = vst.msk [vmem:[#allocation2 + $0x40] sm:$0xff] %vm8897, %v8893
        %8907 = vst.msk [vmem:[#allocation2 + $0x48] sm:$0xff] %vm8897, %v8894
        %8908 = vst.msk [vmem:[#allocation2 + $0x50] sm:$0xff] %vm8897, %v8895
        %8909 = vst.msk [vmem:[#allocation2 + $0x58] sm:$0xff] %vm8897, %v8896
        %v8910 = vld [vmem:[#allocation2] ss:$2 sm:$0xf]
        %v8911 = vld [vmem:[%s1974] ss:$2 sm:$0xf]
        %v8912 = vmax.f32 %v8910, %v8911
        %s8913 = scalar_lea.vmem [#allocation2], 12
        %v8914 = vld [vmem:[%s8913] ss:$2 sm:$0xf]
        %s8915 = scalar_lea.vmem [#allocation2], 13
        %v8916 = vld [vmem:[%s8915] ss:$2 sm:$0xf]
        %v8917 = vmax.f32 %v8914, %v8916
        %v8918 = vmax.f32 %v8912, %v8917
        %v8919 = vpack.c.bf16 %v8918, %v8918
        %vm8920 = vcmask 516096
        %vm8921 = vsmask.f32 256
        %vm8922 = vmand %vm8920, %vm8921
        %v8923 = vld [vmem:[#allocation6] sm:$0x1]
        %v8924 = vsel %vm8922, %v8919, %v8923
        %8925 = vst [vmem:[#allocation6] sm:$0x1] %v8924
        %v8928 = vunpack.c.l.s4 1966171168
        %v8929 = vunpack.c.0.s8 %v8928
        %v8930 = vlaneseq
        %v8931 = vshrl.u32 %v8930, 7
        %v8932 = vsub.s32 %v8929, %v8931
        %v8933 = vrot.slane %v8919, %v8932
        %v8935 = vunpack.c.l.s4 1966171168
        %v8936 = vunpack.c.0.s8 %v8935
        %v8937 = vlaneseq
        %v8938 = vshrl.u32 %v8937, 7
        %v8939 = vsub.s32 %v8936, %v8938
        %v8940 = vrot.slane %v8933, %v8939
        %v8942 = vshrl.u32 %v8940, 16
        %v8944 = vrot.slane %v8942, 7
        %v8945 = vrot.slane %v8944, 1
        %8946 = vrot.lane.b32.xlu0 %v8945, 64
        %v8947 = vpop.permute.xlu0 %8946
        %vm8949 = vcmask 1040896
        %vm8950 = vmand %vm8949, %vm8921
        %v8951 = vld [vmem:[#allocation6] sm:$0x1]
        %v8952 = vsel %vm8950, %v8947, %v8951
        %8953 = vst [vmem:[#allocation6] sm:$0x1] %v8952
        %v8954 = vcombine.high %v8933, %v8933
        %v8956 = vunpack.c.l.s4 1966171168
        %v8957 = vunpack.c.0.s8 %v8956
        %v8958 = vlaneseq
        %v8959 = vshrl.u32 %v8958, 7
        %v8960 = vsub.s32 %v8957, %v8959
        %v8961 = vrot.slane %v8954, %v8960
        %v8963 = vld [vmem:[#allocation6 + $0x1] sm:$0x1]
        %v8964 = vsel %vm8922, %v8961, %v8963
        %8965 = vst [vmem:[#allocation6 + $0x1] sm:$0x1] %v8964
        %v8967 = vshrl.u32 %v8961, 16
        %v8969 = vrot.slane %v8967, 7
        %v8970 = vrot.slane %v8969, 1
        %8971 = vrot.lane.b32.xlu0 %v8970, 64
        %v8972 = vpop.permute.xlu0 %8971
        %v8974 = vld [vmem:[#allocation6 + $0x1] sm:$0x1]
        %v8975 = vsel %vm8950, %v8972, %v8974
        %8976 = vst [vmem:[#allocation6 + $0x1] sm:$0x1] %v8975
        %s8977 = scalar_lea.vmem [#allocation2], 24
        %v8978 = vld [vmem:[%s8977] ss:$2 sm:$0xf]
        %s8979 = scalar_lea.vmem [#allocation2], 25
        %v8980 = vld [vmem:[%s8979] ss:$2 sm:$0xf]
        %v8981 = vmax.f32 %v8978, %v8980
        %s8982 = scalar_lea.vmem [#allocation2], 36
        %v8983 = vld [vmem:[%s8982] ss:$2 sm:$0xf]
        %s8984 = scalar_lea.vmem [#allocation2], 37
        %v8985 = vld [vmem:[%s8984] ss:$2 sm:$0xf]
        %v8986 = vmax.f32 %v8983, %v8985
        %v8987 = vmax.f32 %v8981, %v8986
        %v8988 = vpack.c.bf16 %v8987, %v8987
        %v8989 = vld [vmem:[#allocation6 + $0x2] sm:$0x1]
        %v8990 = vsel %vm8922, %v8988, %v8989
        %8991 = vst [vmem:[#allocation6 + $0x2] sm:$0x1] %v8990
        %v8994 = vunpack.c.l.s4 1966171168
        %v8995 = vunpack.c.0.s8 %v8994
        %v8996 = vlaneseq
        %v8997 = vshrl.u32 %v8996, 7
        %v8998 = vsub.s32 %v8995, %v8997
        %v8999 = vrot.slane %v8988, %v8998
        %v9001 = vunpack.c.l.s4 1966171168
        %v9002 = vunpack.c.0.s8 %v9001
        %v9003 = vlaneseq
        %v9004 = vshrl.u32 %v9003, 7
        %v9005 = vsub.s32 %v9002, %v9004
        %v9006 = vrot.slane %v8999, %v9005
        %v9008 = vshrl.u32 %v9006, 16
        %v9010 = vrot.slane %v9008, 7
        %v9011 = vrot.slane %v9010, 1
        %9012 = vrot.lane.b32.xlu0 %v9011, 64
        %v9013 = vpop.permute.xlu0 %9012
        %v9015 = vld [vmem:[#allocation6 + $0x2] sm:$0x1]
        %v9016 = vsel %vm8950, %v9013, %v9015
        %9017 = vst [vmem:[#allocation6 + $0x2] sm:$0x1] %v9016
        %v9018 = vcombine.high %v8999, %v8999
        %v9020 = vunpack.c.l.s4 1966171168
        %v9021 = vunpack.c.0.s8 %v9020
        %v9022 = vlaneseq
        %v9023 = vshrl.u32 %v9022, 7
        %v9024 = vsub.s32 %v9021, %v9023
        %v9025 = vrot.slane %v9018, %v9024
        %v9027 = vld [vmem:[#allocation6 + $0x3] sm:$0x1]
        %v9028 = vsel %vm8922, %v9025, %v9027
        %9029 = vst [vmem:[#allocation6 + $0x3] sm:$0x1] %v9028
        %v9031 = vshrl.u32 %v9025, 16
        %v9033 = vrot.slane %v9031, 7
        %v9034 = vrot.slane %v9033, 1
        %9035 = vrot.lane.b32.xlu0 %v9034, 64
        %v9036 = vpop.permute.xlu0 %9035
        %v9038 = vld [vmem:[#allocation6 + $0x3] sm:$0x1]
        %v9039 = vsel %vm8950, %v9036, %v9038
        %9040 = vst [vmem:[#allocation6 + $0x3] sm:$0x1] %v9039
        %v9041 = vld [vmem:[%s1982] ss:$2 sm:$0xf]
        %v9042 = vld [vmem:[%s1986] ss:$2 sm:$0xf]
        %v9043 = vmax.f32 %v9041, %v9042
        %v9044 = vld [vmem:[%s6945] ss:$2 sm:$0xf]
        %v9045 = vld [vmem:[%s6947] ss:$2 sm:$0xf]
        %v9046 = vmax.f32 %v9044, %v9045
        %v9047 = vmax.f32 %v9043, %v9046
        %v9048 = vpack.c.bf16 %v9047, %v9047
        %v9049 = vld [vmem:[#allocation6 + $0x4] sm:$0x1]
        %v9050 = vsel %vm8922, %v9048, %v9049
        %9051 = vst [vmem:[#allocation6 + $0x4] sm:$0x1] %v9050
        %v9054 = vunpack.c.l.s4 1966171168
        %v9055 = vunpack.c.0.s8 %v9054
        %v9056 = vlaneseq
        %v9057 = vshrl.u32 %v9056, 7
        %v9058 = vsub.s32 %v9055, %v9057
        %v9059 = vrot.slane %v9048, %v9058
        %v9061 = vunpack.c.l.s4 1966171168
        %v9062 = vunpack.c.0.s8 %v9061
        %v9063 = vlaneseq
        %v9064 = vshrl.u32 %v9063, 7
        %v9065 = vsub.s32 %v9062, %v9064
        %v9066 = vrot.slane %v9059, %v9065
        %v9068 = vshrl.u32 %v9066, 16
        %v9070 = vrot.slane %v9068, 7
        %v9071 = vrot.slane %v9070, 1
        %9072 = vrot.lane.b32.xlu0 %v9071, 64
        %v9073 = vpop.permute.xlu0 %9072
        %v9075 = vld [vmem:[#allocation6 + $0x4] sm:$0x1]
        %v9076 = vsel %vm8950, %v9073, %v9075
        %9077 = vst [vmem:[#allocation6 + $0x4] sm:$0x1] %v9076
        %v9078 = vcombine.high %v9059, %v9059
        %v9080 = vunpack.c.l.s4 1966171168
        %v9081 = vunpack.c.0.s8 %v9080
        %v9082 = vlaneseq
        %v9083 = vshrl.u32 %v9082, 7
        %v9084 = vsub.s32 %v9081, %v9083
        %v9085 = vrot.slane %v9078, %v9084
        %v9087 = vld [vmem:[#allocation6 + $0x5] sm:$0x1]
        %v9088 = vsel %vm8922, %v9085, %v9087
        %9089 = vst [vmem:[#allocation6 + $0x5] sm:$0x1] %v9088
        %v9091 = vshrl.u32 %v9085, 16
        %v9093 = vrot.slane %v9091, 7
        %v9094 = vrot.slane %v9093, 1
        %9095 = vrot.lane.b32.xlu0 %v9094, 64
        %v9096 = vpop.permute.xlu0 %9095
        %v9098 = vld [vmem:[#allocation6 + $0x5] sm:$0x1]
        %v9099 = vsel %vm8950, %v9096, %v9098
        %9100 = vst [vmem:[#allocation6 + $0x5] sm:$0x1] %v9099
        %s9101 = scalar_lea.vmem [#allocation2], 72
        %v9102 = vld [vmem:[%s9101] ss:$2 sm:$0xf]
        %s9103 = scalar_lea.vmem [#allocation2], 73
        %v9104 = vld [vmem:[%s9103] ss:$2 sm:$0xf]
        %v9105 = vmax.f32 %v9102, %v9104
        %s9106 = scalar_lea.vmem [#allocation2], 84
        %v9107 = vld [vmem:[%s9106] ss:$2 sm:$0xf]
        %s9108 = scalar_lea.vmem [#allocation2], 85
        %v9109 = vld [vmem:[%s9108] ss:$2 sm:$0xf]
        %v9110 = vmax.f32 %v9107, %v9109
        %v9111 = vmax.f32 %v9105, %v9110
        %v9112 = vpack.c.bf16 %v9111, %v9111
        %v9113 = vld [vmem:[#allocation6 + $0x6] sm:$0x1]
        %v9114 = vsel %vm8922, %v9112, %v9113
        %9115 = vst [vmem:[#allocation6 + $0x6] sm:$0x1] %v9114
        %v9118 = vunpack.c.l.s4 1966171168
        %v9119 = vunpack.c.0.s8 %v9118
        %v9120 = vlaneseq
        %v9121 = vshrl.u32 %v9120, 7
        %v9122 = vsub.s32 %v9119, %v9121
        %v9123 = vrot.slane %v9112, %v9122
        %v9125 = vunpack.c.l.s4 1966171168
        %v9126 = vunpack.c.0.s8 %v9125
        %v9127 = vlaneseq
        %v9128 = vshrl.u32 %v9127, 7
        %v9129 = vsub.s32 %v9126, %v9128
        %v9130 = vrot.slane %v9123, %v9129
        %v9132 = vshrl.u32 %v9130, 16
        %v9134 = vrot.slane %v9132, 7
        %v9135 = vrot.slane %v9134, 1
        %9136 = vrot.lane.b32.xlu0 %v9135, 64
        %v9137 = vpop.permute.xlu0 %9136
        %v9139 = vld [vmem:[#allocation6 + $0x6] sm:$0x1]
        %v9140 = vsel %vm8950, %v9137, %v9139
        %9141 = vst [vmem:[#allocation6 + $0x6] sm:$0x1] %v9140
        %v9142 = vcombine.high %v9123, %v9123
        %v9144 = vunpack.c.l.s4 1966171168
        %v9145 = vunpack.c.0.s8 %v9144
        %v9146 = vlaneseq
        %v9147 = vshrl.u32 %v9146, 7
        %v9148 = vsub.s32 %v9145, %v9147
        %v9149 = vrot.slane %v9142, %v9148
        %v9151 = vld [vmem:[#allocation6 + $0x7] sm:$0x1]
        %v9152 = vsel %vm8922, %v9149, %v9151
        %9153 = vst [vmem:[#allocation6 + $0x7] sm:$0x1] %v9152
        %v9155 = vshrl.u32 %v9149, 16
        %v9157 = vrot.slane %v9155, 7
        %v9158 = vrot.slane %v9157, 1
        %9159 = vrot.lane.b32.xlu0 %v9158, 64
        %v9160 = vpop.permute.xlu0 %9159
        %v9162 = vld [vmem:[#allocation6 + $0x7] sm:$0x1]
        %v9163 = vsel %vm8950, %v9160, %v9162
        %9164 = vst [vmem:[#allocation6 + $0x7] sm:$0x1] %v9163
        %v9165 = vld [vmem:[#allocation6] sm:$0xff]
        %v9166 = vld [vmem:[%s7] sm:$0xf]
        %v9167 = vld [vmem:[%s7 + $0x4] sm:$0xf]
        %v9168 = vld [vmem:[%s7 + $0x8] sm:$0xf]
        %v9169 = vld [vmem:[%s7 + $0xc] sm:$0xf]
        %v9170 = vld [vmem:[%s7 + $0x10] sm:$0xf]
        %v9171 = vld [vmem:[%s7 + $0x14] sm:$0xf]
        %v9172 = vld [vmem:[%s7 + $0x18] sm:$0xf]
        %v9173 = vld [vmem:[%s7 + $0x1c] sm:$0xf]
        %v9174 = vld [vmem:[%s7 + $0x20] sm:$0xf]
        %v9175 = vld [vmem:[%s7 + $0x24] sm:$0xf]
        %v9176 = vld [vmem:[%s7 + $0x28] sm:$0xf]
        %v9177 = vld [vmem:[%s7 + $0x2c] sm:$0xf]
        %v9178 = vld [vmem:[%s7 + $0x30] sm:$0xf]
        %v9179 = vld [vmem:[%s7 + $0x34] sm:$0xf]
        %v9180 = vld [vmem:[%s7 + $0x38] sm:$0xf]
        %v9181 = vld [vmem:[%s7 + $0x3c] sm:$0xf]
        %v9182 = vld [vmem:[%s7 + $0x40] sm:$0xf]
        %v9183 = vld [vmem:[%s7 + $0x44] sm:$0xf]
        %v9184 = vld [vmem:[%s7 + $0x48] sm:$0xf]
        %v9185 = vld [vmem:[%s7 + $0x4c] sm:$0xf]
        %v9186 = vld [vmem:[%s7 + $0x50] sm:$0xf]
        %v9187 = vld [vmem:[%s7 + $0x54] sm:$0xf]
        %v9188 = vld [vmem:[%s7 + $0x58] sm:$0xf]
        %v9189 = vld [vmem:[%s7 + $0x5c] sm:$0xf]
        %v9190 = vld [vmem:[%s7 + $0x60] sm:$0xf]
        %v9191 = vld [vmem:[%s7 + $0x64] sm:$0xf]
        %v9192 = vld [vmem:[%s7 + $0x68] sm:$0xf]
        %v9193 = vld [vmem:[%s7 + $0x6c] sm:$0xf]
        %v9194 = vld [vmem:[%s7 + $0x70] sm:$0xf]
        %v9195 = vld [vmem:[%s7 + $0x74] sm:$0xf]
        %v9196 = vld [vmem:[%s7 + $0x78] sm:$0xf]
        %v9197 = vld [vmem:[%s7 + $0x7c] sm:$0xf]
        %v9198 = vld [vmem:[%s7 + $0x80] sm:$0xf]
        %v9199 = vld [vmem:[%s7 + $0x84] sm:$0xf]
        %v9200 = vld [vmem:[%s7 + $0x88] sm:$0xf]
        %v9201 = vld [vmem:[%s7 + $0x8c] sm:$0xf]
        %v9202 = vld [vmem:[%s7 + $0x90] sm:$0xf]
        %v9203 = vld [vmem:[%s7 + $0x94] sm:$0xf]
        %v9204 = vld [vmem:[%s7 + $0x98] sm:$0xf]
        %v9205 = vld [vmem:[%s7 + $0x9c] sm:$0xf]
        %v9206 = vld [vmem:[%s7 + $0xa0] sm:$0xf]
        %v9207 = vld [vmem:[%s7 + $0xa4] sm:$0xf]
        %v9208 = vld [vmem:[%s7 + $0xa8] sm:$0xf]
        %v9209 = vld [vmem:[%s7 + $0xac] sm:$0xf]
        %v9210 = vld [vmem:[%s7 + $0xb0] sm:$0xf]
        %v9211 = vld [vmem:[%s7 + $0xb4] sm:$0xf]
        %v9212 = vld [vmem:[%s7 + $0xb8] sm:$0xf]
        %v9213 = vld [vmem:[%s7 + $0xbc] sm:$0xf]
        %v9214 = vld [vmem:[%s7 + $0xc0] sm:$0xf]
        %v9215 = vld [vmem:[%s7 + $0xc4] sm:$0xf]
        %v9216 = vld [vmem:[%s7 + $0xc8] sm:$0xf]
        %v9217 = vld [vmem:[%s7 + $0xcc] sm:$0xf]
        %v9218 = vld [vmem:[%s7 + $0xd0] sm:$0xf]
        %v9219 = vld [vmem:[%s7 + $0xd4] sm:$0xf]
        %v9220 = vld [vmem:[%s7 + $0xd8] sm:$0xf]
        %v9221 = vld [vmem:[%s7 + $0xdc] sm:$0xf]
        %v9222 = vld [vmem:[%s7 + $0xe0] sm:$0xf]
        %v9223 = vld [vmem:[%s7 + $0xe4] sm:$0xf]
        %v9224 = vld [vmem:[%s7 + $0xe8] sm:$0xf]
        %v9225 = vld [vmem:[%s7 + $0xec] sm:$0xf]
        %v9226 = vld [vmem:[%s7 + $0xf0] sm:$0xf]
        %v9227 = vld [vmem:[%s7 + $0xf4] sm:$0xf]
        %v9228 = vld [vmem:[%s7 + $0xf8] sm:$0xf]
        %v9229 = vld [vmem:[%s7 + $0xfc] sm:$0xf]
        %v9230 = vld [vmem:[%s7 + $0x100] sm:$0xf]
        %v9231 = vld [vmem:[%s7 + $0x104] sm:$0xf]
        %v9232 = vld [vmem:[%s7 + $0x108] sm:$0xf]
        %v9233 = vld [vmem:[%s7 + $0x10c] sm:$0xf]
        %v9234 = vld [vmem:[%s7 + $0x110] sm:$0xf]
        %v9235 = vld [vmem:[%s7 + $0x114] sm:$0xf]
        %v9236 = vld [vmem:[%s7 + $0x118] sm:$0xf]
        %v9237 = vld [vmem:[%s7 + $0x11c] sm:$0xf]
        %v9238 = vld [vmem:[%s7 + $0x120] sm:$0xf]
        %v9239 = vld [vmem:[%s7 + $0x124] sm:$0xf]
        %v9240 = vld [vmem:[%s7 + $0x128] sm:$0xf]
        %v9241 = vld [vmem:[%s7 + $0x12c] sm:$0xf]
        %v9242 = vld [vmem:[%s7 + $0x130] sm:$0xf]
        %v9243 = vld [vmem:[%s7 + $0x134] sm:$0xf]
        %v9244 = vld [vmem:[%s7 + $0x138] sm:$0xf]
        %v9245 = vld [vmem:[%s7 + $0x13c] sm:$0xf]
        %v9246 = vld [vmem:[%s7 + $0x140] sm:$0xf]
        %v9247 = vld [vmem:[%s7 + $0x144] sm:$0xf]
        %v9248 = vld [vmem:[%s7 + $0x148] sm:$0xf]
        %v9249 = vld [vmem:[%s7 + $0x14c] sm:$0xf]
        %v9250 = vld [vmem:[%s7 + $0x150] sm:$0xf]
        %v9251 = vld [vmem:[%s7 + $0x154] sm:$0xf]
        %v9252 = vld [vmem:[%s7 + $0x158] sm:$0xf]
        %v9253 = vld [vmem:[%s7 + $0x15c] sm:$0xf]
        %v9254 = vld [vmem:[%s7 + $0x160] sm:$0xf]
        %v9255 = vld [vmem:[%s7 + $0x164] sm:$0xf]
        %v9256 = vld [vmem:[%s7 + $0x168] sm:$0xf]
        %v9257 = vld [vmem:[%s7 + $0x16c] sm:$0xf]
        %v9258 = vld [vmem:[%s7 + $0x170] sm:$0xf]
        %v9259 = vld [vmem:[%s7 + $0x174] sm:$0xf]
        %v9260 = vld [vmem:[%s7 + $0x178] sm:$0xf]
        %v9261 = vld [vmem:[%s7 + $0x17c] sm:$0xf]
        %v9262 = vld [vmem:[%s7 + $0x180] sm:$0xf]
        %v9263 = vld [vmem:[%s7 + $0x184] sm:$0xf]
        %v9264 = vld [vmem:[%s7 + $0x188] sm:$0xf]
        %v9265 = vld [vmem:[%s7 + $0x18c] sm:$0xf]
        %v9266 = vld [vmem:[%s7 + $0x190] sm:$0xf]
        %v9267 = vld [vmem:[%s7 + $0x194] sm:$0xf]
        %v9268 = vld [vmem:[%s7 + $0x198] sm:$0xf]
        %v9269 = vld [vmem:[%s7 + $0x19c] sm:$0xf]
        %v9270 = vld [vmem:[%s7 + $0x1a0] sm:$0xf]
        %v9271 = vld [vmem:[%s7 + $0x1a4] sm:$0xf]
        %v9272 = vld [vmem:[%s7 + $0x1a8] sm:$0xf]
        %v9273 = vld [vmem:[%s7 + $0x1ac] sm:$0xf]
        %v9274 = vld [vmem:[%s7 + $0x1b0] sm:$0xf]
        %v9275 = vld [vmem:[%s7 + $0x1b4] sm:$0xf]
        %v9276 = vld [vmem:[%s7 + $0x1b8] sm:$0xf]
        %v9277 = vld [vmem:[%s7 + $0x1bc] sm:$0xf]
        %v9278 = vld [vmem:[%s7 + $0x1c0] sm:$0xf]
        %v9279 = vld [vmem:[%s7 + $0x1c4] sm:$0xf]
        %v9280 = vld [vmem:[%s7 + $0x1c8] sm:$0xf]
        %v9281 = vld [vmem:[%s7 + $0x1cc] sm:$0xf]
        %v9282 = vld [vmem:[%s7 + $0x1d0] sm:$0xf]
        %v9283 = vld [vmem:[%s7 + $0x1d4] sm:$0xf]
        %v9284 = vld [vmem:[%s7 + $0x1d8] sm:$0xf]
        %v9285 = vld [vmem:[%s7 + $0x1dc] sm:$0xf]
        %v9286 = vld [vmem:[%s7 + $0x1e0] sm:$0xf]
        %v9287 = vld [vmem:[%s7 + $0x1e4] sm:$0xf]
        %v9288 = vld [vmem:[%s7 + $0x1e8] sm:$0xf]
        %v9289 = vld [vmem:[%s7 + $0x1ec] sm:$0xf]
        %v9290 = vld [vmem:[%s7 + $0x1f0] sm:$0xf]
        %v9291 = vld [vmem:[%s7 + $0x1f4] sm:$0xf]
        %v9292 = vld [vmem:[%s7 + $0x1f8] sm:$0xf]
        %v9293 = vld [vmem:[%s7 + $0x1fc] sm:$0xf]
        %v9294 = vld [vmem:[%s8] sm:$0x1]
        %v9296 = vcombine.high %v9165, %v9165
        %v9298 = vunpack.c.l.s4 1966171168
        %v9299 = vunpack.c.0.s8 %v9298
        %v9300 = vlaneseq
        %v9301 = vshrl.u32 %v9300, 7
        %v9302 = vsub.s32 %v9299, %v9301
        %v9303 = vrot.slane %v9165, %v9302
        %v9305 = vunpack.c.l.s4 1966171168
        %v9306 = vunpack.c.0.s8 %v9305
        %v9307 = vlaneseq
        %v9308 = vshrl.u32 %v9307, 7
        %v9309 = vsub.s32 %v9306, %v9308
        %v9310 = vrot.slane %v9296, %v9309
        %v9311 = vcombine.high %v9303, %v9303
        %v9312 = vcombine.high %v9310, %v9310
        %v9314 = vunpack.c.l.s4 1966171168
        %v9315 = vunpack.c.0.s8 %v9314
        %v9316 = vlaneseq
        %v9317 = vshrl.u32 %v9316, 7
        %v9318 = vsub.s32 %v9315, %v9317
        %v9319 = vrot.slane %v9303, %v9318
        %v9321 = vunpack.c.l.s4 1966171168
        %v9322 = vunpack.c.0.s8 %v9321
        %v9323 = vlaneseq
        %v9324 = vshrl.u32 %v9323, 7
        %v9325 = vsub.s32 %v9322, %v9324
        %v9326 = vrot.slane %v9310, %v9325
        %v9328 = vunpack.c.l.s4 1966171168
        %v9329 = vunpack.c.0.s8 %v9328
        %v9330 = vlaneseq
        %v9331 = vshrl.u32 %v9330, 7
        %v9332 = vsub.s32 %v9329, %v9331
        %v9333 = vrot.slane %v9311, %v9332
        %v9335 = vunpack.c.l.s4 1966171168
        %v9336 = vunpack.c.0.s8 %v9335
        %v9337 = vlaneseq
        %v9338 = vshrl.u32 %v9337, 7
        %v9339 = vsub.s32 %v9336, %v9338
        %v9340 = vrot.slane %v9312, %v9339
        %v9341 = vcombine.high %v9319, %v9319
        %v9342 = vcombine.high %v9326, %v9326
        %v9343 = vcombine.high %v9333, %v9333
        %v9344 = vcombine.high %v9340, %v9340
        %v9481 = vunpack.c.l.b16 %v9166
        %v9482 = vunpack.c.l.b16 %v9167
        %v9483 = vunpack.c.l.b16 %v9168
        %v9484 = vunpack.c.l.b16 %v9169
        %v9485 = vunpack.c.l.b16 %v9170
        %v9486 = vunpack.c.l.b16 %v9171
        %v9487 = vunpack.c.l.b16 %v9172
        %v9488 = vunpack.c.l.b16 %v9173
        %v9489 = vunpack.c.l.b16 %v9174
        %v9490 = vunpack.c.l.b16 %v9175
        %v9491 = vunpack.c.l.b16 %v9176
        %v9492 = vunpack.c.l.b16 %v9177
        %v9493 = vunpack.c.l.b16 %v9178
        %v9494 = vunpack.c.l.b16 %v9179
        %v9495 = vunpack.c.l.b16 %v9180
        %v9496 = vunpack.c.l.b16 %v9181
        %v9497 = vunpack.c.l.b16 %v9182
        %v9498 = vunpack.c.l.b16 %v9183
        %v9499 = vunpack.c.l.b16 %v9184
        %v9500 = vunpack.c.l.b16 %v9185
        %v9501 = vunpack.c.l.b16 %v9186
        %v9502 = vunpack.c.l.b16 %v9187
        %v9503 = vunpack.c.l.b16 %v9188
        %v9504 = vunpack.c.l.b16 %v9189
        %v9505 = vunpack.c.l.b16 %v9190
        %v9506 = vunpack.c.l.b16 %v9191
        %v9507 = vunpack.c.l.b16 %v9192
        %v9508 = vunpack.c.l.b16 %v9193
        %v9509 = vunpack.c.l.b16 %v9194
        %v9510 = vunpack.c.l.b16 %v9195
        %v9511 = vunpack.c.l.b16 %v9196
        %v9512 = vunpack.c.l.b16 %v9197
        %v9513 = vunpack.c.l.b16 %v9198
        %v9514 = vunpack.c.l.b16 %v9199
        %v9515 = vunpack.c.l.b16 %v9200
        %v9516 = vunpack.c.l.b16 %v9201
        %v9517 = vunpack.c.l.b16 %v9202
        %v9518 = vunpack.c.l.b16 %v9203
        %v9519 = vunpack.c.l.b16 %v9204
        %v9520 = vunpack.c.l.b16 %v9205
        %v9521 = vunpack.c.l.b16 %v9206
        %v9522 = vunpack.c.l.b16 %v9207
        %v9523 = vunpack.c.l.b16 %v9208
        %v9524 = vunpack.c.l.b16 %v9209
        %v9525 = vunpack.c.l.b16 %v9210
        %v9526 = vunpack.c.l.b16 %v9211
        %v9527 = vunpack.c.l.b16 %v9212
        %v9528 = vunpack.c.l.b16 %v9213
        %v9529 = vunpack.c.l.b16 %v9214
        %v9530 = vunpack.c.l.b16 %v9215
        %v9531 = vunpack.c.l.b16 %v9216
        %v9532 = vunpack.c.l.b16 %v9217
        %v9533 = vunpack.c.l.b16 %v9218
        %v9534 = vunpack.c.l.b16 %v9219
        %v9535 = vunpack.c.l.b16 %v9220
        %v9536 = vunpack.c.l.b16 %v9221
        %v9537 = vunpack.c.l.b16 %v9222
        %v9538 = vunpack.c.l.b16 %v9223
        %v9539 = vunpack.c.l.b16 %v9224
        %v9540 = vunpack.c.l.b16 %v9225
        %v9541 = vunpack.c.l.b16 %v9226
        %v9542 = vunpack.c.l.b16 %v9227
        %v9543 = vunpack.c.l.b16 %v9228
        %v9544 = vunpack.c.l.b16 %v9229
        %v9545 = vunpack.c.l.b16 %v9230
        %v9546 = vunpack.c.l.b16 %v9231
        %v9547 = vunpack.c.l.b16 %v9232
        %v9548 = vunpack.c.l.b16 %v9233
        %v9549 = vunpack.c.l.b16 %v9234
        %v9550 = vunpack.c.l.b16 %v9235
        %v9551 = vunpack.c.l.b16 %v9236
        %v9552 = vunpack.c.l.b16 %v9237
        %v9553 = vunpack.c.l.b16 %v9238
        %v9554 = vunpack.c.l.b16 %v9239
        %v9555 = vunpack.c.l.b16 %v9240
        %v9556 = vunpack.c.l.b16 %v9241
        %v9557 = vunpack.c.l.b16 %v9242
        %v9558 = vunpack.c.l.b16 %v9243
        %v9559 = vunpack.c.l.b16 %v9244
        %v9560 = vunpack.c.l.b16 %v9245
        %v9561 = vunpack.c.l.b16 %v9246
        %v9562 = vunpack.c.l.b16 %v9247
        %v9563 = vunpack.c.l.b16 %v9248
        %v9564 = vunpack.c.l.b16 %v9249
        %v9565 = vunpack.c.l.b16 %v9250
        %v9566 = vunpack.c.l.b16 %v9251
        %v9567 = vunpack.c.l.b16 %v9252
        %v9568 = vunpack.c.l.b16 %v9253
        %v9569 = vunpack.c.l.b16 %v9254
        %v9570 = vunpack.c.l.b16 %v9255
        %v9571 = vunpack.c.l.b16 %v9256
        %v9572 = vunpack.c.l.b16 %v9257
        %v9573 = vunpack.c.l.b16 %v9258
        %v9574 = vunpack.c.l.b16 %v9259
        %v9575 = vunpack.c.l.b16 %v9260
        %v9576 = vunpack.c.l.b16 %v9261
        %v9577 = vunpack.c.l.b16 %v9262
        %v9578 = vunpack.c.l.b16 %v9263
        %v9579 = vunpack.c.l.b16 %v9264
        %v9580 = vunpack.c.l.b16 %v9265
        %v9581 = vunpack.c.l.b16 %v9266
        %v9582 = vunpack.c.l.b16 %v9267
        %v9583 = vunpack.c.l.b16 %v9268
        %v9584 = vunpack.c.l.b16 %v9269
        %v9585 = vunpack.c.l.b16 %v9270
        %v9586 = vunpack.c.l.b16 %v9271
        %v9587 = vunpack.c.l.b16 %v9272
        %v9588 = vunpack.c.l.b16 %v9273
        %v9589 = vunpack.c.l.b16 %v9274
        %v9590 = vunpack.c.l.b16 %v9275
        %v9591 = vunpack.c.l.b16 %v9276
        %v9592 = vunpack.c.l.b16 %v9277
        %v9593 = vunpack.c.l.b16 %v9278
        %v9594 = vunpack.c.l.b16 %v9279
        %v9595 = vunpack.c.l.b16 %v9280
        %v9596 = vunpack.c.l.b16 %v9281
        %v9597 = vunpack.c.l.b16 %v9282
        %v9598 = vunpack.c.l.b16 %v9283
        %v9599 = vunpack.c.l.b16 %v9284
        %v9600 = vunpack.c.l.b16 %v9285
        %v9601 = vunpack.c.l.b16 %v9286
        %v9602 = vunpack.c.l.b16 %v9287
        %v9603 = vunpack.c.l.b16 %v9288
        %v9604 = vunpack.c.l.b16 %v9289
        %v9605 = vunpack.c.l.b16 %v9290
        %v9606 = vunpack.c.l.b16 %v9291
        %v9607 = vunpack.c.l.b16 %v9292
        %v9608 = vunpack.c.l.b16 %v9293
        %v9609 = vpack.c.b16 %v9482, %v9481
        %v9610 = vpack.c.b16 %v9484, %v9483
        %v9611 = vpack.c.b16 %v9486, %v9485
        %v9612 = vpack.c.b16 %v9488, %v9487
        %v9613 = vpack.c.b16 %v9490, %v9489
        %v9614 = vpack.c.b16 %v9492, %v9491
        %v9615 = vpack.c.b16 %v9494, %v9493
        %v9616 = vpack.c.b16 %v9496, %v9495
        %v9617 = vpack.c.b16 %v9498, %v9497
        %v9618 = vpack.c.b16 %v9500, %v9499
        %v9619 = vpack.c.b16 %v9502, %v9501
        %v9620 = vpack.c.b16 %v9504, %v9503
        %v9621 = vpack.c.b16 %v9506, %v9505
        %v9622 = vpack.c.b16 %v9508, %v9507
        %v9623 = vpack.c.b16 %v9510, %v9509
        %v9624 = vpack.c.b16 %v9512, %v9511
        %v9625 = vpack.c.b16 %v9514, %v9513
        %v9626 = vpack.c.b16 %v9516, %v9515
        %v9627 = vpack.c.b16 %v9518, %v9517
        %v9628 = vpack.c.b16 %v9520, %v9519
        %v9629 = vpack.c.b16 %v9522, %v9521
        %v9630 = vpack.c.b16 %v9524, %v9523
        %v9631 = vpack.c.b16 %v9526, %v9525
        %v9632 = vpack.c.b16 %v9528, %v9527
        %v9633 = vpack.c.b16 %v9530, %v9529
        %v9634 = vpack.c.b16 %v9532, %v9531
        %v9635 = vpack.c.b16 %v9534, %v9533
        %v9636 = vpack.c.b16 %v9536, %v9535
        %v9637 = vpack.c.b16 %v9538, %v9537
        %v9638 = vpack.c.b16 %v9540, %v9539
        %v9639 = vpack.c.b16 %v9542, %v9541
        %v9640 = vpack.c.b16 %v9544, %v9543
        %v9641 = vpack.c.b16 %v9546, %v9545
        %v9642 = vpack.c.b16 %v9548, %v9547
        %v9643 = vpack.c.b16 %v9550, %v9549
        %v9644 = vpack.c.b16 %v9552, %v9551
        %v9645 = vpack.c.b16 %v9554, %v9553
        %v9646 = vpack.c.b16 %v9556, %v9555
        %v9647 = vpack.c.b16 %v9558, %v9557
        %v9648 = vpack.c.b16 %v9560, %v9559
        %v9649 = vpack.c.b16 %v9562, %v9561
        %v9650 = vpack.c.b16 %v9564, %v9563
        %v9651 = vpack.c.b16 %v9566, %v9565
        %v9652 = vpack.c.b16 %v9568, %v9567
        %v9653 = vpack.c.b16 %v9570, %v9569
        %v9654 = vpack.c.b16 %v9572, %v9571
        %v9655 = vpack.c.b16 %v9574, %v9573
        %v9656 = vpack.c.b16 %v9576, %v9575
        %v9657 = vpack.c.b16 %v9578, %v9577
        %v9658 = vpack.c.b16 %v9580, %v9579
        %v9659 = vpack.c.b16 %v9582, %v9581
        %v9660 = vpack.c.b16 %v9584, %v9583
        %v9661 = vpack.c.b16 %v9586, %v9585
        %v9662 = vpack.c.b16 %v9588, %v9587
        %v9663 = vpack.c.b16 %v9590, %v9589
        %v9664 = vpack.c.b16 %v9592, %v9591
        %v9665 = vpack.c.b16 %v9594, %v9593
        %v9666 = vpack.c.b16 %v9596, %v9595
        %v9667 = vpack.c.b16 %v9598, %v9597
        %v9668 = vpack.c.b16 %v9600, %v9599
        %v9669 = vpack.c.b16 %v9602, %v9601
        %v9670 = vpack.c.b16 %v9604, %v9603
        %v9671 = vpack.c.b16 %v9606, %v9605
        %v9672 = vpack.c.b16 %v9608, %v9607
        %9737 = vmatprep.subr.bf16.mxu0 0
        %9738 = vmatpush1.bf16.msra.mxu0 %v9609
        %9739 = vmatprep.subr.bf16.mxu0 0
        %9740 = vmatpush1.bf16.msra.mxu0 %v9610
        %9741 = vmatprep.subr.bf16.mxu0 0
        %9742 = vmatpush1.bf16.msra.mxu0 %v9611
        %9743 = vmatprep.subr.bf16.mxu0 0
        %9744 = vmatpush1.bf16.msra.mxu0 %v9612
        %9745 = vmatprep.subr.bf16.mxu0 0
        %9746 = vmatpush1.bf16.msra.mxu0 %v9613
        %9747 = vmatprep.subr.bf16.mxu0 0
        %9748 = vmatpush1.bf16.msra.mxu0 %v9614
        %9749 = vmatprep.subr.bf16.mxu0 0
        %9750 = vmatpush1.bf16.msra.mxu0 %v9615
        %9751 = vmatprep.subr.bf16.mxu0 0
        %9752 = vmatpush1.bf16.msra.mxu0 %v9616
        %9753 = vmatprep.subr.bf16.mxu0 0
        %9754 = vmatpush1.bf16.msra.mxu0 %v9617
        %9755 = vmatprep.subr.bf16.mxu0 0
        %9756 = vmatpush1.bf16.msra.mxu0 %v9618
        %9757 = vmatprep.subr.bf16.mxu0 0
        %9758 = vmatpush1.bf16.msra.mxu0 %v9619
        %9759 = vmatprep.subr.bf16.mxu0 0
        %9760 = vmatpush1.bf16.msra.mxu0 %v9620
        %9761 = vmatprep.subr.bf16.mxu0 0
        %9762 = vmatpush1.bf16.msra.mxu0 %v9621
        %9763 = vmatprep.subr.bf16.mxu0 0
        %9764 = vmatpush1.bf16.msra.mxu0 %v9622
        %9765 = vmatprep.subr.bf16.mxu0 0
        %9766 = vmatpush1.bf16.msra.mxu0 %v9623
        %9767 = vmatprep.subr.bf16.mxu0 0
        %9768 = vmatpush1.bf16.msra.mxu0 %v9624
        %9769 = vmatprep.mubr.bf16.mxu0 %v9333
        %9770 = vmatmul.mubr.bf16.gmra.mrb[0].mxu0 %v9319
        %v9771 = vpop.f32.mrb[0].mxu0
        %v9772 = vadd.f32 %v9294, %v9771
        %v9773 = vpop.f32.mrb[0].mxu0
        %v9774 = vpop.f32.mrb[0].mxu0
        %v9775 = vpop.f32.mrb[0].mxu0
        %9776 = vdwg.mxu0
        %9777 = vmatprep.subr.bf16.mxu0 0
        %9778 = vmatpush1.bf16.msra.mxu0 %v9625
        %9779 = vmatprep.subr.bf16.mxu0 0
        %9780 = vmatpush1.bf16.msra.mxu0 %v9626
        %9781 = vmatprep.subr.bf16.mxu0 0
        %9782 = vmatpush1.bf16.msra.mxu0 %v9627
        %9783 = vmatprep.subr.bf16.mxu0 0
        %9784 = vmatpush1.bf16.msra.mxu0 %v9628
        %9785 = vmatprep.subr.bf16.mxu0 0
        %9786 = vmatpush1.bf16.msra.mxu0 %v9629
        %9787 = vmatprep.subr.bf16.mxu0 0
        %9788 = vmatpush1.bf16.msra.mxu0 %v9630
        %9789 = vmatprep.subr.bf16.mxu0 0
        %9790 = vmatpush1.bf16.msra.mxu0 %v9631
        %9791 = vmatprep.subr.bf16.mxu0 0
        %9792 = vmatpush1.bf16.msra.mxu0 %v9632
        %9793 = vmatprep.subr.bf16.mxu0 0
        %9794 = vmatpush1.bf16.msra.mxu0 %v9633
        %9795 = vmatprep.subr.bf16.mxu0 0
        %9796 = vmatpush1.bf16.msra.mxu0 %v9634
        %9797 = vmatprep.subr.bf16.mxu0 0
        %9798 = vmatpush1.bf16.msra.mxu0 %v9635
        %9799 = vmatprep.subr.bf16.mxu0 0
        %9800 = vmatpush1.bf16.msra.mxu0 %v9636
        %9801 = vmatprep.subr.bf16.mxu0 0
        %9802 = vmatpush1.bf16.msra.mxu0 %v9637
        %9803 = vmatprep.subr.bf16.mxu0 0
        %9804 = vmatpush1.bf16.msra.mxu0 %v9638
        %9805 = vmatprep.subr.bf16.mxu0 0
        %9806 = vmatpush1.bf16.msra.mxu0 %v9639
        %9807 = vmatprep.subr.bf16.mxu0 0
        %9808 = vmatpush1.bf16.msra.mxu0 %v9640
        %9809 = vmatprep.mubr.bf16.mxu0 %v9343
        %9810 = vmatmul.mubr.bf16.gmra.mrb[0].mxu0 %v9341
        %v9811 = vpop.f32.mrb[0].mxu0
        %v9812 = vadd.f32 %v9772, %v9811
        %v9813 = vpop.f32.mrb[0].mxu0
        %v9814 = vpop.f32.mrb[0].mxu0
        %v9815 = vpop.f32.mrb[0].mxu0
        %9816 = vdwg.mxu0
        %9817 = vmatprep.subr.bf16.mxu0 0
        %9818 = vmatpush1.bf16.msra.mxu0 %v9641
        %9819 = vmatprep.subr.bf16.mxu0 0
        %9820 = vmatpush1.bf16.msra.mxu0 %v9642
        %9821 = vmatprep.subr.bf16.mxu0 0
        %9822 = vmatpush1.bf16.msra.mxu0 %v9643
        %9823 = vmatprep.subr.bf16.mxu0 0
        %9824 = vmatpush1.bf16.msra.mxu0 %v9644
        %9825 = vmatprep.subr.bf16.mxu0 0
        %9826 = vmatpush1.bf16.msra.mxu0 %v9645
        %9827 = vmatprep.subr.bf16.mxu0 0
        %9828 = vmatpush1.bf16.msra.mxu0 %v9646
        %9829 = vmatprep.subr.bf16.mxu0 0
        %9830 = vmatpush1.bf16.msra.mxu0 %v9647
        %9831 = vmatprep.subr.bf16.mxu0 0
        %9832 = vmatpush1.bf16.msra.mxu0 %v9648
        %9833 = vmatprep.subr.bf16.mxu0 0
        %9834 = vmatpush1.bf16.msra.mxu0 %v9649
        %9835 = vmatprep.subr.bf16.mxu0 0
        %9836 = vmatpush1.bf16.msra.mxu0 %v9650
        %9837 = vmatprep.subr.bf16.mxu0 0
        %9838 = vmatpush1.bf16.msra.mxu0 %v9651
        %9839 = vmatprep.subr.bf16.mxu0 0
        %9840 = vmatpush1.bf16.msra.mxu0 %v9652
        %9841 = vmatprep.subr.bf16.mxu0 0
        %9842 = vmatpush1.bf16.msra.mxu0 %v9653
        %9843 = vmatprep.subr.bf16.mxu0 0
        %9844 = vmatpush1.bf16.msra.mxu0 %v9654
        %9845 = vmatprep.subr.bf16.mxu0 0
        %9846 = vmatpush1.bf16.msra.mxu0 %v9655
        %9847 = vmatprep.subr.bf16.mxu0 0
        %9848 = vmatpush1.bf16.msra.mxu0 %v9656
        %9849 = vmatprep.mubr.bf16.mxu0 %v9340
        %9850 = vmatmul.mubr.bf16.gmra.mrb[0].mxu0 %v9326
        %v9851 = vpop.f32.mrb[0].mxu0
        %v9852 = vadd.f32 %v9812, %v9851
        %v9853 = vpop.f32.mrb[0].mxu0
        %v9854 = vpop.f32.mrb[0].mxu0
        %v9855 = vpop.f32.mrb[0].mxu0
        %9856 = vdwg.mxu0
        %9857 = vmatprep.subr.bf16.mxu0 0
        %9858 = vmatpush1.bf16.msra.mxu0 %v9657
        %9859 = vmatprep.subr.bf16.mxu0 0
        %9860 = vmatpush1.bf16.msra.mxu0 %v9658
        %9861 = vmatprep.subr.bf16.mxu0 0
        %9862 = vmatpush1.bf16.msra.mxu0 %v9659
        %9863 = vmatprep.subr.bf16.mxu0 0
        %9864 = vmatpush1.bf16.msra.mxu0 %v9660
        %9865 = vmatprep.subr.bf16.mxu0 0
        %9866 = vmatpush1.bf16.msra.mxu0 %v9661
        %9867 = vmatprep.subr.bf16.mxu0 0
        %9868 = vmatpush1.bf16.msra.mxu0 %v9662
        %9869 = vmatprep.subr.bf16.mxu0 0
        %9870 = vmatpush1.bf16.msra.mxu0 %v9663
        %9871 = vmatprep.subr.bf16.mxu0 0
        %9872 = vmatpush1.bf16.msra.mxu0 %v9664
        %9873 = vmatprep.subr.bf16.mxu0 0
        %9874 = vmatpush1.bf16.msra.mxu0 %v9665
        %9875 = vmatprep.subr.bf16.mxu0 0
        %9876 = vmatpush1.bf16.msra.mxu0 %v9666
        %9877 = vmatprep.subr.bf16.mxu0 0
        %9878 = vmatpush1.bf16.msra.mxu0 %v9667
        %9879 = vmatprep.subr.bf16.mxu0 0
        %9880 = vmatpush1.bf16.msra.mxu0 %v9668
        %9881 = vmatprep.subr.bf16.mxu0 0
        %9882 = vmatpush1.bf16.msra.mxu0 %v9669
        %9883 = vmatprep.subr.bf16.mxu0 0
        %9884 = vmatpush1.bf16.msra.mxu0 %v9670
        %9885 = vmatprep.subr.bf16.mxu0 0
        %9886 = vmatpush1.bf16.msra.mxu0 %v9671
        %9887 = vmatprep.subr.bf16.mxu0 0
        %9888 = vmatpush1.bf16.msra.mxu0 %v9672
        %9889 = vmatprep.mubr.bf16.mxu0 %v9344
        %9890 = vmatmul.mubr.bf16.gmra.mrb[0].mxu0 %v9342
        %v9891 = vpop.f32.mrb[0].mxu0
        %v9892 = vadd.f32 %v9852, %v9891
        %v9893 = vpop.f32.mrb[0].mxu0
        %v9894 = vpop.f32.mrb[0].mxu0
        %v9895 = vpop.f32.mrb[0].mxu0
        %9896 = vdwg.mxu0
        %vm9897 = vcmask 73728
        %9898 = vst.msk [vmem:[%s324] sm:$0x1] %vm9897, %v9892
        %s9899 = sand.u32 %s225, 1
        %s9900 = scalar_lea.sflag [#allocation8], %s9899
        %s9901 = sand.u32 %s225, 1
        %s9902 = scalar_lea.vmem [#allocation7], %s9901
        // Predicated region
        $region57: #{rxq_forward.1} parent=55 // pred_check
          %p9903 = pneg %p235
        $region58: #{rxq_forward.1} parent=55 // pred_check_branch
          %9905 = sbr.rel (%p9903) target = $region60
        $region59: #{rxq_forward.1} parent=55 // pred_region
          %s9907 = ssub.s32 16, 16
          %9908 = vsyncadd %s9900, %s9907
          %s9909 = smul.addr %s23, 16
          %s9910 = scalar_lea.hbm %s9, %s9909
          %s9912 = sshll.u32 %s9902, 4
          %s9913 = int_to_ptr.vmem [resolvable:$true] %s9912
          %9915 = dma.vmem_to_hbm [thread:$0]  %s9913, 16, %s9910, %s9900
        $region60: #{rxq_forward.1} parent=55 // pred_fallthru
          _
      $region56: #{rxq_forward.1} parent=5 // pred_fallthru
        _
      %p9916 = scmp.le.s32.totalorder 2, %s18
      // Predicated region
      $region61: #{rxq_forward.1} parent=5 // pred_check
        %p9917 = pneg %p9916
      $region62: #{rxq_forward.1} parent=5 // pred_check_branch
        %9919 = sbr.rel (%p9917) target = $region64
      $region63: #{rxq_forward.1} parent=5 // pred_region
        %s9920 = ssub.s32 %s18, 2
        // Predicated region
        $region65: #{rxq_forward.1} parent=63 // pred_check
          %p9921 = pneg %p241
        $region66: #{rxq_forward.1} parent=63 // pred_check_branch
          %9923 = sbr.rel (%p9921) target = $region68
        $region67: #{rxq_forward.1} parent=63 // pred_region
          %s9924 = sand.u32 %s226, 1
          %s9925 = scalar_lea.sflag [#allocation8], %s9924
          %s9926 = sand.u32 %s226, 1
          %s9927 = scalar_lea.vmem [#allocation7], %s9926
          %9928 = dma.done %s9925, 16
        $region68: #{rxq_forward.1} parent=63 // pred_fallthru
          _
      $region64: #{rxq_forward.1} parent=5 // pred_fallthru
        _
    $region6: #{rxq_forward.1} parent=1 // loop_footer
      %s22 = sadd.s32 1, %s18
    $region7: #{rxq_forward.1} parent=1 // loop_footer_branch
      %17 = sbr.rel target = $region3
    $region8: #{rxq_forward.1} parent=1 // loop_exit
      _
    %9929 = vsyncpa [#allocation8], 1
    %s9930 = scalar_lea.sflag [#allocation8], 1
    %9931 = vsyncpa %s9930, 1

</llo_original>
